<compile_context>
chip_gen: v6e
topology: v6e:2x2x1
jax: 0.10.0
libtpu: 0.0.40
codegen_flags: <defaults>
</compile_context>

<pallas_src>
import functools

import jax
import jax.numpy as jnp
from jax import lax
from jax.experimental import pallas as pl
from jax.experimental.pallas import tpu as pltpu


# ------------------------------ LSTM cell (gate-padded) ------------------------------

def _lstm_cell(pre, h, c, whhT, Hp):
    """pre: (Bp, 4*Hp) pre-activation (x@Wih^T + b already folded in).
    Gate order i, f, g, o (PyTorch); each gate occupies a 128-lane-aligned Hp slab."""
    g = pre + jnp.dot(h, whhT, preferred_element_type=jnp.float32)
    i = jax.nn.sigmoid(g[:, 0 * Hp:1 * Hp])
    f = jax.nn.sigmoid(g[:, 1 * Hp:2 * Hp])
    gg = jnp.tanh(g[:, 2 * Hp:3 * Hp])
    o = jax.nn.sigmoid(g[:, 3 * Hp:4 * Hp])
    c_new = f * c + i * gg
    h_new = o * jnp.tanh(c_new)
    return h_new, c_new


# ----------------------- input projection (both directions at once) -----------------------

def input_proj_kernel(x_ref, w_ref, b_ref, pre_f_ref, pre_b_ref):
    K, Bp, E = x_ref.shape
    G = pre_f_ref.shape[-1]                      # 4 * Hp
    x2 = x_ref[...].reshape(K * Bp, E)
    pre = jnp.dot(x2, w_ref[...], preferred_element_type=jnp.float32) + b_ref[...]
    pre_f_ref[...] = pre[:, :G].reshape(K, Bp, G)
    pre_b_ref[...] = pre[:, G:].reshape(K, Bp, G)


def input_projection(x_tm, wih_cat_T, b_cat, *, K):
    """x_tm: (T, Bp, E).  wih_cat_T: (E, 8*Hp) = [fwd gates | bwd gates], biases folded.
    Returns pre_f, pre_b each (T, Bp, 4*Hp)."""
    T, Bp, E = x_tm.shape
    G2 = wih_cat_T.shape[1]
    G = G2 // 2
    nc = T // K
    return pl.pallas_call(
        input_proj_kernel,
        out_shape=[jax.ShapeDtypeStruct((T, Bp, G), jnp.float32),
                   jax.ShapeDtypeStruct((T, Bp, G), jnp.float32)],
        grid=(nc,),
        in_specs=[
            pl.BlockSpec((K, Bp, E), lambda c: (c, 0, 0)),
            pl.BlockSpec((E, G2), lambda c: (0, 0)),
            pl.BlockSpec((1, G2), lambda c: (0, 0)),
        ],
        out_specs=[pl.BlockSpec((K, Bp, G), lambda c: (c, 0, 0)),
                   pl.BlockSpec((K, Bp, G), lambda c: (c, 0, 0))],
        compiler_params=pltpu.CompilerParams(dimension_semantics=("parallel",)),
    )(x_tm, wih_cat_T, b_cat)


# -------------------- fused bidirectional recurrence + classification head --------------------

def bilstm_head_kernel(pre_f_ref, pre_b_ref, whh_f_ref, whh_b_ref,
                       w1T_ref, b1_ref, alpha_ref, w2T_ref, b2_ref,
                       out_ref,
                       hf, cf, hb, cb, hb1,
                       *, batch):
    ci = pl.program_id(0)
    nc = pl.num_programs(0)
    K = pre_f_ref.shape[0]
    Hp = hf.shape[-1]

    @pl.when(ci == 0)
    def _():
        # h0 = None -> zero initial hidden / cell state for both directions.
        hf[...] = jnp.zeros_like(hf)
        cf[...] = jnp.zeros_like(cf)
        hb[...] = jnp.zeros_like(hb)
        cb[...] = jnp.zeros_like(cb)
        # Backward output at original time T-1 == one backward step on x[T-1] from zero
        # state (grid step 0 holds the *last* time-chunk for the backward direction and
        # its first processed timestep is the chunk's last row).  This is the only
        # backward value the module consumes (x[:, -1, :]).
        z = jnp.zeros(hb.shape, jnp.float32)
        h1st, _ = _lstm_cell(pre_b_ref[K - 1], z, z, whh_b_ref[...], Hp)
        hb1[...] = h1st

    def step(k, carry):
        # forward direction: original time ci*K + k
        h_new, c_new = _lstm_cell(pre_f_ref[k], hf[...], cf[...], whh_f_ref[...], Hp)
        hf[...] = h_new
        cf[...] = c_new
        # backward direction: original time (nc-1-ci)*K + (K-1-k), strictly decreasing.
        # (Full backward recurrence mirrors nn.LSTM; its end state corresponds to the
        #  returned-but-unused `h` in the PyTorch forward.)
        h_new, c_new = _lstm_cell(pre_b_ref[K - 1 - k], hb[...], cb[...], whh_b_ref[...], Hp)
        hb[...] = h_new
        cb[...] = c_new
        return carry

    lax.fori_loop(0, K, step, 0, unroll=True)

    @pl.when(ci == nc - 1)
    def _():
        # x[:, -1, :] of the bi-LSTM = [forward hidden after the whole sequence,
        #                               backward hidden after one step on x[T-1]]
        last = jnp.concatenate([hf[...], hb1[...]], axis=-1)          # (Bp, 2*Hp)
        # Linear(2H, 50)
        h1 = jnp.dot(last, w1T_ref[...], preferred_element_type=jnp.float32) + b1_ref[...]
        # PReLU, single shared slope (scalar lives in SMEM)
        a = alpha_ref[0]
        h1 = jnp.where(h1 >= 0, h1, a * h1)
        # BatchNorm1d in training mode: batch mean / biased variance over the REAL
        # batch rows only (padded sublane rows are masked out), gamma=1, beta=0.
        row = lax.broadcasted_iota(jnp.int32, h1.shape, 0)
        mask = (row < batch).astype(jnp.float32)
        mu = jnp.sum(h1 * mask, axis=0, keepdims=True) / batch
        var = jnp.sum(((h1 - mu) * mask) ** 2, axis=0, keepdims=True) / batch
        hn = (h1 - mu) * lax.rsqrt(var + 1e-5)
        # Linear(50, output_size)
        out_ref[...] = jnp.dot(hn, w2T_ref[...], preferred_element_type=jnp.float32) + b2_ref[...]


def bilstm_head(pre_f, pre_b, kp, *, batch, K):
    T, Bp, G = pre_f.shape
    Hp = G // 4
    nc = T // K
    hid2 = kp["w1T"].shape[1]
    out_size = kp["w2T"].shape[1]
    kern = functools.partial(bilstm_head_kernel, batch=batch)
    return pl.pallas_call(
        kern,
        out_shape=jax.ShapeDtypeStruct((Bp, out_size), jnp.float32),
        grid=(nc,),
        in_specs=[
            pl.BlockSpec((K, Bp, G), lambda c: (c, 0, 0)),                 # pre_f (fwd order)
            pl.BlockSpec((K, Bp, G), lambda c, nc=nc: (nc - 1 - c, 0, 0)), # pre_b (reversed)
            pl.BlockSpec((Hp, G), lambda c: (0, 0)),                       # W_hh_f^T
            pl.BlockSpec((Hp, G), lambda c: (0, 0)),                       # W_hh_b^T
            pl.BlockSpec((2 * Hp, hid2), lambda c: (0, 0)),                # head W1^T
            pl.BlockSpec((1, hid2), lambda c: (0, 0)),                     # head b1
            pl.BlockSpec(memory_space=pltpu.MemorySpace.SMEM),             # PReLU slope
            pl.BlockSpec((hid2, out_size), lambda c: (0, 0)),              # head W2^T
            pl.BlockSpec((1, out_size), lambda c: (0, 0)),                 # head b2
        ],
        # single (Bp, out) result, resident across the grid, written only at the last chunk
        out_specs=pl.BlockSpec((Bp, out_size), lambda c: (0, 0)),
        scratch_shapes=[pltpu.VMEM((Bp, Hp), jnp.float32)] * 5,            # hf, cf, hb, cb, hb1
        compiler_params=pltpu.CompilerParams(
            dimension_semantics=("arbitrary",)),                           # sequential in time
    )(pre_f, pre_b, kp["whh_f_T"], kp["whh_b_T"],
      kp["w1T"], kp["b1"], kp["prelu_a"], kp["w2T"], kp["b2"])


# -------------------------------------- parameters --------------------------------------

def init_params(key, vocab, E, H, hid2, out_size):
    """PyTorch-layout parameters (W_ih: (4H,E), W_hh: (4H,H), Linear W: (out,in))."""
    ks = jax.random.split(key, 14)
    u = lambda k, shape, bound: jax.random.uniform(k, shape, jnp.float32, -bound, bound)
    kH = 1.0 / float(H) ** 0.5
    k1 = 1.0 / float(2 * H) ** 0.5
    k2 = 1.0 / float(hid2) ** 0.5
    return {
        # TODO(synk): pretrained GoogleNews word2vec embedding weights replaced by random init.
        "emb": jax.random.normal(ks[0], (vocab, E), jnp.float32) * 0.1,
        "w_ih_f": u(ks[1], (4 * H, E), kH), "w_hh_f": u(ks[2], (4 * H, H), kH),
        "b_ih_f": u(ks[3], (4 * H,), kH), "b_hh_f": u(ks[4], (4 * H,), kH),
        "w_ih_b": u(ks[5], (4 * H, E), kH), "w_hh_b": u(ks[6], (4 * H, H), kH),
        "b_ih_b": u(ks[7], (4 * H,), kH), "b_hh_b": u(ks[8], (4 * H,), kH),
        "w1": u(ks[9], (hid2, 2 * H), k1), "b1": u(ks[10], (hid2,), k1),
        "prelu_a": jnp.full((1,), 0.25, jnp.float32),
        "w2": u(ks[11], (out_size, hid2), k2), "b2": u(ks[12], (out_size,), k2),
    }


def _pad_gate_cols(wT, H, Hp):
    """(rows, 4H) -> (rows, 4Hp): zero-pad each gate's columns so every gate slab is
    128-lane aligned inside the kernel."""
    rows = wT.shape[0]
    w4 = wT.reshape(rows, 4, H)
    w4 = jnp.pad(w4, ((0, 0), (0, 0), (0, Hp - H)))
    return w4.reshape(rows, 4 * Hp)


def prep_params(p, H, Hp):
    """Pack / pad PyTorch-layout weights for the kernels.  Padded rows/cols are zero,
    which provably keeps the padded hidden lanes at exactly 0 through the recurrence."""
    hid2 = p["w1"].shape[0]
    # combined input projection (fwd | bwd), biases b_ih + b_hh folded in
    wih = jnp.concatenate([_pad_gate_cols(p["w_ih_f"].T, H, Hp),
                           _pad_gate_cols(p["w_ih_b"].T, H, Hp)], axis=1)        # (E, 8Hp)
    b = jnp.concatenate([_pad_gate_cols((p["b_ih_f"] + p["b_hh_f"])[None, :], H, Hp),
                         _pad_gate_cols((p["b_ih_b"] + p["b_hh_b"])[None, :], H, Hp)],
                        axis=1)                                                  # (1, 8Hp)
    # recurrent weights: pad gate columns and hidden-input rows
    whh_f = jnp.pad(_pad_gate_cols(p["w_hh_f"].T, H, Hp), ((0, Hp - H), (0, 0)))  # (Hp, 4Hp)
    whh_b = jnp.pad(_pad_gate_cols(p["w_hh_b"].T, H, Hp), ((0, Hp - H), (0, 0)))
    # head: Linear(2H, hid2) weight transposed and row-padded to match the padded
    # [forward(Hp) | backward(Hp)] feature layout (zero rows on pad lanes -> exact).
    w1T = p["w1"].T                                                               # (2H, hid2)
    w1T_pad = jnp.zeros((2 * Hp, hid2), jnp.float32)
    w1T_pad = w1T_pad.at[:H].set(w1T[:H]).at[Hp:Hp + H].set(w1T[H:])
    return {
        "emb": p["emb"],
        "wih_cat_T": wih, "b_cat": b,
        "whh_f_T": whh_f, "whh_b_T": whh_b,
        "w1T": w1T_pad, "b1": p["b1"][None, :],
        "prelu_a": p["prelu_a"],
        "w2T": p["w2"].T, "b2": p["b2"][None, :],
    }


# -------------------------------------- forward --------------------------------------

def rnn_forward(tokens, kp, *, K):
    B, T = tokens.shape
    Bp = ((B + 7) // 8) * 8
    # pad the batch to the 8-sublane granule; padded rows are masked out of the
    # BatchNorm statistics and sliced off the final output.
    tok = jnp.pad(tokens, ((0, Bp - B), (0, 0)))
    emb = jnp.take(kp["emb"], tok, axis=0)            # (Bp, T, E) gather (XLA glue)
    x_tm = jnp.transpose(emb, (1, 0, 2))              # (T, Bp, E) time-major
    pre_f, pre_b = input_projection(x_tm, kp["wih_cat_T"], kp["b_cat"], K=K)
    y = bilstm_head(pre_f, pre_b, kp, batch=B, K=K)   # (Bp, out_size)
    return y[:B]


if __name__ == "__main__":
    VOCAB = 1000      # stand-in for len(TEXT.vocab.stoi) + 1
    E = 128           # embedding_dim (small stand-in for 300)
    H = 64            # hidden_size (small stand-in for 100)
    HID2 = 50
    OUT = 4           # output_size=4 as in the snippet
    B, T = 4, 16

    Hp = ((H + 127) // 128) * 128                     # gate lanes padded to 128 multiple
    # time-chunk size: amortizes per-grid-step overhead; keep K small enough that the
    # double-buffered (K, Bp, 4Hp) pre-activation blocks fit comfortably in scoped VMEM.
    K = next(k for k in (8, 4, 2, 1) if T % k == 0)

    key = jax.random.PRNGKey(0)
    k_tok, k_par = jax.random.split(key)
    tokens = jax.random.randint(k_tok, (B, T), 0, VOCAB, dtype=jnp.int32)
    params = init_params(k_par, VOCAB, E, H, HID2, OUT)
    kparams = prep_params(params, H, Hp)

    fwd = jax.jit(functools.partial(rnn_forward, K=K))
    y = fwd(tokens, kparams)
    jax.block_until_ready(y)
    assert y.shape == (B, OUT) and y.dtype == jnp.float32
    assert bool(jnp.all(jnp.isfinite(y)))
    print("KERNEL_OK")
</pallas_src>

<mosaic_0001>
module attributes {stable_mosaic.version = 11 : i64} {
  func.func @input_proj_kernel(%arg0: i32, %arg1: memref<8x8x128xf32, #tpu.memory_space<vmem>>, %arg2: memref<128x1024xf32, #tpu.memory_space<vmem>>, %arg3: memref<1x1024xf32, #tpu.memory_space<vmem>>, %arg4: memref<8x8x512xf32, #tpu.memory_space<vmem>>, %arg5: memref<8x8x512xf32, #tpu.memory_space<vmem>>) attributes {dimension_semantics = [#tpu.dimension_semantics<parallel>], iteration_bounds = array<i64: 2>, scalar_prefetch = 0 : i64, scratch_operands = 0 : i64, tpu.core_type = #tpu.core_type<tc>, window_params = [{transform_indices = @transform_0, window_bounds = array<i64: 8, 8, 128>}, {pipeline_mode = #tpu.pipeline_mode<synchronous>, transform_indices = @transform_1, window_bounds = array<i64: 128, 1024>}, {pipeline_mode = #tpu.pipeline_mode<synchronous>, transform_indices = @transform_2, window_bounds = array<i64: 1, 1024>}, {transform_indices = @transform_3, window_bounds = array<i64: 8, 8, 512>}, {transform_indices = @transform_4, window_bounds = array<i64: 8, 8, 512>}]} {
    %c0 = arith.constant 0 : index
    %c0_0 = arith.constant 0 : index
    %c0_1 = arith.constant 0 : index
    %0 = vector.load %arg1[%c0, %c0_0, %c0_1] : memref<8x8x128xf32, #tpu.memory_space<vmem>>, vector<8x8x128xf32>
    %1 = vector.shape_cast %0 : vector<8x8x128xf32> to vector<64x128xf32>
    %c0_2 = arith.constant 0 : index
    %c0_3 = arith.constant 0 : index
    %2 = vector.load %arg2[%c0_2, %c0_3] : memref<128x1024xf32, #tpu.memory_space<vmem>>, vector<128x1024xf32>
    %cst = arith.constant dense<0.000000e+00> : vector<64x1024xf32>
    %3 = tpu.matmul %1, %2, %cst {dimension_numbers = #tpu.dot_dimension_numbers<[1], [0], [0], [1], [0, 0, 1, 1], [], []>} : vector<64x128xf32>, vector<128x1024xf32>, vector<64x1024xf32> -> vector<64x1024xf32>
    %c0_4 = arith.constant 0 : index
    %c0_5 = arith.constant 0 : index
    %4 = vector.load %arg3[%c0_4, %c0_5] : memref<1x1024xf32, #tpu.memory_space<vmem>>, vector<1x1024xf32>
    %5 = vector.broadcast %4 : vector<1x1024xf32> to vector<64x1024xf32>
    %6 = arith.addf %3, %5 : vector<64x1024xf32>
    %7 = vector.extract_strided_slice %6 {offsets = [0, 0], sizes = [64, 512], strides = [1, 1]} : vector<64x1024xf32> to vector<64x512xf32>
    %8 = vector.shape_cast %7 : vector<64x512xf32> to vector<8x8x512xf32>
    %c0_6 = arith.constant 0 : index
    %c0_7 = arith.constant 0 : index
    %c0_8 = arith.constant 0 : index
    %9 = vector.load %arg4[%c0_6, %c0_7, %c0_8] : memref<8x8x512xf32, #tpu.memory_space<vmem>>, vector<8x8x512xf32>
    tpu.vector_store %arg4[%c0_6, %c0_7, %c0_8], %8 {strides = array<i32>} : memref<8x8x512xf32, #tpu.memory_space<vmem>>, vector<8x8x512xf32>,
    %10 = vector.extract_strided_slice %6 {offsets = [0, 512], sizes = [64, 512], strides = [1, 1]} : vector<64x1024xf32> to vector<64x512xf32>
    %11 = vector.shape_cast %10 : vector<64x512xf32> to vector<8x8x512xf32>
    %c0_9 = arith.constant 0 : index
    %c0_10 = arith.constant 0 : index
    %c0_11 = arith.constant 0 : index
    %12 = vector.load %arg5[%c0_9, %c0_10, %c0_11] : memref<8x8x512xf32, #tpu.memory_space<vmem>>, vector<8x8x512xf32>
    tpu.vector_store %arg5[%c0_9, %c0_10, %c0_11], %11 {strides = array<i32>} : memref<8x8x512xf32, #tpu.memory_space<vmem>>, vector<8x8x512xf32>,
    return
  }
  func.func @transform_0(%arg0: i32) -> (i32, i32, i32) {
    %c0_i32 = arith.constant 0 : i32
    %c0_i32_0 = arith.constant 0 : i32
    %c0_i32_1 = arith.constant 0 : i32
    return %arg0, %c0_i32, %c0_i32_0 : i32, i32, i32
  }
  func.func @transform_1(%arg0: i32) -> (i32, i32) {
    %c0_i32 = arith.constant 0 : i32
    %c0_i32_0 = arith.constant 0 : i32
    %c0_i32_1 = arith.constant 0 : i32
    return %c0_i32, %c0_i32_0 : i32, i32
  }
  func.func @transform_2(%arg0: i32) -> (i32, i32) {
    %c0_i32 = arith.constant 0 : i32
    %c0_i32_0 = arith.constant 0 : i32
    %c0_i32_1 = arith.constant 0 : i32
    return %c0_i32, %c0_i32_0 : i32, i32
  }
  func.func @transform_3(%arg0: i32) -> (i32, i32, i32) {
    %c0_i32 = arith.constant 0 : i32
    %c0_i32_0 = arith.constant 0 : i32
    %c0_i32_1 = arith.constant 0 : i32
    return %arg0, %c0_i32, %c0_i32_0 : i32, i32, i32
  }
  func.func @transform_4(%arg0: i32) -> (i32, i32, i32) {
    %c0_i32 = arith.constant 0 : i32
    %c0_i32_0 = arith.constant 0 : i32
    %c0_i32_1 = arith.constant 0 : i32
    return %arg0, %c0_i32, %c0_i32_0 : i32, i32, i32
  }
}

module attributes {stable_mosaic.version = 11 : i64} {
  func.func @bilstm_head_kernel(%arg0: i32, %arg1: memref<8x8x512xf32, #tpu.memory_space<vmem>>, %arg2: memref<8x8x512xf32, #tpu.memory_space<vmem>>, %arg3: memref<128x512xf32, #tpu.memory_space<vmem>>, %arg4: memref<128x512xf32, #tpu.memory_space<vmem>>, %arg5: memref<256x50xf32, #tpu.memory_space<vmem>>, %arg6: memref<1x50xf32, #tpu.memory_space<vmem>>, %arg7: memref<1xf32, #tpu.memory_space<smem>>, %arg8: memref<50x4xf32, #tpu.memory_space<vmem>>, %arg9: memref<1x4xf32, #tpu.memory_space<vmem>>, %arg10: memref<8x4xf32, #tpu.memory_space<vmem>>, %arg11: memref<8x128xf32, #tpu.memory_space<vmem>>, %arg12: memref<8x128xf32, #tpu.memory_space<vmem>>, %arg13: memref<8x128xf32, #tpu.memory_space<vmem>>, %arg14: memref<8x128xf32, #tpu.memory_space<vmem>>, %arg15: memref<8x128xf32, #tpu.memory_space<vmem>>) attributes {dimension_semantics = [#tpu.dimension_semantics<arbitrary>], iteration_bounds = array<i64: 2>, scalar_prefetch = 0 : i64, scratch_operands = 5 : i64, tpu.core_type = #tpu.core_type<tc>, window_params = [{transform_indices = @transform_0, window_bounds = array<i64: 8, 8, 512>}, {transform_indices = @transform_1, window_bounds = array<i64: 8, 8, 512>}, {pipeline_mode = #tpu.pipeline_mode<synchronous>, transform_indices = @transform_2, window_bounds = array<i64: 128, 512>}, {pipeline_mode = #tpu.pipeline_mode<synchronous>, transform_indices = @transform_3, window_bounds = array<i64: 128, 512>}, {pipeline_mode = #tpu.pipeline_mode<synchronous>, transform_indices = @transform_4, window_bounds = array<i64: 256, 50>}, {pipeline_mode = #tpu.pipeline_mode<synchronous>, transform_indices = @transform_5, window_bounds = array<i64: 1, 50>}, {transform_indices = @transform_6, window_bounds = array<i64: 1>}, {pipeline_mode = #tpu.pipeline_mode<synchronous>, transform_indices = @transform_7, window_bounds = array<i64: 50, 4>}, {pipeline_mode = #tpu.pipeline_mode<synchronous>, transform_indices = @transform_8, window_bounds = array<i64: 1, 4>}, {pipeline_mode = #tpu.pipeline_mode<synchronous>, transform_indices = @transform_9, window_bounds = array<i64: 8, 4>}]} {
    %c0_i32 = arith.constant 0 : i32
    %0 = arith.cmpi eq, %arg0, %c0_i32 : i32
    %1 = arith.extui %0 : i1 to i32
    %c0_i32_0 = arith.constant 0 : i32
    %2 = arith.cmpi ne, %1, %c0_i32_0 : i32
    scf.if %2 {
      %cst_266 = arith.constant 0.000000e+00 : f32
      %574 = vector.broadcast %cst_266 : f32 to vector<8x128xf32>
      %c0_267 = arith.constant 0 : index
      %c0_268 = arith.constant 0 : index
      %575 = vector.load %arg11[%c0_267, %c0_268] : memref<8x128xf32, #tpu.memory_space<vmem>>, vector<8x128xf32>
      tpu.vector_store %arg11[%c0_267, %c0_268], %574 {strides = array<i32>} : memref<8x128xf32, #tpu.memory_space<vmem>>, vector<8x128xf32>,
      %cst_269 = arith.constant 0.000000e+00 : f32
      %576 = vector.broadcast %cst_269 : f32 to vector<8x128xf32>
      %c0_270 = arith.constant 0 : index
      %c0_271 = arith.constant 0 : index
      %577 = vector.load %arg12[%c0_270, %c0_271] : memref<8x128xf32, #tpu.memory_space<vmem>>, vector<8x128xf32>
      tpu.vector_store %arg12[%c0_270, %c0_271], %576 {strides = array<i32>} : memref<8x128xf32, #tpu.memory_space<vmem>>, vector<8x128xf32>,
      %cst_272 = arith.constant 0.000000e+00 : f32
      %578 = vector.broadcast %cst_272 : f32 to vector<8x128xf32>
      %c0_273 = arith.constant 0 : index
      %c0_274 = arith.constant 0 : index
      %579 = vector.load %arg13[%c0_273, %c0_274] : memref<8x128xf32, #tpu.memory_space<vmem>>, vector<8x128xf32>
      tpu.vector_store %arg13[%c0_273, %c0_274], %578 {strides = array<i32>} : memref<8x128xf32, #tpu.memory_space<vmem>>, vector<8x128xf32>,
      %cst_275 = arith.constant 0.000000e+00 : f32
      %580 = vector.broadcast %cst_275 : f32 to vector<8x128xf32>
      %c0_276 = arith.constant 0 : index
      %c0_277 = arith.constant 0 : index
      %581 = vector.load %arg14[%c0_276, %c0_277] : memref<8x128xf32, #tpu.memory_space<vmem>>, vector<8x128xf32>
      tpu.vector_store %arg14[%c0_276, %c0_277], %580 {strides = array<i32>} : memref<8x128xf32, #tpu.memory_space<vmem>>, vector<8x128xf32>,
      %cst_278 = arith.constant 0.000000e+00 : f32
      %582 = vector.broadcast %cst_278 : f32 to vector<8x128xf32>
      %c7 = arith.constant 7 : index
      %c0_279 = arith.constant 0 : index
      %c0_280 = arith.constant 0 : index
      %583 = vector.load %arg2[%c7, %c0_279, %c0_280] : memref<8x8x512xf32, #tpu.memory_space<vmem>>, vector<1x8x512xf32>
      %584 = vector.shape_cast %583 : vector<1x8x512xf32> to vector<8x512xf32>
      %c0_281 = arith.constant 0 : index
      %c0_282 = arith.constant 0 : index
      %585 = vector.load %arg4[%c0_281, %c0_282] : memref<128x512xf32, #tpu.memory_space<vmem>>, vector<128x512xf32>
      %cst_283 = arith.constant dense<0.000000e+00> : vector<8x512xf32>
      %586 = tpu.matmul %582, %585, %cst_283 {dimension_numbers = #tpu.dot_dimension_numbers<[1], [0], [0], [1], [0, 0, 1, 1], [], []>} : vector<8x128xf32>, vector<128x512xf32>, vector<8x512xf32> -> vector<8x512xf32>
      %587 = arith.addf %584, %586 : vector<8x512xf32>
      %588 = vector.extract_strided_slice %587 {offsets = [0, 0], sizes = [8, 128], strides = [1, 1]} : vector<8x512xf32> to vector<8x128xf32>
      %589 = arith.negf %588 : vector<8x128xf32>
      %590 = math.exp %589 : vector<8x128xf32>
      %cst_284 = arith.constant 1.000000e+00 : f32
      %591 = vector.broadcast %cst_284 : f32 to vector<8x128xf32>
      %592 = arith.addf %591, %590 : vector<8x128xf32>
      %593 = arith.divf %591, %592 : vector<8x128xf32>
      %594 = vector.extract_strided_slice %587 {offsets = [0, 128], sizes = [8, 128], strides = [1, 1]} : vector<8x512xf32> to vector<8x128xf32>
      %595 = arith.negf %594 : vector<8x128xf32>
      %596 = math.exp %595 : vector<8x128xf32>
      %cst_285 = arith.constant 1.000000e+00 : f32
      %597 = vector.broadcast %cst_285 : f32 to vector<8x128xf32>
      %598 = arith.addf %597, %596 : vector<8x128xf32>
      %599 = arith.divf %597, %598 : vector<8x128xf32>
      %600 = vector.extract_strided_slice %587 {offsets = [0, 256], sizes = [8, 128], strides = [1, 1]} : vector<8x512xf32> to vector<8x128xf32>
      %601 = math.tanh %600 : vector<8x128xf32>
      %602 = vector.extract_strided_slice %587 {offsets = [0, 384], sizes = [8, 128], strides = [1, 1]} : vector<8x512xf32> to vector<8x128xf32>
      %603 = arith.negf %602 : vector<8x128xf32>
      %604 = math.exp %603 : vector<8x128xf32>
      %cst_286 = arith.constant 1.000000e+00 : f32
      %605 = vector.broadcast %cst_286 : f32 to vector<8x128xf32>
      %606 = arith.addf %605, %604 : vector<8x128xf32>
      %607 = arith.divf %605, %606 : vector<8x128xf32>
      %608 = arith.mulf %599, %582 : vector<8x128xf32>
      %609 = arith.mulf %593, %601 : vector<8x128xf32>
      %610 = arith.addf %608, %609 : vector<8x128xf32>
      %611 = math.tanh %610 : vector<8x128xf32>
      %612 = arith.mulf %607, %611 : vector<8x128xf32>
      %c0_287 = arith.constant 0 : index
      %c0_288 = arith.constant 0 : index
      %613 = vector.load %arg15[%c0_287, %c0_288] : memref<8x128xf32, #tpu.memory_space<vmem>>, vector<8x128xf32>
      tpu.vector_store %arg15[%c0_287, %c0_288], %612 {strides = array<i32>} : memref<8x128xf32, #tpu.memory_space<vmem>>, vector<8x128xf32>,
    } else {
    }
    %c0_i32_1 = arith.constant 0 : i32
    %3 = arith.index_cast %c0_i32_1 : i32 to index
    %c0 = arith.constant 0 : index
    %c0_2 = arith.constant 0 : index
    %4 = vector.load %arg1[%3, %c0, %c0_2] : memref<8x8x512xf32, #tpu.memory_space<vmem>>, vector<1x8x512xf32>
    %5 = vector.shape_cast %4 : vector<1x8x512xf32> to vector<8x512xf32>
    %c0_3 = arith.constant 0 : index
    %c0_4 = arith.constant 0 : index
    %6 = vector.load %arg11[%c0_3, %c0_4] : memref<8x128xf32, #tpu.memory_space<vmem>>, vector<8x128xf32>
    %c0_5 = arith.constant 0 : index
    %c0_6 = arith.constant 0 : index
    %7 = vector.load %arg12[%c0_5, %c0_6] : memref<8x128xf32, #tpu.memory_space<vmem>>, vector<8x128xf32>
    %c0_7 = arith.constant 0 : index
    %c0_8 = arith.constant 0 : index
    %8 = vector.load %arg3[%c0_7, %c0_8] : memref<128x512xf32, #tpu.memory_space<vmem>>, vector<128x512xf32>
    %cst = arith.constant dense<0.000000e+00> : vector<8x512xf32>
    %9 = tpu.matmul %6, %8, %cst {dimension_numbers = #tpu.dot_dimension_numbers<[1], [0], [0], [1], [0, 0, 1, 1], [], []>} : vector<8x128xf32>, vector<128x512xf32>, vector<8x512xf32> -> vector<8x512xf32>
    %10 = arith.addf %5, %9 : vector<8x512xf32>
    %11 = vector.extract_strided_slice %10 {offsets = [0, 0], sizes = [8, 128], strides = [1, 1]} : vector<8x512xf32> to vector<8x128xf32>
    %12 = arith.negf %11 : vector<8x128xf32>
    %13 = math.exp %12 : vector<8x128xf32>
    %cst_9 = arith.constant 1.000000e+00 : f32
    %14 = vector.broadcast %cst_9 : f32 to vector<8x128xf32>
    %15 = arith.addf %14, %13 : vector<8x128xf32>
    %16 = arith.divf %14, %15 : vector<8x128xf32>
    %17 = vector.extract_strided_slice %10 {offsets = [0, 128], sizes = [8, 128], strides = [1, 1]} : vector<8x512xf32> to vector<8x128xf32>
    %18 = arith.negf %17 : vector<8x128xf32>
    %19 = math.exp %18 : vector<8x128xf32>
    %cst_10 = arith.constant 1.000000e+00 : f32
    %20 = vector.broadcast %cst_10 : f32 to vector<8x128xf32>
    %21 = arith.addf %20, %19 : vector<8x128xf32>
    %22 = arith.divf %20, %21 : vector<8x128xf32>
    %23 = vector.extract_strided_slice %10 {offsets = [0, 256], sizes = [8, 128], strides = [1, 1]} : vector<8x512xf32> to vector<8x128xf32>
    %24 = math.tanh %23 : vector<8x128xf32>
    %25 = vector.extract_strided_slice %10 {offsets = [0, 384], sizes = [8, 128], strides = [1, 1]} : vector<8x512xf32> to vector<8x128xf32>
    %26 = arith.negf %25 : vector<8x128xf32>
    %27 = math.exp %26 : vector<8x128xf32>
    %cst_11 = arith.constant 1.000000e+00 : f32
    %28 = vector.broadcast %cst_11 : f32 to vector<8x128xf32>
    %29 = arith.addf %28, %27 : vector<8x128xf32>
    %30 = arith.divf %28, %29 : vector<8x128xf32>
    %31 = arith.mulf %22, %7 : vector<8x128xf32>
    %32 = arith.mulf %16, %24 : vector<8x128xf32>
    %33 = arith.addf %31, %32 : vector<8x128xf32>
    %34 = math.tanh %33 : vector<8x128xf32>
    %35 = arith.mulf %30, %34 : vector<8x128xf32>
    %c0_12 = arith.constant 0 : index
    %c0_13 = arith.constant 0 : index
    %36 = vector.load %arg11[%c0_12, %c0_13] : memref<8x128xf32, #tpu.memory_space<vmem>>, vector<8x128xf32>
    tpu.vector_store %arg11[%c0_12, %c0_13], %35 {strides = array<i32>} : memref<8x128xf32, #tpu.memory_space<vmem>>, vector<8x128xf32>,
    %c0_14 = arith.constant 0 : index
    %c0_15 = arith.constant 0 : index
    %37 = vector.load %arg12[%c0_14, %c0_15] : memref<8x128xf32, #tpu.memory_space<vmem>>, vector<8x128xf32>
    tpu.vector_store %arg12[%c0_14, %c0_15], %33 {strides = array<i32>} : memref<8x128xf32, #tpu.memory_space<vmem>>, vector<8x128xf32>,
    %c7_i32 = arith.constant 7 : i32
    %38 = arith.subi %c7_i32, %c0_i32_1 : i32
    %39 = arith.index_cast %38 : i32 to index
    %c0_16 = arith.constant 0 : index
    %c0_17 = arith.constant 0 : index
    %40 = vector.load %arg2[%39, %c0_16, %c0_17] : memref<8x8x512xf32, #tpu.memory_space<vmem>>, vector<1x8x512xf32>
    %41 = vector.shape_cast %40 : vector<1x8x512xf32> to vector<8x512xf32>
    %c0_18 = arith.constant 0 : index
    %c0_19 = arith.constant 0 : index
    %42 = vector.load %arg13[%c0_18, %c0_19] : memref<8x128xf32, #tpu.memory_space<vmem>>, vector<8x128xf32>
    %c0_20 = arith.constant 0 : index
    %c0_21 = arith.constant 0 : index
    %43 = vector.load %arg14[%c0_20, %c0_21] : memref<8x128xf32, #tpu.memory_space<vmem>>, vector<8x128xf32>
    %c0_22 = arith.constant 0 : index
    %c0_23 = arith.constant 0 : index
    %44 = vector.load %arg4[%c0_22, %c0_23] : memref<128x512xf32, #tpu.memory_space<vmem>>, vector<128x512xf32>
    %cst_24 = arith.constant dense<0.000000e+00> : vector<8x512xf32>
    %45 = tpu.matmul %42, %44, %cst_24 {dimension_numbers = #tpu.dot_dimension_numbers<[1], [0], [0], [1], [0, 0, 1, 1], [], []>} : vector<8x128xf32>, vector<128x512xf32>, vector<8x512xf32> -> vector<8x512xf32>
    %46 = arith.addf %41, %45 : vector<8x512xf32>
    %47 = vector.extract_strided_slice %46 {offsets = [0, 0], sizes = [8, 128], strides = [1, 1]} : vector<8x512xf32> to vector<8x128xf32>
    %48 = arith.negf %47 : vector<8x128xf32>
    %49 = math.exp %48 : vector<8x128xf32>
    %cst_25 = arith.constant 1.000000e+00 : f32
    %50 = vector.broadcast %cst_25 : f32 to vector<8x128xf32>
    %51 = arith.addf %50, %49 : vector<8x128xf32>
    %52 = arith.divf %50, %51 : vector<8x128xf32>
    %53 = vector.extract_strided_slice %46 {offsets = [0, 128], sizes = [8, 128], strides = [1, 1]} : vector<8x512xf32> to vector<8x128xf32>
    %54 = arith.negf %53 : vector<8x128xf32>
    %55 = math.exp %54 : vector<8x128xf32>
    %cst_26 = arith.constant 1.000000e+00 : f32
    %56 = vector.broadcast %cst_26 : f32 to vector<8x128xf32>
    %57 = arith.addf %56, %55 : vector<8x128xf32>
    %58 = arith.divf %56, %57 : vector<8x128xf32>
    %59 = vector.extract_strided_slice %46 {offsets = [0, 256], sizes = [8, 128], strides = [1, 1]} : vector<8x512xf32> to vector<8x128xf32>
    %60 = math.tanh %59 : vector<8x128xf32>
    %61 = vector.extract_strided_slice %46 {offsets = [0, 384], sizes = [8, 128], strides = [1, 1]} : vector<8x512xf32> to vector<8x128xf32>
    %62 = arith.negf %61 : vector<8x128xf32>
    %63 = math.exp %62 : vector<8x128xf32>
    %cst_27 = arith.constant 1.000000e+00 : f32
    %64 = vector.broadcast %cst_27 : f32 to vector<8x128xf32>
    %65 = arith.addf %64, %63 : vector<8x128xf32>
    %66 = arith.divf %64, %65 : vector<8x128xf32>
    %67 = arith.mulf %58, %43 : vector<8x128xf32>
    %68 = arith.mulf %52, %60 : vector<8x128xf32>
    %69 = arith.addf %67, %68 : vector<8x128xf32>
    %70 = math.tanh %69 : vector<8x128xf32>
    %71 = arith.mulf %66, %70 : vector<8x128xf32>
    %c0_28 = arith.constant 0 : index
    %c0_29 = arith.constant 0 : index
    %72 = vector.load %arg13[%c0_28, %c0_29] : memref<8x128xf32, #tpu.memory_space<vmem>>, vector<8x128xf32>
    tpu.vector_store %arg13[%c0_28, %c0_29], %71 {strides = array<i32>} : memref<8x128xf32, #tpu.memory_space<vmem>>, vector<8x128xf32>,
    %c0_30 = arith.constant 0 : index
    %c0_31 = arith.constant 0 : index
    %73 = vector.load %arg14[%c0_30, %c0_31] : memref<8x128xf32, #tpu.memory_space<vmem>>, vector<8x128xf32>
    tpu.vector_store %arg14[%c0_30, %c0_31], %69 {strides = array<i32>} : memref<8x128xf32, #tpu.memory_space<vmem>>, vector<8x128xf32>,
    %c1_i32 = arith.constant 1 : i32
    %74 = arith.index_cast %c1_i32 : i32 to index
    %c0_32 = arith.constant 0 : index
    %c0_33 = arith.constant 0 : index
    %75 = vector.load %arg1[%74, %c0_32, %c0_33] : memref<8x8x512xf32, #tpu.memory_space<vmem>>, vector<1x8x512xf32>
    %76 = vector.shape_cast %75 : vector<1x8x512xf32> to vector<8x512xf32>
    %c0_34 = arith.constant 0 : index
    %c0_35 = arith.constant 0 : index
    %77 = vector.load %arg11[%c0_34, %c0_35] : memref<8x128xf32, #tpu.memory_space<vmem>>, vector<8x128xf32>
    %c0_36 = arith.constant 0 : index
    %c0_37 = arith.constant 0 : index
    %78 = vector.load %arg12[%c0_36, %c0_37] : memref<8x128xf32, #tpu.memory_space<vmem>>, vector<8x128xf32>
    %c0_38 = arith.constant 0 : index
    %c0_39 = arith.constant 0 : index
    %79 = vector.load %arg3[%c0_38, %c0_39] : memref<128x512xf32, #tpu.memory_space<vmem>>, vector<128x512xf32>
    %cst_40 = arith.constant dense<0.000000e+00> : vector<8x512xf32>
    %80 = tpu.matmul %77, %79, %cst_40 {dimension_numbers = #tpu.dot_dimension_numbers<[1], [0], [0], [1], [0, 0, 1, 1], [], []>} : vector<8x128xf32>, vector<128x512xf32>, vector<8x512xf32> -> vector<8x512xf32>
    %81 = arith.addf %76, %80 : vector<8x512xf32>
    %82 = vector.extract_strided_slice %81 {offsets = [0, 0], sizes = [8, 128], strides = [1, 1]} : vector<8x512xf32> to vector<8x128xf32>
    %83 = arith.negf %82 : vector<8x128xf32>
    %84 = math.exp %83 : vector<8x128xf32>
    %cst_41 = arith.constant 1.000000e+00 : f32
    %85 = vector.broadcast %cst_41 : f32 to vector<8x128xf32>
    %86 = arith.addf %85, %84 : vector<8x128xf32>
    %87 = arith.divf %85, %86 : vector<8x128xf32>
    %88 = vector.extract_strided_slice %81 {offsets = [0, 128], sizes = [8, 128], strides = [1, 1]} : vector<8x512xf32> to vector<8x128xf32>
    %89 = arith.negf %88 : vector<8x128xf32>
    %90 = math.exp %89 : vector<8x128xf32>
    %cst_42 = arith.constant 1.000000e+00 : f32
    %91 = vector.broadcast %cst_42 : f32 to vector<8x128xf32>
    %92 = arith.addf %91, %90 : vector<8x128xf32>
    %93 = arith.divf %91, %92 : vector<8x128xf32>
    %94 = vector.extract_strided_slice %81 {offsets = [0, 256], sizes = [8, 128], strides = [1, 1]} : vector<8x512xf32> to vector<8x128xf32>
    %95 = math.tanh %94 : vector<8x128xf32>
    %96 = vector.extract_strided_slice %81 {offsets = [0, 384], sizes = [8, 128], strides = [1, 1]} : vector<8x512xf32> to vector<8x128xf32>
    %97 = arith.negf %96 : vector<8x128xf32>
    %98 = math.exp %97 : vector<8x128xf32>
    %cst_43 = arith.constant 1.000000e+00 : f32
    %99 = vector.broadcast %cst_43 : f32 to vector<8x128xf32>
    %100 = arith.addf %99, %98 : vector<8x128xf32>
    %101 = arith.divf %99, %100 : vector<8x128xf32>
    %102 = arith.mulf %93, %78 : vector<8x128xf32>
    %103 = arith.mulf %87, %95 : vector<8x128xf32>
    %104 = arith.addf %102, %103 : vector<8x128xf32>
    %105 = math.tanh %104 : vector<8x128xf32>
    %106 = arith.mulf %101, %105 : vector<8x128xf32>
    %c0_44 = arith.constant 0 : index
    %c0_45 = arith.constant 0 : index
    %107 = vector.load %arg11[%c0_44, %c0_45] : memref<8x128xf32, #tpu.memory_space<vmem>>, vector<8x128xf32>
    tpu.vector_store %arg11[%c0_44, %c0_45], %106 {strides = array<i32>} : memref<8x128xf32, #tpu.memory_space<vmem>>, vector<8x128xf32>,
    %c0_46 = arith.constant 0 : index
    %c0_47 = arith.constant 0 : index
    %108 = vector.load %arg12[%c0_46, %c0_47] : memref<8x128xf32, #tpu.memory_space<vmem>>, vector<8x128xf32>
    tpu.vector_store %arg12[%c0_46, %c0_47], %104 {strides = array<i32>} : memref<8x128xf32, #tpu.memory_space<vmem>>, vector<8x128xf32>,
    %c7_i32_48 = arith.constant 7 : i32
    %109 = arith.subi %c7_i32_48, %c1_i32 : i32
    %110 = arith.index_cast %109 : i32 to index
    %c0_49 = arith.constant 0 : index
    %c0_50 = arith.constant 0 : index
    %111 = vector.load %arg2[%110, %c0_49, %c0_50] : memref<8x8x512xf32, #tpu.memory_space<vmem>>, vector<1x8x512xf32>
    %112 = vector.shape_cast %111 : vector<1x8x512xf32> to vector<8x512xf32>
    %c0_51 = arith.constant 0 : index
    %c0_52 = arith.constant 0 : index
    %113 = vector.load %arg13[%c0_51, %c0_52] : memref<8x128xf32, #tpu.memory_space<vmem>>, vector<8x128xf32>
    %c0_53 = arith.constant 0 : index
    %c0_54 = arith.constant 0 : index
    %114 = vector.load %arg14[%c0_53, %c0_54] : memref<8x128xf32, #tpu.memory_space<vmem>>, vector<8x128xf32>
    %c0_55 = arith.constant 0 : index
    %c0_56 = arith.constant 0 : index
    %115 = vector.load %arg4[%c0_55, %c0_56] : memref<128x512xf32, #tpu.memory_space<vmem>>, vector<128x512xf32>
    %cst_57 = arith.constant dense<0.000000e+00> : vector<8x512xf32>
    %116 = tpu.matmul %113, %115, %cst_57 {dimension_numbers = #tpu.dot_dimension_numbers<[1], [0], [0], [1], [0, 0, 1, 1], [], []>} : vector<8x128xf32>, vector<128x512xf32>, vector<8x512xf32> -> vector<8x512xf32>
    %117 = arith.addf %112, %116 : vector<8x512xf32>
    %118 = vector.extract_strided_slice %117 {offsets = [0, 0], sizes = [8, 128], strides = [1, 1]} : vector<8x512xf32> to vector<8x128xf32>
    %119 = arith.negf %118 : vector<8x128xf32>
    %120 = math.exp %119 : vector<8x128xf32>
    %cst_58 = arith.constant 1.000000e+00 : f32
    %121 = vector.broadcast %cst_58 : f32 to vector<8x128xf32>
    %122 = arith.addf %121, %120 : vector<8x128xf32>
    %123 = arith.divf %121, %122 : vector<8x128xf32>
    %124 = vector.extract_strided_slice %117 {offsets = [0, 128], sizes = [8, 128], strides = [1, 1]} : vector<8x512xf32> to vector<8x128xf32>
    %125 = arith.negf %124 : vector<8x128xf32>
    %126 = math.exp %125 : vector<8x128xf32>
    %cst_59 = arith.constant 1.000000e+00 : f32
    %127 = vector.broadcast %cst_59 : f32 to vector<8x128xf32>
    %128 = arith.addf %127, %126 : vector<8x128xf32>
    %129 = arith.divf %127, %128 : vector<8x128xf32>
    %130 = vector.extract_strided_slice %117 {offsets = [0, 256], sizes = [8, 128], strides = [1, 1]} : vector<8x512xf32> to vector<8x128xf32>
    %131 = math.tanh %130 : vector<8x128xf32>
    %132 = vector.extract_strided_slice %117 {offsets = [0, 384], sizes = [8, 128], strides = [1, 1]} : vector<8x512xf32> to vector<8x128xf32>
    %133 = arith.negf %132 : vector<8x128xf32>
    %134 = math.exp %133 : vector<8x128xf32>
    %cst_60 = arith.constant 1.000000e+00 : f32
    %135 = vector.broadcast %cst_60 : f32 to vector<8x128xf32>
    %136 = arith.addf %135, %134 : vector<8x128xf32>
    %137 = arith.divf %135, %136 : vector<8x128xf32>
    %138 = arith.mulf %129, %114 : vector<8x128xf32>
    %139 = arith.mulf %123, %131 : vector<8x128xf32>
    %140 = arith.addf %138, %139 : vector<8x128xf32>
    %141 = math.tanh %140 : vector<8x128xf32>
    %142 = arith.mulf %137, %141 : vector<8x128xf32>
    %c0_61 = arith.constant 0 : index
    %c0_62 = arith.constant 0 : index
    %143 = vector.load %arg13[%c0_61, %c0_62] : memref<8x128xf32, #tpu.memory_space<vmem>>, vector<8x128xf32>
    tpu.vector_store %arg13[%c0_61, %c0_62], %142 {strides = array<i32>} : memref<8x128xf32, #tpu.memory_space<vmem>>, vector<8x128xf32>,
    %c0_63 = arith.constant 0 : index
    %c0_64 = arith.constant 0 : index
    %144 = vector.load %arg14[%c0_63, %c0_64] : memref<8x128xf32, #tpu.memory_space<vmem>>, vector<8x128xf32>
    tpu.vector_store %arg14[%c0_63, %c0_64], %140 {strides = array<i32>} : memref<8x128xf32, #tpu.memory_space<vmem>>, vector<8x128xf32>,
    %c2_i32 = arith.constant 2 : i32
    %145 = arith.index_cast %c2_i32 : i32 to index
    %c0_65 = arith.constant 0 : index
    %c0_66 = arith.constant 0 : index
    %146 = vector.load %arg1[%145, %c0_65, %c0_66] : memref<8x8x512xf32, #tpu.memory_space<vmem>>, vector<1x8x512xf32>
    %147 = vector.shape_cast %146 : vector<1x8x512xf32> to vector<8x512xf32>
    %c0_67 = arith.constant 0 : index
    %c0_68 = arith.constant 0 : index
    %148 = vector.load %arg11[%c0_67, %c0_68] : memref<8x128xf32, #tpu.memory_space<vmem>>, vector<8x128xf32>
    %c0_69 = arith.constant 0 : index
    %c0_70 = arith.constant 0 : index
    %149 = vector.load %arg12[%c0_69, %c0_70] : memref<8x128xf32, #tpu.memory_space<vmem>>, vector<8x128xf32>
    %c0_71 = arith.constant 0 : index
    %c0_72 = arith.constant 0 : index
    %150 = vector.load %arg3[%c0_71, %c0_72] : memref<128x512xf32, #tpu.memory_space<vmem>>, vector<128x512xf32>
    %cst_73 = arith.constant dense<0.000000e+00> : vector<8x512xf32>
    %151 = tpu.matmul %148, %150, %cst_73 {dimension_numbers = #tpu.dot_dimension_numbers<[1], [0], [0], [1], [0, 0, 1, 1], [], []>} : vector<8x128xf32>, vector<128x512xf32>, vector<8x512xf32> -> vector<8x512xf32>
    %152 = arith.addf %147, %151 : vector<8x512xf32>
    %153 = vector.extract_strided_slice %152 {offsets = [0, 0], sizes = [8, 128], strides = [1, 1]} : vector<8x512xf32> to vector<8x128xf32>
    %154 = arith.negf %153 : vector<8x128xf32>
    %155 = math.exp %154 : vector<8x128xf32>
    %cst_74 = arith.constant 1.000000e+00 : f32
    %156 = vector.broadcast %cst_74 : f32 to vector<8x128xf32>
    %157 = arith.addf %156, %155 : vector<8x128xf32>
    %158 = arith.divf %156, %157 : vector<8x128xf32>
    %159 = vector.extract_strided_slice %152 {offsets = [0, 128], sizes = [8, 128], strides = [1, 1]} : vector<8x512xf32> to vector<8x128xf32>
    %160 = arith.negf %159 : vector<8x128xf32>
    %161 = math.exp %160 : vector<8x128xf32>
    %cst_75 = arith.constant 1.000000e+00 : f32
    %162 = vector.broadcast %cst_75 : f32 to vector<8x128xf32>
    %163 = arith.addf %162, %161 : vector<8x128xf32>
    %164 = arith.divf %162, %163 : vector<8x128xf32>
    %165 = vector.extract_strided_slice %152 {offsets = [0, 256], sizes = [8, 128], strides = [1, 1]} : vector<8x512xf32> to vector<8x128xf32>
    %166 = math.tanh %165 : vector<8x128xf32>
    %167 = vector.extract_strided_slice %152 {offsets = [0, 384], sizes = [8, 128], strides = [1, 1]} : vector<8x512xf32> to vector<8x128xf32>
    %168 = arith.negf %167 : vector<8x128xf32>
    %169 = math.exp %168 : vector<8x128xf32>
    %cst_76 = arith.constant 1.000000e+00 : f32
    %170 = vector.broadcast %cst_76 : f32 to vector<8x128xf32>
    %171 = arith.addf %170, %169 : vector<8x128xf32>
    %172 = arith.divf %170, %171 : vector<8x128xf32>
    %173 = arith.mulf %164, %149 : vector<8x128xf32>
    %174 = arith.mulf %158, %166 : vector<8x128xf32>
    %175 = arith.addf %173, %174 : vector<8x128xf32>
    %176 = math.tanh %175 : vector<8x128xf32>
    %177 = arith.mulf %172, %176 : vector<8x128xf32>
    %c0_77 = arith.constant 0 : index
    %c0_78 = arith.constant 0 : index
    %178 = vector.load %arg11[%c0_77, %c0_78] : memref<8x128xf32, #tpu.memory_space<vmem>>, vector<8x128xf32>
    tpu.vector_store %arg11[%c0_77, %c0_78], %177 {strides = array<i32>} : memref<8x128xf32, #tpu.memory_space<vmem>>, vector<8x128xf32>,
    %c0_79 = arith.constant 0 : index
    %c0_80 = arith.constant 0 : index
    %179 = vector.load %arg12[%c0_79, %c0_80] : memref<8x128xf32, #tpu.memory_space<vmem>>, vector<8x128xf32>
    tpu.vector_store %arg12[%c0_79, %c0_80], %175 {strides = array<i32>} : memref<8x128xf32, #tpu.memory_space<vmem>>, vector<8x128xf32>,
    %c7_i32_81 = arith.constant 7 : i32
    %180 = arith.subi %c7_i32_81, %c2_i32 : i32
    %181 = arith.index_cast %180 : i32 to index
    %c0_82 = arith.constant 0 : index
    %c0_83 = arith.constant 0 : index
    %182 = vector.load %arg2[%181, %c0_82, %c0_83] : memref<8x8x512xf32, #tpu.memory_space<vmem>>, vector<1x8x512xf32>
    %183 = vector.shape_cast %182 : vector<1x8x512xf32> to vector<8x512xf32>
    %c0_84 = arith.constant 0 : index
    %c0_85 = arith.constant 0 : index
    %184 = vector.load %arg13[%c0_84, %c0_85] : memref<8x128xf32, #tpu.memory_space<vmem>>, vector<8x128xf32>
    %c0_86 = arith.constant 0 : index
    %c0_87 = arith.constant 0 : index
    %185 = vector.load %arg14[%c0_86, %c0_87] : memref<8x128xf32, #tpu.memory_space<vmem>>, vector<8x128xf32>
    %c0_88 = arith.constant 0 : index
    %c0_89 = arith.constant 0 : index
    %186 = vector.load %arg4[%c0_88, %c0_89] : memref<128x512xf32, #tpu.memory_space<vmem>>, vector<128x512xf32>
    %cst_90 = arith.constant dense<0.000000e+00> : vector<8x512xf32>
    %187 = tpu.matmul %184, %186, %cst_90 {dimension_numbers = #tpu.dot_dimension_numbers<[1], [0], [0], [1], [0, 0, 1, 1], [], []>} : vector<8x128xf32>, vector<128x512xf32>, vector<8x512xf32> -> vector<8x512xf32>
    %188 = arith.addf %183, %187 : vector<8x512xf32>
    %189 = vector.extract_strided_slice %188 {offsets = [0, 0], sizes = [8, 128], strides = [1, 1]} : vector<8x512xf32> to vector<8x128xf32>
    %190 = arith.negf %189 : vector<8x128xf32>
    %191 = math.exp %190 : vector<8x128xf32>
    %cst_91 = arith.constant 1.000000e+00 : f32
    %192 = vector.broadcast %cst_91 : f32 to vector<8x128xf32>
    %193 = arith.addf %192, %191 : vector<8x128xf32>
    %194 = arith.divf %192, %193 : vector<8x128xf32>
    %195 = vector.extract_strided_slice %188 {offsets = [0, 128], sizes = [8, 128], strides = [1, 1]} : vector<8x512xf32> to vector<8x128xf32>
    %196 = arith.negf %195 : vector<8x128xf32>
    %197 = math.exp %196 : vector<8x128xf32>
    %cst_92 = arith.constant 1.000000e+00 : f32
    %198 = vector.broadcast %cst_92 : f32 to vector<8x128xf32>
    %199 = arith.addf %198, %197 : vector<8x128xf32>
    %200 = arith.divf %198, %199 : vector<8x128xf32>
    %201 = vector.extract_strided_slice %188 {offsets = [0, 256], sizes = [8, 128], strides = [1, 1]} : vector<8x512xf32> to vector<8x128xf32>
    %202 = math.tanh %201 : vector<8x128xf32>
    %203 = vector.extract_strided_slice %188 {offsets = [0, 384], sizes = [8, 128], strides = [1, 1]} : vector<8x512xf32> to vector<8x128xf32>
    %204 = arith.negf %203 : vector<8x128xf32>
    %205 = math.exp %204 : vector<8x128xf32>
    %cst_93 = arith.constant 1.000000e+00 : f32
    %206 = vector.broadcast %cst_93 : f32 to vector<8x128xf32>
    %207 = arith.addf %206, %205 : vector<8x128xf32>
    %208 = arith.divf %206, %207 : vector<8x128xf32>
    %209 = arith.mulf %200, %185 : vector<8x128xf32>
    %210 = arith.mulf %194, %202 : vector<8x128xf32>
    %211 = arith.addf %209, %210 : vector<8x128xf32>
    %212 = math.tanh %211 : vector<8x128xf32>
    %213 = arith.mulf %208, %212 : vector<8x128xf32>
    %c0_94 = arith.constant 0 : index
    %c0_95 = arith.constant 0 : index
    %214 = vector.load %arg13[%c0_94, %c0_95] : memref<8x128xf32, #tpu.memory_space<vmem>>, vector<8x128xf32>
    tpu.vector_store %arg13[%c0_94, %c0_95], %213 {strides = array<i32>} : memref<8x128xf32, #tpu.memory_space<vmem>>, vector<8x128xf32>,
    %c0_96 = arith.constant 0 : index
    %c0_97 = arith.constant 0 : index
    %215 = vector.load %arg14[%c0_96, %c0_97] : memref<8x128xf32, #tpu.memory_space<vmem>>, vector<8x128xf32>
    tpu.vector_store %arg14[%c0_96, %c0_97], %211 {strides = array<i32>} : memref<8x128xf32, #tpu.memory_space<vmem>>, vector<8x128xf32>,
    %c3_i32 = arith.constant 3 : i32
    %216 = arith.index_cast %c3_i32 : i32 to index
    %c0_98 = arith.constant 0 : index
    %c0_99 = arith.constant 0 : index
    %217 = vector.load %arg1[%216, %c0_98, %c0_99] : memref<8x8x512xf32, #tpu.memory_space<vmem>>, vector<1x8x512xf32>
    %218 = vector.shape_cast %217 : vector<1x8x512xf32> to vector<8x512xf32>
    %c0_100 = arith.constant 0 : index
    %c0_101 = arith.constant 0 : index
    %219 = vector.load %arg11[%c0_100, %c0_101] : memref<8x128xf32, #tpu.memory_space<vmem>>, vector<8x128xf32>
    %c0_102 = arith.constant 0 : index
    %c0_103 = arith.constant 0 : index
    %220 = vector.load %arg12[%c0_102, %c0_103] : memref<8x128xf32, #tpu.memory_space<vmem>>, vector<8x128xf32>
    %c0_104 = arith.constant 0 : index
    %c0_105 = arith.constant 0 : index
    %221 = vector.load %arg3[%c0_104, %c0_105] : memref<128x512xf32, #tpu.memory_space<vmem>>, vector<128x512xf32>
    %cst_106 = arith.constant dense<0.000000e+00> : vector<8x512xf32>
    %222 = tpu.matmul %219, %221, %cst_106 {dimension_numbers = #tpu.dot_dimension_numbers<[1], [0], [0], [1], [0, 0, 1, 1], [], []>} : vector<8x128xf32>, vector<128x512xf32>, vector<8x512xf32> -> vector<8x512xf32>
    %223 = arith.addf %218, %222 : vector<8x512xf32>
    %224 = vector.extract_strided_slice %223 {offsets = [0, 0], sizes = [8, 128], strides = [1, 1]} : vector<8x512xf32> to vector<8x128xf32>
    %225 = arith.negf %224 : vector<8x128xf32>
    %226 = math.exp %225 : vector<8x128xf32>
    %cst_107 = arith.constant 1.000000e+00 : f32
    %227 = vector.broadcast %cst_107 : f32 to vector<8x128xf32>
    %228 = arith.addf %227, %226 : vector<8x128xf32>
    %229 = arith.divf %227, %228 : vector<8x128xf32>
    %230 = vector.extract_strided_slice %223 {offsets = [0, 128], sizes = [8, 128], strides = [1, 1]} : vector<8x512xf32> to vector<8x128xf32>
    %231 = arith.negf %230 : vector<8x128xf32>
    %232 = math.exp %231 : vector<8x128xf32>
    %cst_108 = arith.constant 1.000000e+00 : f32
    %233 = vector.broadcast %cst_108 : f32 to vector<8x128xf32>
    %234 = arith.addf %233, %232 : vector<8x128xf32>
    %235 = arith.divf %233, %234 : vector<8x128xf32>
    %236 = vector.extract_strided_slice %223 {offsets = [0, 256], sizes = [8, 128], strides = [1, 1]} : vector<8x512xf32> to vector<8x128xf32>
    %237 = math.tanh %236 : vector<8x128xf32>
    %238 = vector.extract_strided_slice %223 {offsets = [0, 384], sizes = [8, 128], strides = [1, 1]} : vector<8x512xf32> to vector<8x128xf32>
    %239 = arith.negf %238 : vector<8x128xf32>
    %240 = math.exp %239 : vector<8x128xf32>
    %cst_109 = arith.constant 1.000000e+00 : f32
    %241 = vector.broadcast %cst_109 : f32 to vector<8x128xf32>
    %242 = arith.addf %241, %240 : vector<8x128xf32>
    %243 = arith.divf %241, %242 : vector<8x128xf32>
    %244 = arith.mulf %235, %220 : vector<8x128xf32>
    %245 = arith.mulf %229, %237 : vector<8x128xf32>
    %246 = arith.addf %244, %245 : vector<8x128xf32>
    %247 = math.tanh %246 : vector<8x128xf32>
    %248 = arith.mulf %243, %247 : vector<8x128xf32>
    %c0_110 = arith.constant 0 : index
    %c0_111 = arith.constant 0 : index
    %249 = vector.load %arg11[%c0_110, %c0_111] : memref<8x128xf32, #tpu.memory_space<vmem>>, vector<8x128xf32>
    tpu.vector_store %arg11[%c0_110, %c0_111], %248 {strides = array<i32>} : memref<8x128xf32, #tpu.memory_space<vmem>>, vector<8x128xf32>,
    %c0_112 = arith.constant 0 : index
    %c0_113 = arith.constant 0 : index
    %250 = vector.load %arg12[%c0_112, %c0_113] : memref<8x128xf32, #tpu.memory_space<vmem>>, vector<8x128xf32>
    tpu.vector_store %arg12[%c0_112, %c0_113], %246 {strides = array<i32>} : memref<8x128xf32, #tpu.memory_space<vmem>>, vector<8x128xf32>,
    %c7_i32_114 = arith.constant 7 : i32
    %251 = arith.subi %c7_i32_114, %c3_i32 : i32
    %252 = arith.index_cast %251 : i32 to index
    %c0_115 = arith.constant 0 : index
    %c0_116 = arith.constant 0 : index
    %253 = vector.load %arg2[%252, %c0_115, %c0_116] : memref<8x8x512xf32, #tpu.memory_space<vmem>>, vector<1x8x512xf32>
    %254 = vector.shape_cast %253 : vector<1x8x512xf32> to vector<8x512xf32>
    %c0_117 = arith.constant 0 : index
    %c0_118 = arith.constant 0 : index
    %255 = vector.load %arg13[%c0_117, %c0_118] : memref<8x128xf32, #tpu.memory_space<vmem>>, vector<8x128xf32>
    %c0_119 = arith.constant 0 : index
    %c0_120 = arith.constant 0 : index
    %256 = vector.load %arg14[%c0_119, %c0_120] : memref<8x128xf32, #tpu.memory_space<vmem>>, vector<8x128xf32>
    %c0_121 = arith.constant 0 : index
    %c0_122 = arith.constant 0 : index
    %257 = vector.load %arg4[%c0_121, %c0_122] : memref<128x512xf32, #tpu.memory_space<vmem>>, vector<128x512xf32>
    %cst_123 = arith.constant dense<0.000000e+00> : vector<8x512xf32>
    %258 = tpu.matmul %255, %257, %cst_123 {dimension_numbers = #tpu.dot_dimension_numbers<[1], [0], [0], [1], [0, 0, 1, 1], [], []>} : vector<8x128xf32>, vector<128x512xf32>, vector<8x512xf32> -> vector<8x512xf32>
    %259 = arith.addf %254, %258 : vector<8x512xf32>
    %260 = vector.extract_strided_slice %259 {offsets = [0, 0], sizes = [8, 128], strides = [1, 1]} : vector<8x512xf32> to vector<8x128xf32>
    %261 = arith.negf %260 : vector<8x128xf32>
    %262 = math.exp %261 : vector<8x128xf32>
    %cst_124 = arith.constant 1.000000e+00 : f32
    %263 = vector.broadcast %cst_124 : f32 to vector<8x128xf32>
    %264 = arith.addf %263, %262 : vector<8x128xf32>
    %265 = arith.divf %263, %264 : vector<8x128xf32>
    %266 = vector.extract_strided_slice %259 {offsets = [0, 128], sizes = [8, 128], strides = [1, 1]} : vector<8x512xf32> to vector<8x128xf32>
    %267 = arith.negf %266 : vector<8x128xf32>
    %268 = math.exp %267 : vector<8x128xf32>
    %cst_125 = arith.constant 1.000000e+00 : f32
    %269 = vector.broadcast %cst_125 : f32 to vector<8x128xf32>
    %270 = arith.addf %269, %268 : vector<8x128xf32>
    %271 = arith.divf %269, %270 : vector<8x128xf32>
    %272 = vector.extract_strided_slice %259 {offsets = [0, 256], sizes = [8, 128], strides = [1, 1]} : vector<8x512xf32> to vector<8x128xf32>
    %273 = math.tanh %272 : vector<8x128xf32>
    %274 = vector.extract_strided_slice %259 {offsets = [0, 384], sizes = [8, 128], strides = [1, 1]} : vector<8x512xf32> to vector<8x128xf32>
    %275 = arith.negf %274 : vector<8x128xf32>
    %276 = math.exp %275 : vector<8x128xf32>
    %cst_126 = arith.constant 1.000000e+00 : f32
    %277 = vector.broadcast %cst_126 : f32 to vector<8x128xf32>
    %278 = arith.addf %277, %276 : vector<8x128xf32>
    %279 = arith.divf %277, %278 : vector<8x128xf32>
    %280 = arith.mulf %271, %256 : vector<8x128xf32>
    %281 = arith.mulf %265, %273 : vector<8x128xf32>
    %282 = arith.addf %280, %281 : vector<8x128xf32>
    %283 = math.tanh %282 : vector<8x128xf32>
    %284 = arith.mulf %279, %283 : vector<8x128xf32>
    %c0_127 = arith.constant 0 : index
    %c0_128 = arith.constant 0 : index
    %285 = vector.load %arg13[%c0_127, %c0_128] : memref<8x128xf32, #tpu.memory_space<vmem>>, vector<8x128xf32>
    tpu.vector_store %arg13[%c0_127, %c0_128], %284 {strides = array<i32>} : memref<8x128xf32, #tpu.memory_space<vmem>>, vector<8x128xf32>,
    %c0_129 = arith.constant 0 : index
    %c0_130 = arith.constant 0 : index
    %286 = vector.load %arg14[%c0_129, %c0_130] : memref<8x128xf32, #tpu.memory_space<vmem>>, vector<8x128xf32>
    tpu.vector_store %arg14[%c0_129, %c0_130], %282 {strides = array<i32>} : memref<8x128xf32, #tpu.memory_space<vmem>>, vector<8x128xf32>,
    %c4_i32 = arith.constant 4 : i32
    %287 = arith.index_cast %c4_i32 : i32 to index
    %c0_131 = arith.constant 0 : index
    %c0_132 = arith.constant 0 : index
    %288 = vector.load %arg1[%287, %c0_131, %c0_132] : memref<8x8x512xf32, #tpu.memory_space<vmem>>, vector<1x8x512xf32>
    %289 = vector.shape_cast %288 : vector<1x8x512xf32> to vector<8x512xf32>
    %c0_133 = arith.constant 0 : index
    %c0_134 = arith.constant 0 : index
    %290 = vector.load %arg11[%c0_133, %c0_134] : memref<8x128xf32, #tpu.memory_space<vmem>>, vector<8x128xf32>
    %c0_135 = arith.constant 0 : index
    %c0_136 = arith.constant 0 : index
    %291 = vector.load %arg12[%c0_135, %c0_136] : memref<8x128xf32, #tpu.memory_space<vmem>>, vector<8x128xf32>
    %c0_137 = arith.constant 0 : index
    %c0_138 = arith.constant 0 : index
    %292 = vector.load %arg3[%c0_137, %c0_138] : memref<128x512xf32, #tpu.memory_space<vmem>>, vector<128x512xf32>
    %cst_139 = arith.constant dense<0.000000e+00> : vector<8x512xf32>
    %293 = tpu.matmul %290, %292, %cst_139 {dimension_numbers = #tpu.dot_dimension_numbers<[1], [0], [0], [1], [0, 0, 1, 1], [], []>} : vector<8x128xf32>, vector<128x512xf32>, vector<8x512xf32> -> vector<8x512xf32>
    %294 = arith.addf %289, %293 : vector<8x512xf32>
    %295 = vector.extract_strided_slice %294 {offsets = [0, 0], sizes = [8, 128], strides = [1, 1]} : vector<8x512xf32> to vector<8x128xf32>
    %296 = arith.negf %295 : vector<8x128xf32>
    %297 = math.exp %296 : vector<8x128xf32>
    %cst_140 = arith.constant 1.000000e+00 : f32
    %298 = vector.broadcast %cst_140 : f32 to vector<8x128xf32>
    %299 = arith.addf %298, %297 : vector<8x128xf32>
    %300 = arith.divf %298, %299 : vector<8x128xf32>
    %301 = vector.extract_strided_slice %294 {offsets = [0, 128], sizes = [8, 128], strides = [1, 1]} : vector<8x512xf32> to vector<8x128xf32>
    %302 = arith.negf %301 : vector<8x128xf32>
    %303 = math.exp %302 : vector<8x128xf32>
    %cst_141 = arith.constant 1.000000e+00 : f32
    %304 = vector.broadcast %cst_141 : f32 to vector<8x128xf32>
    %305 = arith.addf %304, %303 : vector<8x128xf32>
    %306 = arith.divf %304, %305 : vector<8x128xf32>
    %307 = vector.extract_strided_slice %294 {offsets = [0, 256], sizes = [8, 128], strides = [1, 1]} : vector<8x512xf32> to vector<8x128xf32>
    %308 = math.tanh %307 : vector<8x128xf32>
    %309 = vector.extract_strided_slice %294 {offsets = [0, 384], sizes = [8, 128], strides = [1, 1]} : vector<8x512xf32> to vector<8x128xf32>
    %310 = arith.negf %309 : vector<8x128xf32>
    %311 = math.exp %310 : vector<8x128xf32>
    %cst_142 = arith.constant 1.000000e+00 : f32
    %312 = vector.broadcast %cst_142 : f32 to vector<8x128xf32>
    %313 = arith.addf %312, %311 : vector<8x128xf32>
    %314 = arith.divf %312, %313 : vector<8x128xf32>
    %315 = arith.mulf %306, %291 : vector<8x128xf32>
    %316 = arith.mulf %300, %308 : vector<8x128xf32>
    %317 = arith.addf %315, %316 : vector<8x128xf32>
    %318 = math.tanh %317 : vector<8x128xf32>
    %319 = arith.mulf %314, %318 : vector<8x128xf32>
    %c0_143 = arith.constant 0 : index
    %c0_144 = arith.constant 0 : index
    %320 = vector.load %arg11[%c0_143, %c0_144] : memref<8x128xf32, #tpu.memory_space<vmem>>, vector<8x128xf32>
    tpu.vector_store %arg11[%c0_143, %c0_144], %319 {strides = array<i32>} : memref<8x128xf32, #tpu.memory_space<vmem>>, vector<8x128xf32>,
    %c0_145 = arith.constant 0 : index
    %c0_146 = arith.constant 0 : index
    %321 = vector.load %arg12[%c0_145, %c0_146] : memref<8x128xf32, #tpu.memory_space<vmem>>, vector<8x128xf32>
    tpu.vector_store %arg12[%c0_145, %c0_146], %317 {strides = array<i32>} : memref<8x128xf32, #tpu.memory_space<vmem>>, vector<8x128xf32>,
    %c7_i32_147 = arith.constant 7 : i32
    %322 = arith.subi %c7_i32_147, %c4_i32 : i32
    %323 = arith.index_cast %322 : i32 to index
    %c0_148 = arith.constant 0 : index
    %c0_149 = arith.constant 0 : index
    %324 = vector.load %arg2[%323, %c0_148, %c0_149] : memref<8x8x512xf32, #tpu.memory_space<vmem>>, vector<1x8x512xf32>
    %325 = vector.shape_cast %324 : vector<1x8x512xf32> to vector<8x512xf32>
    %c0_150 = arith.constant 0 : index
    %c0_151 = arith.constant 0 : index
    %326 = vector.load %arg13[%c0_150, %c0_151] : memref<8x128xf32, #tpu.memory_space<vmem>>, vector<8x128xf32>
    %c0_152 = arith.constant 0 : index
    %c0_153 = arith.constant 0 : index
    %327 = vector.load %arg14[%c0_152, %c0_153] : memref<8x128xf32, #tpu.memory_space<vmem>>, vector<8x128xf32>
    %c0_154 = arith.constant 0 : index
    %c0_155 = arith.constant 0 : index
    %328 = vector.load %arg4[%c0_154, %c0_155] : memref<128x512xf32, #tpu.memory_space<vmem>>, vector<128x512xf32>
    %cst_156 = arith.constant dense<0.000000e+00> : vector<8x512xf32>
    %329 = tpu.matmul %326, %328, %cst_156 {dimension_numbers = #tpu.dot_dimension_numbers<[1], [0], [0], [1], [0, 0, 1, 1], [], []>} : vector<8x128xf32>, vector<128x512xf32>, vector<8x512xf32> -> vector<8x512xf32>
    %330 = arith.addf %325, %329 : vector<8x512xf32>
    %331 = vector.extract_strided_slice %330 {offsets = [0, 0], sizes = [8, 128], strides = [1, 1]} : vector<8x512xf32> to vector<8x128xf32>
    %332 = arith.negf %331 : vector<8x128xf32>
    %333 = math.exp %332 : vector<8x128xf32>
    %cst_157 = arith.constant 1.000000e+00 : f32
    %334 = vector.broadcast %cst_157 : f32 to vector<8x128xf32>
    %335 = arith.addf %334, %333 : vector<8x128xf32>
    %336 = arith.divf %334, %335 : vector<8x128xf32>
    %337 = vector.extract_strided_slice %330 {offsets = [0, 128], sizes = [8, 128], strides = [1, 1]} : vector<8x512xf32> to vector<8x128xf32>
    %338 = arith.negf %337 : vector<8x128xf32>
    %339 = math.exp %338 : vector<8x128xf32>
    %cst_158 = arith.constant 1.000000e+00 : f32
    %340 = vector.broadcast %cst_158 : f32 to vector<8x128xf32>
    %341 = arith.addf %340, %339 : vector<8x128xf32>
    %342 = arith.divf %340, %341 : vector<8x128xf32>
    %343 = vector.extract_strided_slice %330 {offsets = [0, 256], sizes = [8, 128], strides = [1, 1]} : vector<8x512xf32> to vector<8x128xf32>
    %344 = math.tanh %343 : vector<8x128xf32>
    %345 = vector.extract_strided_slice %330 {offsets = [0, 384], sizes = [8, 128], strides = [1, 1]} : vector<8x512xf32> to vector<8x128xf32>
    %346 = arith.negf %345 : vector<8x128xf32>
    %347 = math.exp %346 : vector<8x128xf32>
    %cst_159 = arith.constant 1.000000e+00 : f32
    %348 = vector.broadcast %cst_159 : f32 to vector<8x128xf32>
    %349 = arith.addf %348, %347 : vector<8x128xf32>
    %350 = arith.divf %348, %349 : vector<8x128xf32>
    %351 = arith.mulf %342, %327 : vector<8x128xf32>
    %352 = arith.mulf %336, %344 : vector<8x128xf32>
    %353 = arith.addf %351, %352 : vector<8x128xf32>
    %354 = math.tanh %353 : vector<8x128xf32>
    %355 = arith.mulf %350, %354 : vector<8x128xf32>
    %c0_160 = arith.constant 0 : index
    %c0_161 = arith.constant 0 : index
    %356 = vector.load %arg13[%c0_160, %c0_161] : memref<8x128xf32, #tpu.memory_space<vmem>>, vector<8x128xf32>
    tpu.vector_store %arg13[%c0_160, %c0_161], %355 {strides = array<i32>} : memref<8x128xf32, #tpu.memory_space<vmem>>, vector<8x128xf32>,
    %c0_162 = arith.constant 0 : index
    %c0_163 = arith.constant 0 : index
    %357 = vector.load %arg14[%c0_162, %c0_163] : memref<8x128xf32, #tpu.memory_space<vmem>>, vector<8x128xf32>
    tpu.vector_store %arg14[%c0_162, %c0_163], %353 {strides = array<i32>} : memref<8x128xf32, #tpu.memory_space<vmem>>, vector<8x128xf32>,
    %c5_i32 = arith.constant 5 : i32
    %358 = arith.index_cast %c5_i32 : i32 to index
    %c0_164 = arith.constant 0 : index
    %c0_165 = arith.constant 0 : index
    %359 = vector.load %arg1[%358, %c0_164, %c0_165] : memref<8x8x512xf32, #tpu.memory_space<vmem>>, vector<1x8x512xf32>
    %360 = vector.shape_cast %359 : vector<1x8x512xf32> to vector<8x512xf32>
    %c0_166 = arith.constant 0 : index
    %c0_167 = arith.constant 0 : index
    %361 = vector.load %arg11[%c0_166, %c0_167] : memref<8x128xf32, #tpu.memory_space<vmem>>, vector<8x128xf32>
    %c0_168 = arith.constant 0 : index
    %c0_169 = arith.constant 0 : index
    %362 = vector.load %arg12[%c0_168, %c0_169] : memref<8x128xf32, #tpu.memory_space<vmem>>, vector<8x128xf32>
    %c0_170 = arith.constant 0 : index
    %c0_171 = arith.constant 0 : index
    %363 = vector.load %arg3[%c0_170, %c0_171] : memref<128x512xf32, #tpu.memory_space<vmem>>, vector<128x512xf32>
    %cst_172 = arith.constant dense<0.000000e+00> : vector<8x512xf32>
    %364 = tpu.matmul %361, %363, %cst_172 {dimension_numbers = #tpu.dot_dimension_numbers<[1], [0], [0], [1], [0, 0, 1, 1], [], []>} : vector<8x128xf32>, vector<128x512xf32>, vector<8x512xf32> -> vector<8x512xf32>
    %365 = arith.addf %360, %364 : vector<8x512xf32>
    %366 = vector.extract_strided_slice %365 {offsets = [0, 0], sizes = [8, 128], strides = [1, 1]} : vector<8x512xf32> to vector<8x128xf32>
    %367 = arith.negf %366 : vector<8x128xf32>
    %368 = math.exp %367 : vector<8x128xf32>
    %cst_173 = arith.constant 1.000000e+00 : f32
    %369 = vector.broadcast %cst_173 : f32 to vector<8x128xf32>
    %370 = arith.addf %369, %368 : vector<8x128xf32>
    %371 = arith.divf %369, %370 : vector<8x128xf32>
    %372 = vector.extract_strided_slice %365 {offsets = [0, 128], sizes = [8, 128], strides = [1, 1]} : vector<8x512xf32> to vector<8x128xf32>
    %373 = arith.negf %372 : vector<8x128xf32>
    %374 = math.exp %373 : vector<8x128xf32>
    %cst_174 = arith.constant 1.000000e+00 : f32
    %375 = vector.broadcast %cst_174 : f32 to vector<8x128xf32>
    %376 = arith.addf %375, %374 : vector<8x128xf32>
    %377 = arith.divf %375, %376 : vector<8x128xf32>
    %378 = vector.extract_strided_slice %365 {offsets = [0, 256], sizes = [8, 128], strides = [1, 1]} : vector<8x512xf32> to vector<8x128xf32>
    %379 = math.tanh %378 : vector<8x128xf32>
    %380 = vector.extract_strided_slice %365 {offsets = [0, 384], sizes = [8, 128], strides = [1, 1]} : vector<8x512xf32> to vector<8x128xf32>
    %381 = arith.negf %380 : vector<8x128xf32>
    %382 = math.exp %381 : vector<8x128xf32>
    %cst_175 = arith.constant 1.000000e+00 : f32
    %383 = vector.broadcast %cst_175 : f32 to vector<8x128xf32>
    %384 = arith.addf %383, %382 : vector<8x128xf32>
    %385 = arith.divf %383, %384 : vector<8x128xf32>
    %386 = arith.mulf %377, %362 : vector<8x128xf32>
    %387 = arith.mulf %371, %379 : vector<8x128xf32>
    %388 = arith.addf %386, %387 : vector<8x128xf32>
    %389 = math.tanh %388 : vector<8x128xf32>
    %390 = arith.mulf %385, %389 : vector<8x128xf32>
    %c0_176 = arith.constant 0 : index
    %c0_177 = arith.constant 0 : index
    %391 = vector.load %arg11[%c0_176, %c0_177] : memref<8x128xf32, #tpu.memory_space<vmem>>, vector<8x128xf32>
    tpu.vector_store %arg11[%c0_176, %c0_177], %390 {strides = array<i32>} : memref<8x128xf32, #tpu.memory_space<vmem>>, vector<8x128xf32>,
    %c0_178 = arith.constant 0 : index
    %c0_179 = arith.constant 0 : index
    %392 = vector.load %arg12[%c0_178, %c0_179] : memref<8x128xf32, #tpu.memory_space<vmem>>, vector<8x128xf32>
    tpu.vector_store %arg12[%c0_178, %c0_179], %388 {strides = array<i32>} : memref<8x128xf32, #tpu.memory_space<vmem>>, vector<8x128xf32>,
    %c7_i32_180 = arith.constant 7 : i32
    %393 = arith.subi %c7_i32_180, %c5_i32 : i32
    %394 = arith.index_cast %393 : i32 to index
    %c0_181 = arith.constant 0 : index
    %c0_182 = arith.constant 0 : index
    %395 = vector.load %arg2[%394, %c0_181, %c0_182] : memref<8x8x512xf32, #tpu.memory_space<vmem>>, vector<1x8x512xf32>
    %396 = vector.shape_cast %395 : vector<1x8x512xf32> to vector<8x512xf32>
    %c0_183 = arith.constant 0 : index
    %c0_184 = arith.constant 0 : index
    %397 = vector.load %arg13[%c0_183, %c0_184] : memref<8x128xf32, #tpu.memory_space<vmem>>, vector<8x128xf32>
    %c0_185 = arith.constant 0 : index
    %c0_186 = arith.constant 0 : index
    %398 = vector.load %arg14[%c0_185, %c0_186] : memref<8x128xf32, #tpu.memory_space<vmem>>, vector<8x128xf32>
    %c0_187 = arith.constant 0 : index
    %c0_188 = arith.constant 0 : index
    %399 = vector.load %arg4[%c0_187, %c0_188] : memref<128x512xf32, #tpu.memory_space<vmem>>, vector<128x512xf32>
    %cst_189 = arith.constant dense<0.000000e+00> : vector<8x512xf32>
    %400 = tpu.matmul %397, %399, %cst_189 {dimension_numbers = #tpu.dot_dimension_numbers<[1], [0], [0], [1], [0, 0, 1, 1], [], []>} : vector<8x128xf32>, vector<128x512xf32>, vector<8x512xf32> -> vector<8x512xf32>
    %401 = arith.addf %396, %400 : vector<8x512xf32>
    %402 = vector.extract_strided_slice %401 {offsets = [0, 0], sizes = [8, 128], strides = [1, 1]} : vector<8x512xf32> to vector<8x128xf32>
    %403 = arith.negf %402 : vector<8x128xf32>
    %404 = math.exp %403 : vector<8x128xf32>
    %cst_190 = arith.constant 1.000000e+00 : f32
    %405 = vector.broadcast %cst_190 : f32 to vector<8x128xf32>
    %406 = arith.addf %405, %404 : vector<8x128xf32>
    %407 = arith.divf %405, %406 : vector<8x128xf32>
    %408 = vector.extract_strided_slice %401 {offsets = [0, 128], sizes = [8, 128], strides = [1, 1]} : vector<8x512xf32> to vector<8x128xf32>
    %409 = arith.negf %408 : vector<8x128xf32>
    %410 = math.exp %409 : vector<8x128xf32>
    %cst_191 = arith.constant 1.000000e+00 : f32
    %411 = vector.broadcast %cst_191 : f32 to vector<8x128xf32>
    %412 = arith.addf %411, %410 : vector<8x128xf32>
    %413 = arith.divf %411, %412 : vector<8x128xf32>
    %414 = vector.extract_strided_slice %401 {offsets = [0, 256], sizes = [8, 128], strides = [1, 1]} : vector<8x512xf32> to vector<8x128xf32>
    %415 = math.tanh %414 : vector<8x128xf32>
    %416 = vector.extract_strided_slice %401 {offsets = [0, 384], sizes = [8, 128], strides = [1, 1]} : vector<8x512xf32> to vector<8x128xf32>
    %417 = arith.negf %416 : vector<8x128xf32>
    %418 = math.exp %417 : vector<8x128xf32>
    %cst_192 = arith.constant 1.000000e+00 : f32
    %419 = vector.broadcast %cst_192 : f32 to vector<8x128xf32>
    %420 = arith.addf %419, %418 : vector<8x128xf32>
    %421 = arith.divf %419, %420 : vector<8x128xf32>
    %422 = arith.mulf %413, %398 : vector<8x128xf32>
    %423 = arith.mulf %407, %415 : vector<8x128xf32>
    %424 = arith.addf %422, %423 : vector<8x128xf32>
    %425 = math.tanh %424 : vector<8x128xf32>
    %426 = arith.mulf %421, %425 : vector<8x128xf32>
    %c0_193 = arith.constant 0 : index
    %c0_194 = arith.constant 0 : index
    %427 = vector.load %arg13[%c0_193, %c0_194] : memref<8x128xf32, #tpu.memory_space<vmem>>, vector<8x128xf32>
    tpu.vector_store %arg13[%c0_193, %c0_194], %426 {strides = array<i32>} : memref<8x128xf32, #tpu.memory_space<vmem>>, vector<8x128xf32>,
    %c0_195 = arith.constant 0 : index
    %c0_196 = arith.constant 0 : index
    %428 = vector.load %arg14[%c0_195, %c0_196] : memref<8x128xf32, #tpu.memory_space<vmem>>, vector<8x128xf32>
    tpu.vector_store %arg14[%c0_195, %c0_196], %424 {strides = array<i32>} : memref<8x128xf32, #tpu.memory_space<vmem>>, vector<8x128xf32>,
    %c6_i32 = arith.constant 6 : i32
    %429 = arith.index_cast %c6_i32 : i32 to index
    %c0_197 = arith.constant 0 : index
    %c0_198 = arith.constant 0 : index
    %430 = vector.load %arg1[%429, %c0_197, %c0_198] : memref<8x8x512xf32, #tpu.memory_space<vmem>>, vector<1x8x512xf32>
    %431 = vector.shape_cast %430 : vector<1x8x512xf32> to vector<8x512xf32>
    %c0_199 = arith.constant 0 : index
    %c0_200 = arith.constant 0 : index
    %432 = vector.load %arg11[%c0_199, %c0_200] : memref<8x128xf32, #tpu.memory_space<vmem>>, vector<8x128xf32>
    %c0_201 = arith.constant 0 : index
    %c0_202 = arith.constant 0 : index
    %433 = vector.load %arg12[%c0_201, %c0_202] : memref<8x128xf32, #tpu.memory_space<vmem>>, vector<8x128xf32>
    %c0_203 = arith.constant 0 : index
    %c0_204 = arith.constant 0 : index
    %434 = vector.load %arg3[%c0_203, %c0_204] : memref<128x512xf32, #tpu.memory_space<vmem>>, vector<128x512xf32>
    %cst_205 = arith.constant dense<0.000000e+00> : vector<8x512xf32>
    %435 = tpu.matmul %432, %434, %cst_205 {dimension_numbers = #tpu.dot_dimension_numbers<[1], [0], [0], [1], [0, 0, 1, 1], [], []>} : vector<8x128xf32>, vector<128x512xf32>, vector<8x512xf32> -> vector<8x512xf32>
    %436 = arith.addf %431, %435 : vector<8x512xf32>
    %437 = vector.extract_strided_slice %436 {offsets = [0, 0], sizes = [8, 128], strides = [1, 1]} : vector<8x512xf32> to vector<8x128xf32>
    %438 = arith.negf %437 : vector<8x128xf32>
    %439 = math.exp %438 : vector<8x128xf32>
    %cst_206 = arith.constant 1.000000e+00 : f32
    %440 = vector.broadcast %cst_206 : f32 to vector<8x128xf32>
    %441 = arith.addf %440, %439 : vector<8x128xf32>
    %442 = arith.divf %440, %441 : vector<8x128xf32>
    %443 = vector.extract_strided_slice %436 {offsets = [0, 128], sizes = [8, 128], strides = [1, 1]} : vector<8x512xf32> to vector<8x128xf32>
    %444 = arith.negf %443 : vector<8x128xf32>
    %445 = math.exp %444 : vector<8x128xf32>
    %cst_207 = arith.constant 1.000000e+00 : f32
    %446 = vector.broadcast %cst_207 : f32 to vector<8x128xf32>
    %447 = arith.addf %446, %445 : vector<8x128xf32>
    %448 = arith.divf %446, %447 : vector<8x128xf32>
    %449 = vector.extract_strided_slice %436 {offsets = [0, 256], sizes = [8, 128], strides = [1, 1]} : vector<8x512xf32> to vector<8x128xf32>
    %450 = math.tanh %449 : vector<8x128xf32>
    %451 = vector.extract_strided_slice %436 {offsets = [0, 384], sizes = [8, 128], strides = [1, 1]} : vector<8x512xf32> to vector<8x128xf32>
    %452 = arith.negf %451 : vector<8x128xf32>
    %453 = math.exp %452 : vector<8x128xf32>
    %cst_208 = arith.constant 1.000000e+00 : f32
    %454 = vector.broadcast %cst_208 : f32 to vector<8x128xf32>
    %455 = arith.addf %454, %453 : vector<8x128xf32>
    %456 = arith.divf %454, %455 : vector<8x128xf32>
    %457 = arith.mulf %448, %433 : vector<8x128xf32>
    %458 = arith.mulf %442, %450 : vector<8x128xf32>
    %459 = arith.addf %457, %458 : vector<8x128xf32>
    %460 = math.tanh %459 : vector<8x128xf32>
    %461 = arith.mulf %456, %460 : vector<8x128xf32>
    %c0_209 = arith.constant 0 : index
    %c0_210 = arith.constant 0 : index
    %462 = vector.load %arg11[%c0_209, %c0_210] : memref<8x128xf32, #tpu.memory_space<vmem>>, vector<8x128xf32>
    tpu.vector_store %arg11[%c0_209, %c0_210], %461 {strides = array<i32>} : memref<8x128xf32, #tpu.memory_space<vmem>>, vector<8x128xf32>,
    %c0_211 = arith.constant 0 : index
    %c0_212 = arith.constant 0 : index
    %463 = vector.load %arg12[%c0_211, %c0_212] : memref<8x128xf32, #tpu.memory_space<vmem>>, vector<8x128xf32>
    tpu.vector_store %arg12[%c0_211, %c0_212], %459 {strides = array<i32>} : memref<8x128xf32, #tpu.memory_space<vmem>>, vector<8x128xf32>,
    %c7_i32_213 = arith.constant 7 : i32
    %464 = arith.subi %c7_i32_213, %c6_i32 : i32
    %465 = arith.index_cast %464 : i32 to index
    %c0_214 = arith.constant 0 : index
    %c0_215 = arith.constant 0 : index
    %466 = vector.load %arg2[%465, %c0_214, %c0_215] : memref<8x8x512xf32, #tpu.memory_space<vmem>>, vector<1x8x512xf32>
    %467 = vector.shape_cast %466 : vector<1x8x512xf32> to vector<8x512xf32>
    %c0_216 = arith.constant 0 : index
    %c0_217 = arith.constant 0 : index
    %468 = vector.load %arg13[%c0_216, %c0_217] : memref<8x128xf32, #tpu.memory_space<vmem>>, vector<8x128xf32>
    %c0_218 = arith.constant 0 : index
    %c0_219 = arith.constant 0 : index
    %469 = vector.load %arg14[%c0_218, %c0_219] : memref<8x128xf32, #tpu.memory_space<vmem>>, vector<8x128xf32>
    %c0_220 = arith.constant 0 : index
    %c0_221 = arith.constant 0 : index
    %470 = vector.load %arg4[%c0_220, %c0_221] : memref<128x512xf32, #tpu.memory_space<vmem>>, vector<128x512xf32>
    %cst_222 = arith.constant dense<0.000000e+00> : vector<8x512xf32>
    %471 = tpu.matmul %468, %470, %cst_222 {dimension_numbers = #tpu.dot_dimension_numbers<[1], [0], [0], [1], [0, 0, 1, 1], [], []>} : vector<8x128xf32>, vector<128x512xf32>, vector<8x512xf32> -> vector<8x512xf32>
    %472 = arith.addf %467, %471 : vector<8x512xf32>
    %473 = vector.extract_strided_slice %472 {offsets = [0, 0], sizes = [8, 128], strides = [1, 1]} : vector<8x512xf32> to vector<8x128xf32>
    %474 = arith.negf %473 : vector<8x128xf32>
    %475 = math.exp %474 : vector<8x128xf32>
    %cst_223 = arith.constant 1.000000e+00 : f32
    %476 = vector.broadcast %cst_223 : f32 to vector<8x128xf32>
    %477 = arith.addf %476, %475 : vector<8x128xf32>
    %478 = arith.divf %476, %477 : vector<8x128xf32>
    %479 = vector.extract_strided_slice %472 {offsets = [0, 128], sizes = [8, 128], strides = [1, 1]} : vector<8x512xf32> to vector<8x128xf32>
    %480 = arith.negf %479 : vector<8x128xf32>
    %481 = math.exp %480 : vector<8x128xf32>
    %cst_224 = arith.constant 1.000000e+00 : f32
    %482 = vector.broadcast %cst_224 : f32 to vector<8x128xf32>
    %483 = arith.addf %482, %481 : vector<8x128xf32>
    %484 = arith.divf %482, %483 : vector<8x128xf32>
    %485 = vector.extract_strided_slice %472 {offsets = [0, 256], sizes = [8, 128], strides = [1, 1]} : vector<8x512xf32> to vector<8x128xf32>
    %486 = math.tanh %485 : vector<8x128xf32>
    %487 = vector.extract_strided_slice %472 {offsets = [0, 384], sizes = [8, 128], strides = [1, 1]} : vector<8x512xf32> to vector<8x128xf32>
    %488 = arith.negf %487 : vector<8x128xf32>
    %489 = math.exp %488 : vector<8x128xf32>
    %cst_225 = arith.constant 1.000000e+00 : f32
    %490 = vector.broadcast %cst_225 : f32 to vector<8x128xf32>
    %491 = arith.addf %490, %489 : vector<8x128xf32>
    %492 = arith.divf %490, %491 : vector<8x128xf32>
    %493 = arith.mulf %484, %469 : vector<8x128xf32>
    %494 = arith.mulf %478, %486 : vector<8x128xf32>
    %495 = arith.addf %493, %494 : vector<8x128xf32>
    %496 = math.tanh %495 : vector<8x128xf32>
    %497 = arith.mulf %492, %496 : vector<8x128xf32>
    %c0_226 = arith.constant 0 : index
    %c0_227 = arith.constant 0 : index
    %498 = vector.load %arg13[%c0_226, %c0_227] : memref<8x128xf32, #tpu.memory_space<vmem>>, vector<8x128xf32>
    tpu.vector_store %arg13[%c0_226, %c0_227], %497 {strides = array<i32>} : memref<8x128xf32, #tpu.memory_space<vmem>>, vector<8x128xf32>,
    %c0_228 = arith.constant 0 : index
    %c0_229 = arith.constant 0 : index
    %499 = vector.load %arg14[%c0_228, %c0_229] : memref<8x128xf32, #tpu.memory_space<vmem>>, vector<8x128xf32>
    tpu.vector_store %arg14[%c0_228, %c0_229], %495 {strides = array<i32>} : memref<8x128xf32, #tpu.memory_space<vmem>>, vector<8x128xf32>,
    %c7_i32_230 = arith.constant 7 : i32
    %500 = arith.index_cast %c7_i32_230 : i32 to index
    %c0_231 = arith.constant 0 : index
    %c0_232 = arith.constant 0 : index
    %501 = vector.load %arg1[%500, %c0_231, %c0_232] : memref<8x8x512xf32, #tpu.memory_space<vmem>>, vector<1x8x512xf32>
    %502 = vector.shape_cast %501 : vector<1x8x512xf32> to vector<8x512xf32>
    %c0_233 = arith.constant 0 : index
    %c0_234 = arith.constant 0 : index
    %503 = vector.load %arg11[%c0_233, %c0_234] : memref<8x128xf32, #tpu.memory_space<vmem>>, vector<8x128xf32>
    %c0_235 = arith.constant 0 : index
    %c0_236 = arith.constant 0 : index
    %504 = vector.load %arg12[%c0_235, %c0_236] : memref<8x128xf32, #tpu.memory_space<vmem>>, vector<8x128xf32>
    %c0_237 = arith.constant 0 : index
    %c0_238 = arith.constant 0 : index
    %505 = vector.load %arg3[%c0_237, %c0_238] : memref<128x512xf32, #tpu.memory_space<vmem>>, vector<128x512xf32>
    %cst_239 = arith.constant dense<0.000000e+00> : vector<8x512xf32>
    %506 = tpu.matmul %503, %505, %cst_239 {dimension_numbers = #tpu.dot_dimension_numbers<[1], [0], [0], [1], [0, 0, 1, 1], [], []>} : vector<8x128xf32>, vector<128x512xf32>, vector<8x512xf32> -> vector<8x512xf32>
    %507 = arith.addf %502, %506 : vector<8x512xf32>
    %508 = vector.extract_strided_slice %507 {offsets = [0, 0], sizes = [8, 128], strides = [1, 1]} : vector<8x512xf32> to vector<8x128xf32>
    %509 = arith.negf %508 : vector<8x128xf32>
    %510 = math.exp %509 : vector<8x128xf32>
    %cst_240 = arith.constant 1.000000e+00 : f32
    %511 = vector.broadcast %cst_240 : f32 to vector<8x128xf32>
    %512 = arith.addf %511, %510 : vector<8x128xf32>
    %513 = arith.divf %511, %512 : vector<8x128xf32>
    %514 = vector.extract_strided_slice %507 {offsets = [0, 128], sizes = [8, 128], strides = [1, 1]} : vector<8x512xf32> to vector<8x128xf32>
    %515 = arith.negf %514 : vector<8x128xf32>
    %516 = math.exp %515 : vector<8x128xf32>
    %cst_241 = arith.constant 1.000000e+00 : f32
    %517 = vector.broadcast %cst_241 : f32 to vector<8x128xf32>
    %518 = arith.addf %517, %516 : vector<8x128xf32>
    %519 = arith.divf %517, %518 : vector<8x128xf32>
    %520 = vector.extract_strided_slice %507 {offsets = [0, 256], sizes = [8, 128], strides = [1, 1]} : vector<8x512xf32> to vector<8x128xf32>
    %521 = math.tanh %520 : vector<8x128xf32>
    %522 = vector.extract_strided_slice %507 {offsets = [0, 384], sizes = [8, 128], strides = [1, 1]} : vector<8x512xf32> to vector<8x128xf32>
    %523 = arith.negf %522 : vector<8x128xf32>
    %524 = math.exp %523 : vector<8x128xf32>
    %cst_242 = arith.constant 1.000000e+00 : f32
    %525 = vector.broadcast %cst_242 : f32 to vector<8x128xf32>
    %526 = arith.addf %525, %524 : vector<8x128xf32>
    %527 = arith.divf %525, %526 : vector<8x128xf32>
    %528 = arith.mulf %519, %504 : vector<8x128xf32>
    %529 = arith.mulf %513, %521 : vector<8x128xf32>
    %530 = arith.addf %528, %529 : vector<8x128xf32>
    %531 = math.tanh %530 : vector<8x128xf32>
    %532 = arith.mulf %527, %531 : vector<8x128xf32>
    %c0_243 = arith.constant 0 : index
    %c0_244 = arith.constant 0 : index
    %533 = vector.load %arg11[%c0_243, %c0_244] : memref<8x128xf32, #tpu.memory_space<vmem>>, vector<8x128xf32>
    tpu.vector_store %arg11[%c0_243, %c0_244], %532 {strides = array<i32>} : memref<8x128xf32, #tpu.memory_space<vmem>>, vector<8x128xf32>,
    %c0_245 = arith.constant 0 : index
    %c0_246 = arith.constant 0 : index
    %534 = vector.load %arg12[%c0_245, %c0_246] : memref<8x128xf32, #tpu.memory_space<vmem>>, vector<8x128xf32>
    tpu.vector_store %arg12[%c0_245, %c0_246], %530 {strides = array<i32>} : memref<8x128xf32, #tpu.memory_space<vmem>>, vector<8x128xf32>,
    %c7_i32_247 = arith.constant 7 : i32
    %535 = arith.subi %c7_i32_247, %c7_i32_230 : i32
    %536 = arith.index_cast %535 : i32 to index
    %c0_248 = arith.constant 0 : index
    %c0_249 = arith.constant 0 : index
    %537 = vector.load %arg2[%536, %c0_248, %c0_249] : memref<8x8x512xf32, #tpu.memory_space<vmem>>, vector<1x8x512xf32>
    %538 = vector.shape_cast %537 : vector<1x8x512xf32> to vector<8x512xf32>
    %c0_250 = arith.constant 0 : index
    %c0_251 = arith.constant 0 : index
    %539 = vector.load %arg13[%c0_250, %c0_251] : memref<8x128xf32, #tpu.memory_space<vmem>>, vector<8x128xf32>
    %c0_252 = arith.constant 0 : index
    %c0_253 = arith.constant 0 : index
    %540 = vector.load %arg14[%c0_252, %c0_253] : memref<8x128xf32, #tpu.memory_space<vmem>>, vector<8x128xf32>
    %c0_254 = arith.constant 0 : index
    %c0_255 = arith.constant 0 : index
    %541 = vector.load %arg4[%c0_254, %c0_255] : memref<128x512xf32, #tpu.memory_space<vmem>>, vector<128x512xf32>
    %cst_256 = arith.constant dense<0.000000e+00> : vector<8x512xf32>
    %542 = tpu.matmul %539, %541, %cst_256 {dimension_numbers = #tpu.dot_dimension_numbers<[1], [0], [0], [1], [0, 0, 1, 1], [], []>} : vector<8x128xf32>, vector<128x512xf32>, vector<8x512xf32> -> vector<8x512xf32>
    %543 = arith.addf %538, %542 : vector<8x512xf32>
    %544 = vector.extract_strided_slice %543 {offsets = [0, 0], sizes = [8, 128], strides = [1, 1]} : vector<8x512xf32> to vector<8x128xf32>
    %545 = arith.negf %544 : vector<8x128xf32>
    %546 = math.exp %545 : vector<8x128xf32>
    %cst_257 = arith.constant 1.000000e+00 : f32
    %547 = vector.broadcast %cst_257 : f32 to vector<8x128xf32>
    %548 = arith.addf %547, %546 : vector<8x128xf32>
    %549 = arith.divf %547, %548 : vector<8x128xf32>
    %550 = vector.extract_strided_slice %543 {offsets = [0, 128], sizes = [8, 128], strides = [1, 1]} : vector<8x512xf32> to vector<8x128xf32>
    %551 = arith.negf %550 : vector<8x128xf32>
    %552 = math.exp %551 : vector<8x128xf32>
    %cst_258 = arith.constant 1.000000e+00 : f32
    %553 = vector.broadcast %cst_258 : f32 to vector<8x128xf32>
    %554 = arith.addf %553, %552 : vector<8x128xf32>
    %555 = arith.divf %553, %554 : vector<8x128xf32>
    %556 = vector.extract_strided_slice %543 {offsets = [0, 256], sizes = [8, 128], strides = [1, 1]} : vector<8x512xf32> to vector<8x128xf32>
    %557 = math.tanh %556 : vector<8x128xf32>
    %558 = vector.extract_strided_slice %543 {offsets = [0, 384], sizes = [8, 128], strides = [1, 1]} : vector<8x512xf32> to vector<8x128xf32>
    %559 = arith.negf %558 : vector<8x128xf32>
    %560 = math.exp %559 : vector<8x128xf32>
    %cst_259 = arith.constant 1.000000e+00 : f32
    %561 = vector.broadcast %cst_259 : f32 to vector<8x128xf32>
    %562 = arith.addf %561, %560 : vector<8x128xf32>
    %563 = arith.divf %561, %562 : vector<8x128xf32>
    %564 = arith.mulf %555, %540 : vector<8x128xf32>
    %565 = arith.mulf %549, %557 : vector<8x128xf32>
    %566 = arith.addf %564, %565 : vector<8x128xf32>
    %567 = math.tanh %566 : vector<8x128xf32>
    %568 = arith.mulf %563, %567 : vector<8x128xf32>
    %c0_260 = arith.constant 0 : index
    %c0_261 = arith.constant 0 : index
    %569 = vector.load %arg13[%c0_260, %c0_261] : memref<8x128xf32, #tpu.memory_space<vmem>>, vector<8x128xf32>
    tpu.vector_store %arg13[%c0_260, %c0_261], %568 {strides = array<i32>} : memref<8x128xf32, #tpu.memory_space<vmem>>, vector<8x128xf32>,
    %c0_262 = arith.constant 0 : index
    %c0_263 = arith.constant 0 : index
    %570 = vector.load %arg14[%c0_262, %c0_263] : memref<8x128xf32, #tpu.memory_space<vmem>>, vector<8x128xf32>
    tpu.vector_store %arg14[%c0_262, %c0_263], %566 {strides = array<i32>} : memref<8x128xf32, #tpu.memory_space<vmem>>, vector<8x128xf32>,
    %c8_i32 = arith.constant 8 : i32
    %c1_i32_264 = arith.constant 1 : i32
    %571 = arith.cmpi eq, %arg0, %c1_i32_264 : i32
    %572 = arith.extui %571 : i1 to i32
    %c0_i32_265 = arith.constant 0 : i32
    %573 = arith.cmpi ne, %572, %c0_i32_265 : i32
    scf.if %573 {
      %c0_266 = arith.constant 0 : index
      %c0_267 = arith.constant 0 : index
      %574 = vector.load %arg11[%c0_266, %c0_267] : memref<8x128xf32, #tpu.memory_space<vmem>>, vector<8x128xf32>
      %c0_268 = arith.constant 0 : index
      %c0_269 = arith.constant 0 : index
      %575 = vector.load %arg15[%c0_268, %c0_269] : memref<8x128xf32, #tpu.memory_space<vmem>>, vector<8x128xf32>
      %576 = tpu.concatenate %574, %575 in 1 : vector<8x128xf32>, vector<8x128xf32> -> vector<8x256xf32>
      %c0_270 = arith.constant 0 : index
      %c0_271 = arith.constant 0 : index
      %577 = vector.load %arg5[%c0_270, %c0_271] : memref<256x50xf32, #tpu.memory_space<vmem>>, vector<256x50xf32>
      %cst_272 = arith.constant dense<0.000000e+00> : vector<8x50xf32>
      %578 = tpu.matmul %576, %577, %cst_272 {dimension_numbers = #tpu.dot_dimension_numbers<[1], [0], [0], [1], [0, 0, 1, 1], [], []>} : vector<8x256xf32>, vector<256x50xf32>, vector<8x50xf32> -> vector<8x50xf32>
      %c0_273 = arith.constant 0 : index
      %c0_274 = arith.constant 0 : index
      %579 = vector.load %arg6[%c0_273, %c0_274] : memref<1x50xf32, #tpu.memory_space<vmem>>, vector<1x50xf32>
      %580 = vector.broadcast %579 : vector<1x50xf32> to vector<8x50xf32>
      %581 = arith.addf %578, %580 : vector<8x50xf32>
      %c0_275 = arith.constant 0 : index
      %582 = memref.load %arg7[%c0_275] : memref<1xf32, #tpu.memory_space<smem>>
      %cst_276 = arith.constant 0.000000e+00 : f32
      %583 = vector.broadcast %cst_276 : f32 to vector<8x50xf32>
      %584 = arith.cmpf oge, %581, %583 : vector<8x50xf32>
      %585 = vector.broadcast %582 : f32 to vector<8x50xf32>
      %586 = arith.mulf %585, %581 : vector<8x50xf32>
      %587 = arith.select %584, %581, %586 : vector<8x50xi1>, vector<8x50xf32>
      %588 = tpu.iota {dimensions = array<i32: 0>} : vector<8x50xi32>
      %c4_i32_277 = arith.constant 4 : i32
      %589 = vector.broadcast %c4_i32_277 : i32 to vector<8x50xi32>
      %590 = arith.cmpi slt, %588, %589 : vector<8x50xi32>
      %591 = arith.extui %590 : vector<8x50xi1> to vector<8x50xi32>
      %592 = arith.sitofp %591 : vector<8x50xi32> to vector<8x50xf32>
      %593 = arith.mulf %587, %592 : vector<8x50xf32>
      %cst_278 = arith.constant dense<0.000000e+00> : vector<50xf32>
      %594 = vector.multi_reduction <add>, %593, %cst_278 [0] : vector<8x50xf32> to vector<50xf32>
      %595 = vector.shape_cast %594 : vector<50xf32> to vector<1x50xf32>
      %cst_279 = arith.constant 4.000000e+00 : f32
      %596 = vector.broadcast %cst_279 : f32 to vector<1x50xf32>
      %597 = arith.divf %595, %596 : vector<1x50xf32>
      %598 = vector.broadcast %597 : vector<1x50xf32> to vector<8x50xf32>
      %599 = arith.subf %587, %598 : vector<8x50xf32>
      %600 = arith.mulf %599, %592 : vector<8x50xf32>
      %601 = arith.mulf %600, %600 : vector<8x50xf32>
      %cst_280 = arith.constant dense<0.000000e+00> : vector<50xf32>
      %602 = vector.multi_reduction <add>, %601, %cst_280 [0] : vector<8x50xf32> to vector<50xf32>
      %603 = vector.shape_cast %602 : vector<50xf32> to vector<1x50xf32>
      %cst_281 = arith.constant 4.000000e+00 : f32
      %604 = vector.broadcast %cst_281 : f32 to vector<1x50xf32>
      %605 = arith.divf %603, %604 : vector<1x50xf32>
      %606 = vector.broadcast %597 : vector<1x50xf32> to vector<8x50xf32>
      %607 = arith.subf %587, %606 : vector<8x50xf32>
      %cst_282 = arith.constant 9.99999974E-6 : f32
      %608 = vector.broadcast %cst_282 : f32 to vector<1x50xf32>
      %609 = arith.addf %605, %608 : vector<1x50xf32>
      %610 = math.rsqrt %609 : vector<1x50xf32>
      %611 = vector.broadcast %610 : vector<1x50xf32> to vector<8x50xf32>
      %612 = arith.mulf %607, %611 : vector<8x50xf32>
      %c0_283 = arith.constant 0 : index
      %c0_284 = arith.constant 0 : index
      %613 = vector.load %arg8[%c0_283, %c0_284] : memref<50x4xf32, #tpu.memory_space<vmem>>, vector<50x4xf32>
      %cst_285 = arith.constant dense<0.000000e+00> : vector<8x4xf32>
      %614 = tpu.matmul %612, %613, %cst_285 {dimension_numbers = #tpu.dot_dimension_numbers<[1], [0], [0], [1], [0, 0, 1, 1], [], []>} : vector<8x50xf32>, vector<50x4xf32>, vector<8x4xf32> -> vector<8x4xf32>
      %c0_286 = arith.constant 0 : index
      %c0_287 = arith.constant 0 : index
      %615 = vector.load %arg9[%c0_286, %c0_287] : memref<1x4xf32, #tpu.memory_space<vmem>>, vector<1x4xf32>
      %616 = vector.broadcast %615 : vector<1x4xf32> to vector<8x4xf32>
      %617 = arith.addf %614, %616 : vector<8x4xf32>
      %c0_288 = arith.constant 0 : index
      %c0_289 = arith.constant 0 : index
      %618 = vector.load %arg10[%c0_288, %c0_289] : memref<8x4xf32, #tpu.memory_space<vmem>>, vector<8x4xf32>
      tpu.vector_store %arg10[%c0_288, %c0_289], %617 {strides = array<i32>} : memref<8x4xf32, #tpu.memory_space<vmem>>, vector<8x4xf32>,
    } else {
    }
    return
  }
  func.func @transform_0(%arg0: i32) -> (i32, i32, i32) {
    %c0_i32 = arith.constant 0 : i32
    %c0_i32_0 = arith.constant 0 : i32
    %c0_i32_1 = arith.constant 0 : i32
    return %arg0, %c0_i32, %c0_i32_0 : i32, i32, i32
  }
  func.func @transform_1(%arg0: i32) -> (i32, i32, i32) {
    %c1_i32 = arith.constant 1 : i32
    %0 = arith.subi %c1_i32, %arg0 : i32
    %c0_i32 = arith.constant 0 : i32
    %c0_i32_0 = arith.constant 0 : i32
    %c0_i32_1 = arith.constant 0 : i32
    return %0, %c0_i32, %c0_i32_0 : i32, i32, i32
  }
  func.func @transform_2(%arg0: i32) -> (i32, i32) {
    %c0_i32 = arith.constant 0 : i32
    %c0_i32_0 = arith.constant 0 : i32
    %c0_i32_1 = arith.constant 0 : i32
    return %c0_i32, %c0_i32_0 : i32, i32
  }
  func.func @transform_3(%arg0: i32) -> (i32, i32) {
    %c0_i32 = arith.constant 0 : i32
    %c0_i32_0 = arith.constant 0 : i32
    %c0_i32_1 = arith.constant 0 : i32
    return %c0_i32, %c0_i32_0 : i32, i32
  }
  func.func @transform_4(%arg0: i32) -> (i32, i32) {
    %c0_i32 = arith.constant 0 : i32
    %c0_i32_0 = arith.constant 0 : i32
    %c0_i32_1 = arith.constant 0 : i32
    return %c0_i32, %c0_i32_0 : i32, i32
  }
  func.func @transform_5(%arg0: i32) -> (i32, i32) {
    %c0_i32 = arith.constant 0 : i32
    %c0_i32_0 = arith.constant 0 : i32
    %c0_i32_1 = arith.constant 0 : i32
    return %c0_i32, %c0_i32_0 : i32, i32
  }
  func.func @transform_6(%arg0: i32) -> i32 {
    %c0_i32 = arith.constant 0 : i32
    %c0_i32_0 = arith.constant 0 : i32
    return %c0_i32 : i32
  }
  func.func @transform_7(%arg0: i32) -> (i32, i32) {
    %c0_i32 = arith.constant 0 : i32
    %c0_i32_0 = arith.constant 0 : i32
    %c0_i32_1 = arith.constant 0 : i32
    return %c0_i32, %c0_i32_0 : i32, i32
  }
  func.func @transform_8(%arg0: i32) -> (i32, i32) {
    %c0_i32 = arith.constant 0 : i32
    %c0_i32_0 = arith.constant 0 : i32
    %c0_i32_1 = arith.constant 0 : i32
    return %c0_i32, %c0_i32_0 : i32, i32
  }
  func.func @transform_9(%arg0: i32) -> (i32, i32) {
    %c0_i32 = arith.constant 0 : i32
    %c0_i32_0 = arith.constant 0 : i32
    %c0_i32_1 = arith.constant 0 : i32
    return %c0_i32, %c0_i32_0 : i32, i32
  }
}

</mosaic_0001>

<llo_original>
// kernel: rnn_forward.2
$region0: #{rnn_forward.2}
  #allocation0 [shape = 'u32[]', space=smem, size = 0x4, offset = 0x4, fixed_abs, tag = 'smem constant byte address 0x4 - core index']
  #allocation1 [shape = 'u32[144,128]{1,0:T(1,128)}', space=vmem, size = 0x12000, scoped, tag = 'internal scratch']
  %s0 = inlined_call_operand.vmem [shape: f32[16,8,128], index: 0, kind: input, shape index: {}]
  %s1 = inlined_call_operand.vmem [shape: f32[128,1024], index: 1, kind: input, shape index: {}]
  %s2 = inlined_call_operand.vmem [shape: f32[1,1024], index: 2, kind: input, shape index: {}]
  %s3 = inlined_call_operand.vmem [shape: f32[16,8,512], index: 3, kind: output, shape index: {0}]
  %s4 = inlined_call_operand.vmem [shape: f32[16,8,512], index: 4, kind: output, shape index: {1}]
  %5 = xla_tuple %s3, %s4
  %s6 = sld [smem:[#allocation0]]
  $region53: #{rnn_forward.2} parent=0
    _
  %s8 = ssub.s32 1, %s6
  %s9 = scalar_select 0, %s8, %s6
  loop: start=0, step=1, limit=4
  $region2: #{rnn_forward.2} parent=0 // loop_pre_header
    _
  $region3: #{rnn_forward.2} parent=0 // loop_header
    %s11 = sphi 0, %s15
    %p12 = scmp.ge.s32.totalorder %s11, 4
    %s21 = sphi 0, %s23
    %s24 = sphi 0, %s21
    %s25 = sphi 0, %s24
    %s41 = sphi 0, %s25
    %s45 = sphi 0, %s45
    %s47 = sphi 0, %s45
    %s48 = sphi 0, %s47
    %s62 = sphi 0, %s48
    %s66 = sphi 0, %s66
    %s68 = sphi 0, %s66
    %s69 = sphi 0, %s68
    %s83 = sphi 0, %s69
    %s89 = sphi 0, %s91
    %s92 = sphi 0, %s89
    %s93 = sphi 0, %s92
    %s109 = sphi 0, %s93
    %s115 = sphi 0, %s117
    %s118 = sphi 0, %s115
    %s119 = sphi 0, %s118
    %s135 = sphi 0, %s119
  $region4: #{rnn_forward.2} parent=0 // loop_header_branch
    %14 = sbr.rel (%p12) target = $region8
  $region5: #{rnn_forward.2} parent=0 // loop_body
    %s16 = ssub.s32 %s11, 1
    %s17 = ssub.s32 %s11, 2
    %s18 = sadd.s32 %s11, 1
    %s19 = ssub.s32 %s11, %s18
    %p20 = scmp.eq.s32.totalorder %s19, 0
    %s22 = sadd.s32 %s21, 1
    %s23 = scalar_select %p20, %s21, %s22
    %p26 = pneg %p20
    %p27 = scmp.eq.s32.totalorder %s11, 1
    %p28 = por %p26, %p27
    %p29 = scmp.ne.s32.totalorder %s21, %s24
    %p30 = scmp.eq.s32.totalorder %s11, 0
    %p31 = por %p29, %p30
    %p32 = scmp.ne.s32.totalorder %s21, %s24
    %p33 = scmp.eq.s32.totalorder %s16, 1
    %p34 = por %p32, %p33
    %p35 = scmp.ne.s32.totalorder %s24, %s25
    %p36 = scmp.eq.s32.totalorder %s16, 0
    %p37 = por %p35, %p36
    %p38 = scmp.ne.s32.totalorder %s24, %s25
    %p39 = scmp.eq.s32.totalorder %s17, 1
    %p40 = por %p38, %p39
    %p42 = scmp.ne.s32.totalorder %s25, %s41
    %p43 = scmp.eq.s32.totalorder %s17, 0
    %p44 = por %p42, %p43
    %s46 = sadd.s32 %s45, 1
    %p49 = scmp.eq.s32.totalorder %s11, 1
    %p50 = scmp.ne.s32.totalorder %s45, %s47
    %p51 = scmp.eq.s32.totalorder %s11, 0
    %p52 = por %p50, %p51
    %p53 = scmp.ne.s32.totalorder %s45, %s47
    %p54 = scmp.eq.s32.totalorder %s16, 1
    %p55 = por %p53, %p54
    %p56 = scmp.ne.s32.totalorder %s47, %s48
    %p57 = scmp.eq.s32.totalorder %s16, 0
    %p58 = por %p56, %p57
    %p59 = scmp.ne.s32.totalorder %s47, %s48
    %p60 = scmp.eq.s32.totalorder %s17, 1
    %p61 = por %p59, %p60
    %p63 = scmp.ne.s32.totalorder %s48, %s62
    %p64 = scmp.eq.s32.totalorder %s17, 0
    %p65 = por %p63, %p64
    %s67 = sadd.s32 %s66, 1
    %p70 = scmp.eq.s32.totalorder %s11, 1
    %p71 = scmp.ne.s32.totalorder %s66, %s68
    %p72 = scmp.eq.s32.totalorder %s11, 0
    %p73 = por %p71, %p72
    %p74 = scmp.ne.s32.totalorder %s66, %s68
    %p75 = scmp.eq.s32.totalorder %s16, 1
    %p76 = por %p74, %p75
    %p77 = scmp.ne.s32.totalorder %s68, %s69
    %p78 = scmp.eq.s32.totalorder %s16, 0
    %p79 = por %p77, %p78
    %p80 = scmp.ne.s32.totalorder %s68, %s69
    %p81 = scmp.eq.s32.totalorder %s17, 1
    %p82 = por %p80, %p81
    %p84 = scmp.ne.s32.totalorder %s69, %s83
    %p85 = scmp.eq.s32.totalorder %s17, 0
    %p86 = por %p84, %p85
    %s87 = ssub.s32 %s11, %s18
    %p88 = scmp.eq.s32.totalorder %s87, 0
    %s90 = sadd.s32 %s89, 1
    %s91 = scalar_select %p88, %s89, %s90
    %p94 = pneg %p88
    %p95 = scmp.eq.s32.totalorder %s11, 1
    %p96 = por %p94, %p95
    %p97 = scmp.ne.s32.totalorder %s89, %s92
    %p98 = scmp.eq.s32.totalorder %s11, 0
    %p99 = por %p97, %p98
    %p100 = scmp.ne.s32.totalorder %s89, %s92
    %p101 = scmp.eq.s32.totalorder %s16, 1
    %p102 = por %p100, %p101
    %p103 = scmp.ne.s32.totalorder %s92, %s93
    %p104 = scmp.eq.s32.totalorder %s16, 0
    %p105 = por %p103, %p104
    %p106 = scmp.ne.s32.totalorder %s92, %s93
    %p107 = scmp.eq.s32.totalorder %s17, 1
    %p108 = por %p106, %p107
    %p110 = scmp.ne.s32.totalorder %s93, %s109
    %p111 = scmp.eq.s32.totalorder %s17, 0
    %p112 = por %p110, %p111
    %s113 = ssub.s32 %s11, %s18
    %p114 = scmp.eq.s32.totalorder %s113, 0
    %s116 = sadd.s32 %s115, 1
    %s117 = scalar_select %p114, %s115, %s116
    %p120 = pneg %p114
    %p121 = scmp.eq.s32.totalorder %s11, 1
    %p122 = por %p120, %p121
    %p123 = scmp.ne.s32.totalorder %s115, %s118
    %p124 = scmp.eq.s32.totalorder %s11, 0
    %p125 = por %p123, %p124
    %p126 = scmp.ne.s32.totalorder %s115, %s118
    %p127 = scmp.eq.s32.totalorder %s16, 1
    %p128 = por %p126, %p127
    %p129 = scmp.ne.s32.totalorder %s118, %s119
    %p130 = scmp.eq.s32.totalorder %s16, 0
    %p131 = por %p129, %p130
    %p132 = scmp.ne.s32.totalorder %s118, %s119
    %p133 = scmp.eq.s32.totalorder %s17, 1
    %p134 = por %p132, %p133
    %p136 = scmp.ne.s32.totalorder %s119, %s135
    %p137 = scmp.eq.s32.totalorder %s17, 0
    %p138 = por %p136, %p137
    %p139 = scmp.le.s32.totalorder 1, %s11
    %p140 = scmp.lt.s32.totalorder %s11, 3
    %p141 = pnand %p139, %p140
    %p142 = pneg %p141
    // Predicated region
    $region9: #{rnn_forward.2} parent=5 // pred_check
      _
    $region10: #{rnn_forward.2} parent=5 // pred_check_branch
      %144 = sbr.rel (%p141) target = $region12
    $region11: #{rnn_forward.2} parent=5 // pred_region
      %s145 = ssub.s32 %s11, 1
      // Predicated region
      $region13: #{rnn_forward.2} parent=11 // pred_check
        %p146 = pneg %p58
      $region14: #{rnn_forward.2} parent=11 // pred_check_branch
        %148 = sbr.rel (%p146) target = $region16
      $region15: #{rnn_forward.2} parent=11 // pred_region
        _
      $region16: #{rnn_forward.2} parent=11 // pred_fallthru
        _
      // Predicated region
      $region17: #{rnn_forward.2} parent=11 // pred_check
        %p149 = pneg %p79
      $region18: #{rnn_forward.2} parent=11 // pred_check_branch
        %151 = sbr.rel (%p149) target = $region20
      $region19: #{rnn_forward.2} parent=11 // pred_region
        _
      $region20: #{rnn_forward.2} parent=11 // pred_fallthru
        _
    $region12: #{rnn_forward.2} parent=5 // pred_fallthru
      _
    %p152 = scmp.lt.s32.totalorder %s11, 2
    // Predicated region
    $region21: #{rnn_forward.2} parent=5 // pred_check
      %p153 = pneg %p152
    $region22: #{rnn_forward.2} parent=5 // pred_check_branch
      %155 = sbr.rel (%p153) target = $region24
    $region23: #{rnn_forward.2} parent=5 // pred_region
      // Predicated region
      $region25: #{rnn_forward.2} parent=23 // pred_check
        %p156 = pneg %p31
      $region26: #{rnn_forward.2} parent=23 // pred_check_branch
        %158 = sbr.rel (%p156) target = $region28
      $region27: #{rnn_forward.2} parent=23 // pred_region
        %s159 = smul.u32 8, %s11
        %p160 = scmp.lt.s32.totalorder %s159, 15
        %s161 = scalar_select %p160, %s159, 15
        %s162 = smul.addr %s161, 8
        %s163 = scalar_lea.vmem %s0, %s162
        %s164 = smul.u32 8, %s11
      $region28: #{rnn_forward.2} parent=23 // pred_fallthru
        _
    $region24: #{rnn_forward.2} parent=5 // pred_fallthru
      _
    %p165 = scmp.le.s32.totalorder 1, %s11
    %p166 = scmp.lt.s32.totalorder %s11, 3
    %p167 = pnand %p165, %p166
    %p168 = pneg %p167
    // Predicated region
    $region29: #{rnn_forward.2} parent=5 // pred_check
      _
    $region30: #{rnn_forward.2} parent=5 // pred_check_branch
      %170 = sbr.rel (%p167) target = $region32
    $region31: #{rnn_forward.2} parent=5 // pred_region
      %s171 = ssub.s32 %s11, 1
      %s172 = smul.u32 8, %s16
      %p173 = scmp.lt.s32.totalorder %s172, 15
      %s174 = scalar_select %p173, %s172, 15
      %s175 = smul.addr %s174, 8
      %s176 = scalar_lea.vmem %s0, %s175
      %p177 = pneg %p37
      %p178 = pneg %p34
      %p179 = pneg %p58
      %p180 = pneg %p55
      %p181 = pneg %p79
      %p182 = pneg %p76
      %p183 = pneg %p105
      %p184 = pneg %p102
      %s185 = smul.u32 8, %s16
      %p186 = scmp.lt.s32.totalorder %s185, 15
      %s187 = scalar_select %p186, %s185, 15
      %s188 = smul.addr %s187, 4
      %s189 = smul.addr %s188, 8
      %s190 = scalar_lea.vmem %s3, %s189
      %p191 = pneg %p131
      %p192 = pneg %p128
      %s193 = smul.u32 8, %s16
      %p194 = scmp.lt.s32.totalorder %s193, 15
      %s195 = scalar_select %p194, %s193, 15
      %s196 = smul.addr %s195, 4
      %s197 = smul.addr %s196, 8
      %s198 = scalar_lea.vmem %s4, %s197
      %s199 = smul.u32 8, %s16
      %p200 = scmp.lt.s32.totalorder %s199, 15
      %s201 = scalar_select %p200, %s199, 15
      %s202 = smul.addr %s201, 8
      %s203 = scalar_lea.vmem %s0, %s202
      %s204 = smul.u32 8, %s16
      %s205 = smul.u32 8, %s16
      %p206 = scmp.lt.s32.totalorder %s205, 15
      %s207 = scalar_select %p206, %s205, 15
      %s208 = smul.addr %s207, 4
      %s209 = smul.addr %s208, 8
      %s210 = scalar_lea.vmem %s3, %s209
      %s211 = smul.u32 8, %s16
      %s212 = smul.u32 8, %s16
      %p213 = scmp.lt.s32.totalorder %s212, 15
      %s214 = scalar_select %p213, %s212, 15
      %s215 = smul.addr %s214, 4
      %s216 = smul.addr %s215, 8
      %s217 = scalar_lea.vmem %s4, %s216
      %s218 = smul.u32 8, %s16
      %v219 = vld [vmem:[%s203] sm:$0xff]
      %v220 = vld [vmem:[%s203 + $0x8] sm:$0xff]
      %v221 = vld [vmem:[%s203 + $0x10] sm:$0xff]
      %v222 = vld [vmem:[%s203 + $0x18] sm:$0xff]
      %v223 = vld [vmem:[%s203 + $0x20] sm:$0xff]
      %v224 = vld [vmem:[%s203 + $0x28] sm:$0xff]
      %v225 = vld [vmem:[%s203 + $0x30] sm:$0xff]
      %v226 = vld [vmem:[%s203 + $0x38] sm:$0xff]
      %v227 = vld [vmem:[%s1] sm:$0xff]
      %v228 = vld [vmem:[%s1 + $0x8] sm:$0xff]
      %v229 = vld [vmem:[%s1 + $0x10] sm:$0xff]
      %v230 = vld [vmem:[%s1 + $0x18] sm:$0xff]
      %v231 = vld [vmem:[%s1 + $0x20] sm:$0xff]
      %v232 = vld [vmem:[%s1 + $0x28] sm:$0xff]
      %v233 = vld [vmem:[%s1 + $0x30] sm:$0xff]
      %v234 = vld [vmem:[%s1 + $0x38] sm:$0xff]
      %v235 = vld [vmem:[%s1 + $0x40] sm:$0xff]
      %v236 = vld [vmem:[%s1 + $0x48] sm:$0xff]
      %v237 = vld [vmem:[%s1 + $0x50] sm:$0xff]
      %v238 = vld [vmem:[%s1 + $0x58] sm:$0xff]
      %v239 = vld [vmem:[%s1 + $0x60] sm:$0xff]
      %v240 = vld [vmem:[%s1 + $0x68] sm:$0xff]
      %v241 = vld [vmem:[%s1 + $0x70] sm:$0xff]
      %v242 = vld [vmem:[%s1 + $0x78] sm:$0xff]
      %v243 = vld [vmem:[%s1 + $0x80] sm:$0xff]
      %v244 = vld [vmem:[%s1 + $0x88] sm:$0xff]
      %v245 = vld [vmem:[%s1 + $0x90] sm:$0xff]
      %v246 = vld [vmem:[%s1 + $0x98] sm:$0xff]
      %v247 = vld [vmem:[%s1 + $0xa0] sm:$0xff]
      %v248 = vld [vmem:[%s1 + $0xa8] sm:$0xff]
      %v249 = vld [vmem:[%s1 + $0xb0] sm:$0xff]
      %v250 = vld [vmem:[%s1 + $0xb8] sm:$0xff]
      %v251 = vld [vmem:[%s1 + $0xc0] sm:$0xff]
      %v252 = vld [vmem:[%s1 + $0xc8] sm:$0xff]
      %v253 = vld [vmem:[%s1 + $0xd0] sm:$0xff]
      %v254 = vld [vmem:[%s1 + $0xd8] sm:$0xff]
      %v255 = vld [vmem:[%s1 + $0xe0] sm:$0xff]
      %v256 = vld [vmem:[%s1 + $0xe8] sm:$0xff]
      %v257 = vld [vmem:[%s1 + $0xf0] sm:$0xff]
      %v258 = vld [vmem:[%s1 + $0xf8] sm:$0xff]
      %v259 = vld [vmem:[%s1 + $0x100] sm:$0xff]
      %v260 = vld [vmem:[%s1 + $0x108] sm:$0xff]
      %v261 = vld [vmem:[%s1 + $0x110] sm:$0xff]
      %v262 = vld [vmem:[%s1 + $0x118] sm:$0xff]
      %v263 = vld [vmem:[%s1 + $0x120] sm:$0xff]
      %v264 = vld [vmem:[%s1 + $0x128] sm:$0xff]
      %v265 = vld [vmem:[%s1 + $0x130] sm:$0xff]
      %v266 = vld [vmem:[%s1 + $0x138] sm:$0xff]
      %v267 = vld [vmem:[%s1 + $0x140] sm:$0xff]
      %v268 = vld [vmem:[%s1 + $0x148] sm:$0xff]
      %v269 = vld [vmem:[%s1 + $0x150] sm:$0xff]
      %v270 = vld [vmem:[%s1 + $0x158] sm:$0xff]
      %v271 = vld [vmem:[%s1 + $0x160] sm:$0xff]
      %v272 = vld [vmem:[%s1 + $0x168] sm:$0xff]
      %v273 = vld [vmem:[%s1 + $0x170] sm:$0xff]
      %v274 = vld [vmem:[%s1 + $0x178] sm:$0xff]
      %v275 = vld [vmem:[%s1 + $0x180] sm:$0xff]
      %v276 = vld [vmem:[%s1 + $0x188] sm:$0xff]
      %v277 = vld [vmem:[%s1 + $0x190] sm:$0xff]
      %v278 = vld [vmem:[%s1 + $0x198] sm:$0xff]
      %v279 = vld [vmem:[%s1 + $0x1a0] sm:$0xff]
      %v280 = vld [vmem:[%s1 + $0x1a8] sm:$0xff]
      %v281 = vld [vmem:[%s1 + $0x1b0] sm:$0xff]
      %v282 = vld [vmem:[%s1 + $0x1b8] sm:$0xff]
      %v283 = vld [vmem:[%s1 + $0x1c0] sm:$0xff]
      %v284 = vld [vmem:[%s1 + $0x1c8] sm:$0xff]
      %v285 = vld [vmem:[%s1 + $0x1d0] sm:$0xff]
      %v286 = vld [vmem:[%s1 + $0x1d8] sm:$0xff]
      %v287 = vld [vmem:[%s1 + $0x1e0] sm:$0xff]
      %v288 = vld [vmem:[%s1 + $0x1e8] sm:$0xff]
      %v289 = vld [vmem:[%s1 + $0x1f0] sm:$0xff]
      %v290 = vld [vmem:[%s1 + $0x1f8] sm:$0xff]
      %v291 = vld [vmem:[%s1 + $0x200] sm:$0xff]
      %v292 = vld [vmem:[%s1 + $0x208] sm:$0xff]
      %v293 = vld [vmem:[%s1 + $0x210] sm:$0xff]
      %v294 = vld [vmem:[%s1 + $0x218] sm:$0xff]
      %v295 = vld [vmem:[%s1 + $0x220] sm:$0xff]
      %v296 = vld [vmem:[%s1 + $0x228] sm:$0xff]
      %v297 = vld [vmem:[%s1 + $0x230] sm:$0xff]
      %v298 = vld [vmem:[%s1 + $0x238] sm:$0xff]
      %v299 = vld [vmem:[%s1 + $0x240] sm:$0xff]
      %v300 = vld [vmem:[%s1 + $0x248] sm:$0xff]
      %v301 = vld [vmem:[%s1 + $0x250] sm:$0xff]
      %v302 = vld [vmem:[%s1 + $0x258] sm:$0xff]
      %v303 = vld [vmem:[%s1 + $0x260] sm:$0xff]
      %v304 = vld [vmem:[%s1 + $0x268] sm:$0xff]
      %v305 = vld [vmem:[%s1 + $0x270] sm:$0xff]
      %v306 = vld [vmem:[%s1 + $0x278] sm:$0xff]
      %v307 = vld [vmem:[%s1 + $0x280] sm:$0xff]
      %v308 = vld [vmem:[%s1 + $0x288] sm:$0xff]
      %v309 = vld [vmem:[%s1 + $0x290] sm:$0xff]
      %v310 = vld [vmem:[%s1 + $0x298] sm:$0xff]
      %v311 = vld [vmem:[%s1 + $0x2a0] sm:$0xff]
      %v312 = vld [vmem:[%s1 + $0x2a8] sm:$0xff]
      %v313 = vld [vmem:[%s1 + $0x2b0] sm:$0xff]
      %v314 = vld [vmem:[%s1 + $0x2b8] sm:$0xff]
      %v315 = vld [vmem:[%s1 + $0x2c0] sm:$0xff]
      %v316 = vld [vmem:[%s1 + $0x2c8] sm:$0xff]
      %v317 = vld [vmem:[%s1 + $0x2d0] sm:$0xff]
      %v318 = vld [vmem:[%s1 + $0x2d8] sm:$0xff]
      %v319 = vld [vmem:[%s1 + $0x2e0] sm:$0xff]
      %v320 = vld [vmem:[%s1 + $0x2e8] sm:$0xff]
      %v321 = vld [vmem:[%s1 + $0x2f0] sm:$0xff]
      %v322 = vld [vmem:[%s1 + $0x2f8] sm:$0xff]
      %v323 = vld [vmem:[%s1 + $0x300] sm:$0xff]
      %v324 = vld [vmem:[%s1 + $0x308] sm:$0xff]
      %v325 = vld [vmem:[%s1 + $0x310] sm:$0xff]
      %v326 = vld [vmem:[%s1 + $0x318] sm:$0xff]
      %v327 = vld [vmem:[%s1 + $0x320] sm:$0xff]
      %v328 = vld [vmem:[%s1 + $0x328] sm:$0xff]
      %v329 = vld [vmem:[%s1 + $0x330] sm:$0xff]
      %v330 = vld [vmem:[%s1 + $0x338] sm:$0xff]
      %v331 = vld [vmem:[%s1 + $0x340] sm:$0xff]
      %v332 = vld [vmem:[%s1 + $0x348] sm:$0xff]
      %v333 = vld [vmem:[%s1 + $0x350] sm:$0xff]
      %v334 = vld [vmem:[%s1 + $0x358] sm:$0xff]
      %v335 = vld [vmem:[%s1 + $0x360] sm:$0xff]
      %v336 = vld [vmem:[%s1 + $0x368] sm:$0xff]
      %v337 = vld [vmem:[%s1 + $0x370] sm:$0xff]
      %v338 = vld [vmem:[%s1 + $0x378] sm:$0xff]
      %v339 = vld [vmem:[%s1 + $0x380] sm:$0xff]
      %v340 = vld [vmem:[%s1 + $0x388] sm:$0xff]
      %v341 = vld [vmem:[%s1 + $0x390] sm:$0xff]
      %v342 = vld [vmem:[%s1 + $0x398] sm:$0xff]
      %v343 = vld [vmem:[%s1 + $0x3a0] sm:$0xff]
      %v344 = vld [vmem:[%s1 + $0x3a8] sm:$0xff]
      %v345 = vld [vmem:[%s1 + $0x3b0] sm:$0xff]
      %v346 = vld [vmem:[%s1 + $0x3b8] sm:$0xff]
      %v347 = vld [vmem:[%s1 + $0x3c0] sm:$0xff]
      %v348 = vld [vmem:[%s1 + $0x3c8] sm:$0xff]
      %v349 = vld [vmem:[%s1 + $0x3d0] sm:$0xff]
      %v350 = vld [vmem:[%s1 + $0x3d8] sm:$0xff]
      %v351 = vld [vmem:[%s1 + $0x3e0] sm:$0xff]
      %v352 = vld [vmem:[%s1 + $0x3e8] sm:$0xff]
      %v353 = vld [vmem:[%s1 + $0x3f0] sm:$0xff]
      %v354 = vld [vmem:[%s1 + $0x3f8] sm:$0xff]
      %v355 = vld [vmem:[%s2] sm:$0xff]
      %v357 = vlaneseq
      %v358 = vshrl.u32 %v357, 7
      %v359 = vsub.s32 0, %v358
      %v360 = vrot.slane %v355, %v359
      %v361 = vlaneseq
      %v362 = vshrl.u32 %v361, 7
      %v363 = vsub.s32 1, %v362
      %v364 = vrot.slane %v355, %v363
      %v365 = vlaneseq
      %v366 = vshrl.u32 %v365, 7
      %v367 = vsub.s32 2, %v366
      %v368 = vrot.slane %v355, %v367
      %v369 = vlaneseq
      %v370 = vshrl.u32 %v369, 7
      %v371 = vsub.s32 3, %v370
      %v372 = vrot.slane %v355, %v371
      %v373 = vlaneseq
      %v374 = vshrl.u32 %v373, 7
      %v375 = vsub.s32 4, %v374
      %v376 = vrot.slane %v355, %v375
      %v377 = vlaneseq
      %v378 = vshrl.u32 %v377, 7
      %v379 = vsub.s32 5, %v378
      %v380 = vrot.slane %v355, %v379
      %v381 = vlaneseq
      %v382 = vshrl.u32 %v381, 7
      %v383 = vsub.s32 6, %v382
      %v384 = vrot.slane %v355, %v383
      %v385 = vlaneseq
      %v386 = vshrl.u32 %v385, 7
      %v387 = vsub.s32 7, %v386
      %v388 = vrot.slane %v355, %v387
      %397 = vmatprep.subr.mxu0 %v348
      %398 = vmatpush1.msra.mxu0 %v347
      %399 = vmatprep.subr.mxu0 %v340
      %400 = vmatpush1.msra.mxu0 %v339
      %401 = vmatprep.subr.mxu0 %v332
      %402 = vmatpush1.msra.mxu0 %v331
      %403 = vmatprep.subr.mxu0 %v324
      %404 = vmatpush1.msra.mxu0 %v323
      %405 = vmatprep.subr.mxu0 %v316
      %406 = vmatpush1.msra.mxu0 %v315
      %407 = vmatprep.subr.mxu0 %v308
      %408 = vmatpush1.msra.mxu0 %v307
      %409 = vmatprep.subr.mxu0 %v300
      %410 = vmatpush1.msra.mxu0 %v299
      %411 = vmatprep.subr.mxu0 %v292
      %412 = vmatpush1.msra.mxu0 %v291
      %413 = vmatprep.subr.mxu0 %v284
      %414 = vmatpush1.msra.mxu0 %v283
      %415 = vmatprep.subr.mxu0 %v276
      %416 = vmatpush1.msra.mxu0 %v275
      %417 = vmatprep.subr.mxu0 %v268
      %418 = vmatpush1.msra.mxu0 %v267
      %419 = vmatprep.subr.mxu0 %v260
      %420 = vmatpush1.msra.mxu0 %v259
      %421 = vmatprep.subr.mxu0 %v252
      %422 = vmatpush1.msra.mxu0 %v251
      %423 = vmatprep.subr.mxu0 %v244
      %424 = vmatpush1.msra.mxu0 %v243
      %425 = vmatprep.subr.mxu0 %v236
      %426 = vmatpush1.msra.mxu0 %v235
      %427 = vmatprep.subr.mxu0 %v228
      %428 = vmatpush1.msra.mxu0 %v227
      %429 = vmatprep.subr.mxu0 0.0
      %430 = vmatpush2.msra.mxu0 0.0
      %431 = vmatprep.subr.mxu0 0.0
      %432 = vmatpush2.msra.mxu0 0.0
      %433 = vmatprep.subr.mxu0 0.0
      %434 = vmatpush2.msra.mxu0 0.0
      %435 = vmatprep.subr.mxu0 0.0
      %436 = vmatpush2.msra.mxu0 0.0
      %437 = vmatprep.subr.mxu0 0.0
      %438 = vmatpush2.msra.mxu0 0.0
      %439 = vmatprep.subr.mxu0 0.0
      %440 = vmatpush2.msra.mxu0 0.0
      %441 = vmatprep.subr.mxu0 0.0
      %442 = vmatpush2.msra.mxu0 0.0
      %443 = vmatprep.subr.mxu0 0.0
      %444 = vmatpush2.msra.mxu0 0.0
      %445 = vmatprep.subr.mxu0 0.0
      %446 = vmatpush2.msra.mxu0 0.0
      %447 = vmatprep.subr.mxu0 0.0
      %448 = vmatpush2.msra.mxu0 0.0
      %449 = vmatprep.subr.mxu0 0.0
      %450 = vmatpush2.msra.mxu0 0.0
      %451 = vmatprep.subr.mxu0 0.0
      %452 = vmatpush2.msra.mxu0 0.0
      %453 = vmatprep.subr.mxu0 0.0
      %454 = vmatpush2.msra.mxu0 0.0
      %455 = vmatprep.subr.mxu0 0.0
      %456 = vmatpush2.msra.mxu0 0.0
      %457 = vmatprep.subr.mxu0 0.0
      %458 = vmatpush2.msra.mxu0 0.0
      %459 = vmatprep.subr.mxu0 0.0
      %460 = vmatpush2.msra.mxu0 0.0
      %461 = vmatprep.mubr.f32.mxu0 0.0
      %462 = vmatmul.mubr.f32.gmra.mxu0 %v219
      %v463 = vpop.f32.mrf.mxu0
      %v464 = vadd.f32 %v360, %v463
      %v465 = vpop.f32.mrf.mxu0
      %v466 = vadd.f32 %v364, %v465
      %467 = vmatprep.mubr.f32.mxu0 0.0
      %468 = vmatmul.mubr.f32.gmra.mxu0 %v220
      %v469 = vpop.f32.mrf.mxu0
      %v470 = vadd.f32 %v360, %v469
      %v471 = vpop.f32.mrf.mxu0
      %v472 = vadd.f32 %v364, %v471
      %473 = vmatprep.mubr.f32.mxu0 0.0
      %474 = vmatmul.mubr.f32.gmra.mxu0 %v221
      %v475 = vpop.f32.mrf.mxu0
      %v476 = vadd.f32 %v360, %v475
      %v477 = vpop.f32.mrf.mxu0
      %v478 = vadd.f32 %v364, %v477
      %479 = vmatprep.mubr.f32.mxu0 0.0
      %480 = vmatmul.mubr.f32.gmra.mxu0 %v222
      %v481 = vpop.f32.mrf.mxu0
      %v482 = vadd.f32 %v360, %v481
      %v483 = vpop.f32.mrf.mxu0
      %v484 = vadd.f32 %v364, %v483
      %485 = vmatprep.mubr.f32.mxu0 0.0
      %486 = vmatmul.mubr.f32.gmra.mxu0 %v223
      %v487 = vpop.f32.mrf.mxu0
      %v488 = vadd.f32 %v360, %v487
      %v489 = vpop.f32.mrf.mxu0
      %v490 = vadd.f32 %v364, %v489
      %491 = vmatprep.mubr.f32.mxu0 0.0
      %492 = vmatmul.mubr.f32.gmra.mxu0 %v224
      %v493 = vpop.f32.mrf.mxu0
      %v494 = vadd.f32 %v360, %v493
      %v495 = vpop.f32.mrf.mxu0
      %v496 = vadd.f32 %v364, %v495
      %497 = vmatprep.mubr.f32.mxu0 0.0
      %498 = vmatmul.mubr.f32.gmra.mxu0 %v225
      %v499 = vpop.f32.mrf.mxu0
      %v500 = vadd.f32 %v360, %v499
      %v501 = vpop.f32.mrf.mxu0
      %v502 = vadd.f32 %v364, %v501
      %503 = vmatprep.mubr.f32.mxu0 0.0
      %504 = vmatmul.mubr.f32.gmra.mxu0 %v226
      %v505 = vpop.f32.mrf.mxu0
      %v506 = vadd.f32 %v360, %v505
      %v507 = vpop.f32.mrf.mxu0
      %v508 = vadd.f32 %v364, %v507
      %509 = vdwg.mxu0
      %510 = vmatprep.subr.mxu0 %v350
      %511 = vmatpush1.msra.mxu0 %v349
      %512 = vmatprep.subr.mxu0 %v342
      %513 = vmatpush1.msra.mxu0 %v341
      %514 = vmatprep.subr.mxu0 %v334
      %515 = vmatpush1.msra.mxu0 %v333
      %516 = vmatprep.subr.mxu0 %v326
      %517 = vmatpush1.msra.mxu0 %v325
      %518 = vmatprep.subr.mxu0 %v318
      %519 = vmatpush1.msra.mxu0 %v317
      %520 = vmatprep.subr.mxu0 %v310
      %521 = vmatpush1.msra.mxu0 %v309
      %522 = vmatprep.subr.mxu0 %v302
      %523 = vmatpush1.msra.mxu0 %v301
      %524 = vmatprep.subr.mxu0 %v294
      %525 = vmatpush1.msra.mxu0 %v293
      %526 = vmatprep.subr.mxu0 %v286
      %527 = vmatpush1.msra.mxu0 %v285
      %528 = vmatprep.subr.mxu0 %v278
      %529 = vmatpush1.msra.mxu0 %v277
      %530 = vmatprep.subr.mxu0 %v270
      %531 = vmatpush1.msra.mxu0 %v269
      %532 = vmatprep.subr.mxu0 %v262
      %533 = vmatpush1.msra.mxu0 %v261
      %534 = vmatprep.subr.mxu0 %v254
      %535 = vmatpush1.msra.mxu0 %v253
      %536 = vmatprep.subr.mxu0 %v246
      %537 = vmatpush1.msra.mxu0 %v245
      %538 = vmatprep.subr.mxu0 %v238
      %539 = vmatpush1.msra.mxu0 %v237
      %540 = vmatprep.subr.mxu0 %v230
      %541 = vmatpush1.msra.mxu0 %v229
      %542 = vmatprep.subr.mxu0 0.0
      %543 = vmatpush2.msra.mxu0 0.0
      %544 = vmatprep.subr.mxu0 0.0
      %545 = vmatpush2.msra.mxu0 0.0
      %546 = vmatprep.subr.mxu0 0.0
      %547 = vmatpush2.msra.mxu0 0.0
      %548 = vmatprep.subr.mxu0 0.0
      %549 = vmatpush2.msra.mxu0 0.0
      %550 = vmatprep.subr.mxu0 0.0
      %551 = vmatpush2.msra.mxu0 0.0
      %552 = vmatprep.subr.mxu0 0.0
      %553 = vmatpush2.msra.mxu0 0.0
      %554 = vmatprep.subr.mxu0 0.0
      %555 = vmatpush2.msra.mxu0 0.0
      %556 = vmatprep.subr.mxu0 0.0
      %557 = vmatpush2.msra.mxu0 0.0
      %558 = vmatprep.subr.mxu0 0.0
      %559 = vmatpush2.msra.mxu0 0.0
      %560 = vmatprep.subr.mxu0 0.0
      %561 = vmatpush2.msra.mxu0 0.0
      %562 = vmatprep.subr.mxu0 0.0
      %563 = vmatpush2.msra.mxu0 0.0
      %564 = vmatprep.subr.mxu0 0.0
      %565 = vmatpush2.msra.mxu0 0.0
      %566 = vmatprep.subr.mxu0 0.0
      %567 = vmatpush2.msra.mxu0 0.0
      %568 = vmatprep.subr.mxu0 0.0
      %569 = vmatpush2.msra.mxu0 0.0
      %570 = vmatprep.subr.mxu0 0.0
      %571 = vmatpush2.msra.mxu0 0.0
      %572 = vmatprep.subr.mxu0 0.0
      %573 = vmatpush2.msra.mxu0 0.0
      %574 = vmatprep.mubr.f32.mxu0 0.0
      %575 = vmatmul.mubr.f32.gmra.mxu0 %v219
      %v576 = vpop.f32.mrf.mxu0
      %v577 = vadd.f32 %v368, %v576
      %v578 = vpop.f32.mrf.mxu0
      %v579 = vadd.f32 %v372, %v578
      %580 = vmatprep.mubr.f32.mxu0 0.0
      %581 = vmatmul.mubr.f32.gmra.mxu0 %v220
      %v582 = vpop.f32.mrf.mxu0
      %v583 = vadd.f32 %v368, %v582
      %v584 = vpop.f32.mrf.mxu0
      %v585 = vadd.f32 %v372, %v584
      %586 = vmatprep.mubr.f32.mxu0 0.0
      %587 = vmatmul.mubr.f32.gmra.mxu0 %v221
      %v588 = vpop.f32.mrf.mxu0
      %v589 = vadd.f32 %v368, %v588
      %v590 = vpop.f32.mrf.mxu0
      %v591 = vadd.f32 %v372, %v590
      %592 = vmatprep.mubr.f32.mxu0 0.0
      %593 = vmatmul.mubr.f32.gmra.mxu0 %v222
      %v594 = vpop.f32.mrf.mxu0
      %v595 = vadd.f32 %v368, %v594
      %v596 = vpop.f32.mrf.mxu0
      %v597 = vadd.f32 %v372, %v596
      %598 = vmatprep.mubr.f32.mxu0 0.0
      %599 = vmatmul.mubr.f32.gmra.mxu0 %v223
      %v600 = vpop.f32.mrf.mxu0
      %v601 = vadd.f32 %v368, %v600
      %v602 = vpop.f32.mrf.mxu0
      %v603 = vadd.f32 %v372, %v602
      %604 = vmatprep.mubr.f32.mxu0 0.0
      %605 = vmatmul.mubr.f32.gmra.mxu0 %v224
      %v606 = vpop.f32.mrf.mxu0
      %v607 = vadd.f32 %v368, %v606
      %v608 = vpop.f32.mrf.mxu0
      %v609 = vadd.f32 %v372, %v608
      %610 = vmatprep.mubr.f32.mxu0 0.0
      %611 = vmatmul.mubr.f32.gmra.mxu0 %v225
      %v612 = vpop.f32.mrf.mxu0
      %v613 = vadd.f32 %v368, %v612
      %v614 = vpop.f32.mrf.mxu0
      %v615 = vadd.f32 %v372, %v614
      %616 = vmatprep.mubr.f32.mxu0 0.0
      %617 = vmatmul.mubr.f32.gmra.mxu0 %v226
      %v618 = vpop.f32.mrf.mxu0
      %v619 = vadd.f32 %v368, %v618
      %v620 = vpop.f32.mrf.mxu0
      %v621 = vadd.f32 %v372, %v620
      %622 = vdwg.mxu0
      %623 = vmatprep.subr.mxu0 %v352
      %624 = vmatpush1.msra.mxu0 %v351
      %625 = vmatprep.subr.mxu0 %v344
      %626 = vmatpush1.msra.mxu0 %v343
      %627 = vmatprep.subr.mxu0 %v336
      %628 = vmatpush1.msra.mxu0 %v335
      %629 = vmatprep.subr.mxu0 %v328
      %630 = vmatpush1.msra.mxu0 %v327
      %631 = vmatprep.subr.mxu0 %v320
      %632 = vmatpush1.msra.mxu0 %v319
      %633 = vmatprep.subr.mxu0 %v312
      %634 = vmatpush1.msra.mxu0 %v311
      %635 = vmatprep.subr.mxu0 %v304
      %636 = vmatpush1.msra.mxu0 %v303
      %637 = vmatprep.subr.mxu0 %v296
      %638 = vmatpush1.msra.mxu0 %v295
      %639 = vmatprep.subr.mxu0 %v288
      %640 = vmatpush1.msra.mxu0 %v287
      %641 = vmatprep.subr.mxu0 %v280
      %642 = vmatpush1.msra.mxu0 %v279
      %643 = vmatprep.subr.mxu0 %v272
      %644 = vmatpush1.msra.mxu0 %v271
      %645 = vmatprep.subr.mxu0 %v264
      %646 = vmatpush1.msra.mxu0 %v263
      %647 = vmatprep.subr.mxu0 %v256
      %648 = vmatpush1.msra.mxu0 %v255
      %649 = vmatprep.subr.mxu0 %v248
      %650 = vmatpush1.msra.mxu0 %v247
      %651 = vmatprep.subr.mxu0 %v240
      %652 = vmatpush1.msra.mxu0 %v239
      %653 = vmatprep.subr.mxu0 %v232
      %654 = vmatpush1.msra.mxu0 %v231
      %655 = vmatprep.subr.mxu0 0.0
      %656 = vmatpush2.msra.mxu0 0.0
      %657 = vmatprep.subr.mxu0 0.0
      %658 = vmatpush2.msra.mxu0 0.0
      %659 = vmatprep.subr.mxu0 0.0
      %660 = vmatpush2.msra.mxu0 0.0
      %661 = vmatprep.subr.mxu0 0.0
      %662 = vmatpush2.msra.mxu0 0.0
      %663 = vmatprep.subr.mxu0 0.0
      %664 = vmatpush2.msra.mxu0 0.0
      %665 = vmatprep.subr.mxu0 0.0
      %666 = vmatpush2.msra.mxu0 0.0
      %667 = vmatprep.subr.mxu0 0.0
      %668 = vmatpush2.msra.mxu0 0.0
      %669 = vmatprep.subr.mxu0 0.0
      %670 = vmatpush2.msra.mxu0 0.0
      %671 = vmatprep.subr.mxu0 0.0
      %672 = vmatpush2.msra.mxu0 0.0
      %673 = vmatprep.subr.mxu0 0.0
      %674 = vmatpush2.msra.mxu0 0.0
      %675 = vmatprep.subr.mxu0 0.0
      %676 = vmatpush2.msra.mxu0 0.0
      %677 = vmatprep.subr.mxu0 0.0
      %678 = vmatpush2.msra.mxu0 0.0
      %679 = vmatprep.subr.mxu0 0.0
      %680 = vmatpush2.msra.mxu0 0.0
      %681 = vmatprep.subr.mxu0 0.0
      %682 = vmatpush2.msra.mxu0 0.0
      %683 = vmatprep.subr.mxu0 0.0
      %684 = vmatpush2.msra.mxu0 0.0
      %685 = vmatprep.subr.mxu0 0.0
      %686 = vmatpush2.msra.mxu0 0.0
      %687 = vmatprep.mubr.f32.mxu0 0.0
      %688 = vmatmul.mubr.f32.gmra.mxu0 %v219
      %v689 = vpop.f32.mrf.mxu0
      %v690 = vadd.f32 %v376, %v689
      %v691 = vpop.f32.mrf.mxu0
      %v692 = vadd.f32 %v380, %v691
      %693 = vmatprep.mubr.f32.mxu0 0.0
      %694 = vmatmul.mubr.f32.gmra.mxu0 %v220
      %v695 = vpop.f32.mrf.mxu0
      %v696 = vadd.f32 %v376, %v695
      %v697 = vpop.f32.mrf.mxu0
      %v698 = vadd.f32 %v380, %v697
      %699 = vmatprep.mubr.f32.mxu0 0.0
      %700 = vmatmul.mubr.f32.gmra.mxu0 %v221
      %v701 = vpop.f32.mrf.mxu0
      %v702 = vadd.f32 %v376, %v701
      %v703 = vpop.f32.mrf.mxu0
      %v704 = vadd.f32 %v380, %v703
      %705 = vmatprep.mubr.f32.mxu0 0.0
      %706 = vmatmul.mubr.f32.gmra.mxu0 %v222
      %v707 = vpop.f32.mrf.mxu0
      %v708 = vadd.f32 %v376, %v707
      %v709 = vpop.f32.mrf.mxu0
      %v710 = vadd.f32 %v380, %v709
      %711 = vmatprep.mubr.f32.mxu0 0.0
      %712 = vmatmul.mubr.f32.gmra.mxu0 %v223
      %v713 = vpop.f32.mrf.mxu0
      %v714 = vadd.f32 %v376, %v713
      %v715 = vpop.f32.mrf.mxu0
      %v716 = vadd.f32 %v380, %v715
      %717 = vmatprep.mubr.f32.mxu0 0.0
      %718 = vmatmul.mubr.f32.gmra.mxu0 %v224
      %v719 = vpop.f32.mrf.mxu0
      %v720 = vadd.f32 %v376, %v719
      %v721 = vpop.f32.mrf.mxu0
      %v722 = vadd.f32 %v380, %v721
      %723 = vmatprep.mubr.f32.mxu0 0.0
      %724 = vmatmul.mubr.f32.gmra.mxu0 %v225
      %v725 = vpop.f32.mrf.mxu0
      %v726 = vadd.f32 %v376, %v725
      %v727 = vpop.f32.mrf.mxu0
      %v728 = vadd.f32 %v380, %v727
      %729 = vmatprep.mubr.f32.mxu0 0.0
      %730 = vmatmul.mubr.f32.gmra.mxu0 %v226
      %v731 = vpop.f32.mrf.mxu0
      %v732 = vadd.f32 %v376, %v731
      %v733 = vpop.f32.mrf.mxu0
      %v734 = vadd.f32 %v380, %v733
      %735 = vdwg.mxu0
      %736 = vmatprep.subr.mxu0 %v354
      %737 = vmatpush1.msra.mxu0 %v353
      %738 = vmatprep.subr.mxu0 %v346
      %739 = vmatpush1.msra.mxu0 %v345
      %740 = vmatprep.subr.mxu0 %v338
      %741 = vmatpush1.msra.mxu0 %v337
      %742 = vmatprep.subr.mxu0 %v330
      %743 = vmatpush1.msra.mxu0 %v329
      %744 = vmatprep.subr.mxu0 %v322
      %745 = vmatpush1.msra.mxu0 %v321
      %746 = vmatprep.subr.mxu0 %v314
      %747 = vmatpush1.msra.mxu0 %v313
      %748 = vmatprep.subr.mxu0 %v306
      %749 = vmatpush1.msra.mxu0 %v305
      %750 = vmatprep.subr.mxu0 %v298
      %751 = vmatpush1.msra.mxu0 %v297
      %752 = vmatprep.subr.mxu0 %v290
      %753 = vmatpush1.msra.mxu0 %v289
      %754 = vmatprep.subr.mxu0 %v282
      %755 = vmatpush1.msra.mxu0 %v281
      %756 = vmatprep.subr.mxu0 %v274
      %757 = vmatpush1.msra.mxu0 %v273
      %758 = vmatprep.subr.mxu0 %v266
      %759 = vmatpush1.msra.mxu0 %v265
      %760 = vmatprep.subr.mxu0 %v258
      %761 = vmatpush1.msra.mxu0 %v257
      %762 = vmatprep.subr.mxu0 %v250
      %763 = vmatpush1.msra.mxu0 %v249
      %764 = vmatprep.subr.mxu0 %v242
      %765 = vmatpush1.msra.mxu0 %v241
      %766 = vmatprep.subr.mxu0 %v234
      %767 = vmatpush1.msra.mxu0 %v233
      %768 = vmatprep.subr.mxu0 0.0
      %769 = vmatpush2.msra.mxu0 0.0
      %770 = vmatprep.subr.mxu0 0.0
      %771 = vmatpush2.msra.mxu0 0.0
      %772 = vmatprep.subr.mxu0 0.0
      %773 = vmatpush2.msra.mxu0 0.0
      %774 = vmatprep.subr.mxu0 0.0
      %775 = vmatpush2.msra.mxu0 0.0
      %776 = vmatprep.subr.mxu0 0.0
      %777 = vmatpush2.msra.mxu0 0.0
      %778 = vmatprep.subr.mxu0 0.0
      %779 = vmatpush2.msra.mxu0 0.0
      %780 = vmatprep.subr.mxu0 0.0
      %781 = vmatpush2.msra.mxu0 0.0
      %782 = vmatprep.subr.mxu0 0.0
      %783 = vmatpush2.msra.mxu0 0.0
      %784 = vmatprep.subr.mxu0 0.0
      %785 = vmatpush2.msra.mxu0 0.0
      %786 = vmatprep.subr.mxu0 0.0
      %787 = vmatpush2.msra.mxu0 0.0
      %788 = vmatprep.subr.mxu0 0.0
      %789 = vmatpush2.msra.mxu0 0.0
      %790 = vmatprep.subr.mxu0 0.0
      %791 = vmatpush2.msra.mxu0 0.0
      %792 = vmatprep.subr.mxu0 0.0
      %793 = vmatpush2.msra.mxu0 0.0
      %794 = vmatprep.subr.mxu0 0.0
      %795 = vmatpush2.msra.mxu0 0.0
      %796 = vmatprep.subr.mxu0 0.0
      %797 = vmatpush2.msra.mxu0 0.0
      %798 = vmatprep.subr.mxu0 0.0
      %799 = vmatpush2.msra.mxu0 0.0
      %800 = vmatprep.mubr.f32.mxu0 0.0
      %801 = vmatmul.mubr.f32.gmra.mxu0 %v219
      %v802 = vpop.f32.mrf.mxu0
      %v803 = vadd.f32 %v384, %v802
      %v804 = vpop.f32.mrf.mxu0
      %v805 = vadd.f32 %v388, %v804
      %806 = vmatprep.mubr.f32.mxu0 0.0
      %807 = vmatmul.mubr.f32.gmra.mxu0 %v220
      %v808 = vpop.f32.mrf.mxu0
      %v809 = vadd.f32 %v384, %v808
      %v810 = vpop.f32.mrf.mxu0
      %v811 = vadd.f32 %v388, %v810
      %812 = vmatprep.mubr.f32.mxu0 0.0
      %813 = vmatmul.mubr.f32.gmra.mxu0 %v221
      %v814 = vpop.f32.mrf.mxu0
      %v815 = vadd.f32 %v384, %v814
      %v816 = vpop.f32.mrf.mxu0
      %v817 = vadd.f32 %v388, %v816
      %818 = vmatprep.mubr.f32.mxu0 0.0
      %819 = vmatmul.mubr.f32.gmra.mxu0 %v222
      %v820 = vpop.f32.mrf.mxu0
      %v821 = vadd.f32 %v384, %v820
      %v822 = vpop.f32.mrf.mxu0
      %v823 = vadd.f32 %v388, %v822
      %824 = vmatprep.mubr.f32.mxu0 0.0
      %825 = vmatmul.mubr.f32.gmra.mxu0 %v223
      %v826 = vpop.f32.mrf.mxu0
      %v827 = vadd.f32 %v384, %v826
      %v828 = vpop.f32.mrf.mxu0
      %v829 = vadd.f32 %v388, %v828
      %830 = vmatprep.mubr.f32.mxu0 0.0
      %831 = vmatmul.mubr.f32.gmra.mxu0 %v224
      %v832 = vpop.f32.mrf.mxu0
      %v833 = vadd.f32 %v384, %v832
      %v834 = vpop.f32.mrf.mxu0
      %v835 = vadd.f32 %v388, %v834
      %836 = vmatprep.mubr.f32.mxu0 0.0
      %837 = vmatmul.mubr.f32.gmra.mxu0 %v225
      %v838 = vpop.f32.mrf.mxu0
      %v839 = vadd.f32 %v384, %v838
      %v840 = vpop.f32.mrf.mxu0
      %v841 = vadd.f32 %v388, %v840
      %842 = vmatprep.mubr.f32.mxu0 0.0
      %843 = vmatmul.mubr.f32.gmra.mxu0 %v226
      %v844 = vpop.f32.mrf.mxu0
      %v845 = vadd.f32 %v384, %v844
      %v846 = vpop.f32.mrf.mxu0
      %v847 = vadd.f32 %v388, %v846
      %848 = vdwg.mxu0
      %849 = vst [vmem:[%s210] sm:$0xff] %v464
      %850 = vst [vmem:[%s210 + $0x8] sm:$0xff] %v466
      %851 = vst [vmem:[%s210 + $0x10] sm:$0xff] %v577
      %852 = vst [vmem:[%s210 + $0x18] sm:$0xff] %v579
      %853 = vst [vmem:[%s210 + $0x20] sm:$0xff] %v470
      %854 = vst [vmem:[%s210 + $0x28] sm:$0xff] %v472
      %855 = vst [vmem:[%s210 + $0x30] sm:$0xff] %v583
      %856 = vst [vmem:[%s210 + $0x38] sm:$0xff] %v585
      %857 = vst [vmem:[%s210 + $0x40] sm:$0xff] %v476
      %858 = vst [vmem:[%s210 + $0x48] sm:$0xff] %v478
      %859 = vst [vmem:[%s210 + $0x50] sm:$0xff] %v589
      %860 = vst [vmem:[%s210 + $0x58] sm:$0xff] %v591
      %861 = vst [vmem:[%s210 + $0x60] sm:$0xff] %v482
      %862 = vst [vmem:[%s210 + $0x68] sm:$0xff] %v484
      %863 = vst [vmem:[%s210 + $0x70] sm:$0xff] %v595
      %864 = vst [vmem:[%s210 + $0x78] sm:$0xff] %v597
      %865 = vst [vmem:[%s210 + $0x80] sm:$0xff] %v488
      %866 = vst [vmem:[%s210 + $0x88] sm:$0xff] %v490
      %867 = vst [vmem:[%s210 + $0x90] sm:$0xff] %v601
      %868 = vst [vmem:[%s210 + $0x98] sm:$0xff] %v603
      %869 = vst [vmem:[%s210 + $0xa0] sm:$0xff] %v494
      %870 = vst [vmem:[%s210 + $0xa8] sm:$0xff] %v496
      %871 = vst [vmem:[%s210 + $0xb0] sm:$0xff] %v607
      %872 = vst [vmem:[%s210 + $0xb8] sm:$0xff] %v609
      %873 = vst [vmem:[%s210 + $0xc0] sm:$0xff] %v500
      %874 = vst [vmem:[%s210 + $0xc8] sm:$0xff] %v502
      %875 = vst [vmem:[%s210 + $0xd0] sm:$0xff] %v613
      %876 = vst [vmem:[%s210 + $0xd8] sm:$0xff] %v615
      %877 = vst [vmem:[%s210 + $0xe0] sm:$0xff] %v506
      %878 = vst [vmem:[%s210 + $0xe8] sm:$0xff] %v508
      %879 = vst [vmem:[%s210 + $0xf0] sm:$0xff] %v619
      %880 = vst [vmem:[%s210 + $0xf8] sm:$0xff] %v621
      %881 = vst [vmem:[%s217] sm:$0xff] %v690
      %882 = vst [vmem:[%s217 + $0x8] sm:$0xff] %v692
      %883 = vst [vmem:[%s217 + $0x10] sm:$0xff] %v803
      %884 = vst [vmem:[%s217 + $0x18] sm:$0xff] %v805
      %885 = vst [vmem:[%s217 + $0x20] sm:$0xff] %v696
      %886 = vst [vmem:[%s217 + $0x28] sm:$0xff] %v698
      %887 = vst [vmem:[%s217 + $0x30] sm:$0xff] %v809
      %888 = vst [vmem:[%s217 + $0x38] sm:$0xff] %v811
      %889 = vst [vmem:[%s217 + $0x40] sm:$0xff] %v702
      %890 = vst [vmem:[%s217 + $0x48] sm:$0xff] %v704
      %891 = vst [vmem:[%s217 + $0x50] sm:$0xff] %v815
      %892 = vst [vmem:[%s217 + $0x58] sm:$0xff] %v817
      %893 = vst [vmem:[%s217 + $0x60] sm:$0xff] %v708
      %894 = vst [vmem:[%s217 + $0x68] sm:$0xff] %v710
      %895 = vst [vmem:[%s217 + $0x70] sm:$0xff] %v821
      %896 = vst [vmem:[%s217 + $0x78] sm:$0xff] %v823
      %897 = vst [vmem:[%s217 + $0x80] sm:$0xff] %v714
      %898 = vst [vmem:[%s217 + $0x88] sm:$0xff] %v716
      %899 = vst [vmem:[%s217 + $0x90] sm:$0xff] %v827
      %900 = vst [vmem:[%s217 + $0x98] sm:$0xff] %v829
      %901 = vst [vmem:[%s217 + $0xa0] sm:$0xff] %v720
      %902 = vst [vmem:[%s217 + $0xa8] sm:$0xff] %v722
      %903 = vst [vmem:[%s217 + $0xb0] sm:$0xff] %v833
      %904 = vst [vmem:[%s217 + $0xb8] sm:$0xff] %v835
      %905 = vst [vmem:[%s217 + $0xc0] sm:$0xff] %v726
      %906 = vst [vmem:[%s217 + $0xc8] sm:$0xff] %v728
      %907 = vst [vmem:[%s217 + $0xd0] sm:$0xff] %v839
      %908 = vst [vmem:[%s217 + $0xd8] sm:$0xff] %v841
      %909 = vst [vmem:[%s217 + $0xe0] sm:$0xff] %v732
      %910 = vst [vmem:[%s217 + $0xe8] sm:$0xff] %v734
      %911 = vst [vmem:[%s217 + $0xf0] sm:$0xff] %v845
      %912 = vst [vmem:[%s217 + $0xf8] sm:$0xff] %v847
      %s913 = smul.u32 8, %s16
      %p914 = scmp.lt.s32.totalorder %s913, 15
      %s915 = scalar_select %p914, %s913, 15
      %s916 = smul.addr %s915, 4
      %s917 = smul.addr %s916, 8
      %s918 = scalar_lea.vmem %s3, %s917
      %s919 = smul.u32 8, %s16
      %p920 = scmp.lt.s32.totalorder %s919, 15
      %s921 = scalar_select %p920, %s919, 15
      %s922 = smul.addr %s921, 4
      %s923 = smul.addr %s922, 8
      %s924 = scalar_lea.vmem %s4, %s923
      // Predicated region
      $region33: #{rnn_forward.2} parent=31 // pred_check
        %p925 = pneg %p102
      $region34: #{rnn_forward.2} parent=31 // pred_check_branch
        %927 = sbr.rel (%p925) target = $region36
      $region35: #{rnn_forward.2} parent=31 // pred_region
        %s928 = smul.u32 8, %s16
      $region36: #{rnn_forward.2} parent=31 // pred_fallthru
        _
      // Predicated region
      $region37: #{rnn_forward.2} parent=31 // pred_check
        %p929 = pneg %p128
      $region38: #{rnn_forward.2} parent=31 // pred_check_branch
        %931 = sbr.rel (%p929) target = $region40
      $region39: #{rnn_forward.2} parent=31 // pred_region
        %s932 = smul.u32 8, %s16
      $region40: #{rnn_forward.2} parent=31 // pred_fallthru
        _
    $region32: #{rnn_forward.2} parent=5 // pred_fallthru
      _
    %p933 = scmp.le.s32.totalorder 2, %s11
    // Predicated region
    $region41: #{rnn_forward.2} parent=5 // pred_check
      %p934 = pneg %p933
    $region42: #{rnn_forward.2} parent=5 // pred_check_branch
      %936 = sbr.rel (%p934) target = $region44
    $region43: #{rnn_forward.2} parent=5 // pred_region
      %s937 = ssub.s32 %s11, 2
      // Predicated region
      $region45: #{rnn_forward.2} parent=43 // pred_check
        %p938 = pneg %p108
      $region46: #{rnn_forward.2} parent=43 // pred_check_branch
        %940 = sbr.rel (%p938) target = $region48
      $region47: #{rnn_forward.2} parent=43 // pred_region
        %s941 = smul.u32 8, %s17
        %p942 = scmp.lt.s32.totalorder %s941, 15
        %s943 = scalar_select %p942, %s941, 15
        %s944 = smul.addr %s943, 4
        %s945 = smul.addr %s944, 8
        %s946 = scalar_lea.vmem %s3, %s945
      $region48: #{rnn_forward.2} parent=43 // pred_fallthru
        _
      // Predicated region
      $region49: #{rnn_forward.2} parent=43 // pred_check
        %p947 = pneg %p134
      $region50: #{rnn_forward.2} parent=43 // pred_check_branch
        %949 = sbr.rel (%p947) target = $region52
      $region51: #{rnn_forward.2} parent=43 // pred_region
        %s950 = smul.u32 8, %s17
        %p951 = scmp.lt.s32.totalorder %s950, 15
        %s952 = scalar_select %p951, %s950, 15
        %s953 = smul.addr %s952, 4
        %s954 = smul.addr %s953, 8
        %s955 = scalar_lea.vmem %s4, %s954
      $region52: #{rnn_forward.2} parent=43 // pred_fallthru
        _
    $region44: #{rnn_forward.2} parent=5 // pred_fallthru
      _
  $region6: #{rnn_forward.2} parent=0 // loop_footer
    %s15 = sadd.s32 1, %s11
  $region7: #{rnn_forward.2} parent=0 // loop_footer_branch
    %10 = sbr.rel target = $region3
  $region8: #{rnn_forward.2} parent=0 // loop_exit
    _

// kernel: rnn_forward.3
$region0: #{rnn_forward.3}
  #allocation0 [shape = 'u32[]', space=smem, size = 0x4, offset = 0x4, fixed_abs, tag = 'smem constant byte address 0x4 - core index']
  #allocation1 [shape = 'u32[144,128]{1,0:T(1,128)}', space=vmem, size = 0x12000, scoped, tag = 'internal scratch']
  #allocation2 [shape = 'f32[8,128]{1,0:T(8,128)}', space=vmem, size = 0x1000, scoped, tag = 'scratch operand']
  #allocation3 [shape = 'f32[8,128]{1,0:T(8,128)}', space=vmem, size = 0x1000, scoped, tag = 'scratch operand']
  #allocation4 [shape = 'f32[8,128]{1,0:T(8,128)}', space=vmem, size = 0x1000, scoped, tag = 'scratch operand']
  #allocation5 [shape = 'f32[8,128]{1,0:T(8,128)}', space=vmem, size = 0x1000, scoped, tag = 'scratch operand']
  #allocation6 [shape = 'f32[8,128]{1,0:T(8,128)}', space=vmem, size = 0x1000, scoped, tag = 'scratch operand']
  #allocation7 [shape = 'f32[1]{0:T(128)S(6)}', space=smem, size = 0x200, scoped, tag = 'scoped memory for rnn_forward.3']
  %s0 = inlined_call_operand.vmem [shape: f32[16,8,512], index: 0, kind: input, shape index: {}]
  %s1 = inlined_call_operand.vmem [shape: f32[16,8,512], index: 1, kind: input, shape index: {}]
  %s2 = inlined_call_operand.vmem [shape: f32[128,512], index: 2, kind: input, shape index: {}]
  %s3 = inlined_call_operand.vmem [shape: f32[128,512], index: 3, kind: input, shape index: {}]
  %s4 = inlined_call_operand.vmem [shape: f32[256,50], index: 4, kind: input, shape index: {}]
  %s5 = inlined_call_operand.vmem [shape: f32[1,50], index: 5, kind: input, shape index: {}]
  %s6 = inlined_call_operand.<no memory space> [shape: f32[1], index: 6, kind: input, shape index: {}]
  %s7 = inlined_call_operand.vmem [shape: f32[50,4], index: 7, kind: input, shape index: {}]
  %s8 = inlined_call_operand.vmem [shape: f32[1,4], index: 8, kind: input, shape index: {}]
  %s9 = inlined_call_operand.vmem [shape: f32[8,4], index: 9, kind: output, shape index: {}]
  %s10 = sld [smem:[#allocation0]]
  $region77: #{rnn_forward.3} parent=0
    _
  %s12 = ssub.s32 1, %s10
  %s13 = scalar_select 0, %s12, %s10
  %14 = sst [smem:[#allocation7]] %s6
  loop: start=0, step=1, limit=4
  $region2: #{rnn_forward.3} parent=0 // loop_pre_header
    _
  $region3: #{rnn_forward.3} parent=0 // loop_header
    %s16 = sphi 0, %s20
    %p17 = scmp.ge.s32.totalorder %s16, 4
    %s26 = sphi 0, %s28
    %s29 = sphi 0, %s26
    %s30 = sphi 0, %s29
    %s46 = sphi 0, %s30
    %s54 = sphi 0, %s56
    %s57 = sphi 0, %s54
    %s58 = sphi 0, %s57
    %s74 = sphi 0, %s58
    %s78 = sphi 0, %s78
    %s80 = sphi 0, %s78
    %s81 = sphi 0, %s80
    %s95 = sphi 0, %s81
    %s99 = sphi 0, %s99
    %s101 = sphi 0, %s99
    %s102 = sphi 0, %s101
    %s116 = sphi 0, %s102
    %s120 = sphi 0, %s120
    %s122 = sphi 0, %s120
    %s123 = sphi 0, %s122
    %s137 = sphi 0, %s123
    %s141 = sphi 0, %s141
    %s143 = sphi 0, %s141
    %s144 = sphi 0, %s143
    %s158 = sphi 0, %s144
    %s162 = sphi 0, %s162
    %s164 = sphi 0, %s162
    %s165 = sphi 0, %s164
    %s179 = sphi 0, %s165
    %s183 = sphi 0, %s183
    %s185 = sphi 0, %s183
    %s186 = sphi 0, %s185
    %s200 = sphi 0, %s186
    %s204 = sphi 0, %s204
    %s206 = sphi 0, %s204
    %s207 = sphi 0, %s206
    %s221 = sphi 0, %s207
    %s225 = sphi 0, %s225
    %s227 = sphi 0, %s225
    %s228 = sphi 0, %s227
    %s242 = sphi 0, %s228
  $region4: #{rnn_forward.3} parent=0 // loop_header_branch
    %19 = sbr.rel (%p17) target = $region8
  $region5: #{rnn_forward.3} parent=0 // loop_body
    %s21 = ssub.s32 %s16, 1
    %s22 = ssub.s32 %s16, 2
    %s23 = sadd.s32 %s16, 1
    %s24 = ssub.s32 %s16, %s23
    %p25 = scmp.eq.s32.totalorder %s24, 0
    %s27 = sadd.s32 %s26, 1
    %s28 = scalar_select %p25, %s26, %s27
    %p31 = pneg %p25
    %p32 = scmp.eq.s32.totalorder %s16, 1
    %p33 = por %p31, %p32
    %p34 = scmp.ne.s32.totalorder %s26, %s29
    %p35 = scmp.eq.s32.totalorder %s16, 0
    %p36 = por %p34, %p35
    %p37 = scmp.ne.s32.totalorder %s26, %s29
    %p38 = scmp.eq.s32.totalorder %s21, 1
    %p39 = por %p37, %p38
    %p40 = scmp.ne.s32.totalorder %s29, %s30
    %p41 = scmp.eq.s32.totalorder %s21, 0
    %p42 = por %p40, %p41
    %p43 = scmp.ne.s32.totalorder %s29, %s30
    %p44 = scmp.eq.s32.totalorder %s22, 1
    %p45 = por %p43, %p44
    %p47 = scmp.ne.s32.totalorder %s30, %s46
    %p48 = scmp.eq.s32.totalorder %s22, 0
    %p49 = por %p47, %p48
    %s50 = ssub.s32 1, %s16
    %s51 = ssub.s32 1, %s23
    %s52 = ssub.s32 %s50, %s51
    %p53 = scmp.eq.s32.totalorder %s52, 0
    %s55 = sadd.s32 %s54, 1
    %s56 = scalar_select %p53, %s54, %s55
    %p59 = pneg %p53
    %p60 = scmp.eq.s32.totalorder %s16, 1
    %p61 = por %p59, %p60
    %p62 = scmp.ne.s32.totalorder %s54, %s57
    %p63 = scmp.eq.s32.totalorder %s16, 0
    %p64 = por %p62, %p63
    %p65 = scmp.ne.s32.totalorder %s54, %s57
    %p66 = scmp.eq.s32.totalorder %s21, 1
    %p67 = por %p65, %p66
    %p68 = scmp.ne.s32.totalorder %s57, %s58
    %p69 = scmp.eq.s32.totalorder %s21, 0
    %p70 = por %p68, %p69
    %p71 = scmp.ne.s32.totalorder %s57, %s58
    %p72 = scmp.eq.s32.totalorder %s22, 1
    %p73 = por %p71, %p72
    %p75 = scmp.ne.s32.totalorder %s58, %s74
    %p76 = scmp.eq.s32.totalorder %s22, 0
    %p77 = por %p75, %p76
    %s79 = sadd.s32 %s78, 1
    %p82 = scmp.eq.s32.totalorder %s16, 1
    %p83 = scmp.ne.s32.totalorder %s78, %s80
    %p84 = scmp.eq.s32.totalorder %s16, 0
    %p85 = por %p83, %p84
    %p86 = scmp.ne.s32.totalorder %s78, %s80
    %p87 = scmp.eq.s32.totalorder %s21, 1
    %p88 = por %p86, %p87
    %p89 = scmp.ne.s32.totalorder %s80, %s81
    %p90 = scmp.eq.s32.totalorder %s21, 0
    %p91 = por %p89, %p90
    %p92 = scmp.ne.s32.totalorder %s80, %s81
    %p93 = scmp.eq.s32.totalorder %s22, 1
    %p94 = por %p92, %p93
    %p96 = scmp.ne.s32.totalorder %s81, %s95
    %p97 = scmp.eq.s32.totalorder %s22, 0
    %p98 = por %p96, %p97
    %s100 = sadd.s32 %s99, 1
    %p103 = scmp.eq.s32.totalorder %s16, 1
    %p104 = scmp.ne.s32.totalorder %s99, %s101
    %p105 = scmp.eq.s32.totalorder %s16, 0
    %p106 = por %p104, %p105
    %p107 = scmp.ne.s32.totalorder %s99, %s101
    %p108 = scmp.eq.s32.totalorder %s21, 1
    %p109 = por %p107, %p108
    %p110 = scmp.ne.s32.totalorder %s101, %s102
    %p111 = scmp.eq.s32.totalorder %s21, 0
    %p112 = por %p110, %p111
    %p113 = scmp.ne.s32.totalorder %s101, %s102
    %p114 = scmp.eq.s32.totalorder %s22, 1
    %p115 = por %p113, %p114
    %p117 = scmp.ne.s32.totalorder %s102, %s116
    %p118 = scmp.eq.s32.totalorder %s22, 0
    %p119 = por %p117, %p118
    %s121 = sadd.s32 %s120, 1
    %p124 = scmp.eq.s32.totalorder %s16, 1
    %p125 = scmp.ne.s32.totalorder %s120, %s122
    %p126 = scmp.eq.s32.totalorder %s16, 0
    %p127 = por %p125, %p126
    %p128 = scmp.ne.s32.totalorder %s120, %s122
    %p129 = scmp.eq.s32.totalorder %s21, 1
    %p130 = por %p128, %p129
    %p131 = scmp.ne.s32.totalorder %s122, %s123
    %p132 = scmp.eq.s32.totalorder %s21, 0
    %p133 = por %p131, %p132
    %p134 = scmp.ne.s32.totalorder %s122, %s123
    %p135 = scmp.eq.s32.totalorder %s22, 1
    %p136 = por %p134, %p135
    %p138 = scmp.ne.s32.totalorder %s123, %s137
    %p139 = scmp.eq.s32.totalorder %s22, 0
    %p140 = por %p138, %p139
    %s142 = sadd.s32 %s141, 1
    %p145 = scmp.eq.s32.totalorder %s16, 1
    %p146 = scmp.ne.s32.totalorder %s141, %s143
    %p147 = scmp.eq.s32.totalorder %s16, 0
    %p148 = por %p146, %p147
    %p149 = scmp.ne.s32.totalorder %s141, %s143
    %p150 = scmp.eq.s32.totalorder %s21, 1
    %p151 = por %p149, %p150
    %p152 = scmp.ne.s32.totalorder %s143, %s144
    %p153 = scmp.eq.s32.totalorder %s21, 0
    %p154 = por %p152, %p153
    %p155 = scmp.ne.s32.totalorder %s143, %s144
    %p156 = scmp.eq.s32.totalorder %s22, 1
    %p157 = por %p155, %p156
    %p159 = scmp.ne.s32.totalorder %s144, %s158
    %p160 = scmp.eq.s32.totalorder %s22, 0
    %p161 = por %p159, %p160
    %s163 = sadd.s32 %s162, 1
    %p166 = scmp.eq.s32.totalorder %s16, 1
    %p167 = scmp.ne.s32.totalorder %s162, %s164
    %p168 = scmp.eq.s32.totalorder %s16, 0
    %p169 = por %p167, %p168
    %p170 = scmp.ne.s32.totalorder %s162, %s164
    %p171 = scmp.eq.s32.totalorder %s21, 1
    %p172 = por %p170, %p171
    %p173 = scmp.ne.s32.totalorder %s164, %s165
    %p174 = scmp.eq.s32.totalorder %s21, 0
    %p175 = por %p173, %p174
    %p176 = scmp.ne.s32.totalorder %s164, %s165
    %p177 = scmp.eq.s32.totalorder %s22, 1
    %p178 = por %p176, %p177
    %p180 = scmp.ne.s32.totalorder %s165, %s179
    %p181 = scmp.eq.s32.totalorder %s22, 0
    %p182 = por %p180, %p181
    %s184 = sadd.s32 %s183, 1
    %p187 = scmp.eq.s32.totalorder %s16, 1
    %p188 = scmp.ne.s32.totalorder %s183, %s185
    %p189 = scmp.eq.s32.totalorder %s16, 0
    %p190 = por %p188, %p189
    %p191 = scmp.ne.s32.totalorder %s183, %s185
    %p192 = scmp.eq.s32.totalorder %s21, 1
    %p193 = por %p191, %p192
    %p194 = scmp.ne.s32.totalorder %s185, %s186
    %p195 = scmp.eq.s32.totalorder %s21, 0
    %p196 = por %p194, %p195
    %p197 = scmp.ne.s32.totalorder %s185, %s186
    %p198 = scmp.eq.s32.totalorder %s22, 1
    %p199 = por %p197, %p198
    %p201 = scmp.ne.s32.totalorder %s186, %s200
    %p202 = scmp.eq.s32.totalorder %s22, 0
    %p203 = por %p201, %p202
    %s205 = sadd.s32 %s204, 1
    %p208 = scmp.eq.s32.totalorder %s16, 1
    %p209 = scmp.ne.s32.totalorder %s204, %s206
    %p210 = scmp.eq.s32.totalorder %s16, 0
    %p211 = por %p209, %p210
    %p212 = scmp.ne.s32.totalorder %s204, %s206
    %p213 = scmp.eq.s32.totalorder %s21, 1
    %p214 = por %p212, %p213
    %p215 = scmp.ne.s32.totalorder %s206, %s207
    %p216 = scmp.eq.s32.totalorder %s21, 0
    %p217 = por %p215, %p216
    %p218 = scmp.ne.s32.totalorder %s206, %s207
    %p219 = scmp.eq.s32.totalorder %s22, 1
    %p220 = por %p218, %p219
    %p222 = scmp.ne.s32.totalorder %s207, %s221
    %p223 = scmp.eq.s32.totalorder %s22, 0
    %p224 = por %p222, %p223
    %s226 = sadd.s32 %s225, 1
    %p229 = scmp.eq.s32.totalorder %s16, 1
    %p230 = scmp.ne.s32.totalorder %s225, %s227
    %p231 = scmp.eq.s32.totalorder %s16, 0
    %p232 = por %p230, %p231
    %p233 = scmp.ne.s32.totalorder %s225, %s227
    %p234 = scmp.eq.s32.totalorder %s21, 1
    %p235 = por %p233, %p234
    %p236 = scmp.ne.s32.totalorder %s227, %s228
    %p237 = scmp.eq.s32.totalorder %s21, 0
    %p238 = por %p236, %p237
    %p239 = scmp.ne.s32.totalorder %s227, %s228
    %p240 = scmp.eq.s32.totalorder %s22, 1
    %p241 = por %p239, %p240
    %p243 = scmp.ne.s32.totalorder %s228, %s242
    %p244 = scmp.eq.s32.totalorder %s22, 0
    %p245 = por %p243, %p244
    %p246 = scmp.le.s32.totalorder 1, %s16
    %p247 = scmp.lt.s32.totalorder %s16, 3
    %p248 = pnand %p246, %p247
    %p249 = pneg %p248
    // Predicated region
    $region9: #{rnn_forward.3} parent=5 // pred_check
      _
    $region10: #{rnn_forward.3} parent=5 // pred_check_branch
      %251 = sbr.rel (%p248) target = $region12
    $region11: #{rnn_forward.3} parent=5 // pred_region
      %s252 = ssub.s32 %s16, 1
      // Predicated region
      $region13: #{rnn_forward.3} parent=11 // pred_check
        %p253 = pneg %p91
      $region14: #{rnn_forward.3} parent=11 // pred_check_branch
        %255 = sbr.rel (%p253) target = $region16
      $region15: #{rnn_forward.3} parent=11 // pred_region
        _
      $region16: #{rnn_forward.3} parent=11 // pred_fallthru
        _
      // Predicated region
      $region17: #{rnn_forward.3} parent=11 // pred_check
        %p256 = pneg %p112
      $region18: #{rnn_forward.3} parent=11 // pred_check_branch
        %258 = sbr.rel (%p256) target = $region20
      $region19: #{rnn_forward.3} parent=11 // pred_region
        _
      $region20: #{rnn_forward.3} parent=11 // pred_fallthru
        _
      // Predicated region
      $region21: #{rnn_forward.3} parent=11 // pred_check
        %p259 = pneg %p133
      $region22: #{rnn_forward.3} parent=11 // pred_check_branch
        %261 = sbr.rel (%p259) target = $region24
      $region23: #{rnn_forward.3} parent=11 // pred_region
        _
      $region24: #{rnn_forward.3} parent=11 // pred_fallthru
        _
      // Predicated region
      $region25: #{rnn_forward.3} parent=11 // pred_check
        %p262 = pneg %p154
      $region26: #{rnn_forward.3} parent=11 // pred_check_branch
        %264 = sbr.rel (%p262) target = $region28
      $region27: #{rnn_forward.3} parent=11 // pred_region
        _
      $region28: #{rnn_forward.3} parent=11 // pred_fallthru
        _
      // Predicated region
      $region29: #{rnn_forward.3} parent=11 // pred_check
        %p265 = pneg %p175
      $region30: #{rnn_forward.3} parent=11 // pred_check_branch
        %267 = sbr.rel (%p265) target = $region32
      $region31: #{rnn_forward.3} parent=11 // pred_region
        _
      $region32: #{rnn_forward.3} parent=11 // pred_fallthru
        _
      // Predicated region
      $region33: #{rnn_forward.3} parent=11 // pred_check
        %p268 = pneg %p196
      $region34: #{rnn_forward.3} parent=11 // pred_check_branch
        %270 = sbr.rel (%p268) target = $region36
      $region35: #{rnn_forward.3} parent=11 // pred_region
        _
      $region36: #{rnn_forward.3} parent=11 // pred_fallthru
        _
      // Predicated region
      $region37: #{rnn_forward.3} parent=11 // pred_check
        %p271 = pneg %p217
      $region38: #{rnn_forward.3} parent=11 // pred_check_branch
        %273 = sbr.rel (%p271) target = $region40
      $region39: #{rnn_forward.3} parent=11 // pred_region
        _
      $region40: #{rnn_forward.3} parent=11 // pred_fallthru
        _
    $region12: #{rnn_forward.3} parent=5 // pred_fallthru
      _
    %p274 = scmp.lt.s32.totalorder %s16, 2
    // Predicated region
    $region41: #{rnn_forward.3} parent=5 // pred_check
      %p275 = pneg %p274
    $region42: #{rnn_forward.3} parent=5 // pred_check_branch
      %277 = sbr.rel (%p275) target = $region44
    $region43: #{rnn_forward.3} parent=5 // pred_region
      // Predicated region
      $region45: #{rnn_forward.3} parent=43 // pred_check
        %p278 = pneg %p36
      $region46: #{rnn_forward.3} parent=43 // pred_check_branch
        %280 = sbr.rel (%p278) target = $region48
      $region47: #{rnn_forward.3} parent=43 // pred_region
        %s281 = smul.u32 8, %s16
        %p282 = scmp.lt.s32.totalorder %s281, 15
        %s283 = scalar_select %p282, %s281, 15
        %s284 = smul.addr %s283, 4
        %s285 = smul.addr %s284, 8
        %s286 = scalar_lea.vmem %s0, %s285
        %s287 = smul.u32 8, %s16
      $region48: #{rnn_forward.3} parent=43 // pred_fallthru
        _
      // Predicated region
      $region49: #{rnn_forward.3} parent=43 // pred_check
        %p288 = pneg %p64
      $region50: #{rnn_forward.3} parent=43 // pred_check_branch
        %290 = sbr.rel (%p288) target = $region52
      $region51: #{rnn_forward.3} parent=43 // pred_region
        %s291 = ssub.s32 1, %s16
        %s292 = smul.u32 8, %s291
        %p293 = scmp.lt.s32.totalorder %s292, 15
        %s294 = scalar_select %p293, %s292, 15
        %s295 = smul.addr %s294, 4
        %s296 = smul.addr %s295, 8
        %s297 = scalar_lea.vmem %s1, %s296
        %s298 = ssub.s32 1, %s16
        %s299 = smul.u32 8, %s298
      $region52: #{rnn_forward.3} parent=43 // pred_fallthru
        _
    $region44: #{rnn_forward.3} parent=5 // pred_fallthru
      _
    %p300 = scmp.le.s32.totalorder 1, %s16
    %p301 = scmp.lt.s32.totalorder %s16, 3
    %p302 = pnand %p300, %p301
    %p303 = pneg %p302
    // Predicated region
    $region53: #{rnn_forward.3} parent=5 // pred_check
      _
    $region54: #{rnn_forward.3} parent=5 // pred_check_branch
      %305 = sbr.rel (%p302) target = $region56
    $region55: #{rnn_forward.3} parent=5 // pred_region
      %s306 = ssub.s32 %s16, 1
      %s307 = smul.u32 8, %s21
      %p308 = scmp.lt.s32.totalorder %s307, 15
      %s309 = scalar_select %p308, %s307, 15
      %s310 = smul.addr %s309, 4
      %s311 = smul.addr %s310, 8
      %s312 = scalar_lea.vmem %s0, %s311
      %p313 = pneg %p42
      %p314 = pneg %p39
      %s315 = ssub.s32 1, %s21
      %s316 = smul.u32 8, %s315
      %p317 = scmp.lt.s32.totalorder %s316, 15
      %s318 = scalar_select %p317, %s316, 15
      %s319 = smul.addr %s318, 4
      %s320 = smul.addr %s319, 8
      %s321 = scalar_lea.vmem %s1, %s320
      %p322 = pneg %p70
      %p323 = pneg %p67
      %p324 = pneg %p91
      %p325 = pneg %p88
      %p326 = pneg %p112
      %p327 = pneg %p109
      %p328 = pneg %p133
      %p329 = pneg %p130
      %p330 = pneg %p154
      %p331 = pneg %p151
      %p332 = pneg %p175
      %p333 = pneg %p172
      %p334 = pneg %p196
      %p335 = pneg %p193
      %p336 = pneg %p217
      %p337 = pneg %p214
      %p338 = pneg %p238
      %p339 = pneg %p235
      %s340 = smul.u32 8, %s21
      %p341 = scmp.lt.s32.totalorder %s340, 15
      %s342 = scalar_select %p341, %s340, 15
      %s343 = smul.addr %s342, 4
      %s344 = smul.addr %s343, 8
      %s345 = scalar_lea.vmem %s0, %s344
      %s346 = smul.u32 8, %s21
      %s347 = ssub.s32 1, %s21
      %s348 = smul.u32 8, %s347
      %p349 = scmp.lt.s32.totalorder %s348, 15
      %s350 = scalar_select %p349, %s348, 15
      %s351 = smul.addr %s350, 4
      %s352 = smul.addr %s351, 8
      %s353 = scalar_lea.vmem %s1, %s352
      %s354 = ssub.s32 1, %s21
      %s355 = smul.u32 8, %s354
      %p356 = scmp.eq.s32.totalorder %s21, 0
      // Predicated region
      $region57: #{rnn_forward.3} parent=55 // pred_check
        %p357 = pneg %p356
      $region58: #{rnn_forward.3} parent=55 // pred_check_branch
        %359 = sbr.rel (%p357) target = $region60
      $region59: #{rnn_forward.3} parent=55 // pred_region
        %360 = vst [vmem:[#allocation2] sm:$0xff] 0.0
        %361 = vst [vmem:[#allocation3] sm:$0xff] 0.0
        %362 = vst [vmem:[#allocation4] sm:$0xff] 0.0
        %363 = vst [vmem:[#allocation5] sm:$0xff] 0.0
        %s364 = scalar_lea.vmem %s353, 224
        %v365 = vld [vmem:[%s364] sm:$0xff]
        %v366 = vld [vmem:[%s364 + $0x8] sm:$0xff]
        %v367 = vld [vmem:[%s364 + $0x10] sm:$0xff]
        %v368 = vld [vmem:[%s364 + $0x18] sm:$0xff]
        %v369 = vld [vmem:[%s3] sm:$0xff]
        %v370 = vld [vmem:[%s3 + $0x8] sm:$0xff]
        %v371 = vld [vmem:[%s3 + $0x10] sm:$0xff]
        %v372 = vld [vmem:[%s3 + $0x18] sm:$0xff]
        %v373 = vld [vmem:[%s3 + $0x20] sm:$0xff]
        %v374 = vld [vmem:[%s3 + $0x28] sm:$0xff]
        %v375 = vld [vmem:[%s3 + $0x30] sm:$0xff]
        %v376 = vld [vmem:[%s3 + $0x38] sm:$0xff]
        %v377 = vld [vmem:[%s3 + $0x40] sm:$0xff]
        %v378 = vld [vmem:[%s3 + $0x48] sm:$0xff]
        %v379 = vld [vmem:[%s3 + $0x50] sm:$0xff]
        %v380 = vld [vmem:[%s3 + $0x58] sm:$0xff]
        %v381 = vld [vmem:[%s3 + $0x60] sm:$0xff]
        %v382 = vld [vmem:[%s3 + $0x68] sm:$0xff]
        %v383 = vld [vmem:[%s3 + $0x70] sm:$0xff]
        %v384 = vld [vmem:[%s3 + $0x78] sm:$0xff]
        %v385 = vld [vmem:[%s3 + $0x80] sm:$0xff]
        %v386 = vld [vmem:[%s3 + $0x88] sm:$0xff]
        %v387 = vld [vmem:[%s3 + $0x90] sm:$0xff]
        %v388 = vld [vmem:[%s3 + $0x98] sm:$0xff]
        %v389 = vld [vmem:[%s3 + $0xa0] sm:$0xff]
        %v390 = vld [vmem:[%s3 + $0xa8] sm:$0xff]
        %v391 = vld [vmem:[%s3 + $0xb0] sm:$0xff]
        %v392 = vld [vmem:[%s3 + $0xb8] sm:$0xff]
        %v393 = vld [vmem:[%s3 + $0xc0] sm:$0xff]
        %v394 = vld [vmem:[%s3 + $0xc8] sm:$0xff]
        %v395 = vld [vmem:[%s3 + $0xd0] sm:$0xff]
        %v396 = vld [vmem:[%s3 + $0xd8] sm:$0xff]
        %v397 = vld [vmem:[%s3 + $0xe0] sm:$0xff]
        %v398 = vld [vmem:[%s3 + $0xe8] sm:$0xff]
        %v399 = vld [vmem:[%s3 + $0xf0] sm:$0xff]
        %v400 = vld [vmem:[%s3 + $0xf8] sm:$0xff]
        %v401 = vld [vmem:[%s3 + $0x100] sm:$0xff]
        %v402 = vld [vmem:[%s3 + $0x108] sm:$0xff]
        %v403 = vld [vmem:[%s3 + $0x110] sm:$0xff]
        %v404 = vld [vmem:[%s3 + $0x118] sm:$0xff]
        %v405 = vld [vmem:[%s3 + $0x120] sm:$0xff]
        %v406 = vld [vmem:[%s3 + $0x128] sm:$0xff]
        %v407 = vld [vmem:[%s3 + $0x130] sm:$0xff]
        %v408 = vld [vmem:[%s3 + $0x138] sm:$0xff]
        %v409 = vld [vmem:[%s3 + $0x140] sm:$0xff]
        %v410 = vld [vmem:[%s3 + $0x148] sm:$0xff]
        %v411 = vld [vmem:[%s3 + $0x150] sm:$0xff]
        %v412 = vld [vmem:[%s3 + $0x158] sm:$0xff]
        %v413 = vld [vmem:[%s3 + $0x160] sm:$0xff]
        %v414 = vld [vmem:[%s3 + $0x168] sm:$0xff]
        %v415 = vld [vmem:[%s3 + $0x170] sm:$0xff]
        %v416 = vld [vmem:[%s3 + $0x178] sm:$0xff]
        %v417 = vld [vmem:[%s3 + $0x180] sm:$0xff]
        %v418 = vld [vmem:[%s3 + $0x188] sm:$0xff]
        %v419 = vld [vmem:[%s3 + $0x190] sm:$0xff]
        %v420 = vld [vmem:[%s3 + $0x198] sm:$0xff]
        %v421 = vld [vmem:[%s3 + $0x1a0] sm:$0xff]
        %v422 = vld [vmem:[%s3 + $0x1a8] sm:$0xff]
        %v423 = vld [vmem:[%s3 + $0x1b0] sm:$0xff]
        %v424 = vld [vmem:[%s3 + $0x1b8] sm:$0xff]
        %v425 = vld [vmem:[%s3 + $0x1c0] sm:$0xff]
        %v426 = vld [vmem:[%s3 + $0x1c8] sm:$0xff]
        %v427 = vld [vmem:[%s3 + $0x1d0] sm:$0xff]
        %v428 = vld [vmem:[%s3 + $0x1d8] sm:$0xff]
        %v429 = vld [vmem:[%s3 + $0x1e0] sm:$0xff]
        %v430 = vld [vmem:[%s3 + $0x1e8] sm:$0xff]
        %v431 = vld [vmem:[%s3 + $0x1f0] sm:$0xff]
        %v432 = vld [vmem:[%s3 + $0x1f8] sm:$0xff]
        %433 = vmatprep.subr.mxu0 %v430
        %434 = vmatpush1.msra.mxu0 %v429
        %435 = vmatprep.subr.mxu0 %v426
        %436 = vmatpush1.msra.mxu0 %v425
        %437 = vmatprep.subr.mxu0 %v422
        %438 = vmatpush1.msra.mxu0 %v421
        %439 = vmatprep.subr.mxu0 %v418
        %440 = vmatpush1.msra.mxu0 %v417
        %441 = vmatprep.subr.mxu0 %v414
        %442 = vmatpush1.msra.mxu0 %v413
        %443 = vmatprep.subr.mxu0 %v410
        %444 = vmatpush1.msra.mxu0 %v409
        %445 = vmatprep.subr.mxu0 %v406
        %446 = vmatpush1.msra.mxu0 %v405
        %447 = vmatprep.subr.mxu0 %v402
        %448 = vmatpush1.msra.mxu0 %v401
        %449 = vmatprep.subr.mxu0 %v398
        %450 = vmatpush1.msra.mxu0 %v397
        %451 = vmatprep.subr.mxu0 %v394
        %452 = vmatpush1.msra.mxu0 %v393
        %453 = vmatprep.subr.mxu0 %v390
        %454 = vmatpush1.msra.mxu0 %v389
        %455 = vmatprep.subr.mxu0 %v386
        %456 = vmatpush1.msra.mxu0 %v385
        %457 = vmatprep.subr.mxu0 %v382
        %458 = vmatpush1.msra.mxu0 %v381
        %459 = vmatprep.subr.mxu0 %v378
        %460 = vmatpush1.msra.mxu0 %v377
        %461 = vmatprep.subr.mxu0 %v374
        %462 = vmatpush1.msra.mxu0 %v373
        %463 = vmatprep.subr.mxu0 %v370
        %464 = vmatpush1.msra.mxu0 %v369
        %465 = vmatprep.subr.mxu0 0.0
        %466 = vmatpush2.msra.mxu0 0.0
        %467 = vmatprep.subr.mxu0 0.0
        %468 = vmatpush2.msra.mxu0 0.0
        %469 = vmatprep.subr.mxu0 0.0
        %470 = vmatpush2.msra.mxu0 0.0
        %471 = vmatprep.subr.mxu0 0.0
        %472 = vmatpush2.msra.mxu0 0.0
        %473 = vmatprep.subr.mxu0 0.0
        %474 = vmatpush2.msra.mxu0 0.0
        %475 = vmatprep.subr.mxu0 0.0
        %476 = vmatpush2.msra.mxu0 0.0
        %477 = vmatprep.subr.mxu0 0.0
        %478 = vmatpush2.msra.mxu0 0.0
        %479 = vmatprep.subr.mxu0 0.0
        %480 = vmatpush2.msra.mxu0 0.0
        %481 = vmatprep.subr.mxu0 0.0
        %482 = vmatpush2.msra.mxu0 0.0
        %483 = vmatprep.subr.mxu0 0.0
        %484 = vmatpush2.msra.mxu0 0.0
        %485 = vmatprep.subr.mxu0 0.0
        %486 = vmatpush2.msra.mxu0 0.0
        %487 = vmatprep.subr.mxu0 0.0
        %488 = vmatpush2.msra.mxu0 0.0
        %489 = vmatprep.subr.mxu0 0.0
        %490 = vmatpush2.msra.mxu0 0.0
        %491 = vmatprep.subr.mxu0 0.0
        %492 = vmatpush2.msra.mxu0 0.0
        %493 = vmatprep.subr.mxu0 0.0
        %494 = vmatpush2.msra.mxu0 0.0
        %495 = vmatprep.subr.mxu0 0.0
        %496 = vmatpush2.msra.mxu0 0.0
        %497 = vmatprep.mubr.f32.mxu0 0.0
        %498 = vmatmul.mubr.f32.gmra.mxu0 0.0
        %v499 = vpop.f32.mrf.mxu0
        %v500 = vadd.f32 0.0, %v499
        %v501 = vpop.f32.mrf.mxu0
        %v502 = vadd.f32 0.0, %v501
        %503 = vdwg.mxu0
        %504 = vmatprep.subr.mxu0 %v432
        %505 = vmatpush1.msra.mxu0 %v431
        %506 = vmatprep.subr.mxu0 %v428
        %507 = vmatpush1.msra.mxu0 %v427
        %508 = vmatprep.subr.mxu0 %v424
        %509 = vmatpush1.msra.mxu0 %v423
        %510 = vmatprep.subr.mxu0 %v420
        %511 = vmatpush1.msra.mxu0 %v419
        %512 = vmatprep.subr.mxu0 %v416
        %513 = vmatpush1.msra.mxu0 %v415
        %514 = vmatprep.subr.mxu0 %v412
        %515 = vmatpush1.msra.mxu0 %v411
        %516 = vmatprep.subr.mxu0 %v408
        %517 = vmatpush1.msra.mxu0 %v407
        %518 = vmatprep.subr.mxu0 %v404
        %519 = vmatpush1.msra.mxu0 %v403
        %520 = vmatprep.subr.mxu0 %v400
        %521 = vmatpush1.msra.mxu0 %v399
        %522 = vmatprep.subr.mxu0 %v396
        %523 = vmatpush1.msra.mxu0 %v395
        %524 = vmatprep.subr.mxu0 %v392
        %525 = vmatpush1.msra.mxu0 %v391
        %526 = vmatprep.subr.mxu0 %v388
        %527 = vmatpush1.msra.mxu0 %v387
        %528 = vmatprep.subr.mxu0 %v384
        %529 = vmatpush1.msra.mxu0 %v383
        %530 = vmatprep.subr.mxu0 %v380
        %531 = vmatpush1.msra.mxu0 %v379
        %532 = vmatprep.subr.mxu0 %v376
        %533 = vmatpush1.msra.mxu0 %v375
        %534 = vmatprep.subr.mxu0 %v372
        %535 = vmatpush1.msra.mxu0 %v371
        %536 = vmatprep.subr.mxu0 0.0
        %537 = vmatpush2.msra.mxu0 0.0
        %538 = vmatprep.subr.mxu0 0.0
        %539 = vmatpush2.msra.mxu0 0.0
        %540 = vmatprep.subr.mxu0 0.0
        %541 = vmatpush2.msra.mxu0 0.0
        %542 = vmatprep.subr.mxu0 0.0
        %543 = vmatpush2.msra.mxu0 0.0
        %544 = vmatprep.subr.mxu0 0.0
        %545 = vmatpush2.msra.mxu0 0.0
        %546 = vmatprep.subr.mxu0 0.0
        %547 = vmatpush2.msra.mxu0 0.0
        %548 = vmatprep.subr.mxu0 0.0
        %549 = vmatpush2.msra.mxu0 0.0
        %550 = vmatprep.subr.mxu0 0.0
        %551 = vmatpush2.msra.mxu0 0.0
        %552 = vmatprep.subr.mxu0 0.0
        %553 = vmatpush2.msra.mxu0 0.0
        %554 = vmatprep.subr.mxu0 0.0
        %555 = vmatpush2.msra.mxu0 0.0
        %556 = vmatprep.subr.mxu0 0.0
        %557 = vmatpush2.msra.mxu0 0.0
        %558 = vmatprep.subr.mxu0 0.0
        %559 = vmatpush2.msra.mxu0 0.0
        %560 = vmatprep.subr.mxu0 0.0
        %561 = vmatpush2.msra.mxu0 0.0
        %562 = vmatprep.subr.mxu0 0.0
        %563 = vmatpush2.msra.mxu0 0.0
        %564 = vmatprep.subr.mxu0 0.0
        %565 = vmatpush2.msra.mxu0 0.0
        %566 = vmatprep.subr.mxu0 0.0
        %567 = vmatpush2.msra.mxu0 0.0
        %568 = vmatprep.mubr.f32.mxu0 0.0
        %569 = vmatmul.mubr.f32.gmra.mxu0 0.0
        %v570 = vpop.f32.mrf.mxu0
        %v571 = vadd.f32 0.0, %v570
        %v572 = vpop.f32.mrf.mxu0
        %v573 = vadd.f32 0.0, %v572
        %574 = vdwg.mxu0
        %v575 = vadd.f32 %v365, %v500
        %v576 = vadd.f32 %v366, %v502
        %v577 = vadd.f32 %v367, %v571
        %v578 = vadd.f32 %v368, %v573
        %v579 = vxor.u32 %v575, 2147483648
        %v580 = vmul.f32 %v579, 1.442695
        %v581 = vpow.pop %v580
        %v582 = vadd.f32 %v581, 1.0
        %v583 = vrcp.pop %v582
        %v584 = vmul.f32 1.0, %v583
        %v585 = vxor.u32 %v576, 2147483648
        %v586 = vmul.f32 %v585, 1.442695
        %v587 = vpow.pop %v586
        %v588 = vadd.f32 %v587, 1.0
        %v589 = vrcp.pop %v588
        %v590 = vmul.f32 1.0, %v589
        %v591 = vtanh.pop %v577
        %v592 = vxor.u32 %v578, 2147483648
        %v593 = vmul.f32 %v592, 1.442695
        %v594 = vpow.pop %v593
        %v595 = vadd.f32 %v594, 1.0
        %v596 = vrcp.pop %v595
        %v597 = vmul.f32 1.0, %v596
        %v598 = vmul.f32 %v590, 0.0
        %v599 = vmul.f32 %v584, %v591
        %v600 = vadd.f32 %v598, %v599
        %v601 = vtanh.pop %v600
        %v602 = vmul.f32 %v597, %v601
        %603 = vst [vmem:[#allocation6] sm:$0xff] %v602
      $region60: #{rnn_forward.3} parent=55 // pred_fallthru
        _
      %v604 = vld [vmem:[%s345] sm:$0xff]
      %v605 = vld [vmem:[%s345 + $0x8] sm:$0xff]
      %v606 = vld [vmem:[%s345 + $0x10] sm:$0xff]
      %v607 = vld [vmem:[%s345 + $0x18] sm:$0xff]
      %v608 = vld [vmem:[#allocation2] sm:$0xff]
      %v609 = vld [vmem:[#allocation3] sm:$0xff]
      %v610 = vld [vmem:[%s2] sm:$0xff]
      %v611 = vld [vmem:[%s2 + $0x8] sm:$0xff]
      %v612 = vld [vmem:[%s2 + $0x10] sm:$0xff]
      %v613 = vld [vmem:[%s2 + $0x18] sm:$0xff]
      %v614 = vld [vmem:[%s2 + $0x20] sm:$0xff]
      %v615 = vld [vmem:[%s2 + $0x28] sm:$0xff]
      %v616 = vld [vmem:[%s2 + $0x30] sm:$0xff]
      %v617 = vld [vmem:[%s2 + $0x38] sm:$0xff]
      %v618 = vld [vmem:[%s2 + $0x40] sm:$0xff]
      %v619 = vld [vmem:[%s2 + $0x48] sm:$0xff]
      %v620 = vld [vmem:[%s2 + $0x50] sm:$0xff]
      %v621 = vld [vmem:[%s2 + $0x58] sm:$0xff]
      %v622 = vld [vmem:[%s2 + $0x60] sm:$0xff]
      %v623 = vld [vmem:[%s2 + $0x68] sm:$0xff]
      %v624 = vld [vmem:[%s2 + $0x70] sm:$0xff]
      %v625 = vld [vmem:[%s2 + $0x78] sm:$0xff]
      %v626 = vld [vmem:[%s2 + $0x80] sm:$0xff]
      %v627 = vld [vmem:[%s2 + $0x88] sm:$0xff]
      %v628 = vld [vmem:[%s2 + $0x90] sm:$0xff]
      %v629 = vld [vmem:[%s2 + $0x98] sm:$0xff]
      %v630 = vld [vmem:[%s2 + $0xa0] sm:$0xff]
      %v631 = vld [vmem:[%s2 + $0xa8] sm:$0xff]
      %v632 = vld [vmem:[%s2 + $0xb0] sm:$0xff]
      %v633 = vld [vmem:[%s2 + $0xb8] sm:$0xff]
      %v634 = vld [vmem:[%s2 + $0xc0] sm:$0xff]
      %v635 = vld [vmem:[%s2 + $0xc8] sm:$0xff]
      %v636 = vld [vmem:[%s2 + $0xd0] sm:$0xff]
      %v637 = vld [vmem:[%s2 + $0xd8] sm:$0xff]
      %v638 = vld [vmem:[%s2 + $0xe0] sm:$0xff]
      %v639 = vld [vmem:[%s2 + $0xe8] sm:$0xff]
      %v640 = vld [vmem:[%s2 + $0xf0] sm:$0xff]
      %v641 = vld [vmem:[%s2 + $0xf8] sm:$0xff]
      %v642 = vld [vmem:[%s2 + $0x100] sm:$0xff]
      %v643 = vld [vmem:[%s2 + $0x108] sm:$0xff]
      %v644 = vld [vmem:[%s2 + $0x110] sm:$0xff]
      %v645 = vld [vmem:[%s2 + $0x118] sm:$0xff]
      %v646 = vld [vmem:[%s2 + $0x120] sm:$0xff]
      %v647 = vld [vmem:[%s2 + $0x128] sm:$0xff]
      %v648 = vld [vmem:[%s2 + $0x130] sm:$0xff]
      %v649 = vld [vmem:[%s2 + $0x138] sm:$0xff]
      %v650 = vld [vmem:[%s2 + $0x140] sm:$0xff]
      %v651 = vld [vmem:[%s2 + $0x148] sm:$0xff]
      %v652 = vld [vmem:[%s2 + $0x150] sm:$0xff]
      %v653 = vld [vmem:[%s2 + $0x158] sm:$0xff]
      %v654 = vld [vmem:[%s2 + $0x160] sm:$0xff]
      %v655 = vld [vmem:[%s2 + $0x168] sm:$0xff]
      %v656 = vld [vmem:[%s2 + $0x170] sm:$0xff]
      %v657 = vld [vmem:[%s2 + $0x178] sm:$0xff]
      %v658 = vld [vmem:[%s2 + $0x180] sm:$0xff]
      %v659 = vld [vmem:[%s2 + $0x188] sm:$0xff]
      %v660 = vld [vmem:[%s2 + $0x190] sm:$0xff]
      %v661 = vld [vmem:[%s2 + $0x198] sm:$0xff]
      %v662 = vld [vmem:[%s2 + $0x1a0] sm:$0xff]
      %v663 = vld [vmem:[%s2 + $0x1a8] sm:$0xff]
      %v664 = vld [vmem:[%s2 + $0x1b0] sm:$0xff]
      %v665 = vld [vmem:[%s2 + $0x1b8] sm:$0xff]
      %v666 = vld [vmem:[%s2 + $0x1c0] sm:$0xff]
      %v667 = vld [vmem:[%s2 + $0x1c8] sm:$0xff]
      %v668 = vld [vmem:[%s2 + $0x1d0] sm:$0xff]
      %v669 = vld [vmem:[%s2 + $0x1d8] sm:$0xff]
      %v670 = vld [vmem:[%s2 + $0x1e0] sm:$0xff]
      %v671 = vld [vmem:[%s2 + $0x1e8] sm:$0xff]
      %v672 = vld [vmem:[%s2 + $0x1f0] sm:$0xff]
      %v673 = vld [vmem:[%s2 + $0x1f8] sm:$0xff]
      %674 = vmatprep.subr.mxu0 %v671
      %675 = vmatpush1.msra.mxu0 %v670
      %676 = vmatprep.subr.mxu0 %v667
      %677 = vmatpush1.msra.mxu0 %v666
      %678 = vmatprep.subr.mxu0 %v663
      %679 = vmatpush1.msra.mxu0 %v662
      %680 = vmatprep.subr.mxu0 %v659
      %681 = vmatpush1.msra.mxu0 %v658
      %682 = vmatprep.subr.mxu0 %v655
      %683 = vmatpush1.msra.mxu0 %v654
      %684 = vmatprep.subr.mxu0 %v651
      %685 = vmatpush1.msra.mxu0 %v650
      %686 = vmatprep.subr.mxu0 %v647
      %687 = vmatpush1.msra.mxu0 %v646
      %688 = vmatprep.subr.mxu0 %v643
      %689 = vmatpush1.msra.mxu0 %v642
      %690 = vmatprep.subr.mxu0 %v639
      %691 = vmatpush1.msra.mxu0 %v638
      %692 = vmatprep.subr.mxu0 %v635
      %693 = vmatpush1.msra.mxu0 %v634
      %694 = vmatprep.subr.mxu0 %v631
      %695 = vmatpush1.msra.mxu0 %v630
      %696 = vmatprep.subr.mxu0 %v627
      %697 = vmatpush1.msra.mxu0 %v626
      %698 = vmatprep.subr.mxu0 %v623
      %699 = vmatpush1.msra.mxu0 %v622
      %700 = vmatprep.subr.mxu0 %v619
      %701 = vmatpush1.msra.mxu0 %v618
      %702 = vmatprep.subr.mxu0 %v615
      %703 = vmatpush1.msra.mxu0 %v614
      %704 = vmatprep.subr.mxu0 %v611
      %705 = vmatpush1.msra.mxu0 %v610
      %706 = vmatprep.subr.mxu0 0.0
      %707 = vmatpush2.msra.mxu0 0.0
      %708 = vmatprep.subr.mxu0 0.0
      %709 = vmatpush2.msra.mxu0 0.0
      %710 = vmatprep.subr.mxu0 0.0
      %711 = vmatpush2.msra.mxu0 0.0
      %712 = vmatprep.subr.mxu0 0.0
      %713 = vmatpush2.msra.mxu0 0.0
      %714 = vmatprep.subr.mxu0 0.0
      %715 = vmatpush2.msra.mxu0 0.0
      %716 = vmatprep.subr.mxu0 0.0
      %717 = vmatpush2.msra.mxu0 0.0
      %718 = vmatprep.subr.mxu0 0.0
      %719 = vmatpush2.msra.mxu0 0.0
      %720 = vmatprep.subr.mxu0 0.0
      %721 = vmatpush2.msra.mxu0 0.0
      %722 = vmatprep.subr.mxu0 0.0
      %723 = vmatpush2.msra.mxu0 0.0
      %724 = vmatprep.subr.mxu0 0.0
      %725 = vmatpush2.msra.mxu0 0.0
      %726 = vmatprep.subr.mxu0 0.0
      %727 = vmatpush2.msra.mxu0 0.0
      %728 = vmatprep.subr.mxu0 0.0
      %729 = vmatpush2.msra.mxu0 0.0
      %730 = vmatprep.subr.mxu0 0.0
      %731 = vmatpush2.msra.mxu0 0.0
      %732 = vmatprep.subr.mxu0 0.0
      %733 = vmatpush2.msra.mxu0 0.0
      %734 = vmatprep.subr.mxu0 0.0
      %735 = vmatpush2.msra.mxu0 0.0
      %736 = vmatprep.subr.mxu0 0.0
      %737 = vmatpush2.msra.mxu0 0.0
      %738 = vmatprep.mubr.f32.mxu0 0.0
      %739 = vmatmul.mubr.f32.gmra.mxu0 %v608
      %v740 = vpop.f32.mrf.mxu0
      %v741 = vadd.f32 0.0, %v740
      %v742 = vpop.f32.mrf.mxu0
      %v743 = vadd.f32 0.0, %v742
      %744 = vdwg.mxu0
      %745 = vmatprep.subr.mxu0 %v673
      %746 = vmatpush1.msra.mxu0 %v672
      %747 = vmatprep.subr.mxu0 %v669
      %748 = vmatpush1.msra.mxu0 %v668
      %749 = vmatprep.subr.mxu0 %v665
      %750 = vmatpush1.msra.mxu0 %v664
      %751 = vmatprep.subr.mxu0 %v661
      %752 = vmatpush1.msra.mxu0 %v660
      %753 = vmatprep.subr.mxu0 %v657
      %754 = vmatpush1.msra.mxu0 %v656
      %755 = vmatprep.subr.mxu0 %v653
      %756 = vmatpush1.msra.mxu0 %v652
      %757 = vmatprep.subr.mxu0 %v649
      %758 = vmatpush1.msra.mxu0 %v648
      %759 = vmatprep.subr.mxu0 %v645
      %760 = vmatpush1.msra.mxu0 %v644
      %761 = vmatprep.subr.mxu0 %v641
      %762 = vmatpush1.msra.mxu0 %v640
      %763 = vmatprep.subr.mxu0 %v637
      %764 = vmatpush1.msra.mxu0 %v636
      %765 = vmatprep.subr.mxu0 %v633
      %766 = vmatpush1.msra.mxu0 %v632
      %767 = vmatprep.subr.mxu0 %v629
      %768 = vmatpush1.msra.mxu0 %v628
      %769 = vmatprep.subr.mxu0 %v625
      %770 = vmatpush1.msra.mxu0 %v624
      %771 = vmatprep.subr.mxu0 %v621
      %772 = vmatpush1.msra.mxu0 %v620
      %773 = vmatprep.subr.mxu0 %v617
      %774 = vmatpush1.msra.mxu0 %v616
      %775 = vmatprep.subr.mxu0 %v613
      %776 = vmatpush1.msra.mxu0 %v612
      %777 = vmatprep.subr.mxu0 0.0
      %778 = vmatpush2.msra.mxu0 0.0
      %779 = vmatprep.subr.mxu0 0.0
      %780 = vmatpush2.msra.mxu0 0.0
      %781 = vmatprep.subr.mxu0 0.0
      %782 = vmatpush2.msra.mxu0 0.0
      %783 = vmatprep.subr.mxu0 0.0
      %784 = vmatpush2.msra.mxu0 0.0
      %785 = vmatprep.subr.mxu0 0.0
      %786 = vmatpush2.msra.mxu0 0.0
      %787 = vmatprep.subr.mxu0 0.0
      %788 = vmatpush2.msra.mxu0 0.0
      %789 = vmatprep.subr.mxu0 0.0
      %790 = vmatpush2.msra.mxu0 0.0
      %791 = vmatprep.subr.mxu0 0.0
      %792 = vmatpush2.msra.mxu0 0.0
      %793 = vmatprep.subr.mxu0 0.0
      %794 = vmatpush2.msra.mxu0 0.0
      %795 = vmatprep.subr.mxu0 0.0
      %796 = vmatpush2.msra.mxu0 0.0
      %797 = vmatprep.subr.mxu0 0.0
      %798 = vmatpush2.msra.mxu0 0.0
      %799 = vmatprep.subr.mxu0 0.0
      %800 = vmatpush2.msra.mxu0 0.0
      %801 = vmatprep.subr.mxu0 0.0
      %802 = vmatpush2.msra.mxu0 0.0
      %803 = vmatprep.subr.mxu0 0.0
      %804 = vmatpush2.msra.mxu0 0.0
      %805 = vmatprep.subr.mxu0 0.0
      %806 = vmatpush2.msra.mxu0 0.0
      %807 = vmatprep.subr.mxu0 0.0
      %808 = vmatpush2.msra.mxu0 0.0
      %809 = vmatprep.mubr.f32.mxu0 0.0
      %810 = vmatmul.mubr.f32.gmra.mxu0 %v608
      %v811 = vpop.f32.mrf.mxu0
      %v812 = vadd.f32 0.0, %v811
      %v813 = vpop.f32.mrf.mxu0
      %v814 = vadd.f32 0.0, %v813
      %815 = vdwg.mxu0
      %v816 = vadd.f32 %v604, %v741
      %v817 = vadd.f32 %v605, %v743
      %v818 = vadd.f32 %v606, %v812
      %v819 = vadd.f32 %v607, %v814
      %v820 = vxor.u32 %v816, 2147483648
      %v821 = vmul.f32 %v820, 1.442695
      %v822 = vpow.pop %v821
      %v823 = vadd.f32 %v822, 1.0
      %v824 = vrcp.pop %v823
      %v825 = vmul.f32 1.0, %v824
      %v826 = vxor.u32 %v817, 2147483648
      %v827 = vmul.f32 %v826, 1.442695
      %v828 = vpow.pop %v827
      %v829 = vadd.f32 %v828, 1.0
      %v830 = vrcp.pop %v829
      %v831 = vmul.f32 1.0, %v830
      %v832 = vtanh.pop %v818
      %v833 = vxor.u32 %v819, 2147483648
      %v834 = vmul.f32 %v833, 1.442695
      %v835 = vpow.pop %v834
      %v836 = vadd.f32 %v835, 1.0
      %v837 = vrcp.pop %v836
      %v838 = vmul.f32 1.0, %v837
      %v839 = vmul.f32 %v831, %v609
      %v840 = vmul.f32 %v825, %v832
      %v841 = vadd.f32 %v839, %v840
      %v842 = vtanh.pop %v841
      %v843 = vmul.f32 %v838, %v842
      %844 = vst [vmem:[#allocation2] sm:$0xff] %v843
      %845 = vst [vmem:[#allocation3] sm:$0xff] %v841
      %s846 = scalar_lea.vmem %s353, 224
      %v847 = vld [vmem:[%s846] sm:$0xff]
      %v848 = vld [vmem:[%s846 + $0x8] sm:$0xff]
      %v849 = vld [vmem:[%s846 + $0x10] sm:$0xff]
      %v850 = vld [vmem:[%s846 + $0x18] sm:$0xff]
      %v851 = vld [vmem:[#allocation4] sm:$0xff]
      %v852 = vld [vmem:[#allocation5] sm:$0xff]
      %v853 = vld [vmem:[%s3] sm:$0xff]
      %v854 = vld [vmem:[%s3 + $0x8] sm:$0xff]
      %v855 = vld [vmem:[%s3 + $0x10] sm:$0xff]
      %v856 = vld [vmem:[%s3 + $0x18] sm:$0xff]
      %v857 = vld [vmem:[%s3 + $0x20] sm:$0xff]
      %v858 = vld [vmem:[%s3 + $0x28] sm:$0xff]
      %v859 = vld [vmem:[%s3 + $0x30] sm:$0xff]
      %v860 = vld [vmem:[%s3 + $0x38] sm:$0xff]
      %v861 = vld [vmem:[%s3 + $0x40] sm:$0xff]
      %v862 = vld [vmem:[%s3 + $0x48] sm:$0xff]
      %v863 = vld [vmem:[%s3 + $0x50] sm:$0xff]
      %v864 = vld [vmem:[%s3 + $0x58] sm:$0xff]
      %v865 = vld [vmem:[%s3 + $0x60] sm:$0xff]
      %v866 = vld [vmem:[%s3 + $0x68] sm:$0xff]
      %v867 = vld [vmem:[%s3 + $0x70] sm:$0xff]
      %v868 = vld [vmem:[%s3 + $0x78] sm:$0xff]
      %v869 = vld [vmem:[%s3 + $0x80] sm:$0xff]
      %v870 = vld [vmem:[%s3 + $0x88] sm:$0xff]
      %v871 = vld [vmem:[%s3 + $0x90] sm:$0xff]
      %v872 = vld [vmem:[%s3 + $0x98] sm:$0xff]
      %v873 = vld [vmem:[%s3 + $0xa0] sm:$0xff]
      %v874 = vld [vmem:[%s3 + $0xa8] sm:$0xff]
      %v875 = vld [vmem:[%s3 + $0xb0] sm:$0xff]
      %v876 = vld [vmem:[%s3 + $0xb8] sm:$0xff]
      %v877 = vld [vmem:[%s3 + $0xc0] sm:$0xff]
      %v878 = vld [vmem:[%s3 + $0xc8] sm:$0xff]
      %v879 = vld [vmem:[%s3 + $0xd0] sm:$0xff]
      %v880 = vld [vmem:[%s3 + $0xd8] sm:$0xff]
      %v881 = vld [vmem:[%s3 + $0xe0] sm:$0xff]
      %v882 = vld [vmem:[%s3 + $0xe8] sm:$0xff]
      %v883 = vld [vmem:[%s3 + $0xf0] sm:$0xff]
      %v884 = vld [vmem:[%s3 + $0xf8] sm:$0xff]
      %v885 = vld [vmem:[%s3 + $0x100] sm:$0xff]
      %v886 = vld [vmem:[%s3 + $0x108] sm:$0xff]
      %v887 = vld [vmem:[%s3 + $0x110] sm:$0xff]
      %v888 = vld [vmem:[%s3 + $0x118] sm:$0xff]
      %v889 = vld [vmem:[%s3 + $0x120] sm:$0xff]
      %v890 = vld [vmem:[%s3 + $0x128] sm:$0xff]
      %v891 = vld [vmem:[%s3 + $0x130] sm:$0xff]
      %v892 = vld [vmem:[%s3 + $0x138] sm:$0xff]
      %v893 = vld [vmem:[%s3 + $0x140] sm:$0xff]
      %v894 = vld [vmem:[%s3 + $0x148] sm:$0xff]
      %v895 = vld [vmem:[%s3 + $0x150] sm:$0xff]
      %v896 = vld [vmem:[%s3 + $0x158] sm:$0xff]
      %v897 = vld [vmem:[%s3 + $0x160] sm:$0xff]
      %v898 = vld [vmem:[%s3 + $0x168] sm:$0xff]
      %v899 = vld [vmem:[%s3 + $0x170] sm:$0xff]
      %v900 = vld [vmem:[%s3 + $0x178] sm:$0xff]
      %v901 = vld [vmem:[%s3 + $0x180] sm:$0xff]
      %v902 = vld [vmem:[%s3 + $0x188] sm:$0xff]
      %v903 = vld [vmem:[%s3 + $0x190] sm:$0xff]
      %v904 = vld [vmem:[%s3 + $0x198] sm:$0xff]
      %v905 = vld [vmem:[%s3 + $0x1a0] sm:$0xff]
      %v906 = vld [vmem:[%s3 + $0x1a8] sm:$0xff]
      %v907 = vld [vmem:[%s3 + $0x1b0] sm:$0xff]
      %v908 = vld [vmem:[%s3 + $0x1b8] sm:$0xff]
      %v909 = vld [vmem:[%s3 + $0x1c0] sm:$0xff]
      %v910 = vld [vmem:[%s3 + $0x1c8] sm:$0xff]
      %v911 = vld [vmem:[%s3 + $0x1d0] sm:$0xff]
      %v912 = vld [vmem:[%s3 + $0x1d8] sm:$0xff]
      %v913 = vld [vmem:[%s3 + $0x1e0] sm:$0xff]
      %v914 = vld [vmem:[%s3 + $0x1e8] sm:$0xff]
      %v915 = vld [vmem:[%s3 + $0x1f0] sm:$0xff]
      %v916 = vld [vmem:[%s3 + $0x1f8] sm:$0xff]
      %917 = vmatprep.subr.mxu0 %v914
      %918 = vmatpush1.msra.mxu0 %v913
      %919 = vmatprep.subr.mxu0 %v910
      %920 = vmatpush1.msra.mxu0 %v909
      %921 = vmatprep.subr.mxu0 %v906
      %922 = vmatpush1.msra.mxu0 %v905
      %923 = vmatprep.subr.mxu0 %v902
      %924 = vmatpush1.msra.mxu0 %v901
      %925 = vmatprep.subr.mxu0 %v898
      %926 = vmatpush1.msra.mxu0 %v897
      %927 = vmatprep.subr.mxu0 %v894
      %928 = vmatpush1.msra.mxu0 %v893
      %929 = vmatprep.subr.mxu0 %v890
      %930 = vmatpush1.msra.mxu0 %v889
      %931 = vmatprep.subr.mxu0 %v886
      %932 = vmatpush1.msra.mxu0 %v885
      %933 = vmatprep.subr.mxu0 %v882
      %934 = vmatpush1.msra.mxu0 %v881
      %935 = vmatprep.subr.mxu0 %v878
      %936 = vmatpush1.msra.mxu0 %v877
      %937 = vmatprep.subr.mxu0 %v874
      %938 = vmatpush1.msra.mxu0 %v873
      %939 = vmatprep.subr.mxu0 %v870
      %940 = vmatpush1.msra.mxu0 %v869
      %941 = vmatprep.subr.mxu0 %v866
      %942 = vmatpush1.msra.mxu0 %v865
      %943 = vmatprep.subr.mxu0 %v862
      %944 = vmatpush1.msra.mxu0 %v861
      %945 = vmatprep.subr.mxu0 %v858
      %946 = vmatpush1.msra.mxu0 %v857
      %947 = vmatprep.subr.mxu0 %v854
      %948 = vmatpush1.msra.mxu0 %v853
      %949 = vmatprep.subr.mxu0 0.0
      %950 = vmatpush2.msra.mxu0 0.0
      %951 = vmatprep.subr.mxu0 0.0
      %952 = vmatpush2.msra.mxu0 0.0
      %953 = vmatprep.subr.mxu0 0.0
      %954 = vmatpush2.msra.mxu0 0.0
      %955 = vmatprep.subr.mxu0 0.0
      %956 = vmatpush2.msra.mxu0 0.0
      %957 = vmatprep.subr.mxu0 0.0
      %958 = vmatpush2.msra.mxu0 0.0
      %959 = vmatprep.subr.mxu0 0.0
      %960 = vmatpush2.msra.mxu0 0.0
      %961 = vmatprep.subr.mxu0 0.0
      %962 = vmatpush2.msra.mxu0 0.0
      %963 = vmatprep.subr.mxu0 0.0
      %964 = vmatpush2.msra.mxu0 0.0
      %965 = vmatprep.subr.mxu0 0.0
      %966 = vmatpush2.msra.mxu0 0.0
      %967 = vmatprep.subr.mxu0 0.0
      %968 = vmatpush2.msra.mxu0 0.0
      %969 = vmatprep.subr.mxu0 0.0
      %970 = vmatpush2.msra.mxu0 0.0
      %971 = vmatprep.subr.mxu0 0.0
      %972 = vmatpush2.msra.mxu0 0.0
      %973 = vmatprep.subr.mxu0 0.0
      %974 = vmatpush2.msra.mxu0 0.0
      %975 = vmatprep.subr.mxu0 0.0
      %976 = vmatpush2.msra.mxu0 0.0
      %977 = vmatprep.subr.mxu0 0.0
      %978 = vmatpush2.msra.mxu0 0.0
      %979 = vmatprep.subr.mxu0 0.0
      %980 = vmatpush2.msra.mxu0 0.0
      %981 = vmatprep.mubr.f32.mxu0 0.0
      %982 = vmatmul.mubr.f32.gmra.mxu0 %v851
      %v983 = vpop.f32.mrf.mxu0
      %v984 = vadd.f32 0.0, %v983
      %v985 = vpop.f32.mrf.mxu0
      %v986 = vadd.f32 0.0, %v985
      %987 = vdwg.mxu0
      %988 = vmatprep.subr.mxu0 %v916
      %989 = vmatpush1.msra.mxu0 %v915
      %990 = vmatprep.subr.mxu0 %v912
      %991 = vmatpush1.msra.mxu0 %v911
      %992 = vmatprep.subr.mxu0 %v908
      %993 = vmatpush1.msra.mxu0 %v907
      %994 = vmatprep.subr.mxu0 %v904
      %995 = vmatpush1.msra.mxu0 %v903
      %996 = vmatprep.subr.mxu0 %v900
      %997 = vmatpush1.msra.mxu0 %v899
      %998 = vmatprep.subr.mxu0 %v896
      %999 = vmatpush1.msra.mxu0 %v895
      %1000 = vmatprep.subr.mxu0 %v892
      %1001 = vmatpush1.msra.mxu0 %v891
      %1002 = vmatprep.subr.mxu0 %v888
      %1003 = vmatpush1.msra.mxu0 %v887
      %1004 = vmatprep.subr.mxu0 %v884
      %1005 = vmatpush1.msra.mxu0 %v883
      %1006 = vmatprep.subr.mxu0 %v880
      %1007 = vmatpush1.msra.mxu0 %v879
      %1008 = vmatprep.subr.mxu0 %v876
      %1009 = vmatpush1.msra.mxu0 %v875
      %1010 = vmatprep.subr.mxu0 %v872
      %1011 = vmatpush1.msra.mxu0 %v871
      %1012 = vmatprep.subr.mxu0 %v868
      %1013 = vmatpush1.msra.mxu0 %v867
      %1014 = vmatprep.subr.mxu0 %v864
      %1015 = vmatpush1.msra.mxu0 %v863
      %1016 = vmatprep.subr.mxu0 %v860
      %1017 = vmatpush1.msra.mxu0 %v859
      %1018 = vmatprep.subr.mxu0 %v856
      %1019 = vmatpush1.msra.mxu0 %v855
      %1020 = vmatprep.subr.mxu0 0.0
      %1021 = vmatpush2.msra.mxu0 0.0
      %1022 = vmatprep.subr.mxu0 0.0
      %1023 = vmatpush2.msra.mxu0 0.0
      %1024 = vmatprep.subr.mxu0 0.0
      %1025 = vmatpush2.msra.mxu0 0.0
      %1026 = vmatprep.subr.mxu0 0.0
      %1027 = vmatpush2.msra.mxu0 0.0
      %1028 = vmatprep.subr.mxu0 0.0
      %1029 = vmatpush2.msra.mxu0 0.0
      %1030 = vmatprep.subr.mxu0 0.0
      %1031 = vmatpush2.msra.mxu0 0.0
      %1032 = vmatprep.subr.mxu0 0.0
      %1033 = vmatpush2.msra.mxu0 0.0
      %1034 = vmatprep.subr.mxu0 0.0
      %1035 = vmatpush2.msra.mxu0 0.0
      %1036 = vmatprep.subr.mxu0 0.0
      %1037 = vmatpush2.msra.mxu0 0.0
      %1038 = vmatprep.subr.mxu0 0.0
      %1039 = vmatpush2.msra.mxu0 0.0
      %1040 = vmatprep.subr.mxu0 0.0
      %1041 = vmatpush2.msra.mxu0 0.0
      %1042 = vmatprep.subr.mxu0 0.0
      %1043 = vmatpush2.msra.mxu0 0.0
      %1044 = vmatprep.subr.mxu0 0.0
      %1045 = vmatpush2.msra.mxu0 0.0
      %1046 = vmatprep.subr.mxu0 0.0
      %1047 = vmatpush2.msra.mxu0 0.0
      %1048 = vmatprep.subr.mxu0 0.0
      %1049 = vmatpush2.msra.mxu0 0.0
      %1050 = vmatprep.subr.mxu0 0.0
      %1051 = vmatpush2.msra.mxu0 0.0
      %1052 = vmatprep.mubr.f32.mxu0 0.0
      %1053 = vmatmul.mubr.f32.gmra.mxu0 %v851
      %v1054 = vpop.f32.mrf.mxu0
      %v1055 = vadd.f32 0.0, %v1054
      %v1056 = vpop.f32.mrf.mxu0
      %v1057 = vadd.f32 0.0, %v1056
      %1058 = vdwg.mxu0
      %v1059 = vadd.f32 %v847, %v984
      %v1060 = vadd.f32 %v848, %v986
      %v1061 = vadd.f32 %v849, %v1055
      %v1062 = vadd.f32 %v850, %v1057
      %v1063 = vxor.u32 %v1059, 2147483648
      %v1064 = vmul.f32 %v1063, 1.442695
      %v1065 = vpow.pop %v1064
      %v1066 = vadd.f32 %v1065, 1.0
      %v1067 = vrcp.pop %v1066
      %v1068 = vmul.f32 1.0, %v1067
      %v1069 = vxor.u32 %v1060, 2147483648
      %v1070 = vmul.f32 %v1069, 1.442695
      %v1071 = vpow.pop %v1070
      %v1072 = vadd.f32 %v1071, 1.0
      %v1073 = vrcp.pop %v1072
      %v1074 = vmul.f32 1.0, %v1073
      %v1075 = vtanh.pop %v1061
      %v1076 = vxor.u32 %v1062, 2147483648
      %v1077 = vmul.f32 %v1076, 1.442695
      %v1078 = vpow.pop %v1077
      %v1079 = vadd.f32 %v1078, 1.0
      %v1080 = vrcp.pop %v1079
      %v1081 = vmul.f32 1.0, %v1080
      %v1082 = vmul.f32 %v1074, %v852
      %v1083 = vmul.f32 %v1068, %v1075
      %v1084 = vadd.f32 %v1082, %v1083
      %v1085 = vtanh.pop %v1084
      %v1086 = vmul.f32 %v1081, %v1085
      %1087 = vst [vmem:[#allocation4] sm:$0xff] %v1086
      %1088 = vst [vmem:[#allocation5] sm:$0xff] %v1084
      %s1089 = scalar_lea.vmem %s345, 32
      %v1090 = vld [vmem:[%s1089] sm:$0xff]
      %v1091 = vld [vmem:[%s1089 + $0x8] sm:$0xff]
      %v1092 = vld [vmem:[%s1089 + $0x10] sm:$0xff]
      %v1093 = vld [vmem:[%s1089 + $0x18] sm:$0xff]
      %v1094 = vld [vmem:[#allocation2] sm:$0xff]
      %v1095 = vld [vmem:[#allocation3] sm:$0xff]
      %v1096 = vld [vmem:[%s2] sm:$0xff]
      %v1097 = vld [vmem:[%s2 + $0x8] sm:$0xff]
      %v1098 = vld [vmem:[%s2 + $0x10] sm:$0xff]
      %v1099 = vld [vmem:[%s2 + $0x18] sm:$0xff]
      %v1100 = vld [vmem:[%s2 + $0x20] sm:$0xff]
      %v1101 = vld [vmem:[%s2 + $0x28] sm:$0xff]
      %v1102 = vld [vmem:[%s2 + $0x30] sm:$0xff]
      %v1103 = vld [vmem:[%s2 + $0x38] sm:$0xff]
      %v1104 = vld [vmem:[%s2 + $0x40] sm:$0xff]
      %v1105 = vld [vmem:[%s2 + $0x48] sm:$0xff]
      %v1106 = vld [vmem:[%s2 + $0x50] sm:$0xff]
      %v1107 = vld [vmem:[%s2 + $0x58] sm:$0xff]
      %v1108 = vld [vmem:[%s2 + $0x60] sm:$0xff]
      %v1109 = vld [vmem:[%s2 + $0x68] sm:$0xff]
      %v1110 = vld [vmem:[%s2 + $0x70] sm:$0xff]
      %v1111 = vld [vmem:[%s2 + $0x78] sm:$0xff]
      %v1112 = vld [vmem:[%s2 + $0x80] sm:$0xff]
      %v1113 = vld [vmem:[%s2 + $0x88] sm:$0xff]
      %v1114 = vld [vmem:[%s2 + $0x90] sm:$0xff]
      %v1115 = vld [vmem:[%s2 + $0x98] sm:$0xff]
      %v1116 = vld [vmem:[%s2 + $0xa0] sm:$0xff]
      %v1117 = vld [vmem:[%s2 + $0xa8] sm:$0xff]
      %v1118 = vld [vmem:[%s2 + $0xb0] sm:$0xff]
      %v1119 = vld [vmem:[%s2 + $0xb8] sm:$0xff]
      %v1120 = vld [vmem:[%s2 + $0xc0] sm:$0xff]
      %v1121 = vld [vmem:[%s2 + $0xc8] sm:$0xff]
      %v1122 = vld [vmem:[%s2 + $0xd0] sm:$0xff]
      %v1123 = vld [vmem:[%s2 + $0xd8] sm:$0xff]
      %v1124 = vld [vmem:[%s2 + $0xe0] sm:$0xff]
      %v1125 = vld [vmem:[%s2 + $0xe8] sm:$0xff]
      %v1126 = vld [vmem:[%s2 + $0xf0] sm:$0xff]
      %v1127 = vld [vmem:[%s2 + $0xf8] sm:$0xff]
      %v1128 = vld [vmem:[%s2 + $0x100] sm:$0xff]
      %v1129 = vld [vmem:[%s2 + $0x108] sm:$0xff]
      %v1130 = vld [vmem:[%s2 + $0x110] sm:$0xff]
      %v1131 = vld [vmem:[%s2 + $0x118] sm:$0xff]
      %v1132 = vld [vmem:[%s2 + $0x120] sm:$0xff]
      %v1133 = vld [vmem:[%s2 + $0x128] sm:$0xff]
      %v1134 = vld [vmem:[%s2 + $0x130] sm:$0xff]
      %v1135 = vld [vmem:[%s2 + $0x138] sm:$0xff]
      %v1136 = vld [vmem:[%s2 + $0x140] sm:$0xff]
      %v1137 = vld [vmem:[%s2 + $0x148] sm:$0xff]
      %v1138 = vld [vmem:[%s2 + $0x150] sm:$0xff]
      %v1139 = vld [vmem:[%s2 + $0x158] sm:$0xff]
      %v1140 = vld [vmem:[%s2 + $0x160] sm:$0xff]
      %v1141 = vld [vmem:[%s2 + $0x168] sm:$0xff]
      %v1142 = vld [vmem:[%s2 + $0x170] sm:$0xff]
      %v1143 = vld [vmem:[%s2 + $0x178] sm:$0xff]
      %v1144 = vld [vmem:[%s2 + $0x180] sm:$0xff]
      %v1145 = vld [vmem:[%s2 + $0x188] sm:$0xff]
      %v1146 = vld [vmem:[%s2 + $0x190] sm:$0xff]
      %v1147 = vld [vmem:[%s2 + $0x198] sm:$0xff]
      %v1148 = vld [vmem:[%s2 + $0x1a0] sm:$0xff]
      %v1149 = vld [vmem:[%s2 + $0x1a8] sm:$0xff]
      %v1150 = vld [vmem:[%s2 + $0x1b0] sm:$0xff]
      %v1151 = vld [vmem:[%s2 + $0x1b8] sm:$0xff]
      %v1152 = vld [vmem:[%s2 + $0x1c0] sm:$0xff]
      %v1153 = vld [vmem:[%s2 + $0x1c8] sm:$0xff]
      %v1154 = vld [vmem:[%s2 + $0x1d0] sm:$0xff]
      %v1155 = vld [vmem:[%s2 + $0x1d8] sm:$0xff]
      %v1156 = vld [vmem:[%s2 + $0x1e0] sm:$0xff]
      %v1157 = vld [vmem:[%s2 + $0x1e8] sm:$0xff]
      %v1158 = vld [vmem:[%s2 + $0x1f0] sm:$0xff]
      %v1159 = vld [vmem:[%s2 + $0x1f8] sm:$0xff]
      %1160 = vmatprep.subr.mxu0 %v1157
      %1161 = vmatpush1.msra.mxu0 %v1156
      %1162 = vmatprep.subr.mxu0 %v1153
      %1163 = vmatpush1.msra.mxu0 %v1152
      %1164 = vmatprep.subr.mxu0 %v1149
      %1165 = vmatpush1.msra.mxu0 %v1148
      %1166 = vmatprep.subr.mxu0 %v1145
      %1167 = vmatpush1.msra.mxu0 %v1144
      %1168 = vmatprep.subr.mxu0 %v1141
      %1169 = vmatpush1.msra.mxu0 %v1140
      %1170 = vmatprep.subr.mxu0 %v1137
      %1171 = vmatpush1.msra.mxu0 %v1136
      %1172 = vmatprep.subr.mxu0 %v1133
      %1173 = vmatpush1.msra.mxu0 %v1132
      %1174 = vmatprep.subr.mxu0 %v1129
      %1175 = vmatpush1.msra.mxu0 %v1128
      %1176 = vmatprep.subr.mxu0 %v1125
      %1177 = vmatpush1.msra.mxu0 %v1124
      %1178 = vmatprep.subr.mxu0 %v1121
      %1179 = vmatpush1.msra.mxu0 %v1120
      %1180 = vmatprep.subr.mxu0 %v1117
      %1181 = vmatpush1.msra.mxu0 %v1116
      %1182 = vmatprep.subr.mxu0 %v1113
      %1183 = vmatpush1.msra.mxu0 %v1112
      %1184 = vmatprep.subr.mxu0 %v1109
      %1185 = vmatpush1.msra.mxu0 %v1108
      %1186 = vmatprep.subr.mxu0 %v1105
      %1187 = vmatpush1.msra.mxu0 %v1104
      %1188 = vmatprep.subr.mxu0 %v1101
      %1189 = vmatpush1.msra.mxu0 %v1100
      %1190 = vmatprep.subr.mxu0 %v1097
      %1191 = vmatpush1.msra.mxu0 %v1096
      %1192 = vmatprep.subr.mxu0 0.0
      %1193 = vmatpush2.msra.mxu0 0.0
      %1194 = vmatprep.subr.mxu0 0.0
      %1195 = vmatpush2.msra.mxu0 0.0
      %1196 = vmatprep.subr.mxu0 0.0
      %1197 = vmatpush2.msra.mxu0 0.0
      %1198 = vmatprep.subr.mxu0 0.0
      %1199 = vmatpush2.msra.mxu0 0.0
      %1200 = vmatprep.subr.mxu0 0.0
      %1201 = vmatpush2.msra.mxu0 0.0
      %1202 = vmatprep.subr.mxu0 0.0
      %1203 = vmatpush2.msra.mxu0 0.0
      %1204 = vmatprep.subr.mxu0 0.0
      %1205 = vmatpush2.msra.mxu0 0.0
      %1206 = vmatprep.subr.mxu0 0.0
      %1207 = vmatpush2.msra.mxu0 0.0
      %1208 = vmatprep.subr.mxu0 0.0
      %1209 = vmatpush2.msra.mxu0 0.0
      %1210 = vmatprep.subr.mxu0 0.0
      %1211 = vmatpush2.msra.mxu0 0.0
      %1212 = vmatprep.subr.mxu0 0.0
      %1213 = vmatpush2.msra.mxu0 0.0
      %1214 = vmatprep.subr.mxu0 0.0
      %1215 = vmatpush2.msra.mxu0 0.0
      %1216 = vmatprep.subr.mxu0 0.0
      %1217 = vmatpush2.msra.mxu0 0.0
      %1218 = vmatprep.subr.mxu0 0.0
      %1219 = vmatpush2.msra.mxu0 0.0
      %1220 = vmatprep.subr.mxu0 0.0
      %1221 = vmatpush2.msra.mxu0 0.0
      %1222 = vmatprep.subr.mxu0 0.0
      %1223 = vmatpush2.msra.mxu0 0.0
      %1224 = vmatprep.mubr.f32.mxu0 0.0
      %1225 = vmatmul.mubr.f32.gmra.mxu0 %v1094
      %v1226 = vpop.f32.mrf.mxu0
      %v1227 = vadd.f32 0.0, %v1226
      %v1228 = vpop.f32.mrf.mxu0
      %v1229 = vadd.f32 0.0, %v1228
      %1230 = vdwg.mxu0
      %1231 = vmatprep.subr.mxu0 %v1159
      %1232 = vmatpush1.msra.mxu0 %v1158
      %1233 = vmatprep.subr.mxu0 %v1155
      %1234 = vmatpush1.msra.mxu0 %v1154
      %1235 = vmatprep.subr.mxu0 %v1151
      %1236 = vmatpush1.msra.mxu0 %v1150
      %1237 = vmatprep.subr.mxu0 %v1147
      %1238 = vmatpush1.msra.mxu0 %v1146
      %1239 = vmatprep.subr.mxu0 %v1143
      %1240 = vmatpush1.msra.mxu0 %v1142
      %1241 = vmatprep.subr.mxu0 %v1139
      %1242 = vmatpush1.msra.mxu0 %v1138
      %1243 = vmatprep.subr.mxu0 %v1135
      %1244 = vmatpush1.msra.mxu0 %v1134
      %1245 = vmatprep.subr.mxu0 %v1131
      %1246 = vmatpush1.msra.mxu0 %v1130
      %1247 = vmatprep.subr.mxu0 %v1127
      %1248 = vmatpush1.msra.mxu0 %v1126
      %1249 = vmatprep.subr.mxu0 %v1123
      %1250 = vmatpush1.msra.mxu0 %v1122
      %1251 = vmatprep.subr.mxu0 %v1119
      %1252 = vmatpush1.msra.mxu0 %v1118
      %1253 = vmatprep.subr.mxu0 %v1115
      %1254 = vmatpush1.msra.mxu0 %v1114
      %1255 = vmatprep.subr.mxu0 %v1111
      %1256 = vmatpush1.msra.mxu0 %v1110
      %1257 = vmatprep.subr.mxu0 %v1107
      %1258 = vmatpush1.msra.mxu0 %v1106
      %1259 = vmatprep.subr.mxu0 %v1103
      %1260 = vmatpush1.msra.mxu0 %v1102
      %1261 = vmatprep.subr.mxu0 %v1099
      %1262 = vmatpush1.msra.mxu0 %v1098
      %1263 = vmatprep.subr.mxu0 0.0
      %1264 = vmatpush2.msra.mxu0 0.0
      %1265 = vmatprep.subr.mxu0 0.0
      %1266 = vmatpush2.msra.mxu0 0.0
      %1267 = vmatprep.subr.mxu0 0.0
      %1268 = vmatpush2.msra.mxu0 0.0
      %1269 = vmatprep.subr.mxu0 0.0
      %1270 = vmatpush2.msra.mxu0 0.0
      %1271 = vmatprep.subr.mxu0 0.0
      %1272 = vmatpush2.msra.mxu0 0.0
      %1273 = vmatprep.subr.mxu0 0.0
      %1274 = vmatpush2.msra.mxu0 0.0
      %1275 = vmatprep.subr.mxu0 0.0
      %1276 = vmatpush2.msra.mxu0 0.0
      %1277 = vmatprep.subr.mxu0 0.0
      %1278 = vmatpush2.msra.mxu0 0.0
      %1279 = vmatprep.subr.mxu0 0.0
      %1280 = vmatpush2.msra.mxu0 0.0
      %1281 = vmatprep.subr.mxu0 0.0
      %1282 = vmatpush2.msra.mxu0 0.0
      %1283 = vmatprep.subr.mxu0 0.0
      %1284 = vmatpush2.msra.mxu0 0.0
      %1285 = vmatprep.subr.mxu0 0.0
      %1286 = vmatpush2.msra.mxu0 0.0
      %1287 = vmatprep.subr.mxu0 0.0
      %1288 = vmatpush2.msra.mxu0 0.0
      %1289 = vmatprep.subr.mxu0 0.0
      %1290 = vmatpush2.msra.mxu0 0.0
      %1291 = vmatprep.subr.mxu0 0.0
      %1292 = vmatpush2.msra.mxu0 0.0
      %1293 = vmatprep.subr.mxu0 0.0
      %1294 = vmatpush2.msra.mxu0 0.0
      %1295 = vmatprep.mubr.f32.mxu0 0.0
      %1296 = vmatmul.mubr.f32.gmra.mxu0 %v1094
      %v1297 = vpop.f32.mrf.mxu0
      %v1298 = vadd.f32 0.0, %v1297
      %v1299 = vpop.f32.mrf.mxu0
      %v1300 = vadd.f32 0.0, %v1299
      %1301 = vdwg.mxu0
      %v1302 = vadd.f32 %v1090, %v1227
      %v1303 = vadd.f32 %v1091, %v1229
      %v1304 = vadd.f32 %v1092, %v1298
      %v1305 = vadd.f32 %v1093, %v1300
      %v1306 = vxor.u32 %v1302, 2147483648
      %v1307 = vmul.f32 %v1306, 1.442695
      %v1308 = vpow.pop %v1307
      %v1309 = vadd.f32 %v1308, 1.0
      %v1310 = vrcp.pop %v1309
      %v1311 = vmul.f32 1.0, %v1310
      %v1312 = vxor.u32 %v1303, 2147483648
      %v1313 = vmul.f32 %v1312, 1.442695
      %v1314 = vpow.pop %v1313
      %v1315 = vadd.f32 %v1314, 1.0
      %v1316 = vrcp.pop %v1315
      %v1317 = vmul.f32 1.0, %v1316
      %v1318 = vtanh.pop %v1304
      %v1319 = vxor.u32 %v1305, 2147483648
      %v1320 = vmul.f32 %v1319, 1.442695
      %v1321 = vpow.pop %v1320
      %v1322 = vadd.f32 %v1321, 1.0
      %v1323 = vrcp.pop %v1322
      %v1324 = vmul.f32 1.0, %v1323
      %v1325 = vmul.f32 %v1317, %v1095
      %v1326 = vmul.f32 %v1311, %v1318
      %v1327 = vadd.f32 %v1325, %v1326
      %v1328 = vtanh.pop %v1327
      %v1329 = vmul.f32 %v1324, %v1328
      %1330 = vst [vmem:[#allocation2] sm:$0xff] %v1329
      %1331 = vst [vmem:[#allocation3] sm:$0xff] %v1327
      %s1332 = scalar_lea.vmem %s353, 192
      %v1333 = vld [vmem:[%s1332] sm:$0xff]
      %v1334 = vld [vmem:[%s1332 + $0x8] sm:$0xff]
      %v1335 = vld [vmem:[%s1332 + $0x10] sm:$0xff]
      %v1336 = vld [vmem:[%s1332 + $0x18] sm:$0xff]
      %v1337 = vld [vmem:[#allocation4] sm:$0xff]
      %v1338 = vld [vmem:[#allocation5] sm:$0xff]
      %v1339 = vld [vmem:[%s3] sm:$0xff]
      %v1340 = vld [vmem:[%s3 + $0x8] sm:$0xff]
      %v1341 = vld [vmem:[%s3 + $0x10] sm:$0xff]
      %v1342 = vld [vmem:[%s3 + $0x18] sm:$0xff]
      %v1343 = vld [vmem:[%s3 + $0x20] sm:$0xff]
      %v1344 = vld [vmem:[%s3 + $0x28] sm:$0xff]
      %v1345 = vld [vmem:[%s3 + $0x30] sm:$0xff]
      %v1346 = vld [vmem:[%s3 + $0x38] sm:$0xff]
      %v1347 = vld [vmem:[%s3 + $0x40] sm:$0xff]
      %v1348 = vld [vmem:[%s3 + $0x48] sm:$0xff]
      %v1349 = vld [vmem:[%s3 + $0x50] sm:$0xff]
      %v1350 = vld [vmem:[%s3 + $0x58] sm:$0xff]
      %v1351 = vld [vmem:[%s3 + $0x60] sm:$0xff]
      %v1352 = vld [vmem:[%s3 + $0x68] sm:$0xff]
      %v1353 = vld [vmem:[%s3 + $0x70] sm:$0xff]
      %v1354 = vld [vmem:[%s3 + $0x78] sm:$0xff]
      %v1355 = vld [vmem:[%s3 + $0x80] sm:$0xff]
      %v1356 = vld [vmem:[%s3 + $0x88] sm:$0xff]
      %v1357 = vld [vmem:[%s3 + $0x90] sm:$0xff]
      %v1358 = vld [vmem:[%s3 + $0x98] sm:$0xff]
      %v1359 = vld [vmem:[%s3 + $0xa0] sm:$0xff]
      %v1360 = vld [vmem:[%s3 + $0xa8] sm:$0xff]
      %v1361 = vld [vmem:[%s3 + $0xb0] sm:$0xff]
      %v1362 = vld [vmem:[%s3 + $0xb8] sm:$0xff]
      %v1363 = vld [vmem:[%s3 + $0xc0] sm:$0xff]
      %v1364 = vld [vmem:[%s3 + $0xc8] sm:$0xff]
      %v1365 = vld [vmem:[%s3 + $0xd0] sm:$0xff]
      %v1366 = vld [vmem:[%s3 + $0xd8] sm:$0xff]
      %v1367 = vld [vmem:[%s3 + $0xe0] sm:$0xff]
      %v1368 = vld [vmem:[%s3 + $0xe8] sm:$0xff]
      %v1369 = vld [vmem:[%s3 + $0xf0] sm:$0xff]
      %v1370 = vld [vmem:[%s3 + $0xf8] sm:$0xff]
      %v1371 = vld [vmem:[%s3 + $0x100] sm:$0xff]
      %v1372 = vld [vmem:[%s3 + $0x108] sm:$0xff]
      %v1373 = vld [vmem:[%s3 + $0x110] sm:$0xff]
      %v1374 = vld [vmem:[%s3 + $0x118] sm:$0xff]
      %v1375 = vld [vmem:[%s3 + $0x120] sm:$0xff]
      %v1376 = vld [vmem:[%s3 + $0x128] sm:$0xff]
      %v1377 = vld [vmem:[%s3 + $0x130] sm:$0xff]
      %v1378 = vld [vmem:[%s3 + $0x138] sm:$0xff]
      %v1379 = vld [vmem:[%s3 + $0x140] sm:$0xff]
      %v1380 = vld [vmem:[%s3 + $0x148] sm:$0xff]
      %v1381 = vld [vmem:[%s3 + $0x150] sm:$0xff]
      %v1382 = vld [vmem:[%s3 + $0x158] sm:$0xff]
      %v1383 = vld [vmem:[%s3 + $0x160] sm:$0xff]
      %v1384 = vld [vmem:[%s3 + $0x168] sm:$0xff]
      %v1385 = vld [vmem:[%s3 + $0x170] sm:$0xff]
      %v1386 = vld [vmem:[%s3 + $0x178] sm:$0xff]
      %v1387 = vld [vmem:[%s3 + $0x180] sm:$0xff]
      %v1388 = vld [vmem:[%s3 + $0x188] sm:$0xff]
      %v1389 = vld [vmem:[%s3 + $0x190] sm:$0xff]
      %v1390 = vld [vmem:[%s3 + $0x198] sm:$0xff]
      %v1391 = vld [vmem:[%s3 + $0x1a0] sm:$0xff]
      %v1392 = vld [vmem:[%s3 + $0x1a8] sm:$0xff]
      %v1393 = vld [vmem:[%s3 + $0x1b0] sm:$0xff]
      %v1394 = vld [vmem:[%s3 + $0x1b8] sm:$0xff]
      %v1395 = vld [vmem:[%s3 + $0x1c0] sm:$0xff]
      %v1396 = vld [vmem:[%s3 + $0x1c8] sm:$0xff]
      %v1397 = vld [vmem:[%s3 + $0x1d0] sm:$0xff]
      %v1398 = vld [vmem:[%s3 + $0x1d8] sm:$0xff]
      %v1399 = vld [vmem:[%s3 + $0x1e0] sm:$0xff]
      %v1400 = vld [vmem:[%s3 + $0x1e8] sm:$0xff]
      %v1401 = vld [vmem:[%s3 + $0x1f0] sm:$0xff]
      %v1402 = vld [vmem:[%s3 + $0x1f8] sm:$0xff]
      %1403 = vmatprep.subr.mxu0 %v1400
      %1404 = vmatpush1.msra.mxu0 %v1399
      %1405 = vmatprep.subr.mxu0 %v1396
      %1406 = vmatpush1.msra.mxu0 %v1395
      %1407 = vmatprep.subr.mxu0 %v1392
      %1408 = vmatpush1.msra.mxu0 %v1391
      %1409 = vmatprep.subr.mxu0 %v1388
      %1410 = vmatpush1.msra.mxu0 %v1387
      %1411 = vmatprep.subr.mxu0 %v1384
      %1412 = vmatpush1.msra.mxu0 %v1383
      %1413 = vmatprep.subr.mxu0 %v1380
      %1414 = vmatpush1.msra.mxu0 %v1379
      %1415 = vmatprep.subr.mxu0 %v1376
      %1416 = vmatpush1.msra.mxu0 %v1375
      %1417 = vmatprep.subr.mxu0 %v1372
      %1418 = vmatpush1.msra.mxu0 %v1371
      %1419 = vmatprep.subr.mxu0 %v1368
      %1420 = vmatpush1.msra.mxu0 %v1367
      %1421 = vmatprep.subr.mxu0 %v1364
      %1422 = vmatpush1.msra.mxu0 %v1363
      %1423 = vmatprep.subr.mxu0 %v1360
      %1424 = vmatpush1.msra.mxu0 %v1359
      %1425 = vmatprep.subr.mxu0 %v1356
      %1426 = vmatpush1.msra.mxu0 %v1355
      %1427 = vmatprep.subr.mxu0 %v1352
      %1428 = vmatpush1.msra.mxu0 %v1351
      %1429 = vmatprep.subr.mxu0 %v1348
      %1430 = vmatpush1.msra.mxu0 %v1347
      %1431 = vmatprep.subr.mxu0 %v1344
      %1432 = vmatpush1.msra.mxu0 %v1343
      %1433 = vmatprep.subr.mxu0 %v1340
      %1434 = vmatpush1.msra.mxu0 %v1339
      %1435 = vmatprep.subr.mxu0 0.0
      %1436 = vmatpush2.msra.mxu0 0.0
      %1437 = vmatprep.subr.mxu0 0.0
      %1438 = vmatpush2.msra.mxu0 0.0
      %1439 = vmatprep.subr.mxu0 0.0
      %1440 = vmatpush2.msra.mxu0 0.0
      %1441 = vmatprep.subr.mxu0 0.0
      %1442 = vmatpush2.msra.mxu0 0.0
      %1443 = vmatprep.subr.mxu0 0.0
      %1444 = vmatpush2.msra.mxu0 0.0
      %1445 = vmatprep.subr.mxu0 0.0
      %1446 = vmatpush2.msra.mxu0 0.0
      %1447 = vmatprep.subr.mxu0 0.0
      %1448 = vmatpush2.msra.mxu0 0.0
      %1449 = vmatprep.subr.mxu0 0.0
      %1450 = vmatpush2.msra.mxu0 0.0
      %1451 = vmatprep.subr.mxu0 0.0
      %1452 = vmatpush2.msra.mxu0 0.0
      %1453 = vmatprep.subr.mxu0 0.0
      %1454 = vmatpush2.msra.mxu0 0.0
      %1455 = vmatprep.subr.mxu0 0.0
      %1456 = vmatpush2.msra.mxu0 0.0
      %1457 = vmatprep.subr.mxu0 0.0
      %1458 = vmatpush2.msra.mxu0 0.0
      %1459 = vmatprep.subr.mxu0 0.0
      %1460 = vmatpush2.msra.mxu0 0.0
      %1461 = vmatprep.subr.mxu0 0.0
      %1462 = vmatpush2.msra.mxu0 0.0
      %1463 = vmatprep.subr.mxu0 0.0
      %1464 = vmatpush2.msra.mxu0 0.0
      %1465 = vmatprep.subr.mxu0 0.0
      %1466 = vmatpush2.msra.mxu0 0.0
      %1467 = vmatprep.mubr.f32.mxu0 0.0
      %1468 = vmatmul.mubr.f32.gmra.mxu0 %v1337
      %v1469 = vpop.f32.mrf.mxu0
      %v1470 = vadd.f32 0.0, %v1469
      %v1471 = vpop.f32.mrf.mxu0
      %v1472 = vadd.f32 0.0, %v1471
      %1473 = vdwg.mxu0
      %1474 = vmatprep.subr.mxu0 %v1402
      %1475 = vmatpush1.msra.mxu0 %v1401
      %1476 = vmatprep.subr.mxu0 %v1398
      %1477 = vmatpush1.msra.mxu0 %v1397
      %1478 = vmatprep.subr.mxu0 %v1394
      %1479 = vmatpush1.msra.mxu0 %v1393
      %1480 = vmatprep.subr.mxu0 %v1390
      %1481 = vmatpush1.msra.mxu0 %v1389
      %1482 = vmatprep.subr.mxu0 %v1386
      %1483 = vmatpush1.msra.mxu0 %v1385
      %1484 = vmatprep.subr.mxu0 %v1382
      %1485 = vmatpush1.msra.mxu0 %v1381
      %1486 = vmatprep.subr.mxu0 %v1378
      %1487 = vmatpush1.msra.mxu0 %v1377
      %1488 = vmatprep.subr.mxu0 %v1374
      %1489 = vmatpush1.msra.mxu0 %v1373
      %1490 = vmatprep.subr.mxu0 %v1370
      %1491 = vmatpush1.msra.mxu0 %v1369
      %1492 = vmatprep.subr.mxu0 %v1366
      %1493 = vmatpush1.msra.mxu0 %v1365
      %1494 = vmatprep.subr.mxu0 %v1362
      %1495 = vmatpush1.msra.mxu0 %v1361
      %1496 = vmatprep.subr.mxu0 %v1358
      %1497 = vmatpush1.msra.mxu0 %v1357
      %1498 = vmatprep.subr.mxu0 %v1354
      %1499 = vmatpush1.msra.mxu0 %v1353
      %1500 = vmatprep.subr.mxu0 %v1350
      %1501 = vmatpush1.msra.mxu0 %v1349
      %1502 = vmatprep.subr.mxu0 %v1346
      %1503 = vmatpush1.msra.mxu0 %v1345
      %1504 = vmatprep.subr.mxu0 %v1342
      %1505 = vmatpush1.msra.mxu0 %v1341
      %1506 = vmatprep.subr.mxu0 0.0
      %1507 = vmatpush2.msra.mxu0 0.0
      %1508 = vmatprep.subr.mxu0 0.0
      %1509 = vmatpush2.msra.mxu0 0.0
      %1510 = vmatprep.subr.mxu0 0.0
      %1511 = vmatpush2.msra.mxu0 0.0
      %1512 = vmatprep.subr.mxu0 0.0
      %1513 = vmatpush2.msra.mxu0 0.0
      %1514 = vmatprep.subr.mxu0 0.0
      %1515 = vmatpush2.msra.mxu0 0.0
      %1516 = vmatprep.subr.mxu0 0.0
      %1517 = vmatpush2.msra.mxu0 0.0
      %1518 = vmatprep.subr.mxu0 0.0
      %1519 = vmatpush2.msra.mxu0 0.0
      %1520 = vmatprep.subr.mxu0 0.0
      %1521 = vmatpush2.msra.mxu0 0.0
      %1522 = vmatprep.subr.mxu0 0.0
      %1523 = vmatpush2.msra.mxu0 0.0
      %1524 = vmatprep.subr.mxu0 0.0
      %1525 = vmatpush2.msra.mxu0 0.0
      %1526 = vmatprep.subr.mxu0 0.0
      %1527 = vmatpush2.msra.mxu0 0.0
      %1528 = vmatprep.subr.mxu0 0.0
      %1529 = vmatpush2.msra.mxu0 0.0
      %1530 = vmatprep.subr.mxu0 0.0
      %1531 = vmatpush2.msra.mxu0 0.0
      %1532 = vmatprep.subr.mxu0 0.0
      %1533 = vmatpush2.msra.mxu0 0.0
      %1534 = vmatprep.subr.mxu0 0.0
      %1535 = vmatpush2.msra.mxu0 0.0
      %1536 = vmatprep.subr.mxu0 0.0
      %1537 = vmatpush2.msra.mxu0 0.0
      %1538 = vmatprep.mubr.f32.mxu0 0.0
      %1539 = vmatmul.mubr.f32.gmra.mxu0 %v1337
      %v1540 = vpop.f32.mrf.mxu0
      %v1541 = vadd.f32 0.0, %v1540
      %v1542 = vpop.f32.mrf.mxu0
      %v1543 = vadd.f32 0.0, %v1542
      %1544 = vdwg.mxu0
      %v1545 = vadd.f32 %v1333, %v1470
      %v1546 = vadd.f32 %v1334, %v1472
      %v1547 = vadd.f32 %v1335, %v1541
      %v1548 = vadd.f32 %v1336, %v1543
      %v1549 = vxor.u32 %v1545, 2147483648
      %v1550 = vmul.f32 %v1549, 1.442695
      %v1551 = vpow.pop %v1550
      %v1552 = vadd.f32 %v1551, 1.0
      %v1553 = vrcp.pop %v1552
      %v1554 = vmul.f32 1.0, %v1553
      %v1555 = vxor.u32 %v1546, 2147483648
      %v1556 = vmul.f32 %v1555, 1.442695
      %v1557 = vpow.pop %v1556
      %v1558 = vadd.f32 %v1557, 1.0
      %v1559 = vrcp.pop %v1558
      %v1560 = vmul.f32 1.0, %v1559
      %v1561 = vtanh.pop %v1547
      %v1562 = vxor.u32 %v1548, 2147483648
      %v1563 = vmul.f32 %v1562, 1.442695
      %v1564 = vpow.pop %v1563
      %v1565 = vadd.f32 %v1564, 1.0
      %v1566 = vrcp.pop %v1565
      %v1567 = vmul.f32 1.0, %v1566
      %v1568 = vmul.f32 %v1560, %v1338
      %v1569 = vmul.f32 %v1554, %v1561
      %v1570 = vadd.f32 %v1568, %v1569
      %v1571 = vtanh.pop %v1570
      %v1572 = vmul.f32 %v1567, %v1571
      %1573 = vst [vmem:[#allocation4] sm:$0xff] %v1572
      %1574 = vst [vmem:[#allocation5] sm:$0xff] %v1570
      %s1575 = scalar_lea.vmem %s345, 64
      %v1576 = vld [vmem:[%s1575] sm:$0xff]
      %v1577 = vld [vmem:[%s1575 + $0x8] sm:$0xff]
      %v1578 = vld [vmem:[%s1575 + $0x10] sm:$0xff]
      %v1579 = vld [vmem:[%s1575 + $0x18] sm:$0xff]
      %v1580 = vld [vmem:[#allocation2] sm:$0xff]
      %v1581 = vld [vmem:[#allocation3] sm:$0xff]
      %v1582 = vld [vmem:[%s2] sm:$0xff]
      %v1583 = vld [vmem:[%s2 + $0x8] sm:$0xff]
      %v1584 = vld [vmem:[%s2 + $0x10] sm:$0xff]
      %v1585 = vld [vmem:[%s2 + $0x18] sm:$0xff]
      %v1586 = vld [vmem:[%s2 + $0x20] sm:$0xff]
      %v1587 = vld [vmem:[%s2 + $0x28] sm:$0xff]
      %v1588 = vld [vmem:[%s2 + $0x30] sm:$0xff]
      %v1589 = vld [vmem:[%s2 + $0x38] sm:$0xff]
      %v1590 = vld [vmem:[%s2 + $0x40] sm:$0xff]
      %v1591 = vld [vmem:[%s2 + $0x48] sm:$0xff]
      %v1592 = vld [vmem:[%s2 + $0x50] sm:$0xff]
      %v1593 = vld [vmem:[%s2 + $0x58] sm:$0xff]
      %v1594 = vld [vmem:[%s2 + $0x60] sm:$0xff]
      %v1595 = vld [vmem:[%s2 + $0x68] sm:$0xff]
      %v1596 = vld [vmem:[%s2 + $0x70] sm:$0xff]
      %v1597 = vld [vmem:[%s2 + $0x78] sm:$0xff]
      %v1598 = vld [vmem:[%s2 + $0x80] sm:$0xff]
      %v1599 = vld [vmem:[%s2 + $0x88] sm:$0xff]
      %v1600 = vld [vmem:[%s2 + $0x90] sm:$0xff]
      %v1601 = vld [vmem:[%s2 + $0x98] sm:$0xff]
      %v1602 = vld [vmem:[%s2 + $0xa0] sm:$0xff]
      %v1603 = vld [vmem:[%s2 + $0xa8] sm:$0xff]
      %v1604 = vld [vmem:[%s2 + $0xb0] sm:$0xff]
      %v1605 = vld [vmem:[%s2 + $0xb8] sm:$0xff]
      %v1606 = vld [vmem:[%s2 + $0xc0] sm:$0xff]
      %v1607 = vld [vmem:[%s2 + $0xc8] sm:$0xff]
      %v1608 = vld [vmem:[%s2 + $0xd0] sm:$0xff]
      %v1609 = vld [vmem:[%s2 + $0xd8] sm:$0xff]
      %v1610 = vld [vmem:[%s2 + $0xe0] sm:$0xff]
      %v1611 = vld [vmem:[%s2 + $0xe8] sm:$0xff]
      %v1612 = vld [vmem:[%s2 + $0xf0] sm:$0xff]
      %v1613 = vld [vmem:[%s2 + $0xf8] sm:$0xff]
      %v1614 = vld [vmem:[%s2 + $0x100] sm:$0xff]
      %v1615 = vld [vmem:[%s2 + $0x108] sm:$0xff]
      %v1616 = vld [vmem:[%s2 + $0x110] sm:$0xff]
      %v1617 = vld [vmem:[%s2 + $0x118] sm:$0xff]
      %v1618 = vld [vmem:[%s2 + $0x120] sm:$0xff]
      %v1619 = vld [vmem:[%s2 + $0x128] sm:$0xff]
      %v1620 = vld [vmem:[%s2 + $0x130] sm:$0xff]
      %v1621 = vld [vmem:[%s2 + $0x138] sm:$0xff]
      %v1622 = vld [vmem:[%s2 + $0x140] sm:$0xff]
      %v1623 = vld [vmem:[%s2 + $0x148] sm:$0xff]
      %v1624 = vld [vmem:[%s2 + $0x150] sm:$0xff]
      %v1625 = vld [vmem:[%s2 + $0x158] sm:$0xff]
      %v1626 = vld [vmem:[%s2 + $0x160] sm:$0xff]
      %v1627 = vld [vmem:[%s2 + $0x168] sm:$0xff]
      %v1628 = vld [vmem:[%s2 + $0x170] sm:$0xff]
      %v1629 = vld [vmem:[%s2 + $0x178] sm:$0xff]
      %v1630 = vld [vmem:[%s2 + $0x180] sm:$0xff]
      %v1631 = vld [vmem:[%s2 + $0x188] sm:$0xff]
      %v1632 = vld [vmem:[%s2 + $0x190] sm:$0xff]
      %v1633 = vld [vmem:[%s2 + $0x198] sm:$0xff]
      %v1634 = vld [vmem:[%s2 + $0x1a0] sm:$0xff]
      %v1635 = vld [vmem:[%s2 + $0x1a8] sm:$0xff]
      %v1636 = vld [vmem:[%s2 + $0x1b0] sm:$0xff]
      %v1637 = vld [vmem:[%s2 + $0x1b8] sm:$0xff]
      %v1638 = vld [vmem:[%s2 + $0x1c0] sm:$0xff]
      %v1639 = vld [vmem:[%s2 + $0x1c8] sm:$0xff]
      %v1640 = vld [vmem:[%s2 + $0x1d0] sm:$0xff]
      %v1641 = vld [vmem:[%s2 + $0x1d8] sm:$0xff]
      %v1642 = vld [vmem:[%s2 + $0x1e0] sm:$0xff]
      %v1643 = vld [vmem:[%s2 + $0x1e8] sm:$0xff]
      %v1644 = vld [vmem:[%s2 + $0x1f0] sm:$0xff]
      %v1645 = vld [vmem:[%s2 + $0x1f8] sm:$0xff]
      %1646 = vmatprep.subr.mxu0 %v1643
      %1647 = vmatpush1.msra.mxu0 %v1642
      %1648 = vmatprep.subr.mxu0 %v1639
      %1649 = vmatpush1.msra.mxu0 %v1638
      %1650 = vmatprep.subr.mxu0 %v1635
      %1651 = vmatpush1.msra.mxu0 %v1634
      %1652 = vmatprep.subr.mxu0 %v1631
      %1653 = vmatpush1.msra.mxu0 %v1630
      %1654 = vmatprep.subr.mxu0 %v1627
      %1655 = vmatpush1.msra.mxu0 %v1626
      %1656 = vmatprep.subr.mxu0 %v1623
      %1657 = vmatpush1.msra.mxu0 %v1622
      %1658 = vmatprep.subr.mxu0 %v1619
      %1659 = vmatpush1.msra.mxu0 %v1618
      %1660 = vmatprep.subr.mxu0 %v1615
      %1661 = vmatpush1.msra.mxu0 %v1614
      %1662 = vmatprep.subr.mxu0 %v1611
      %1663 = vmatpush1.msra.mxu0 %v1610
      %1664 = vmatprep.subr.mxu0 %v1607
      %1665 = vmatpush1.msra.mxu0 %v1606
      %1666 = vmatprep.subr.mxu0 %v1603
      %1667 = vmatpush1.msra.mxu0 %v1602
      %1668 = vmatprep.subr.mxu0 %v1599
      %1669 = vmatpush1.msra.mxu0 %v1598
      %1670 = vmatprep.subr.mxu0 %v1595
      %1671 = vmatpush1.msra.mxu0 %v1594
      %1672 = vmatprep.subr.mxu0 %v1591
      %1673 = vmatpush1.msra.mxu0 %v1590
      %1674 = vmatprep.subr.mxu0 %v1587
      %1675 = vmatpush1.msra.mxu0 %v1586
      %1676 = vmatprep.subr.mxu0 %v1583
      %1677 = vmatpush1.msra.mxu0 %v1582
      %1678 = vmatprep.subr.mxu0 0.0
      %1679 = vmatpush2.msra.mxu0 0.0
      %1680 = vmatprep.subr.mxu0 0.0
      %1681 = vmatpush2.msra.mxu0 0.0
      %1682 = vmatprep.subr.mxu0 0.0
      %1683 = vmatpush2.msra.mxu0 0.0
      %1684 = vmatprep.subr.mxu0 0.0
      %1685 = vmatpush2.msra.mxu0 0.0
      %1686 = vmatprep.subr.mxu0 0.0
      %1687 = vmatpush2.msra.mxu0 0.0
      %1688 = vmatprep.subr.mxu0 0.0
      %1689 = vmatpush2.msra.mxu0 0.0
      %1690 = vmatprep.subr.mxu0 0.0
      %1691 = vmatpush2.msra.mxu0 0.0
      %1692 = vmatprep.subr.mxu0 0.0
      %1693 = vmatpush2.msra.mxu0 0.0
      %1694 = vmatprep.subr.mxu0 0.0
      %1695 = vmatpush2.msra.mxu0 0.0
      %1696 = vmatprep.subr.mxu0 0.0
      %1697 = vmatpush2.msra.mxu0 0.0
      %1698 = vmatprep.subr.mxu0 0.0
      %1699 = vmatpush2.msra.mxu0 0.0
      %1700 = vmatprep.subr.mxu0 0.0
      %1701 = vmatpush2.msra.mxu0 0.0
      %1702 = vmatprep.subr.mxu0 0.0
      %1703 = vmatpush2.msra.mxu0 0.0
      %1704 = vmatprep.subr.mxu0 0.0
      %1705 = vmatpush2.msra.mxu0 0.0
      %1706 = vmatprep.subr.mxu0 0.0
      %1707 = vmatpush2.msra.mxu0 0.0
      %1708 = vmatprep.subr.mxu0 0.0
      %1709 = vmatpush2.msra.mxu0 0.0
      %1710 = vmatprep.mubr.f32.mxu0 0.0
      %1711 = vmatmul.mubr.f32.gmra.mxu0 %v1580
      %v1712 = vpop.f32.mrf.mxu0
      %v1713 = vadd.f32 0.0, %v1712
      %v1714 = vpop.f32.mrf.mxu0
      %v1715 = vadd.f32 0.0, %v1714
      %1716 = vdwg.mxu0
      %1717 = vmatprep.subr.mxu0 %v1645
      %1718 = vmatpush1.msra.mxu0 %v1644
      %1719 = vmatprep.subr.mxu0 %v1641
      %1720 = vmatpush1.msra.mxu0 %v1640
      %1721 = vmatprep.subr.mxu0 %v1637
      %1722 = vmatpush1.msra.mxu0 %v1636
      %1723 = vmatprep.subr.mxu0 %v1633
      %1724 = vmatpush1.msra.mxu0 %v1632
      %1725 = vmatprep.subr.mxu0 %v1629
      %1726 = vmatpush1.msra.mxu0 %v1628
      %1727 = vmatprep.subr.mxu0 %v1625
      %1728 = vmatpush1.msra.mxu0 %v1624
      %1729 = vmatprep.subr.mxu0 %v1621
      %1730 = vmatpush1.msra.mxu0 %v1620
      %1731 = vmatprep.subr.mxu0 %v1617
      %1732 = vmatpush1.msra.mxu0 %v1616
      %1733 = vmatprep.subr.mxu0 %v1613
      %1734 = vmatpush1.msra.mxu0 %v1612
      %1735 = vmatprep.subr.mxu0 %v1609
      %1736 = vmatpush1.msra.mxu0 %v1608
      %1737 = vmatprep.subr.mxu0 %v1605
      %1738 = vmatpush1.msra.mxu0 %v1604
      %1739 = vmatprep.subr.mxu0 %v1601
      %1740 = vmatpush1.msra.mxu0 %v1600
      %1741 = vmatprep.subr.mxu0 %v1597
      %1742 = vmatpush1.msra.mxu0 %v1596
      %1743 = vmatprep.subr.mxu0 %v1593
      %1744 = vmatpush1.msra.mxu0 %v1592
      %1745 = vmatprep.subr.mxu0 %v1589
      %1746 = vmatpush1.msra.mxu0 %v1588
      %1747 = vmatprep.subr.mxu0 %v1585
      %1748 = vmatpush1.msra.mxu0 %v1584
      %1749 = vmatprep.subr.mxu0 0.0
      %1750 = vmatpush2.msra.mxu0 0.0
      %1751 = vmatprep.subr.mxu0 0.0
      %1752 = vmatpush2.msra.mxu0 0.0
      %1753 = vmatprep.subr.mxu0 0.0
      %1754 = vmatpush2.msra.mxu0 0.0
      %1755 = vmatprep.subr.mxu0 0.0
      %1756 = vmatpush2.msra.mxu0 0.0
      %1757 = vmatprep.subr.mxu0 0.0
      %1758 = vmatpush2.msra.mxu0 0.0
      %1759 = vmatprep.subr.mxu0 0.0
      %1760 = vmatpush2.msra.mxu0 0.0
      %1761 = vmatprep.subr.mxu0 0.0
      %1762 = vmatpush2.msra.mxu0 0.0
      %1763 = vmatprep.subr.mxu0 0.0
      %1764 = vmatpush2.msra.mxu0 0.0
      %1765 = vmatprep.subr.mxu0 0.0
      %1766 = vmatpush2.msra.mxu0 0.0
      %1767 = vmatprep.subr.mxu0 0.0
      %1768 = vmatpush2.msra.mxu0 0.0
      %1769 = vmatprep.subr.mxu0 0.0
      %1770 = vmatpush2.msra.mxu0 0.0
      %1771 = vmatprep.subr.mxu0 0.0
      %1772 = vmatpush2.msra.mxu0 0.0
      %1773 = vmatprep.subr.mxu0 0.0
      %1774 = vmatpush2.msra.mxu0 0.0
      %1775 = vmatprep.subr.mxu0 0.0
      %1776 = vmatpush2.msra.mxu0 0.0
      %1777 = vmatprep.subr.mxu0 0.0
      %1778 = vmatpush2.msra.mxu0 0.0
      %1779 = vmatprep.subr.mxu0 0.0
      %1780 = vmatpush2.msra.mxu0 0.0
      %1781 = vmatprep.mubr.f32.mxu0 0.0
      %1782 = vmatmul.mubr.f32.gmra.mxu0 %v1580
      %v1783 = vpop.f32.mrf.mxu0
      %v1784 = vadd.f32 0.0, %v1783
      %v1785 = vpop.f32.mrf.mxu0
      %v1786 = vadd.f32 0.0, %v1785
      %1787 = vdwg.mxu0
      %v1788 = vadd.f32 %v1576, %v1713
      %v1789 = vadd.f32 %v1577, %v1715
      %v1790 = vadd.f32 %v1578, %v1784
      %v1791 = vadd.f32 %v1579, %v1786
      %v1792 = vxor.u32 %v1788, 2147483648
      %v1793 = vmul.f32 %v1792, 1.442695
      %v1794 = vpow.pop %v1793
      %v1795 = vadd.f32 %v1794, 1.0
      %v1796 = vrcp.pop %v1795
      %v1797 = vmul.f32 1.0, %v1796
      %v1798 = vxor.u32 %v1789, 2147483648
      %v1799 = vmul.f32 %v1798, 1.442695
      %v1800 = vpow.pop %v1799
      %v1801 = vadd.f32 %v1800, 1.0
      %v1802 = vrcp.pop %v1801
      %v1803 = vmul.f32 1.0, %v1802
      %v1804 = vtanh.pop %v1790
      %v1805 = vxor.u32 %v1791, 2147483648
      %v1806 = vmul.f32 %v1805, 1.442695
      %v1807 = vpow.pop %v1806
      %v1808 = vadd.f32 %v1807, 1.0
      %v1809 = vrcp.pop %v1808
      %v1810 = vmul.f32 1.0, %v1809
      %v1811 = vmul.f32 %v1803, %v1581
      %v1812 = vmul.f32 %v1797, %v1804
      %v1813 = vadd.f32 %v1811, %v1812
      %v1814 = vtanh.pop %v1813
      %v1815 = vmul.f32 %v1810, %v1814
      %1816 = vst [vmem:[#allocation2] sm:$0xff] %v1815
      %1817 = vst [vmem:[#allocation3] sm:$0xff] %v1813
      %s1818 = scalar_lea.vmem %s353, 160
      %v1819 = vld [vmem:[%s1818] sm:$0xff]
      %v1820 = vld [vmem:[%s1818 + $0x8] sm:$0xff]
      %v1821 = vld [vmem:[%s1818 + $0x10] sm:$0xff]
      %v1822 = vld [vmem:[%s1818 + $0x18] sm:$0xff]
      %v1823 = vld [vmem:[#allocation4] sm:$0xff]
      %v1824 = vld [vmem:[#allocation5] sm:$0xff]
      %v1825 = vld [vmem:[%s3] sm:$0xff]
      %v1826 = vld [vmem:[%s3 + $0x8] sm:$0xff]
      %v1827 = vld [vmem:[%s3 + $0x10] sm:$0xff]
      %v1828 = vld [vmem:[%s3 + $0x18] sm:$0xff]
      %v1829 = vld [vmem:[%s3 + $0x20] sm:$0xff]
      %v1830 = vld [vmem:[%s3 + $0x28] sm:$0xff]
      %v1831 = vld [vmem:[%s3 + $0x30] sm:$0xff]
      %v1832 = vld [vmem:[%s3 + $0x38] sm:$0xff]
      %v1833 = vld [vmem:[%s3 + $0x40] sm:$0xff]
      %v1834 = vld [vmem:[%s3 + $0x48] sm:$0xff]
      %v1835 = vld [vmem:[%s3 + $0x50] sm:$0xff]
      %v1836 = vld [vmem:[%s3 + $0x58] sm:$0xff]
      %v1837 = vld [vmem:[%s3 + $0x60] sm:$0xff]
      %v1838 = vld [vmem:[%s3 + $0x68] sm:$0xff]
      %v1839 = vld [vmem:[%s3 + $0x70] sm:$0xff]
      %v1840 = vld [vmem:[%s3 + $0x78] sm:$0xff]
      %v1841 = vld [vmem:[%s3 + $0x80] sm:$0xff]
      %v1842 = vld [vmem:[%s3 + $0x88] sm:$0xff]
      %v1843 = vld [vmem:[%s3 + $0x90] sm:$0xff]
      %v1844 = vld [vmem:[%s3 + $0x98] sm:$0xff]
      %v1845 = vld [vmem:[%s3 + $0xa0] sm:$0xff]
      %v1846 = vld [vmem:[%s3 + $0xa8] sm:$0xff]
      %v1847 = vld [vmem:[%s3 + $0xb0] sm:$0xff]
      %v1848 = vld [vmem:[%s3 + $0xb8] sm:$0xff]
      %v1849 = vld [vmem:[%s3 + $0xc0] sm:$0xff]
      %v1850 = vld [vmem:[%s3 + $0xc8] sm:$0xff]
      %v1851 = vld [vmem:[%s3 + $0xd0] sm:$0xff]
      %v1852 = vld [vmem:[%s3 + $0xd8] sm:$0xff]
      %v1853 = vld [vmem:[%s3 + $0xe0] sm:$0xff]
      %v1854 = vld [vmem:[%s3 + $0xe8] sm:$0xff]
      %v1855 = vld [vmem:[%s3 + $0xf0] sm:$0xff]
      %v1856 = vld [vmem:[%s3 + $0xf8] sm:$0xff]
      %v1857 = vld [vmem:[%s3 + $0x100] sm:$0xff]
      %v1858 = vld [vmem:[%s3 + $0x108] sm:$0xff]
      %v1859 = vld [vmem:[%s3 + $0x110] sm:$0xff]
      %v1860 = vld [vmem:[%s3 + $0x118] sm:$0xff]
      %v1861 = vld [vmem:[%s3 + $0x120] sm:$0xff]
      %v1862 = vld [vmem:[%s3 + $0x128] sm:$0xff]
      %v1863 = vld [vmem:[%s3 + $0x130] sm:$0xff]
      %v1864 = vld [vmem:[%s3 + $0x138] sm:$0xff]
      %v1865 = vld [vmem:[%s3 + $0x140] sm:$0xff]
      %v1866 = vld [vmem:[%s3 + $0x148] sm:$0xff]
      %v1867 = vld [vmem:[%s3 + $0x150] sm:$0xff]
      %v1868 = vld [vmem:[%s3 + $0x158] sm:$0xff]
      %v1869 = vld [vmem:[%s3 + $0x160] sm:$0xff]
      %v1870 = vld [vmem:[%s3 + $0x168] sm:$0xff]
      %v1871 = vld [vmem:[%s3 + $0x170] sm:$0xff]
      %v1872 = vld [vmem:[%s3 + $0x178] sm:$0xff]
      %v1873 = vld [vmem:[%s3 + $0x180] sm:$0xff]
      %v1874 = vld [vmem:[%s3 + $0x188] sm:$0xff]
      %v1875 = vld [vmem:[%s3 + $0x190] sm:$0xff]
      %v1876 = vld [vmem:[%s3 + $0x198] sm:$0xff]
      %v1877 = vld [vmem:[%s3 + $0x1a0] sm:$0xff]
      %v1878 = vld [vmem:[%s3 + $0x1a8] sm:$0xff]
      %v1879 = vld [vmem:[%s3 + $0x1b0] sm:$0xff]
      %v1880 = vld [vmem:[%s3 + $0x1b8] sm:$0xff]
      %v1881 = vld [vmem:[%s3 + $0x1c0] sm:$0xff]
      %v1882 = vld [vmem:[%s3 + $0x1c8] sm:$0xff]
      %v1883 = vld [vmem:[%s3 + $0x1d0] sm:$0xff]
      %v1884 = vld [vmem:[%s3 + $0x1d8] sm:$0xff]
      %v1885 = vld [vmem:[%s3 + $0x1e0] sm:$0xff]
      %v1886 = vld [vmem:[%s3 + $0x1e8] sm:$0xff]
      %v1887 = vld [vmem:[%s3 + $0x1f0] sm:$0xff]
      %v1888 = vld [vmem:[%s3 + $0x1f8] sm:$0xff]
      %1889 = vmatprep.subr.mxu0 %v1886
      %1890 = vmatpush1.msra.mxu0 %v1885
      %1891 = vmatprep.subr.mxu0 %v1882
      %1892 = vmatpush1.msra.mxu0 %v1881
      %1893 = vmatprep.subr.mxu0 %v1878
      %1894 = vmatpush1.msra.mxu0 %v1877
      %1895 = vmatprep.subr.mxu0 %v1874
      %1896 = vmatpush1.msra.mxu0 %v1873
      %1897 = vmatprep.subr.mxu0 %v1870
      %1898 = vmatpush1.msra.mxu0 %v1869
      %1899 = vmatprep.subr.mxu0 %v1866
      %1900 = vmatpush1.msra.mxu0 %v1865
      %1901 = vmatprep.subr.mxu0 %v1862
      %1902 = vmatpush1.msra.mxu0 %v1861
      %1903 = vmatprep.subr.mxu0 %v1858
      %1904 = vmatpush1.msra.mxu0 %v1857
      %1905 = vmatprep.subr.mxu0 %v1854
      %1906 = vmatpush1.msra.mxu0 %v1853
      %1907 = vmatprep.subr.mxu0 %v1850
      %1908 = vmatpush1.msra.mxu0 %v1849
      %1909 = vmatprep.subr.mxu0 %v1846
      %1910 = vmatpush1.msra.mxu0 %v1845
      %1911 = vmatprep.subr.mxu0 %v1842
      %1912 = vmatpush1.msra.mxu0 %v1841
      %1913 = vmatprep.subr.mxu0 %v1838
      %1914 = vmatpush1.msra.mxu0 %v1837
      %1915 = vmatprep.subr.mxu0 %v1834
      %1916 = vmatpush1.msra.mxu0 %v1833
      %1917 = vmatprep.subr.mxu0 %v1830
      %1918 = vmatpush1.msra.mxu0 %v1829
      %1919 = vmatprep.subr.mxu0 %v1826
      %1920 = vmatpush1.msra.mxu0 %v1825
      %1921 = vmatprep.subr.mxu0 0.0
      %1922 = vmatpush2.msra.mxu0 0.0
      %1923 = vmatprep.subr.mxu0 0.0
      %1924 = vmatpush2.msra.mxu0 0.0
      %1925 = vmatprep.subr.mxu0 0.0
      %1926 = vmatpush2.msra.mxu0 0.0
      %1927 = vmatprep.subr.mxu0 0.0
      %1928 = vmatpush2.msra.mxu0 0.0
      %1929 = vmatprep.subr.mxu0 0.0
      %1930 = vmatpush2.msra.mxu0 0.0
      %1931 = vmatprep.subr.mxu0 0.0
      %1932 = vmatpush2.msra.mxu0 0.0
      %1933 = vmatprep.subr.mxu0 0.0
      %1934 = vmatpush2.msra.mxu0 0.0
      %1935 = vmatprep.subr.mxu0 0.0
      %1936 = vmatpush2.msra.mxu0 0.0
      %1937 = vmatprep.subr.mxu0 0.0
      %1938 = vmatpush2.msra.mxu0 0.0
      %1939 = vmatprep.subr.mxu0 0.0
      %1940 = vmatpush2.msra.mxu0 0.0
      %1941 = vmatprep.subr.mxu0 0.0
      %1942 = vmatpush2.msra.mxu0 0.0
      %1943 = vmatprep.subr.mxu0 0.0
      %1944 = vmatpush2.msra.mxu0 0.0
      %1945 = vmatprep.subr.mxu0 0.0
      %1946 = vmatpush2.msra.mxu0 0.0
      %1947 = vmatprep.subr.mxu0 0.0
      %1948 = vmatpush2.msra.mxu0 0.0
      %1949 = vmatprep.subr.mxu0 0.0
      %1950 = vmatpush2.msra.mxu0 0.0
      %1951 = vmatprep.subr.mxu0 0.0
      %1952 = vmatpush2.msra.mxu0 0.0
      %1953 = vmatprep.mubr.f32.mxu0 0.0
      %1954 = vmatmul.mubr.f32.gmra.mxu0 %v1823
      %v1955 = vpop.f32.mrf.mxu0
      %v1956 = vadd.f32 0.0, %v1955
      %v1957 = vpop.f32.mrf.mxu0
      %v1958 = vadd.f32 0.0, %v1957
      %1959 = vdwg.mxu0
      %1960 = vmatprep.subr.mxu0 %v1888
      %1961 = vmatpush1.msra.mxu0 %v1887
      %1962 = vmatprep.subr.mxu0 %v1884
      %1963 = vmatpush1.msra.mxu0 %v1883
      %1964 = vmatprep.subr.mxu0 %v1880
      %1965 = vmatpush1.msra.mxu0 %v1879
      %1966 = vmatprep.subr.mxu0 %v1876
      %1967 = vmatpush1.msra.mxu0 %v1875
      %1968 = vmatprep.subr.mxu0 %v1872
      %1969 = vmatpush1.msra.mxu0 %v1871
      %1970 = vmatprep.subr.mxu0 %v1868
      %1971 = vmatpush1.msra.mxu0 %v1867
      %1972 = vmatprep.subr.mxu0 %v1864
      %1973 = vmatpush1.msra.mxu0 %v1863
      %1974 = vmatprep.subr.mxu0 %v1860
      %1975 = vmatpush1.msra.mxu0 %v1859
      %1976 = vmatprep.subr.mxu0 %v1856
      %1977 = vmatpush1.msra.mxu0 %v1855
      %1978 = vmatprep.subr.mxu0 %v1852
      %1979 = vmatpush1.msra.mxu0 %v1851
      %1980 = vmatprep.subr.mxu0 %v1848
      %1981 = vmatpush1.msra.mxu0 %v1847
      %1982 = vmatprep.subr.mxu0 %v1844
      %1983 = vmatpush1.msra.mxu0 %v1843
      %1984 = vmatprep.subr.mxu0 %v1840
      %1985 = vmatpush1.msra.mxu0 %v1839
      %1986 = vmatprep.subr.mxu0 %v1836
      %1987 = vmatpush1.msra.mxu0 %v1835
      %1988 = vmatprep.subr.mxu0 %v1832
      %1989 = vmatpush1.msra.mxu0 %v1831
      %1990 = vmatprep.subr.mxu0 %v1828
      %1991 = vmatpush1.msra.mxu0 %v1827
      %1992 = vmatprep.subr.mxu0 0.0
      %1993 = vmatpush2.msra.mxu0 0.0
      %1994 = vmatprep.subr.mxu0 0.0
      %1995 = vmatpush2.msra.mxu0 0.0
      %1996 = vmatprep.subr.mxu0 0.0
      %1997 = vmatpush2.msra.mxu0 0.0
      %1998 = vmatprep.subr.mxu0 0.0
      %1999 = vmatpush2.msra.mxu0 0.0
      %2000 = vmatprep.subr.mxu0 0.0
      %2001 = vmatpush2.msra.mxu0 0.0
      %2002 = vmatprep.subr.mxu0 0.0
      %2003 = vmatpush2.msra.mxu0 0.0
      %2004 = vmatprep.subr.mxu0 0.0
      %2005 = vmatpush2.msra.mxu0 0.0
      %2006 = vmatprep.subr.mxu0 0.0
      %2007 = vmatpush2.msra.mxu0 0.0
      %2008 = vmatprep.subr.mxu0 0.0
      %2009 = vmatpush2.msra.mxu0 0.0
      %2010 = vmatprep.subr.mxu0 0.0
      %2011 = vmatpush2.msra.mxu0 0.0
      %2012 = vmatprep.subr.mxu0 0.0
      %2013 = vmatpush2.msra.mxu0 0.0
      %2014 = vmatprep.subr.mxu0 0.0
      %2015 = vmatpush2.msra.mxu0 0.0
      %2016 = vmatprep.subr.mxu0 0.0
      %2017 = vmatpush2.msra.mxu0 0.0
      %2018 = vmatprep.subr.mxu0 0.0
      %2019 = vmatpush2.msra.mxu0 0.0
      %2020 = vmatprep.subr.mxu0 0.0
      %2021 = vmatpush2.msra.mxu0 0.0
      %2022 = vmatprep.subr.mxu0 0.0
      %2023 = vmatpush2.msra.mxu0 0.0
      %2024 = vmatprep.mubr.f32.mxu0 0.0
      %2025 = vmatmul.mubr.f32.gmra.mxu0 %v1823
      %v2026 = vpop.f32.mrf.mxu0
      %v2027 = vadd.f32 0.0, %v2026
      %v2028 = vpop.f32.mrf.mxu0
      %v2029 = vadd.f32 0.0, %v2028
      %2030 = vdwg.mxu0
      %v2031 = vadd.f32 %v1819, %v1956
      %v2032 = vadd.f32 %v1820, %v1958
      %v2033 = vadd.f32 %v1821, %v2027
      %v2034 = vadd.f32 %v1822, %v2029
      %v2035 = vxor.u32 %v2031, 2147483648
      %v2036 = vmul.f32 %v2035, 1.442695
      %v2037 = vpow.pop %v2036
      %v2038 = vadd.f32 %v2037, 1.0
      %v2039 = vrcp.pop %v2038
      %v2040 = vmul.f32 1.0, %v2039
      %v2041 = vxor.u32 %v2032, 2147483648
      %v2042 = vmul.f32 %v2041, 1.442695
      %v2043 = vpow.pop %v2042
      %v2044 = vadd.f32 %v2043, 1.0
      %v2045 = vrcp.pop %v2044
      %v2046 = vmul.f32 1.0, %v2045
      %v2047 = vtanh.pop %v2033
      %v2048 = vxor.u32 %v2034, 2147483648
      %v2049 = vmul.f32 %v2048, 1.442695
      %v2050 = vpow.pop %v2049
      %v2051 = vadd.f32 %v2050, 1.0
      %v2052 = vrcp.pop %v2051
      %v2053 = vmul.f32 1.0, %v2052
      %v2054 = vmul.f32 %v2046, %v1824
      %v2055 = vmul.f32 %v2040, %v2047
      %v2056 = vadd.f32 %v2054, %v2055
      %v2057 = vtanh.pop %v2056
      %v2058 = vmul.f32 %v2053, %v2057
      %2059 = vst [vmem:[#allocation4] sm:$0xff] %v2058
      %2060 = vst [vmem:[#allocation5] sm:$0xff] %v2056
      %s2061 = scalar_lea.vmem %s345, 96
      %v2062 = vld [vmem:[%s2061] sm:$0xff]
      %v2063 = vld [vmem:[%s2061 + $0x8] sm:$0xff]
      %v2064 = vld [vmem:[%s2061 + $0x10] sm:$0xff]
      %v2065 = vld [vmem:[%s2061 + $0x18] sm:$0xff]
      %v2066 = vld [vmem:[#allocation2] sm:$0xff]
      %v2067 = vld [vmem:[#allocation3] sm:$0xff]
      %v2068 = vld [vmem:[%s2] sm:$0xff]
      %v2069 = vld [vmem:[%s2 + $0x8] sm:$0xff]
      %v2070 = vld [vmem:[%s2 + $0x10] sm:$0xff]
      %v2071 = vld [vmem:[%s2 + $0x18] sm:$0xff]
      %v2072 = vld [vmem:[%s2 + $0x20] sm:$0xff]
      %v2073 = vld [vmem:[%s2 + $0x28] sm:$0xff]
      %v2074 = vld [vmem:[%s2 + $0x30] sm:$0xff]
      %v2075 = vld [vmem:[%s2 + $0x38] sm:$0xff]
      %v2076 = vld [vmem:[%s2 + $0x40] sm:$0xff]
      %v2077 = vld [vmem:[%s2 + $0x48] sm:$0xff]
      %v2078 = vld [vmem:[%s2 + $0x50] sm:$0xff]
      %v2079 = vld [vmem:[%s2 + $0x58] sm:$0xff]
      %v2080 = vld [vmem:[%s2 + $0x60] sm:$0xff]
      %v2081 = vld [vmem:[%s2 + $0x68] sm:$0xff]
      %v2082 = vld [vmem:[%s2 + $0x70] sm:$0xff]
      %v2083 = vld [vmem:[%s2 + $0x78] sm:$0xff]
      %v2084 = vld [vmem:[%s2 + $0x80] sm:$0xff]
      %v2085 = vld [vmem:[%s2 + $0x88] sm:$0xff]
      %v2086 = vld [vmem:[%s2 + $0x90] sm:$0xff]
      %v2087 = vld [vmem:[%s2 + $0x98] sm:$0xff]
      %v2088 = vld [vmem:[%s2 + $0xa0] sm:$0xff]
      %v2089 = vld [vmem:[%s2 + $0xa8] sm:$0xff]
      %v2090 = vld [vmem:[%s2 + $0xb0] sm:$0xff]
      %v2091 = vld [vmem:[%s2 + $0xb8] sm:$0xff]
      %v2092 = vld [vmem:[%s2 + $0xc0] sm:$0xff]
      %v2093 = vld [vmem:[%s2 + $0xc8] sm:$0xff]
      %v2094 = vld [vmem:[%s2 + $0xd0] sm:$0xff]
      %v2095 = vld [vmem:[%s2 + $0xd8] sm:$0xff]
      %v2096 = vld [vmem:[%s2 + $0xe0] sm:$0xff]
      %v2097 = vld [vmem:[%s2 + $0xe8] sm:$0xff]
      %v2098 = vld [vmem:[%s2 + $0xf0] sm:$0xff]
      %v2099 = vld [vmem:[%s2 + $0xf8] sm:$0xff]
      %v2100 = vld [vmem:[%s2 + $0x100] sm:$0xff]
      %v2101 = vld [vmem:[%s2 + $0x108] sm:$0xff]
      %v2102 = vld [vmem:[%s2 + $0x110] sm:$0xff]
      %v2103 = vld [vmem:[%s2 + $0x118] sm:$0xff]
      %v2104 = vld [vmem:[%s2 + $0x120] sm:$0xff]
      %v2105 = vld [vmem:[%s2 + $0x128] sm:$0xff]
      %v2106 = vld [vmem:[%s2 + $0x130] sm:$0xff]
      %v2107 = vld [vmem:[%s2 + $0x138] sm:$0xff]
      %v2108 = vld [vmem:[%s2 + $0x140] sm:$0xff]
      %v2109 = vld [vmem:[%s2 + $0x148] sm:$0xff]
      %v2110 = vld [vmem:[%s2 + $0x150] sm:$0xff]
      %v2111 = vld [vmem:[%s2 + $0x158] sm:$0xff]
      %v2112 = vld [vmem:[%s2 + $0x160] sm:$0xff]
      %v2113 = vld [vmem:[%s2 + $0x168] sm:$0xff]
      %v2114 = vld [vmem:[%s2 + $0x170] sm:$0xff]
      %v2115 = vld [vmem:[%s2 + $0x178] sm:$0xff]
      %v2116 = vld [vmem:[%s2 + $0x180] sm:$0xff]
      %v2117 = vld [vmem:[%s2 + $0x188] sm:$0xff]
      %v2118 = vld [vmem:[%s2 + $0x190] sm:$0xff]
      %v2119 = vld [vmem:[%s2 + $0x198] sm:$0xff]
      %v2120 = vld [vmem:[%s2 + $0x1a0] sm:$0xff]
      %v2121 = vld [vmem:[%s2 + $0x1a8] sm:$0xff]
      %v2122 = vld [vmem:[%s2 + $0x1b0] sm:$0xff]
      %v2123 = vld [vmem:[%s2 + $0x1b8] sm:$0xff]
      %v2124 = vld [vmem:[%s2 + $0x1c0] sm:$0xff]
      %v2125 = vld [vmem:[%s2 + $0x1c8] sm:$0xff]
      %v2126 = vld [vmem:[%s2 + $0x1d0] sm:$0xff]
      %v2127 = vld [vmem:[%s2 + $0x1d8] sm:$0xff]
      %v2128 = vld [vmem:[%s2 + $0x1e0] sm:$0xff]
      %v2129 = vld [vmem:[%s2 + $0x1e8] sm:$0xff]
      %v2130 = vld [vmem:[%s2 + $0x1f0] sm:$0xff]
      %v2131 = vld [vmem:[%s2 + $0x1f8] sm:$0xff]
      %2132 = vmatprep.subr.mxu0 %v2129
      %2133 = vmatpush1.msra.mxu0 %v2128
      %2134 = vmatprep.subr.mxu0 %v2125
      %2135 = vmatpush1.msra.mxu0 %v2124
      %2136 = vmatprep.subr.mxu0 %v2121
      %2137 = vmatpush1.msra.mxu0 %v2120
      %2138 = vmatprep.subr.mxu0 %v2117
      %2139 = vmatpush1.msra.mxu0 %v2116
      %2140 = vmatprep.subr.mxu0 %v2113
      %2141 = vmatpush1.msra.mxu0 %v2112
      %2142 = vmatprep.subr.mxu0 %v2109
      %2143 = vmatpush1.msra.mxu0 %v2108
      %2144 = vmatprep.subr.mxu0 %v2105
      %2145 = vmatpush1.msra.mxu0 %v2104
      %2146 = vmatprep.subr.mxu0 %v2101
      %2147 = vmatpush1.msra.mxu0 %v2100
      %2148 = vmatprep.subr.mxu0 %v2097
      %2149 = vmatpush1.msra.mxu0 %v2096
      %2150 = vmatprep.subr.mxu0 %v2093
      %2151 = vmatpush1.msra.mxu0 %v2092
      %2152 = vmatprep.subr.mxu0 %v2089
      %2153 = vmatpush1.msra.mxu0 %v2088
      %2154 = vmatprep.subr.mxu0 %v2085
      %2155 = vmatpush1.msra.mxu0 %v2084
      %2156 = vmatprep.subr.mxu0 %v2081
      %2157 = vmatpush1.msra.mxu0 %v2080
      %2158 = vmatprep.subr.mxu0 %v2077
      %2159 = vmatpush1.msra.mxu0 %v2076
      %2160 = vmatprep.subr.mxu0 %v2073
      %2161 = vmatpush1.msra.mxu0 %v2072
      %2162 = vmatprep.subr.mxu0 %v2069
      %2163 = vmatpush1.msra.mxu0 %v2068
      %2164 = vmatprep.subr.mxu0 0.0
      %2165 = vmatpush2.msra.mxu0 0.0
      %2166 = vmatprep.subr.mxu0 0.0
      %2167 = vmatpush2.msra.mxu0 0.0
      %2168 = vmatprep.subr.mxu0 0.0
      %2169 = vmatpush2.msra.mxu0 0.0
      %2170 = vmatprep.subr.mxu0 0.0
      %2171 = vmatpush2.msra.mxu0 0.0
      %2172 = vmatprep.subr.mxu0 0.0
      %2173 = vmatpush2.msra.mxu0 0.0
      %2174 = vmatprep.subr.mxu0 0.0
      %2175 = vmatpush2.msra.mxu0 0.0
      %2176 = vmatprep.subr.mxu0 0.0
      %2177 = vmatpush2.msra.mxu0 0.0
      %2178 = vmatprep.subr.mxu0 0.0
      %2179 = vmatpush2.msra.mxu0 0.0
      %2180 = vmatprep.subr.mxu0 0.0
      %2181 = vmatpush2.msra.mxu0 0.0
      %2182 = vmatprep.subr.mxu0 0.0
      %2183 = vmatpush2.msra.mxu0 0.0
      %2184 = vmatprep.subr.mxu0 0.0
      %2185 = vmatpush2.msra.mxu0 0.0
      %2186 = vmatprep.subr.mxu0 0.0
      %2187 = vmatpush2.msra.mxu0 0.0
      %2188 = vmatprep.subr.mxu0 0.0
      %2189 = vmatpush2.msra.mxu0 0.0
      %2190 = vmatprep.subr.mxu0 0.0
      %2191 = vmatpush2.msra.mxu0 0.0
      %2192 = vmatprep.subr.mxu0 0.0
      %2193 = vmatpush2.msra.mxu0 0.0
      %2194 = vmatprep.subr.mxu0 0.0
      %2195 = vmatpush2.msra.mxu0 0.0
      %2196 = vmatprep.mubr.f32.mxu0 0.0
      %2197 = vmatmul.mubr.f32.gmra.mxu0 %v2066
      %v2198 = vpop.f32.mrf.mxu0
      %v2199 = vadd.f32 0.0, %v2198
      %v2200 = vpop.f32.mrf.mxu0
      %v2201 = vadd.f32 0.0, %v2200
      %2202 = vdwg.mxu0
      %2203 = vmatprep.subr.mxu0 %v2131
      %2204 = vmatpush1.msra.mxu0 %v2130
      %2205 = vmatprep.subr.mxu0 %v2127
      %2206 = vmatpush1.msra.mxu0 %v2126
      %2207 = vmatprep.subr.mxu0 %v2123
      %2208 = vmatpush1.msra.mxu0 %v2122
      %2209 = vmatprep.subr.mxu0 %v2119
      %2210 = vmatpush1.msra.mxu0 %v2118
      %2211 = vmatprep.subr.mxu0 %v2115
      %2212 = vmatpush1.msra.mxu0 %v2114
      %2213 = vmatprep.subr.mxu0 %v2111
      %2214 = vmatpush1.msra.mxu0 %v2110
      %2215 = vmatprep.subr.mxu0 %v2107
      %2216 = vmatpush1.msra.mxu0 %v2106
      %2217 = vmatprep.subr.mxu0 %v2103
      %2218 = vmatpush1.msra.mxu0 %v2102
      %2219 = vmatprep.subr.mxu0 %v2099
      %2220 = vmatpush1.msra.mxu0 %v2098
      %2221 = vmatprep.subr.mxu0 %v2095
      %2222 = vmatpush1.msra.mxu0 %v2094
      %2223 = vmatprep.subr.mxu0 %v2091
      %2224 = vmatpush1.msra.mxu0 %v2090
      %2225 = vmatprep.subr.mxu0 %v2087
      %2226 = vmatpush1.msra.mxu0 %v2086
      %2227 = vmatprep.subr.mxu0 %v2083
      %2228 = vmatpush1.msra.mxu0 %v2082
      %2229 = vmatprep.subr.mxu0 %v2079
      %2230 = vmatpush1.msra.mxu0 %v2078
      %2231 = vmatprep.subr.mxu0 %v2075
      %2232 = vmatpush1.msra.mxu0 %v2074
      %2233 = vmatprep.subr.mxu0 %v2071
      %2234 = vmatpush1.msra.mxu0 %v2070
      %2235 = vmatprep.subr.mxu0 0.0
      %2236 = vmatpush2.msra.mxu0 0.0
      %2237 = vmatprep.subr.mxu0 0.0
      %2238 = vmatpush2.msra.mxu0 0.0
      %2239 = vmatprep.subr.mxu0 0.0
      %2240 = vmatpush2.msra.mxu0 0.0
      %2241 = vmatprep.subr.mxu0 0.0
      %2242 = vmatpush2.msra.mxu0 0.0
      %2243 = vmatprep.subr.mxu0 0.0
      %2244 = vmatpush2.msra.mxu0 0.0
      %2245 = vmatprep.subr.mxu0 0.0
      %2246 = vmatpush2.msra.mxu0 0.0
      %2247 = vmatprep.subr.mxu0 0.0
      %2248 = vmatpush2.msra.mxu0 0.0
      %2249 = vmatprep.subr.mxu0 0.0
      %2250 = vmatpush2.msra.mxu0 0.0
      %2251 = vmatprep.subr.mxu0 0.0
      %2252 = vmatpush2.msra.mxu0 0.0
      %2253 = vmatprep.subr.mxu0 0.0
      %2254 = vmatpush2.msra.mxu0 0.0
      %2255 = vmatprep.subr.mxu0 0.0
      %2256 = vmatpush2.msra.mxu0 0.0
      %2257 = vmatprep.subr.mxu0 0.0
      %2258 = vmatpush2.msra.mxu0 0.0
      %2259 = vmatprep.subr.mxu0 0.0
      %2260 = vmatpush2.msra.mxu0 0.0
      %2261 = vmatprep.subr.mxu0 0.0
      %2262 = vmatpush2.msra.mxu0 0.0
      %2263 = vmatprep.subr.mxu0 0.0
      %2264 = vmatpush2.msra.mxu0 0.0
      %2265 = vmatprep.subr.mxu0 0.0
      %2266 = vmatpush2.msra.mxu0 0.0
      %2267 = vmatprep.mubr.f32.mxu0 0.0
      %2268 = vmatmul.mubr.f32.gmra.mxu0 %v2066
      %v2269 = vpop.f32.mrf.mxu0
      %v2270 = vadd.f32 0.0, %v2269
      %v2271 = vpop.f32.mrf.mxu0
      %v2272 = vadd.f32 0.0, %v2271
      %2273 = vdwg.mxu0
      %v2274 = vadd.f32 %v2062, %v2199
      %v2275 = vadd.f32 %v2063, %v2201
      %v2276 = vadd.f32 %v2064, %v2270
      %v2277 = vadd.f32 %v2065, %v2272
      %v2278 = vxor.u32 %v2274, 2147483648
      %v2279 = vmul.f32 %v2278, 1.442695
      %v2280 = vpow.pop %v2279
      %v2281 = vadd.f32 %v2280, 1.0
      %v2282 = vrcp.pop %v2281
      %v2283 = vmul.f32 1.0, %v2282
      %v2284 = vxor.u32 %v2275, 2147483648
      %v2285 = vmul.f32 %v2284, 1.442695
      %v2286 = vpow.pop %v2285
      %v2287 = vadd.f32 %v2286, 1.0
      %v2288 = vrcp.pop %v2287
      %v2289 = vmul.f32 1.0, %v2288
      %v2290 = vtanh.pop %v2276
      %v2291 = vxor.u32 %v2277, 2147483648
      %v2292 = vmul.f32 %v2291, 1.442695
      %v2293 = vpow.pop %v2292
      %v2294 = vadd.f32 %v2293, 1.0
      %v2295 = vrcp.pop %v2294
      %v2296 = vmul.f32 1.0, %v2295
      %v2297 = vmul.f32 %v2289, %v2067
      %v2298 = vmul.f32 %v2283, %v2290
      %v2299 = vadd.f32 %v2297, %v2298
      %v2300 = vtanh.pop %v2299
      %v2301 = vmul.f32 %v2296, %v2300
      %2302 = vst [vmem:[#allocation2] sm:$0xff] %v2301
      %2303 = vst [vmem:[#allocation3] sm:$0xff] %v2299
      %s2304 = scalar_lea.vmem %s353, 128
      %v2305 = vld [vmem:[%s2304] sm:$0xff]
      %v2306 = vld [vmem:[%s2304 + $0x8] sm:$0xff]
      %v2307 = vld [vmem:[%s2304 + $0x10] sm:$0xff]
      %v2308 = vld [vmem:[%s2304 + $0x18] sm:$0xff]
      %v2309 = vld [vmem:[#allocation4] sm:$0xff]
      %v2310 = vld [vmem:[#allocation5] sm:$0xff]
      %v2311 = vld [vmem:[%s3] sm:$0xff]
      %v2312 = vld [vmem:[%s3 + $0x8] sm:$0xff]
      %v2313 = vld [vmem:[%s3 + $0x10] sm:$0xff]
      %v2314 = vld [vmem:[%s3 + $0x18] sm:$0xff]
      %v2315 = vld [vmem:[%s3 + $0x20] sm:$0xff]
      %v2316 = vld [vmem:[%s3 + $0x28] sm:$0xff]
      %v2317 = vld [vmem:[%s3 + $0x30] sm:$0xff]
      %v2318 = vld [vmem:[%s3 + $0x38] sm:$0xff]
      %v2319 = vld [vmem:[%s3 + $0x40] sm:$0xff]
      %v2320 = vld [vmem:[%s3 + $0x48] sm:$0xff]
      %v2321 = vld [vmem:[%s3 + $0x50] sm:$0xff]
      %v2322 = vld [vmem:[%s3 + $0x58] sm:$0xff]
      %v2323 = vld [vmem:[%s3 + $0x60] sm:$0xff]
      %v2324 = vld [vmem:[%s3 + $0x68] sm:$0xff]
      %v2325 = vld [vmem:[%s3 + $0x70] sm:$0xff]
      %v2326 = vld [vmem:[%s3 + $0x78] sm:$0xff]
      %v2327 = vld [vmem:[%s3 + $0x80] sm:$0xff]
      %v2328 = vld [vmem:[%s3 + $0x88] sm:$0xff]
      %v2329 = vld [vmem:[%s3 + $0x90] sm:$0xff]
      %v2330 = vld [vmem:[%s3 + $0x98] sm:$0xff]
      %v2331 = vld [vmem:[%s3 + $0xa0] sm:$0xff]
      %v2332 = vld [vmem:[%s3 + $0xa8] sm:$0xff]
      %v2333 = vld [vmem:[%s3 + $0xb0] sm:$0xff]
      %v2334 = vld [vmem:[%s3 + $0xb8] sm:$0xff]
      %v2335 = vld [vmem:[%s3 + $0xc0] sm:$0xff]
      %v2336 = vld [vmem:[%s3 + $0xc8] sm:$0xff]
      %v2337 = vld [vmem:[%s3 + $0xd0] sm:$0xff]
      %v2338 = vld [vmem:[%s3 + $0xd8] sm:$0xff]
      %v2339 = vld [vmem:[%s3 + $0xe0] sm:$0xff]
      %v2340 = vld [vmem:[%s3 + $0xe8] sm:$0xff]
      %v2341 = vld [vmem:[%s3 + $0xf0] sm:$0xff]
      %v2342 = vld [vmem:[%s3 + $0xf8] sm:$0xff]
      %v2343 = vld [vmem:[%s3 + $0x100] sm:$0xff]
      %v2344 = vld [vmem:[%s3 + $0x108] sm:$0xff]
      %v2345 = vld [vmem:[%s3 + $0x110] sm:$0xff]
      %v2346 = vld [vmem:[%s3 + $0x118] sm:$0xff]
      %v2347 = vld [vmem:[%s3 + $0x120] sm:$0xff]
      %v2348 = vld [vmem:[%s3 + $0x128] sm:$0xff]
      %v2349 = vld [vmem:[%s3 + $0x130] sm:$0xff]
      %v2350 = vld [vmem:[%s3 + $0x138] sm:$0xff]
      %v2351 = vld [vmem:[%s3 + $0x140] sm:$0xff]
      %v2352 = vld [vmem:[%s3 + $0x148] sm:$0xff]
      %v2353 = vld [vmem:[%s3 + $0x150] sm:$0xff]
      %v2354 = vld [vmem:[%s3 + $0x158] sm:$0xff]
      %v2355 = vld [vmem:[%s3 + $0x160] sm:$0xff]
      %v2356 = vld [vmem:[%s3 + $0x168] sm:$0xff]
      %v2357 = vld [vmem:[%s3 + $0x170] sm:$0xff]
      %v2358 = vld [vmem:[%s3 + $0x178] sm:$0xff]
      %v2359 = vld [vmem:[%s3 + $0x180] sm:$0xff]
      %v2360 = vld [vmem:[%s3 + $0x188] sm:$0xff]
      %v2361 = vld [vmem:[%s3 + $0x190] sm:$0xff]
      %v2362 = vld [vmem:[%s3 + $0x198] sm:$0xff]
      %v2363 = vld [vmem:[%s3 + $0x1a0] sm:$0xff]
      %v2364 = vld [vmem:[%s3 + $0x1a8] sm:$0xff]
      %v2365 = vld [vmem:[%s3 + $0x1b0] sm:$0xff]
      %v2366 = vld [vmem:[%s3 + $0x1b8] sm:$0xff]
      %v2367 = vld [vmem:[%s3 + $0x1c0] sm:$0xff]
      %v2368 = vld [vmem:[%s3 + $0x1c8] sm:$0xff]
      %v2369 = vld [vmem:[%s3 + $0x1d0] sm:$0xff]
      %v2370 = vld [vmem:[%s3 + $0x1d8] sm:$0xff]
      %v2371 = vld [vmem:[%s3 + $0x1e0] sm:$0xff]
      %v2372 = vld [vmem:[%s3 + $0x1e8] sm:$0xff]
      %v2373 = vld [vmem:[%s3 + $0x1f0] sm:$0xff]
      %v2374 = vld [vmem:[%s3 + $0x1f8] sm:$0xff]
      %2375 = vmatprep.subr.mxu0 %v2372
      %2376 = vmatpush1.msra.mxu0 %v2371
      %2377 = vmatprep.subr.mxu0 %v2368
      %2378 = vmatpush1.msra.mxu0 %v2367
      %2379 = vmatprep.subr.mxu0 %v2364
      %2380 = vmatpush1.msra.mxu0 %v2363
      %2381 = vmatprep.subr.mxu0 %v2360
      %2382 = vmatpush1.msra.mxu0 %v2359
      %2383 = vmatprep.subr.mxu0 %v2356
      %2384 = vmatpush1.msra.mxu0 %v2355
      %2385 = vmatprep.subr.mxu0 %v2352
      %2386 = vmatpush1.msra.mxu0 %v2351
      %2387 = vmatprep.subr.mxu0 %v2348
      %2388 = vmatpush1.msra.mxu0 %v2347
      %2389 = vmatprep.subr.mxu0 %v2344
      %2390 = vmatpush1.msra.mxu0 %v2343
      %2391 = vmatprep.subr.mxu0 %v2340
      %2392 = vmatpush1.msra.mxu0 %v2339
      %2393 = vmatprep.subr.mxu0 %v2336
      %2394 = vmatpush1.msra.mxu0 %v2335
      %2395 = vmatprep.subr.mxu0 %v2332
      %2396 = vmatpush1.msra.mxu0 %v2331
      %2397 = vmatprep.subr.mxu0 %v2328
      %2398 = vmatpush1.msra.mxu0 %v2327
      %2399 = vmatprep.subr.mxu0 %v2324
      %2400 = vmatpush1.msra.mxu0 %v2323
      %2401 = vmatprep.subr.mxu0 %v2320
      %2402 = vmatpush1.msra.mxu0 %v2319
      %2403 = vmatprep.subr.mxu0 %v2316
      %2404 = vmatpush1.msra.mxu0 %v2315
      %2405 = vmatprep.subr.mxu0 %v2312
      %2406 = vmatpush1.msra.mxu0 %v2311
      %2407 = vmatprep.subr.mxu0 0.0
      %2408 = vmatpush2.msra.mxu0 0.0
      %2409 = vmatprep.subr.mxu0 0.0
      %2410 = vmatpush2.msra.mxu0 0.0
      %2411 = vmatprep.subr.mxu0 0.0
      %2412 = vmatpush2.msra.mxu0 0.0
      %2413 = vmatprep.subr.mxu0 0.0
      %2414 = vmatpush2.msra.mxu0 0.0
      %2415 = vmatprep.subr.mxu0 0.0
      %2416 = vmatpush2.msra.mxu0 0.0
      %2417 = vmatprep.subr.mxu0 0.0
      %2418 = vmatpush2.msra.mxu0 0.0
      %2419 = vmatprep.subr.mxu0 0.0
      %2420 = vmatpush2.msra.mxu0 0.0
      %2421 = vmatprep.subr.mxu0 0.0
      %2422 = vmatpush2.msra.mxu0 0.0
      %2423 = vmatprep.subr.mxu0 0.0
      %2424 = vmatpush2.msra.mxu0 0.0
      %2425 = vmatprep.subr.mxu0 0.0
      %2426 = vmatpush2.msra.mxu0 0.0
      %2427 = vmatprep.subr.mxu0 0.0
      %2428 = vmatpush2.msra.mxu0 0.0
      %2429 = vmatprep.subr.mxu0 0.0
      %2430 = vmatpush2.msra.mxu0 0.0
      %2431 = vmatprep.subr.mxu0 0.0
      %2432 = vmatpush2.msra.mxu0 0.0
      %2433 = vmatprep.subr.mxu0 0.0
      %2434 = vmatpush2.msra.mxu0 0.0
      %2435 = vmatprep.subr.mxu0 0.0
      %2436 = vmatpush2.msra.mxu0 0.0
      %2437 = vmatprep.subr.mxu0 0.0
      %2438 = vmatpush2.msra.mxu0 0.0
      %2439 = vmatprep.mubr.f32.mxu0 0.0
      %2440 = vmatmul.mubr.f32.gmra.mxu0 %v2309
      %v2441 = vpop.f32.mrf.mxu0
      %v2442 = vadd.f32 0.0, %v2441
      %v2443 = vpop.f32.mrf.mxu0
      %v2444 = vadd.f32 0.0, %v2443
      %2445 = vdwg.mxu0
      %2446 = vmatprep.subr.mxu0 %v2374
      %2447 = vmatpush1.msra.mxu0 %v2373
      %2448 = vmatprep.subr.mxu0 %v2370
      %2449 = vmatpush1.msra.mxu0 %v2369
      %2450 = vmatprep.subr.mxu0 %v2366
      %2451 = vmatpush1.msra.mxu0 %v2365
      %2452 = vmatprep.subr.mxu0 %v2362
      %2453 = vmatpush1.msra.mxu0 %v2361
      %2454 = vmatprep.subr.mxu0 %v2358
      %2455 = vmatpush1.msra.mxu0 %v2357
      %2456 = vmatprep.subr.mxu0 %v2354
      %2457 = vmatpush1.msra.mxu0 %v2353
      %2458 = vmatprep.subr.mxu0 %v2350
      %2459 = vmatpush1.msra.mxu0 %v2349
      %2460 = vmatprep.subr.mxu0 %v2346
      %2461 = vmatpush1.msra.mxu0 %v2345
      %2462 = vmatprep.subr.mxu0 %v2342
      %2463 = vmatpush1.msra.mxu0 %v2341
      %2464 = vmatprep.subr.mxu0 %v2338
      %2465 = vmatpush1.msra.mxu0 %v2337
      %2466 = vmatprep.subr.mxu0 %v2334
      %2467 = vmatpush1.msra.mxu0 %v2333
      %2468 = vmatprep.subr.mxu0 %v2330
      %2469 = vmatpush1.msra.mxu0 %v2329
      %2470 = vmatprep.subr.mxu0 %v2326
      %2471 = vmatpush1.msra.mxu0 %v2325
      %2472 = vmatprep.subr.mxu0 %v2322
      %2473 = vmatpush1.msra.mxu0 %v2321
      %2474 = vmatprep.subr.mxu0 %v2318
      %2475 = vmatpush1.msra.mxu0 %v2317
      %2476 = vmatprep.subr.mxu0 %v2314
      %2477 = vmatpush1.msra.mxu0 %v2313
      %2478 = vmatprep.subr.mxu0 0.0
      %2479 = vmatpush2.msra.mxu0 0.0
      %2480 = vmatprep.subr.mxu0 0.0
      %2481 = vmatpush2.msra.mxu0 0.0
      %2482 = vmatprep.subr.mxu0 0.0
      %2483 = vmatpush2.msra.mxu0 0.0
      %2484 = vmatprep.subr.mxu0 0.0
      %2485 = vmatpush2.msra.mxu0 0.0
      %2486 = vmatprep.subr.mxu0 0.0
      %2487 = vmatpush2.msra.mxu0 0.0
      %2488 = vmatprep.subr.mxu0 0.0
      %2489 = vmatpush2.msra.mxu0 0.0
      %2490 = vmatprep.subr.mxu0 0.0
      %2491 = vmatpush2.msra.mxu0 0.0
      %2492 = vmatprep.subr.mxu0 0.0
      %2493 = vmatpush2.msra.mxu0 0.0
      %2494 = vmatprep.subr.mxu0 0.0
      %2495 = vmatpush2.msra.mxu0 0.0
      %2496 = vmatprep.subr.mxu0 0.0
      %2497 = vmatpush2.msra.mxu0 0.0
      %2498 = vmatprep.subr.mxu0 0.0
      %2499 = vmatpush2.msra.mxu0 0.0
      %2500 = vmatprep.subr.mxu0 0.0
      %2501 = vmatpush2.msra.mxu0 0.0
      %2502 = vmatprep.subr.mxu0 0.0
      %2503 = vmatpush2.msra.mxu0 0.0
      %2504 = vmatprep.subr.mxu0 0.0
      %2505 = vmatpush2.msra.mxu0 0.0
      %2506 = vmatprep.subr.mxu0 0.0
      %2507 = vmatpush2.msra.mxu0 0.0
      %2508 = vmatprep.subr.mxu0 0.0
      %2509 = vmatpush2.msra.mxu0 0.0
      %2510 = vmatprep.mubr.f32.mxu0 0.0
      %2511 = vmatmul.mubr.f32.gmra.mxu0 %v2309
      %v2512 = vpop.f32.mrf.mxu0
      %v2513 = vadd.f32 0.0, %v2512
      %v2514 = vpop.f32.mrf.mxu0
      %v2515 = vadd.f32 0.0, %v2514
      %2516 = vdwg.mxu0
      %v2517 = vadd.f32 %v2305, %v2442
      %v2518 = vadd.f32 %v2306, %v2444
      %v2519 = vadd.f32 %v2307, %v2513
      %v2520 = vadd.f32 %v2308, %v2515
      %v2521 = vxor.u32 %v2517, 2147483648
      %v2522 = vmul.f32 %v2521, 1.442695
      %v2523 = vpow.pop %v2522
      %v2524 = vadd.f32 %v2523, 1.0
      %v2525 = vrcp.pop %v2524
      %v2526 = vmul.f32 1.0, %v2525
      %v2527 = vxor.u32 %v2518, 2147483648
      %v2528 = vmul.f32 %v2527, 1.442695
      %v2529 = vpow.pop %v2528
      %v2530 = vadd.f32 %v2529, 1.0
      %v2531 = vrcp.pop %v2530
      %v2532 = vmul.f32 1.0, %v2531
      %v2533 = vtanh.pop %v2519
      %v2534 = vxor.u32 %v2520, 2147483648
      %v2535 = vmul.f32 %v2534, 1.442695
      %v2536 = vpow.pop %v2535
      %v2537 = vadd.f32 %v2536, 1.0
      %v2538 = vrcp.pop %v2537
      %v2539 = vmul.f32 1.0, %v2538
      %v2540 = vmul.f32 %v2532, %v2310
      %v2541 = vmul.f32 %v2526, %v2533
      %v2542 = vadd.f32 %v2540, %v2541
      %v2543 = vtanh.pop %v2542
      %v2544 = vmul.f32 %v2539, %v2543
      %2545 = vst [vmem:[#allocation4] sm:$0xff] %v2544
      %2546 = vst [vmem:[#allocation5] sm:$0xff] %v2542
      %s2547 = scalar_lea.vmem %s345, 128
      %v2548 = vld [vmem:[%s2547] sm:$0xff]
      %v2549 = vld [vmem:[%s2547 + $0x8] sm:$0xff]
      %v2550 = vld [vmem:[%s2547 + $0x10] sm:$0xff]
      %v2551 = vld [vmem:[%s2547 + $0x18] sm:$0xff]
      %v2552 = vld [vmem:[#allocation2] sm:$0xff]
      %v2553 = vld [vmem:[#allocation3] sm:$0xff]
      %v2554 = vld [vmem:[%s2] sm:$0xff]
      %v2555 = vld [vmem:[%s2 + $0x8] sm:$0xff]
      %v2556 = vld [vmem:[%s2 + $0x10] sm:$0xff]
      %v2557 = vld [vmem:[%s2 + $0x18] sm:$0xff]
      %v2558 = vld [vmem:[%s2 + $0x20] sm:$0xff]
      %v2559 = vld [vmem:[%s2 + $0x28] sm:$0xff]
      %v2560 = vld [vmem:[%s2 + $0x30] sm:$0xff]
      %v2561 = vld [vmem:[%s2 + $0x38] sm:$0xff]
      %v2562 = vld [vmem:[%s2 + $0x40] sm:$0xff]
      %v2563 = vld [vmem:[%s2 + $0x48] sm:$0xff]
      %v2564 = vld [vmem:[%s2 + $0x50] sm:$0xff]
      %v2565 = vld [vmem:[%s2 + $0x58] sm:$0xff]
      %v2566 = vld [vmem:[%s2 + $0x60] sm:$0xff]
      %v2567 = vld [vmem:[%s2 + $0x68] sm:$0xff]
      %v2568 = vld [vmem:[%s2 + $0x70] sm:$0xff]
      %v2569 = vld [vmem:[%s2 + $0x78] sm:$0xff]
      %v2570 = vld [vmem:[%s2 + $0x80] sm:$0xff]
      %v2571 = vld [vmem:[%s2 + $0x88] sm:$0xff]
      %v2572 = vld [vmem:[%s2 + $0x90] sm:$0xff]
      %v2573 = vld [vmem:[%s2 + $0x98] sm:$0xff]
      %v2574 = vld [vmem:[%s2 + $0xa0] sm:$0xff]
      %v2575 = vld [vmem:[%s2 + $0xa8] sm:$0xff]
      %v2576 = vld [vmem:[%s2 + $0xb0] sm:$0xff]
      %v2577 = vld [vmem:[%s2 + $0xb8] sm:$0xff]
      %v2578 = vld [vmem:[%s2 + $0xc0] sm:$0xff]
      %v2579 = vld [vmem:[%s2 + $0xc8] sm:$0xff]
      %v2580 = vld [vmem:[%s2 + $0xd0] sm:$0xff]
      %v2581 = vld [vmem:[%s2 + $0xd8] sm:$0xff]
      %v2582 = vld [vmem:[%s2 + $0xe0] sm:$0xff]
      %v2583 = vld [vmem:[%s2 + $0xe8] sm:$0xff]
      %v2584 = vld [vmem:[%s2 + $0xf0] sm:$0xff]
      %v2585 = vld [vmem:[%s2 + $0xf8] sm:$0xff]
      %v2586 = vld [vmem:[%s2 + $0x100] sm:$0xff]
      %v2587 = vld [vmem:[%s2 + $0x108] sm:$0xff]
      %v2588 = vld [vmem:[%s2 + $0x110] sm:$0xff]
      %v2589 = vld [vmem:[%s2 + $0x118] sm:$0xff]
      %v2590 = vld [vmem:[%s2 + $0x120] sm:$0xff]
      %v2591 = vld [vmem:[%s2 + $0x128] sm:$0xff]
      %v2592 = vld [vmem:[%s2 + $0x130] sm:$0xff]
      %v2593 = vld [vmem:[%s2 + $0x138] sm:$0xff]
      %v2594 = vld [vmem:[%s2 + $0x140] sm:$0xff]
      %v2595 = vld [vmem:[%s2 + $0x148] sm:$0xff]
      %v2596 = vld [vmem:[%s2 + $0x150] sm:$0xff]
      %v2597 = vld [vmem:[%s2 + $0x158] sm:$0xff]
      %v2598 = vld [vmem:[%s2 + $0x160] sm:$0xff]
      %v2599 = vld [vmem:[%s2 + $0x168] sm:$0xff]
      %v2600 = vld [vmem:[%s2 + $0x170] sm:$0xff]
      %v2601 = vld [vmem:[%s2 + $0x178] sm:$0xff]
      %v2602 = vld [vmem:[%s2 + $0x180] sm:$0xff]
      %v2603 = vld [vmem:[%s2 + $0x188] sm:$0xff]
      %v2604 = vld [vmem:[%s2 + $0x190] sm:$0xff]
      %v2605 = vld [vmem:[%s2 + $0x198] sm:$0xff]
      %v2606 = vld [vmem:[%s2 + $0x1a0] sm:$0xff]
      %v2607 = vld [vmem:[%s2 + $0x1a8] sm:$0xff]
      %v2608 = vld [vmem:[%s2 + $0x1b0] sm:$0xff]
      %v2609 = vld [vmem:[%s2 + $0x1b8] sm:$0xff]
      %v2610 = vld [vmem:[%s2 + $0x1c0] sm:$0xff]
      %v2611 = vld [vmem:[%s2 + $0x1c8] sm:$0xff]
      %v2612 = vld [vmem:[%s2 + $0x1d0] sm:$0xff]
      %v2613 = vld [vmem:[%s2 + $0x1d8] sm:$0xff]
      %v2614 = vld [vmem:[%s2 + $0x1e0] sm:$0xff]
      %v2615 = vld [vmem:[%s2 + $0x1e8] sm:$0xff]
      %v2616 = vld [vmem:[%s2 + $0x1f0] sm:$0xff]
      %v2617 = vld [vmem:[%s2 + $0x1f8] sm:$0xff]
      %2618 = vmatprep.subr.mxu0 %v2615
      %2619 = vmatpush1.msra.mxu0 %v2614
      %2620 = vmatprep.subr.mxu0 %v2611
      %2621 = vmatpush1.msra.mxu0 %v2610
      %2622 = vmatprep.subr.mxu0 %v2607
      %2623 = vmatpush1.msra.mxu0 %v2606
      %2624 = vmatprep.subr.mxu0 %v2603
      %2625 = vmatpush1.msra.mxu0 %v2602
      %2626 = vmatprep.subr.mxu0 %v2599
      %2627 = vmatpush1.msra.mxu0 %v2598
      %2628 = vmatprep.subr.mxu0 %v2595
      %2629 = vmatpush1.msra.mxu0 %v2594
      %2630 = vmatprep.subr.mxu0 %v2591
      %2631 = vmatpush1.msra.mxu0 %v2590
      %2632 = vmatprep.subr.mxu0 %v2587
      %2633 = vmatpush1.msra.mxu0 %v2586
      %2634 = vmatprep.subr.mxu0 %v2583
      %2635 = vmatpush1.msra.mxu0 %v2582
      %2636 = vmatprep.subr.mxu0 %v2579
      %2637 = vmatpush1.msra.mxu0 %v2578
      %2638 = vmatprep.subr.mxu0 %v2575
      %2639 = vmatpush1.msra.mxu0 %v2574
      %2640 = vmatprep.subr.mxu0 %v2571
      %2641 = vmatpush1.msra.mxu0 %v2570
      %2642 = vmatprep.subr.mxu0 %v2567
      %2643 = vmatpush1.msra.mxu0 %v2566
      %2644 = vmatprep.subr.mxu0 %v2563
      %2645 = vmatpush1.msra.mxu0 %v2562
      %2646 = vmatprep.subr.mxu0 %v2559
      %2647 = vmatpush1.msra.mxu0 %v2558
      %2648 = vmatprep.subr.mxu0 %v2555
      %2649 = vmatpush1.msra.mxu0 %v2554
      %2650 = vmatprep.subr.mxu0 0.0
      %2651 = vmatpush2.msra.mxu0 0.0
      %2652 = vmatprep.subr.mxu0 0.0
      %2653 = vmatpush2.msra.mxu0 0.0
      %2654 = vmatprep.subr.mxu0 0.0
      %2655 = vmatpush2.msra.mxu0 0.0
      %2656 = vmatprep.subr.mxu0 0.0
      %2657 = vmatpush2.msra.mxu0 0.0
      %2658 = vmatprep.subr.mxu0 0.0
      %2659 = vmatpush2.msra.mxu0 0.0
      %2660 = vmatprep.subr.mxu0 0.0
      %2661 = vmatpush2.msra.mxu0 0.0
      %2662 = vmatprep.subr.mxu0 0.0
      %2663 = vmatpush2.msra.mxu0 0.0
      %2664 = vmatprep.subr.mxu0 0.0
      %2665 = vmatpush2.msra.mxu0 0.0
      %2666 = vmatprep.subr.mxu0 0.0
      %2667 = vmatpush2.msra.mxu0 0.0
      %2668 = vmatprep.subr.mxu0 0.0
      %2669 = vmatpush2.msra.mxu0 0.0
      %2670 = vmatprep.subr.mxu0 0.0
      %2671 = vmatpush2.msra.mxu0 0.0
      %2672 = vmatprep.subr.mxu0 0.0
      %2673 = vmatpush2.msra.mxu0 0.0
      %2674 = vmatprep.subr.mxu0 0.0
      %2675 = vmatpush2.msra.mxu0 0.0
      %2676 = vmatprep.subr.mxu0 0.0
      %2677 = vmatpush2.msra.mxu0 0.0
      %2678 = vmatprep.subr.mxu0 0.0
      %2679 = vmatpush2.msra.mxu0 0.0
      %2680 = vmatprep.subr.mxu0 0.0
      %2681 = vmatpush2.msra.mxu0 0.0
      %2682 = vmatprep.mubr.f32.mxu0 0.0
      %2683 = vmatmul.mubr.f32.gmra.mxu0 %v2552
      %v2684 = vpop.f32.mrf.mxu0
      %v2685 = vadd.f32 0.0, %v2684
      %v2686 = vpop.f32.mrf.mxu0
      %v2687 = vadd.f32 0.0, %v2686
      %2688 = vdwg.mxu0
      %2689 = vmatprep.subr.mxu0 %v2617
      %2690 = vmatpush1.msra.mxu0 %v2616
      %2691 = vmatprep.subr.mxu0 %v2613
      %2692 = vmatpush1.msra.mxu0 %v2612
      %2693 = vmatprep.subr.mxu0 %v2609
      %2694 = vmatpush1.msra.mxu0 %v2608
      %2695 = vmatprep.subr.mxu0 %v2605
      %2696 = vmatpush1.msra.mxu0 %v2604
      %2697 = vmatprep.subr.mxu0 %v2601
      %2698 = vmatpush1.msra.mxu0 %v2600
      %2699 = vmatprep.subr.mxu0 %v2597
      %2700 = vmatpush1.msra.mxu0 %v2596
      %2701 = vmatprep.subr.mxu0 %v2593
      %2702 = vmatpush1.msra.mxu0 %v2592
      %2703 = vmatprep.subr.mxu0 %v2589
      %2704 = vmatpush1.msra.mxu0 %v2588
      %2705 = vmatprep.subr.mxu0 %v2585
      %2706 = vmatpush1.msra.mxu0 %v2584
      %2707 = vmatprep.subr.mxu0 %v2581
      %2708 = vmatpush1.msra.mxu0 %v2580
      %2709 = vmatprep.subr.mxu0 %v2577
      %2710 = vmatpush1.msra.mxu0 %v2576
      %2711 = vmatprep.subr.mxu0 %v2573
      %2712 = vmatpush1.msra.mxu0 %v2572
      %2713 = vmatprep.subr.mxu0 %v2569
      %2714 = vmatpush1.msra.mxu0 %v2568
      %2715 = vmatprep.subr.mxu0 %v2565
      %2716 = vmatpush1.msra.mxu0 %v2564
      %2717 = vmatprep.subr.mxu0 %v2561
      %2718 = vmatpush1.msra.mxu0 %v2560
      %2719 = vmatprep.subr.mxu0 %v2557
      %2720 = vmatpush1.msra.mxu0 %v2556
      %2721 = vmatprep.subr.mxu0 0.0
      %2722 = vmatpush2.msra.mxu0 0.0
      %2723 = vmatprep.subr.mxu0 0.0
      %2724 = vmatpush2.msra.mxu0 0.0
      %2725 = vmatprep.subr.mxu0 0.0
      %2726 = vmatpush2.msra.mxu0 0.0
      %2727 = vmatprep.subr.mxu0 0.0
      %2728 = vmatpush2.msra.mxu0 0.0
      %2729 = vmatprep.subr.mxu0 0.0
      %2730 = vmatpush2.msra.mxu0 0.0
      %2731 = vmatprep.subr.mxu0 0.0
      %2732 = vmatpush2.msra.mxu0 0.0
      %2733 = vmatprep.subr.mxu0 0.0
      %2734 = vmatpush2.msra.mxu0 0.0
      %2735 = vmatprep.subr.mxu0 0.0
      %2736 = vmatpush2.msra.mxu0 0.0
      %2737 = vmatprep.subr.mxu0 0.0
      %2738 = vmatpush2.msra.mxu0 0.0
      %2739 = vmatprep.subr.mxu0 0.0
      %2740 = vmatpush2.msra.mxu0 0.0
      %2741 = vmatprep.subr.mxu0 0.0
      %2742 = vmatpush2.msra.mxu0 0.0
      %2743 = vmatprep.subr.mxu0 0.0
      %2744 = vmatpush2.msra.mxu0 0.0
      %2745 = vmatprep.subr.mxu0 0.0
      %2746 = vmatpush2.msra.mxu0 0.0
      %2747 = vmatprep.subr.mxu0 0.0
      %2748 = vmatpush2.msra.mxu0 0.0
      %2749 = vmatprep.subr.mxu0 0.0
      %2750 = vmatpush2.msra.mxu0 0.0
      %2751 = vmatprep.subr.mxu0 0.0
      %2752 = vmatpush2.msra.mxu0 0.0
      %2753 = vmatprep.mubr.f32.mxu0 0.0
      %2754 = vmatmul.mubr.f32.gmra.mxu0 %v2552
      %v2755 = vpop.f32.mrf.mxu0
      %v2756 = vadd.f32 0.0, %v2755
      %v2757 = vpop.f32.mrf.mxu0
      %v2758 = vadd.f32 0.0, %v2757
      %2759 = vdwg.mxu0
      %v2760 = vadd.f32 %v2548, %v2685
      %v2761 = vadd.f32 %v2549, %v2687
      %v2762 = vadd.f32 %v2550, %v2756
      %v2763 = vadd.f32 %v2551, %v2758
      %v2764 = vxor.u32 %v2760, 2147483648
      %v2765 = vmul.f32 %v2764, 1.442695
      %v2766 = vpow.pop %v2765
      %v2767 = vadd.f32 %v2766, 1.0
      %v2768 = vrcp.pop %v2767
      %v2769 = vmul.f32 1.0, %v2768
      %v2770 = vxor.u32 %v2761, 2147483648
      %v2771 = vmul.f32 %v2770, 1.442695
      %v2772 = vpow.pop %v2771
      %v2773 = vadd.f32 %v2772, 1.0
      %v2774 = vrcp.pop %v2773
      %v2775 = vmul.f32 1.0, %v2774
      %v2776 = vtanh.pop %v2762
      %v2777 = vxor.u32 %v2763, 2147483648
      %v2778 = vmul.f32 %v2777, 1.442695
      %v2779 = vpow.pop %v2778
      %v2780 = vadd.f32 %v2779, 1.0
      %v2781 = vrcp.pop %v2780
      %v2782 = vmul.f32 1.0, %v2781
      %v2783 = vmul.f32 %v2775, %v2553
      %v2784 = vmul.f32 %v2769, %v2776
      %v2785 = vadd.f32 %v2783, %v2784
      %v2786 = vtanh.pop %v2785
      %v2787 = vmul.f32 %v2782, %v2786
      %2788 = vst [vmem:[#allocation2] sm:$0xff] %v2787
      %2789 = vst [vmem:[#allocation3] sm:$0xff] %v2785
      %s2790 = scalar_lea.vmem %s353, 96
      %v2791 = vld [vmem:[%s2790] sm:$0xff]
      %v2792 = vld [vmem:[%s2790 + $0x8] sm:$0xff]
      %v2793 = vld [vmem:[%s2790 + $0x10] sm:$0xff]
      %v2794 = vld [vmem:[%s2790 + $0x18] sm:$0xff]
      %v2795 = vld [vmem:[#allocation4] sm:$0xff]
      %v2796 = vld [vmem:[#allocation5] sm:$0xff]
      %v2797 = vld [vmem:[%s3] sm:$0xff]
      %v2798 = vld [vmem:[%s3 + $0x8] sm:$0xff]
      %v2799 = vld [vmem:[%s3 + $0x10] sm:$0xff]
      %v2800 = vld [vmem:[%s3 + $0x18] sm:$0xff]
      %v2801 = vld [vmem:[%s3 + $0x20] sm:$0xff]
      %v2802 = vld [vmem:[%s3 + $0x28] sm:$0xff]
      %v2803 = vld [vmem:[%s3 + $0x30] sm:$0xff]
      %v2804 = vld [vmem:[%s3 + $0x38] sm:$0xff]
      %v2805 = vld [vmem:[%s3 + $0x40] sm:$0xff]
      %v2806 = vld [vmem:[%s3 + $0x48] sm:$0xff]
      %v2807 = vld [vmem:[%s3 + $0x50] sm:$0xff]
      %v2808 = vld [vmem:[%s3 + $0x58] sm:$0xff]
      %v2809 = vld [vmem:[%s3 + $0x60] sm:$0xff]
      %v2810 = vld [vmem:[%s3 + $0x68] sm:$0xff]
      %v2811 = vld [vmem:[%s3 + $0x70] sm:$0xff]
      %v2812 = vld [vmem:[%s3 + $0x78] sm:$0xff]
      %v2813 = vld [vmem:[%s3 + $0x80] sm:$0xff]
      %v2814 = vld [vmem:[%s3 + $0x88] sm:$0xff]
      %v2815 = vld [vmem:[%s3 + $0x90] sm:$0xff]
      %v2816 = vld [vmem:[%s3 + $0x98] sm:$0xff]
      %v2817 = vld [vmem:[%s3 + $0xa0] sm:$0xff]
      %v2818 = vld [vmem:[%s3 + $0xa8] sm:$0xff]
      %v2819 = vld [vmem:[%s3 + $0xb0] sm:$0xff]
      %v2820 = vld [vmem:[%s3 + $0xb8] sm:$0xff]
      %v2821 = vld [vmem:[%s3 + $0xc0] sm:$0xff]
      %v2822 = vld [vmem:[%s3 + $0xc8] sm:$0xff]
      %v2823 = vld [vmem:[%s3 + $0xd0] sm:$0xff]
      %v2824 = vld [vmem:[%s3 + $0xd8] sm:$0xff]
      %v2825 = vld [vmem:[%s3 + $0xe0] sm:$0xff]
      %v2826 = vld [vmem:[%s3 + $0xe8] sm:$0xff]
      %v2827 = vld [vmem:[%s3 + $0xf0] sm:$0xff]
      %v2828 = vld [vmem:[%s3 + $0xf8] sm:$0xff]
      %v2829 = vld [vmem:[%s3 + $0x100] sm:$0xff]
      %v2830 = vld [vmem:[%s3 + $0x108] sm:$0xff]
      %v2831 = vld [vmem:[%s3 + $0x110] sm:$0xff]
      %v2832 = vld [vmem:[%s3 + $0x118] sm:$0xff]
      %v2833 = vld [vmem:[%s3 + $0x120] sm:$0xff]
      %v2834 = vld [vmem:[%s3 + $0x128] sm:$0xff]
      %v2835 = vld [vmem:[%s3 + $0x130] sm:$0xff]
      %v2836 = vld [vmem:[%s3 + $0x138] sm:$0xff]
      %v2837 = vld [vmem:[%s3 + $0x140] sm:$0xff]
      %v2838 = vld [vmem:[%s3 + $0x148] sm:$0xff]
      %v2839 = vld [vmem:[%s3 + $0x150] sm:$0xff]
      %v2840 = vld [vmem:[%s3 + $0x158] sm:$0xff]
      %v2841 = vld [vmem:[%s3 + $0x160] sm:$0xff]
      %v2842 = vld [vmem:[%s3 + $0x168] sm:$0xff]
      %v2843 = vld [vmem:[%s3 + $0x170] sm:$0xff]
      %v2844 = vld [vmem:[%s3 + $0x178] sm:$0xff]
      %v2845 = vld [vmem:[%s3 + $0x180] sm:$0xff]
      %v2846 = vld [vmem:[%s3 + $0x188] sm:$0xff]
      %v2847 = vld [vmem:[%s3 + $0x190] sm:$0xff]
      %v2848 = vld [vmem:[%s3 + $0x198] sm:$0xff]
      %v2849 = vld [vmem:[%s3 + $0x1a0] sm:$0xff]
      %v2850 = vld [vmem:[%s3 + $0x1a8] sm:$0xff]
      %v2851 = vld [vmem:[%s3 + $0x1b0] sm:$0xff]
      %v2852 = vld [vmem:[%s3 + $0x1b8] sm:$0xff]
      %v2853 = vld [vmem:[%s3 + $0x1c0] sm:$0xff]
      %v2854 = vld [vmem:[%s3 + $0x1c8] sm:$0xff]
      %v2855 = vld [vmem:[%s3 + $0x1d0] sm:$0xff]
      %v2856 = vld [vmem:[%s3 + $0x1d8] sm:$0xff]
      %v2857 = vld [vmem:[%s3 + $0x1e0] sm:$0xff]
      %v2858 = vld [vmem:[%s3 + $0x1e8] sm:$0xff]
      %v2859 = vld [vmem:[%s3 + $0x1f0] sm:$0xff]
      %v2860 = vld [vmem:[%s3 + $0x1f8] sm:$0xff]
      %2861 = vmatprep.subr.mxu0 %v2858
      %2862 = vmatpush1.msra.mxu0 %v2857
      %2863 = vmatprep.subr.mxu0 %v2854
      %2864 = vmatpush1.msra.mxu0 %v2853
      %2865 = vmatprep.subr.mxu0 %v2850
      %2866 = vmatpush1.msra.mxu0 %v2849
      %2867 = vmatprep.subr.mxu0 %v2846
      %2868 = vmatpush1.msra.mxu0 %v2845
      %2869 = vmatprep.subr.mxu0 %v2842
      %2870 = vmatpush1.msra.mxu0 %v2841
      %2871 = vmatprep.subr.mxu0 %v2838
      %2872 = vmatpush1.msra.mxu0 %v2837
      %2873 = vmatprep.subr.mxu0 %v2834
      %2874 = vmatpush1.msra.mxu0 %v2833
      %2875 = vmatprep.subr.mxu0 %v2830
      %2876 = vmatpush1.msra.mxu0 %v2829
      %2877 = vmatprep.subr.mxu0 %v2826
      %2878 = vmatpush1.msra.mxu0 %v2825
      %2879 = vmatprep.subr.mxu0 %v2822
      %2880 = vmatpush1.msra.mxu0 %v2821
      %2881 = vmatprep.subr.mxu0 %v2818
      %2882 = vmatpush1.msra.mxu0 %v2817
      %2883 = vmatprep.subr.mxu0 %v2814
      %2884 = vmatpush1.msra.mxu0 %v2813
      %2885 = vmatprep.subr.mxu0 %v2810
      %2886 = vmatpush1.msra.mxu0 %v2809
      %2887 = vmatprep.subr.mxu0 %v2806
      %2888 = vmatpush1.msra.mxu0 %v2805
      %2889 = vmatprep.subr.mxu0 %v2802
      %2890 = vmatpush1.msra.mxu0 %v2801
      %2891 = vmatprep.subr.mxu0 %v2798
      %2892 = vmatpush1.msra.mxu0 %v2797
      %2893 = vmatprep.subr.mxu0 0.0
      %2894 = vmatpush2.msra.mxu0 0.0
      %2895 = vmatprep.subr.mxu0 0.0
      %2896 = vmatpush2.msra.mxu0 0.0
      %2897 = vmatprep.subr.mxu0 0.0
      %2898 = vmatpush2.msra.mxu0 0.0
      %2899 = vmatprep.subr.mxu0 0.0
      %2900 = vmatpush2.msra.mxu0 0.0
      %2901 = vmatprep.subr.mxu0 0.0
      %2902 = vmatpush2.msra.mxu0 0.0
      %2903 = vmatprep.subr.mxu0 0.0
      %2904 = vmatpush2.msra.mxu0 0.0
      %2905 = vmatprep.subr.mxu0 0.0
      %2906 = vmatpush2.msra.mxu0 0.0
      %2907 = vmatprep.subr.mxu0 0.0
      %2908 = vmatpush2.msra.mxu0 0.0
      %2909 = vmatprep.subr.mxu0 0.0
      %2910 = vmatpush2.msra.mxu0 0.0
      %2911 = vmatprep.subr.mxu0 0.0
      %2912 = vmatpush2.msra.mxu0 0.0
      %2913 = vmatprep.subr.mxu0 0.0
      %2914 = vmatpush2.msra.mxu0 0.0
      %2915 = vmatprep.subr.mxu0 0.0
      %2916 = vmatpush2.msra.mxu0 0.0
      %2917 = vmatprep.subr.mxu0 0.0
      %2918 = vmatpush2.msra.mxu0 0.0
      %2919 = vmatprep.subr.mxu0 0.0
      %2920 = vmatpush2.msra.mxu0 0.0
      %2921 = vmatprep.subr.mxu0 0.0
      %2922 = vmatpush2.msra.mxu0 0.0
      %2923 = vmatprep.subr.mxu0 0.0
      %2924 = vmatpush2.msra.mxu0 0.0
      %2925 = vmatprep.mubr.f32.mxu0 0.0
      %2926 = vmatmul.mubr.f32.gmra.mxu0 %v2795
      %v2927 = vpop.f32.mrf.mxu0
      %v2928 = vadd.f32 0.0, %v2927
      %v2929 = vpop.f32.mrf.mxu0
      %v2930 = vadd.f32 0.0, %v2929
      %2931 = vdwg.mxu0
      %2932 = vmatprep.subr.mxu0 %v2860
      %2933 = vmatpush1.msra.mxu0 %v2859
      %2934 = vmatprep.subr.mxu0 %v2856
      %2935 = vmatpush1.msra.mxu0 %v2855
      %2936 = vmatprep.subr.mxu0 %v2852
      %2937 = vmatpush1.msra.mxu0 %v2851
      %2938 = vmatprep.subr.mxu0 %v2848
      %2939 = vmatpush1.msra.mxu0 %v2847
      %2940 = vmatprep.subr.mxu0 %v2844
      %2941 = vmatpush1.msra.mxu0 %v2843
      %2942 = vmatprep.subr.mxu0 %v2840
      %2943 = vmatpush1.msra.mxu0 %v2839
      %2944 = vmatprep.subr.mxu0 %v2836
      %2945 = vmatpush1.msra.mxu0 %v2835
      %2946 = vmatprep.subr.mxu0 %v2832
      %2947 = vmatpush1.msra.mxu0 %v2831
      %2948 = vmatprep.subr.mxu0 %v2828
      %2949 = vmatpush1.msra.mxu0 %v2827
      %2950 = vmatprep.subr.mxu0 %v2824
      %2951 = vmatpush1.msra.mxu0 %v2823
      %2952 = vmatprep.subr.mxu0 %v2820
      %2953 = vmatpush1.msra.mxu0 %v2819
      %2954 = vmatprep.subr.mxu0 %v2816
      %2955 = vmatpush1.msra.mxu0 %v2815
      %2956 = vmatprep.subr.mxu0 %v2812
      %2957 = vmatpush1.msra.mxu0 %v2811
      %2958 = vmatprep.subr.mxu0 %v2808
      %2959 = vmatpush1.msra.mxu0 %v2807
      %2960 = vmatprep.subr.mxu0 %v2804
      %2961 = vmatpush1.msra.mxu0 %v2803
      %2962 = vmatprep.subr.mxu0 %v2800
      %2963 = vmatpush1.msra.mxu0 %v2799
      %2964 = vmatprep.subr.mxu0 0.0
      %2965 = vmatpush2.msra.mxu0 0.0
      %2966 = vmatprep.subr.mxu0 0.0
      %2967 = vmatpush2.msra.mxu0 0.0
      %2968 = vmatprep.subr.mxu0 0.0
      %2969 = vmatpush2.msra.mxu0 0.0
      %2970 = vmatprep.subr.mxu0 0.0
      %2971 = vmatpush2.msra.mxu0 0.0
      %2972 = vmatprep.subr.mxu0 0.0
      %2973 = vmatpush2.msra.mxu0 0.0
      %2974 = vmatprep.subr.mxu0 0.0
      %2975 = vmatpush2.msra.mxu0 0.0
      %2976 = vmatprep.subr.mxu0 0.0
      %2977 = vmatpush2.msra.mxu0 0.0
      %2978 = vmatprep.subr.mxu0 0.0
      %2979 = vmatpush2.msra.mxu0 0.0
      %2980 = vmatprep.subr.mxu0 0.0
      %2981 = vmatpush2.msra.mxu0 0.0
      %2982 = vmatprep.subr.mxu0 0.0
      %2983 = vmatpush2.msra.mxu0 0.0
      %2984 = vmatprep.subr.mxu0 0.0
      %2985 = vmatpush2.msra.mxu0 0.0
      %2986 = vmatprep.subr.mxu0 0.0
      %2987 = vmatpush2.msra.mxu0 0.0
      %2988 = vmatprep.subr.mxu0 0.0
      %2989 = vmatpush2.msra.mxu0 0.0
      %2990 = vmatprep.subr.mxu0 0.0
      %2991 = vmatpush2.msra.mxu0 0.0
      %2992 = vmatprep.subr.mxu0 0.0
      %2993 = vmatpush2.msra.mxu0 0.0
      %2994 = vmatprep.subr.mxu0 0.0
      %2995 = vmatpush2.msra.mxu0 0.0
      %2996 = vmatprep.mubr.f32.mxu0 0.0
      %2997 = vmatmul.mubr.f32.gmra.mxu0 %v2795
      %v2998 = vpop.f32.mrf.mxu0
      %v2999 = vadd.f32 0.0, %v2998
      %v3000 = vpop.f32.mrf.mxu0
      %v3001 = vadd.f32 0.0, %v3000
      %3002 = vdwg.mxu0
      %v3003 = vadd.f32 %v2791, %v2928
      %v3004 = vadd.f32 %v2792, %v2930
      %v3005 = vadd.f32 %v2793, %v2999
      %v3006 = vadd.f32 %v2794, %v3001
      %v3007 = vxor.u32 %v3003, 2147483648
      %v3008 = vmul.f32 %v3007, 1.442695
      %v3009 = vpow.pop %v3008
      %v3010 = vadd.f32 %v3009, 1.0
      %v3011 = vrcp.pop %v3010
      %v3012 = vmul.f32 1.0, %v3011
      %v3013 = vxor.u32 %v3004, 2147483648
      %v3014 = vmul.f32 %v3013, 1.442695
      %v3015 = vpow.pop %v3014
      %v3016 = vadd.f32 %v3015, 1.0
      %v3017 = vrcp.pop %v3016
      %v3018 = vmul.f32 1.0, %v3017
      %v3019 = vtanh.pop %v3005
      %v3020 = vxor.u32 %v3006, 2147483648
      %v3021 = vmul.f32 %v3020, 1.442695
      %v3022 = vpow.pop %v3021
      %v3023 = vadd.f32 %v3022, 1.0
      %v3024 = vrcp.pop %v3023
      %v3025 = vmul.f32 1.0, %v3024
      %v3026 = vmul.f32 %v3018, %v2796
      %v3027 = vmul.f32 %v3012, %v3019
      %v3028 = vadd.f32 %v3026, %v3027
      %v3029 = vtanh.pop %v3028
      %v3030 = vmul.f32 %v3025, %v3029
      %3031 = vst [vmem:[#allocation4] sm:$0xff] %v3030
      %3032 = vst [vmem:[#allocation5] sm:$0xff] %v3028
      %s3033 = scalar_lea.vmem %s345, 160
      %v3034 = vld [vmem:[%s3033] sm:$0xff]
      %v3035 = vld [vmem:[%s3033 + $0x8] sm:$0xff]
      %v3036 = vld [vmem:[%s3033 + $0x10] sm:$0xff]
      %v3037 = vld [vmem:[%s3033 + $0x18] sm:$0xff]
      %v3038 = vld [vmem:[#allocation2] sm:$0xff]
      %v3039 = vld [vmem:[#allocation3] sm:$0xff]
      %v3040 = vld [vmem:[%s2] sm:$0xff]
      %v3041 = vld [vmem:[%s2 + $0x8] sm:$0xff]
      %v3042 = vld [vmem:[%s2 + $0x10] sm:$0xff]
      %v3043 = vld [vmem:[%s2 + $0x18] sm:$0xff]
      %v3044 = vld [vmem:[%s2 + $0x20] sm:$0xff]
      %v3045 = vld [vmem:[%s2 + $0x28] sm:$0xff]
      %v3046 = vld [vmem:[%s2 + $0x30] sm:$0xff]
      %v3047 = vld [vmem:[%s2 + $0x38] sm:$0xff]
      %v3048 = vld [vmem:[%s2 + $0x40] sm:$0xff]
      %v3049 = vld [vmem:[%s2 + $0x48] sm:$0xff]
      %v3050 = vld [vmem:[%s2 + $0x50] sm:$0xff]
      %v3051 = vld [vmem:[%s2 + $0x58] sm:$0xff]
      %v3052 = vld [vmem:[%s2 + $0x60] sm:$0xff]
      %v3053 = vld [vmem:[%s2 + $0x68] sm:$0xff]
      %v3054 = vld [vmem:[%s2 + $0x70] sm:$0xff]
      %v3055 = vld [vmem:[%s2 + $0x78] sm:$0xff]
      %v3056 = vld [vmem:[%s2 + $0x80] sm:$0xff]
      %v3057 = vld [vmem:[%s2 + $0x88] sm:$0xff]
      %v3058 = vld [vmem:[%s2 + $0x90] sm:$0xff]
      %v3059 = vld [vmem:[%s2 + $0x98] sm:$0xff]
      %v3060 = vld [vmem:[%s2 + $0xa0] sm:$0xff]
      %v3061 = vld [vmem:[%s2 + $0xa8] sm:$0xff]
      %v3062 = vld [vmem:[%s2 + $0xb0] sm:$0xff]
      %v3063 = vld [vmem:[%s2 + $0xb8] sm:$0xff]
      %v3064 = vld [vmem:[%s2 + $0xc0] sm:$0xff]
      %v3065 = vld [vmem:[%s2 + $0xc8] sm:$0xff]
      %v3066 = vld [vmem:[%s2 + $0xd0] sm:$0xff]
      %v3067 = vld [vmem:[%s2 + $0xd8] sm:$0xff]
      %v3068 = vld [vmem:[%s2 + $0xe0] sm:$0xff]
      %v3069 = vld [vmem:[%s2 + $0xe8] sm:$0xff]
      %v3070 = vld [vmem:[%s2 + $0xf0] sm:$0xff]
      %v3071 = vld [vmem:[%s2 + $0xf8] sm:$0xff]
      %v3072 = vld [vmem:[%s2 + $0x100] sm:$0xff]
      %v3073 = vld [vmem:[%s2 + $0x108] sm:$0xff]
      %v3074 = vld [vmem:[%s2 + $0x110] sm:$0xff]
      %v3075 = vld [vmem:[%s2 + $0x118] sm:$0xff]
      %v3076 = vld [vmem:[%s2 + $0x120] sm:$0xff]
      %v3077 = vld [vmem:[%s2 + $0x128] sm:$0xff]
      %v3078 = vld [vmem:[%s2 + $0x130] sm:$0xff]
      %v3079 = vld [vmem:[%s2 + $0x138] sm:$0xff]
      %v3080 = vld [vmem:[%s2 + $0x140] sm:$0xff]
      %v3081 = vld [vmem:[%s2 + $0x148] sm:$0xff]
      %v3082 = vld [vmem:[%s2 + $0x150] sm:$0xff]
      %v3083 = vld [vmem:[%s2 + $0x158] sm:$0xff]
      %v3084 = vld [vmem:[%s2 + $0x160] sm:$0xff]
      %v3085 = vld [vmem:[%s2 + $0x168] sm:$0xff]
      %v3086 = vld [vmem:[%s2 + $0x170] sm:$0xff]
      %v3087 = vld [vmem:[%s2 + $0x178] sm:$0xff]
      %v3088 = vld [vmem:[%s2 + $0x180] sm:$0xff]
      %v3089 = vld [vmem:[%s2 + $0x188] sm:$0xff]
      %v3090 = vld [vmem:[%s2 + $0x190] sm:$0xff]
      %v3091 = vld [vmem:[%s2 + $0x198] sm:$0xff]
      %v3092 = vld [vmem:[%s2 + $0x1a0] sm:$0xff]
      %v3093 = vld [vmem:[%s2 + $0x1a8] sm:$0xff]
      %v3094 = vld [vmem:[%s2 + $0x1b0] sm:$0xff]
      %v3095 = vld [vmem:[%s2 + $0x1b8] sm:$0xff]
      %v3096 = vld [vmem:[%s2 + $0x1c0] sm:$0xff]
      %v3097 = vld [vmem:[%s2 + $0x1c8] sm:$0xff]
      %v3098 = vld [vmem:[%s2 + $0x1d0] sm:$0xff]
      %v3099 = vld [vmem:[%s2 + $0x1d8] sm:$0xff]
      %v3100 = vld [vmem:[%s2 + $0x1e0] sm:$0xff]
      %v3101 = vld [vmem:[%s2 + $0x1e8] sm:$0xff]
      %v3102 = vld [vmem:[%s2 + $0x1f0] sm:$0xff]
      %v3103 = vld [vmem:[%s2 + $0x1f8] sm:$0xff]
      %3104 = vmatprep.subr.mxu0 %v3101
      %3105 = vmatpush1.msra.mxu0 %v3100
      %3106 = vmatprep.subr.mxu0 %v3097
      %3107 = vmatpush1.msra.mxu0 %v3096
      %3108 = vmatprep.subr.mxu0 %v3093
      %3109 = vmatpush1.msra.mxu0 %v3092
      %3110 = vmatprep.subr.mxu0 %v3089
      %3111 = vmatpush1.msra.mxu0 %v3088
      %3112 = vmatprep.subr.mxu0 %v3085
      %3113 = vmatpush1.msra.mxu0 %v3084
      %3114 = vmatprep.subr.mxu0 %v3081
      %3115 = vmatpush1.msra.mxu0 %v3080
      %3116 = vmatprep.subr.mxu0 %v3077
      %3117 = vmatpush1.msra.mxu0 %v3076
      %3118 = vmatprep.subr.mxu0 %v3073
      %3119 = vmatpush1.msra.mxu0 %v3072
      %3120 = vmatprep.subr.mxu0 %v3069
      %3121 = vmatpush1.msra.mxu0 %v3068
      %3122 = vmatprep.subr.mxu0 %v3065
      %3123 = vmatpush1.msra.mxu0 %v3064
      %3124 = vmatprep.subr.mxu0 %v3061
      %3125 = vmatpush1.msra.mxu0 %v3060
      %3126 = vmatprep.subr.mxu0 %v3057
      %3127 = vmatpush1.msra.mxu0 %v3056
      %3128 = vmatprep.subr.mxu0 %v3053
      %3129 = vmatpush1.msra.mxu0 %v3052
      %3130 = vmatprep.subr.mxu0 %v3049
      %3131 = vmatpush1.msra.mxu0 %v3048
      %3132 = vmatprep.subr.mxu0 %v3045
      %3133 = vmatpush1.msra.mxu0 %v3044
      %3134 = vmatprep.subr.mxu0 %v3041
      %3135 = vmatpush1.msra.mxu0 %v3040
      %3136 = vmatprep.subr.mxu0 0.0
      %3137 = vmatpush2.msra.mxu0 0.0
      %3138 = vmatprep.subr.mxu0 0.0
      %3139 = vmatpush2.msra.mxu0 0.0
      %3140 = vmatprep.subr.mxu0 0.0
      %3141 = vmatpush2.msra.mxu0 0.0
      %3142 = vmatprep.subr.mxu0 0.0
      %3143 = vmatpush2.msra.mxu0 0.0
      %3144 = vmatprep.subr.mxu0 0.0
      %3145 = vmatpush2.msra.mxu0 0.0
      %3146 = vmatprep.subr.mxu0 0.0
      %3147 = vmatpush2.msra.mxu0 0.0
      %3148 = vmatprep.subr.mxu0 0.0
      %3149 = vmatpush2.msra.mxu0 0.0
      %3150 = vmatprep.subr.mxu0 0.0
      %3151 = vmatpush2.msra.mxu0 0.0
      %3152 = vmatprep.subr.mxu0 0.0
      %3153 = vmatpush2.msra.mxu0 0.0
      %3154 = vmatprep.subr.mxu0 0.0
      %3155 = vmatpush2.msra.mxu0 0.0
      %3156 = vmatprep.subr.mxu0 0.0
      %3157 = vmatpush2.msra.mxu0 0.0
      %3158 = vmatprep.subr.mxu0 0.0
      %3159 = vmatpush2.msra.mxu0 0.0
      %3160 = vmatprep.subr.mxu0 0.0
      %3161 = vmatpush2.msra.mxu0 0.0
      %3162 = vmatprep.subr.mxu0 0.0
      %3163 = vmatpush2.msra.mxu0 0.0
      %3164 = vmatprep.subr.mxu0 0.0
      %3165 = vmatpush2.msra.mxu0 0.0
      %3166 = vmatprep.subr.mxu0 0.0
      %3167 = vmatpush2.msra.mxu0 0.0
      %3168 = vmatprep.mubr.f32.mxu0 0.0
      %3169 = vmatmul.mubr.f32.gmra.mxu0 %v3038
      %v3170 = vpop.f32.mrf.mxu0
      %v3171 = vadd.f32 0.0, %v3170
      %v3172 = vpop.f32.mrf.mxu0
      %v3173 = vadd.f32 0.0, %v3172
      %3174 = vdwg.mxu0
      %3175 = vmatprep.subr.mxu0 %v3103
      %3176 = vmatpush1.msra.mxu0 %v3102
      %3177 = vmatprep.subr.mxu0 %v3099
      %3178 = vmatpush1.msra.mxu0 %v3098
      %3179 = vmatprep.subr.mxu0 %v3095
      %3180 = vmatpush1.msra.mxu0 %v3094
      %3181 = vmatprep.subr.mxu0 %v3091
      %3182 = vmatpush1.msra.mxu0 %v3090
      %3183 = vmatprep.subr.mxu0 %v3087
      %3184 = vmatpush1.msra.mxu0 %v3086
      %3185 = vmatprep.subr.mxu0 %v3083
      %3186 = vmatpush1.msra.mxu0 %v3082
      %3187 = vmatprep.subr.mxu0 %v3079
      %3188 = vmatpush1.msra.mxu0 %v3078
      %3189 = vmatprep.subr.mxu0 %v3075
      %3190 = vmatpush1.msra.mxu0 %v3074
      %3191 = vmatprep.subr.mxu0 %v3071
      %3192 = vmatpush1.msra.mxu0 %v3070
      %3193 = vmatprep.subr.mxu0 %v3067
      %3194 = vmatpush1.msra.mxu0 %v3066
      %3195 = vmatprep.subr.mxu0 %v3063
      %3196 = vmatpush1.msra.mxu0 %v3062
      %3197 = vmatprep.subr.mxu0 %v3059
      %3198 = vmatpush1.msra.mxu0 %v3058
      %3199 = vmatprep.subr.mxu0 %v3055
      %3200 = vmatpush1.msra.mxu0 %v3054
      %3201 = vmatprep.subr.mxu0 %v3051
      %3202 = vmatpush1.msra.mxu0 %v3050
      %3203 = vmatprep.subr.mxu0 %v3047
      %3204 = vmatpush1.msra.mxu0 %v3046
      %3205 = vmatprep.subr.mxu0 %v3043
      %3206 = vmatpush1.msra.mxu0 %v3042
      %3207 = vmatprep.subr.mxu0 0.0
      %3208 = vmatpush2.msra.mxu0 0.0
      %3209 = vmatprep.subr.mxu0 0.0
      %3210 = vmatpush2.msra.mxu0 0.0
      %3211 = vmatprep.subr.mxu0 0.0
      %3212 = vmatpush2.msra.mxu0 0.0
      %3213 = vmatprep.subr.mxu0 0.0
      %3214 = vmatpush2.msra.mxu0 0.0
      %3215 = vmatprep.subr.mxu0 0.0
      %3216 = vmatpush2.msra.mxu0 0.0
      %3217 = vmatprep.subr.mxu0 0.0
      %3218 = vmatpush2.msra.mxu0 0.0
      %3219 = vmatprep.subr.mxu0 0.0
      %3220 = vmatpush2.msra.mxu0 0.0
      %3221 = vmatprep.subr.mxu0 0.0
      %3222 = vmatpush2.msra.mxu0 0.0
      %3223 = vmatprep.subr.mxu0 0.0
      %3224 = vmatpush2.msra.mxu0 0.0
      %3225 = vmatprep.subr.mxu0 0.0
      %3226 = vmatpush2.msra.mxu0 0.0
      %3227 = vmatprep.subr.mxu0 0.0
      %3228 = vmatpush2.msra.mxu0 0.0
      %3229 = vmatprep.subr.mxu0 0.0
      %3230 = vmatpush2.msra.mxu0 0.0
      %3231 = vmatprep.subr.mxu0 0.0
      %3232 = vmatpush2.msra.mxu0 0.0
      %3233 = vmatprep.subr.mxu0 0.0
      %3234 = vmatpush2.msra.mxu0 0.0
      %3235 = vmatprep.subr.mxu0 0.0
      %3236 = vmatpush2.msra.mxu0 0.0
      %3237 = vmatprep.subr.mxu0 0.0
      %3238 = vmatpush2.msra.mxu0 0.0
      %3239 = vmatprep.mubr.f32.mxu0 0.0
      %3240 = vmatmul.mubr.f32.gmra.mxu0 %v3038
      %v3241 = vpop.f32.mrf.mxu0
      %v3242 = vadd.f32 0.0, %v3241
      %v3243 = vpop.f32.mrf.mxu0
      %v3244 = vadd.f32 0.0, %v3243
      %3245 = vdwg.mxu0
      %v3246 = vadd.f32 %v3034, %v3171
      %v3247 = vadd.f32 %v3035, %v3173
      %v3248 = vadd.f32 %v3036, %v3242
      %v3249 = vadd.f32 %v3037, %v3244
      %v3250 = vxor.u32 %v3246, 2147483648
      %v3251 = vmul.f32 %v3250, 1.442695
      %v3252 = vpow.pop %v3251
      %v3253 = vadd.f32 %v3252, 1.0
      %v3254 = vrcp.pop %v3253
      %v3255 = vmul.f32 1.0, %v3254
      %v3256 = vxor.u32 %v3247, 2147483648
      %v3257 = vmul.f32 %v3256, 1.442695
      %v3258 = vpow.pop %v3257
      %v3259 = vadd.f32 %v3258, 1.0
      %v3260 = vrcp.pop %v3259
      %v3261 = vmul.f32 1.0, %v3260
      %v3262 = vtanh.pop %v3248
      %v3263 = vxor.u32 %v3249, 2147483648
      %v3264 = vmul.f32 %v3263, 1.442695
      %v3265 = vpow.pop %v3264
      %v3266 = vadd.f32 %v3265, 1.0
      %v3267 = vrcp.pop %v3266
      %v3268 = vmul.f32 1.0, %v3267
      %v3269 = vmul.f32 %v3261, %v3039
      %v3270 = vmul.f32 %v3255, %v3262
      %v3271 = vadd.f32 %v3269, %v3270
      %v3272 = vtanh.pop %v3271
      %v3273 = vmul.f32 %v3268, %v3272
      %3274 = vst [vmem:[#allocation2] sm:$0xff] %v3273
      %3275 = vst [vmem:[#allocation3] sm:$0xff] %v3271
      %s3276 = scalar_lea.vmem %s353, 64
      %v3277 = vld [vmem:[%s3276] sm:$0xff]
      %v3278 = vld [vmem:[%s3276 + $0x8] sm:$0xff]
      %v3279 = vld [vmem:[%s3276 + $0x10] sm:$0xff]
      %v3280 = vld [vmem:[%s3276 + $0x18] sm:$0xff]
      %v3281 = vld [vmem:[#allocation4] sm:$0xff]
      %v3282 = vld [vmem:[#allocation5] sm:$0xff]
      %v3283 = vld [vmem:[%s3] sm:$0xff]
      %v3284 = vld [vmem:[%s3 + $0x8] sm:$0xff]
      %v3285 = vld [vmem:[%s3 + $0x10] sm:$0xff]
      %v3286 = vld [vmem:[%s3 + $0x18] sm:$0xff]
      %v3287 = vld [vmem:[%s3 + $0x20] sm:$0xff]
      %v3288 = vld [vmem:[%s3 + $0x28] sm:$0xff]
      %v3289 = vld [vmem:[%s3 + $0x30] sm:$0xff]
      %v3290 = vld [vmem:[%s3 + $0x38] sm:$0xff]
      %v3291 = vld [vmem:[%s3 + $0x40] sm:$0xff]
      %v3292 = vld [vmem:[%s3 + $0x48] sm:$0xff]
      %v3293 = vld [vmem:[%s3 + $0x50] sm:$0xff]
      %v3294 = vld [vmem:[%s3 + $0x58] sm:$0xff]
      %v3295 = vld [vmem:[%s3 + $0x60] sm:$0xff]
      %v3296 = vld [vmem:[%s3 + $0x68] sm:$0xff]
      %v3297 = vld [vmem:[%s3 + $0x70] sm:$0xff]
      %v3298 = vld [vmem:[%s3 + $0x78] sm:$0xff]
      %v3299 = vld [vmem:[%s3 + $0x80] sm:$0xff]
      %v3300 = vld [vmem:[%s3 + $0x88] sm:$0xff]
      %v3301 = vld [vmem:[%s3 + $0x90] sm:$0xff]
      %v3302 = vld [vmem:[%s3 + $0x98] sm:$0xff]
      %v3303 = vld [vmem:[%s3 + $0xa0] sm:$0xff]
      %v3304 = vld [vmem:[%s3 + $0xa8] sm:$0xff]
      %v3305 = vld [vmem:[%s3 + $0xb0] sm:$0xff]
      %v3306 = vld [vmem:[%s3 + $0xb8] sm:$0xff]
      %v3307 = vld [vmem:[%s3 + $0xc0] sm:$0xff]
      %v3308 = vld [vmem:[%s3 + $0xc8] sm:$0xff]
      %v3309 = vld [vmem:[%s3 + $0xd0] sm:$0xff]
      %v3310 = vld [vmem:[%s3 + $0xd8] sm:$0xff]
      %v3311 = vld [vmem:[%s3 + $0xe0] sm:$0xff]
      %v3312 = vld [vmem:[%s3 + $0xe8] sm:$0xff]
      %v3313 = vld [vmem:[%s3 + $0xf0] sm:$0xff]
      %v3314 = vld [vmem:[%s3 + $0xf8] sm:$0xff]
      %v3315 = vld [vmem:[%s3 + $0x100] sm:$0xff]
      %v3316 = vld [vmem:[%s3 + $0x108] sm:$0xff]
      %v3317 = vld [vmem:[%s3 + $0x110] sm:$0xff]
      %v3318 = vld [vmem:[%s3 + $0x118] sm:$0xff]
      %v3319 = vld [vmem:[%s3 + $0x120] sm:$0xff]
      %v3320 = vld [vmem:[%s3 + $0x128] sm:$0xff]
      %v3321 = vld [vmem:[%s3 + $0x130] sm:$0xff]
      %v3322 = vld [vmem:[%s3 + $0x138] sm:$0xff]
      %v3323 = vld [vmem:[%s3 + $0x140] sm:$0xff]
      %v3324 = vld [vmem:[%s3 + $0x148] sm:$0xff]
      %v3325 = vld [vmem:[%s3 + $0x150] sm:$0xff]
      %v3326 = vld [vmem:[%s3 + $0x158] sm:$0xff]
      %v3327 = vld [vmem:[%s3 + $0x160] sm:$0xff]
      %v3328 = vld [vmem:[%s3 + $0x168] sm:$0xff]
      %v3329 = vld [vmem:[%s3 + $0x170] sm:$0xff]
      %v3330 = vld [vmem:[%s3 + $0x178] sm:$0xff]
      %v3331 = vld [vmem:[%s3 + $0x180] sm:$0xff]
      %v3332 = vld [vmem:[%s3 + $0x188] sm:$0xff]
      %v3333 = vld [vmem:[%s3 + $0x190] sm:$0xff]
      %v3334 = vld [vmem:[%s3 + $0x198] sm:$0xff]
      %v3335 = vld [vmem:[%s3 + $0x1a0] sm:$0xff]
      %v3336 = vld [vmem:[%s3 + $0x1a8] sm:$0xff]
      %v3337 = vld [vmem:[%s3 + $0x1b0] sm:$0xff]
      %v3338 = vld [vmem:[%s3 + $0x1b8] sm:$0xff]
      %v3339 = vld [vmem:[%s3 + $0x1c0] sm:$0xff]
      %v3340 = vld [vmem:[%s3 + $0x1c8] sm:$0xff]
      %v3341 = vld [vmem:[%s3 + $0x1d0] sm:$0xff]
      %v3342 = vld [vmem:[%s3 + $0x1d8] sm:$0xff]
      %v3343 = vld [vmem:[%s3 + $0x1e0] sm:$0xff]
      %v3344 = vld [vmem:[%s3 + $0x1e8] sm:$0xff]
      %v3345 = vld [vmem:[%s3 + $0x1f0] sm:$0xff]
      %v3346 = vld [vmem:[%s3 + $0x1f8] sm:$0xff]
      %3347 = vmatprep.subr.mxu0 %v3344
      %3348 = vmatpush1.msra.mxu0 %v3343
      %3349 = vmatprep.subr.mxu0 %v3340
      %3350 = vmatpush1.msra.mxu0 %v3339
      %3351 = vmatprep.subr.mxu0 %v3336
      %3352 = vmatpush1.msra.mxu0 %v3335
      %3353 = vmatprep.subr.mxu0 %v3332
      %3354 = vmatpush1.msra.mxu0 %v3331
      %3355 = vmatprep.subr.mxu0 %v3328
      %3356 = vmatpush1.msra.mxu0 %v3327
      %3357 = vmatprep.subr.mxu0 %v3324
      %3358 = vmatpush1.msra.mxu0 %v3323
      %3359 = vmatprep.subr.mxu0 %v3320
      %3360 = vmatpush1.msra.mxu0 %v3319
      %3361 = vmatprep.subr.mxu0 %v3316
      %3362 = vmatpush1.msra.mxu0 %v3315
      %3363 = vmatprep.subr.mxu0 %v3312
      %3364 = vmatpush1.msra.mxu0 %v3311
      %3365 = vmatprep.subr.mxu0 %v3308
      %3366 = vmatpush1.msra.mxu0 %v3307
      %3367 = vmatprep.subr.mxu0 %v3304
      %3368 = vmatpush1.msra.mxu0 %v3303
      %3369 = vmatprep.subr.mxu0 %v3300
      %3370 = vmatpush1.msra.mxu0 %v3299
      %3371 = vmatprep.subr.mxu0 %v3296
      %3372 = vmatpush1.msra.mxu0 %v3295
      %3373 = vmatprep.subr.mxu0 %v3292
      %3374 = vmatpush1.msra.mxu0 %v3291
      %3375 = vmatprep.subr.mxu0 %v3288
      %3376 = vmatpush1.msra.mxu0 %v3287
      %3377 = vmatprep.subr.mxu0 %v3284
      %3378 = vmatpush1.msra.mxu0 %v3283
      %3379 = vmatprep.subr.mxu0 0.0
      %3380 = vmatpush2.msra.mxu0 0.0
      %3381 = vmatprep.subr.mxu0 0.0
      %3382 = vmatpush2.msra.mxu0 0.0
      %3383 = vmatprep.subr.mxu0 0.0
      %3384 = vmatpush2.msra.mxu0 0.0
      %3385 = vmatprep.subr.mxu0 0.0
      %3386 = vmatpush2.msra.mxu0 0.0
      %3387 = vmatprep.subr.mxu0 0.0
      %3388 = vmatpush2.msra.mxu0 0.0
      %3389 = vmatprep.subr.mxu0 0.0
      %3390 = vmatpush2.msra.mxu0 0.0
      %3391 = vmatprep.subr.mxu0 0.0
      %3392 = vmatpush2.msra.mxu0 0.0
      %3393 = vmatprep.subr.mxu0 0.0
      %3394 = vmatpush2.msra.mxu0 0.0
      %3395 = vmatprep.subr.mxu0 0.0
      %3396 = vmatpush2.msra.mxu0 0.0
      %3397 = vmatprep.subr.mxu0 0.0
      %3398 = vmatpush2.msra.mxu0 0.0
      %3399 = vmatprep.subr.mxu0 0.0
      %3400 = vmatpush2.msra.mxu0 0.0
      %3401 = vmatprep.subr.mxu0 0.0
      %3402 = vmatpush2.msra.mxu0 0.0
      %3403 = vmatprep.subr.mxu0 0.0
      %3404 = vmatpush2.msra.mxu0 0.0
      %3405 = vmatprep.subr.mxu0 0.0
      %3406 = vmatpush2.msra.mxu0 0.0
      %3407 = vmatprep.subr.mxu0 0.0
      %3408 = vmatpush2.msra.mxu0 0.0
      %3409 = vmatprep.subr.mxu0 0.0
      %3410 = vmatpush2.msra.mxu0 0.0
      %3411 = vmatprep.mubr.f32.mxu0 0.0
      %3412 = vmatmul.mubr.f32.gmra.mxu0 %v3281
      %v3413 = vpop.f32.mrf.mxu0
      %v3414 = vadd.f32 0.0, %v3413
      %v3415 = vpop.f32.mrf.mxu0
      %v3416 = vadd.f32 0.0, %v3415
      %3417 = vdwg.mxu0
      %3418 = vmatprep.subr.mxu0 %v3346
      %3419 = vmatpush1.msra.mxu0 %v3345
      %3420 = vmatprep.subr.mxu0 %v3342
      %3421 = vmatpush1.msra.mxu0 %v3341
      %3422 = vmatprep.subr.mxu0 %v3338
      %3423 = vmatpush1.msra.mxu0 %v3337
      %3424 = vmatprep.subr.mxu0 %v3334
      %3425 = vmatpush1.msra.mxu0 %v3333
      %3426 = vmatprep.subr.mxu0 %v3330
      %3427 = vmatpush1.msra.mxu0 %v3329
      %3428 = vmatprep.subr.mxu0 %v3326
      %3429 = vmatpush1.msra.mxu0 %v3325
      %3430 = vmatprep.subr.mxu0 %v3322
      %3431 = vmatpush1.msra.mxu0 %v3321
      %3432 = vmatprep.subr.mxu0 %v3318
      %3433 = vmatpush1.msra.mxu0 %v3317
      %3434 = vmatprep.subr.mxu0 %v3314
      %3435 = vmatpush1.msra.mxu0 %v3313
      %3436 = vmatprep.subr.mxu0 %v3310
      %3437 = vmatpush1.msra.mxu0 %v3309
      %3438 = vmatprep.subr.mxu0 %v3306
      %3439 = vmatpush1.msra.mxu0 %v3305
      %3440 = vmatprep.subr.mxu0 %v3302
      %3441 = vmatpush1.msra.mxu0 %v3301
      %3442 = vmatprep.subr.mxu0 %v3298
      %3443 = vmatpush1.msra.mxu0 %v3297
      %3444 = vmatprep.subr.mxu0 %v3294
      %3445 = vmatpush1.msra.mxu0 %v3293
      %3446 = vmatprep.subr.mxu0 %v3290
      %3447 = vmatpush1.msra.mxu0 %v3289
      %3448 = vmatprep.subr.mxu0 %v3286
      %3449 = vmatpush1.msra.mxu0 %v3285
      %3450 = vmatprep.subr.mxu0 0.0
      %3451 = vmatpush2.msra.mxu0 0.0
      %3452 = vmatprep.subr.mxu0 0.0
      %3453 = vmatpush2.msra.mxu0 0.0
      %3454 = vmatprep.subr.mxu0 0.0
      %3455 = vmatpush2.msra.mxu0 0.0
      %3456 = vmatprep.subr.mxu0 0.0
      %3457 = vmatpush2.msra.mxu0 0.0
      %3458 = vmatprep.subr.mxu0 0.0
      %3459 = vmatpush2.msra.mxu0 0.0
      %3460 = vmatprep.subr.mxu0 0.0
      %3461 = vmatpush2.msra.mxu0 0.0
      %3462 = vmatprep.subr.mxu0 0.0
      %3463 = vmatpush2.msra.mxu0 0.0
      %3464 = vmatprep.subr.mxu0 0.0
      %3465 = vmatpush2.msra.mxu0 0.0
      %3466 = vmatprep.subr.mxu0 0.0
      %3467 = vmatpush2.msra.mxu0 0.0
      %3468 = vmatprep.subr.mxu0 0.0
      %3469 = vmatpush2.msra.mxu0 0.0
      %3470 = vmatprep.subr.mxu0 0.0
      %3471 = vmatpush2.msra.mxu0 0.0
      %3472 = vmatprep.subr.mxu0 0.0
      %3473 = vmatpush2.msra.mxu0 0.0
      %3474 = vmatprep.subr.mxu0 0.0
      %3475 = vmatpush2.msra.mxu0 0.0
      %3476 = vmatprep.subr.mxu0 0.0
      %3477 = vmatpush2.msra.mxu0 0.0
      %3478 = vmatprep.subr.mxu0 0.0
      %3479 = vmatpush2.msra.mxu0 0.0
      %3480 = vmatprep.subr.mxu0 0.0
      %3481 = vmatpush2.msra.mxu0 0.0
      %3482 = vmatprep.mubr.f32.mxu0 0.0
      %3483 = vmatmul.mubr.f32.gmra.mxu0 %v3281
      %v3484 = vpop.f32.mrf.mxu0
      %v3485 = vadd.f32 0.0, %v3484
      %v3486 = vpop.f32.mrf.mxu0
      %v3487 = vadd.f32 0.0, %v3486
      %3488 = vdwg.mxu0
      %v3489 = vadd.f32 %v3277, %v3414
      %v3490 = vadd.f32 %v3278, %v3416
      %v3491 = vadd.f32 %v3279, %v3485
      %v3492 = vadd.f32 %v3280, %v3487
      %v3493 = vxor.u32 %v3489, 2147483648
      %v3494 = vmul.f32 %v3493, 1.442695
      %v3495 = vpow.pop %v3494
      %v3496 = vadd.f32 %v3495, 1.0
      %v3497 = vrcp.pop %v3496
      %v3498 = vmul.f32 1.0, %v3497
      %v3499 = vxor.u32 %v3490, 2147483648
      %v3500 = vmul.f32 %v3499, 1.442695
      %v3501 = vpow.pop %v3500
      %v3502 = vadd.f32 %v3501, 1.0
      %v3503 = vrcp.pop %v3502
      %v3504 = vmul.f32 1.0, %v3503
      %v3505 = vtanh.pop %v3491
      %v3506 = vxor.u32 %v3492, 2147483648
      %v3507 = vmul.f32 %v3506, 1.442695
      %v3508 = vpow.pop %v3507
      %v3509 = vadd.f32 %v3508, 1.0
      %v3510 = vrcp.pop %v3509
      %v3511 = vmul.f32 1.0, %v3510
      %v3512 = vmul.f32 %v3504, %v3282
      %v3513 = vmul.f32 %v3498, %v3505
      %v3514 = vadd.f32 %v3512, %v3513
      %v3515 = vtanh.pop %v3514
      %v3516 = vmul.f32 %v3511, %v3515
      %3517 = vst [vmem:[#allocation4] sm:$0xff] %v3516
      %3518 = vst [vmem:[#allocation5] sm:$0xff] %v3514
      %s3519 = scalar_lea.vmem %s345, 192
      %v3520 = vld [vmem:[%s3519] sm:$0xff]
      %v3521 = vld [vmem:[%s3519 + $0x8] sm:$0xff]
      %v3522 = vld [vmem:[%s3519 + $0x10] sm:$0xff]
      %v3523 = vld [vmem:[%s3519 + $0x18] sm:$0xff]
      %v3524 = vld [vmem:[#allocation2] sm:$0xff]
      %v3525 = vld [vmem:[#allocation3] sm:$0xff]
      %v3526 = vld [vmem:[%s2] sm:$0xff]
      %v3527 = vld [vmem:[%s2 + $0x8] sm:$0xff]
      %v3528 = vld [vmem:[%s2 + $0x10] sm:$0xff]
      %v3529 = vld [vmem:[%s2 + $0x18] sm:$0xff]
      %v3530 = vld [vmem:[%s2 + $0x20] sm:$0xff]
      %v3531 = vld [vmem:[%s2 + $0x28] sm:$0xff]
      %v3532 = vld [vmem:[%s2 + $0x30] sm:$0xff]
      %v3533 = vld [vmem:[%s2 + $0x38] sm:$0xff]
      %v3534 = vld [vmem:[%s2 + $0x40] sm:$0xff]
      %v3535 = vld [vmem:[%s2 + $0x48] sm:$0xff]
      %v3536 = vld [vmem:[%s2 + $0x50] sm:$0xff]
      %v3537 = vld [vmem:[%s2 + $0x58] sm:$0xff]
      %v3538 = vld [vmem:[%s2 + $0x60] sm:$0xff]
      %v3539 = vld [vmem:[%s2 + $0x68] sm:$0xff]
      %v3540 = vld [vmem:[%s2 + $0x70] sm:$0xff]
      %v3541 = vld [vmem:[%s2 + $0x78] sm:$0xff]
      %v3542 = vld [vmem:[%s2 + $0x80] sm:$0xff]
      %v3543 = vld [vmem:[%s2 + $0x88] sm:$0xff]
      %v3544 = vld [vmem:[%s2 + $0x90] sm:$0xff]
      %v3545 = vld [vmem:[%s2 + $0x98] sm:$0xff]
      %v3546 = vld [vmem:[%s2 + $0xa0] sm:$0xff]
      %v3547 = vld [vmem:[%s2 + $0xa8] sm:$0xff]
      %v3548 = vld [vmem:[%s2 + $0xb0] sm:$0xff]
      %v3549 = vld [vmem:[%s2 + $0xb8] sm:$0xff]
      %v3550 = vld [vmem:[%s2 + $0xc0] sm:$0xff]
      %v3551 = vld [vmem:[%s2 + $0xc8] sm:$0xff]
      %v3552 = vld [vmem:[%s2 + $0xd0] sm:$0xff]
      %v3553 = vld [vmem:[%s2 + $0xd8] sm:$0xff]
      %v3554 = vld [vmem:[%s2 + $0xe0] sm:$0xff]
      %v3555 = vld [vmem:[%s2 + $0xe8] sm:$0xff]
      %v3556 = vld [vmem:[%s2 + $0xf0] sm:$0xff]
      %v3557 = vld [vmem:[%s2 + $0xf8] sm:$0xff]
      %v3558 = vld [vmem:[%s2 + $0x100] sm:$0xff]
      %v3559 = vld [vmem:[%s2 + $0x108] sm:$0xff]
      %v3560 = vld [vmem:[%s2 + $0x110] sm:$0xff]
      %v3561 = vld [vmem:[%s2 + $0x118] sm:$0xff]
      %v3562 = vld [vmem:[%s2 + $0x120] sm:$0xff]
      %v3563 = vld [vmem:[%s2 + $0x128] sm:$0xff]
      %v3564 = vld [vmem:[%s2 + $0x130] sm:$0xff]
      %v3565 = vld [vmem:[%s2 + $0x138] sm:$0xff]
      %v3566 = vld [vmem:[%s2 + $0x140] sm:$0xff]
      %v3567 = vld [vmem:[%s2 + $0x148] sm:$0xff]
      %v3568 = vld [vmem:[%s2 + $0x150] sm:$0xff]
      %v3569 = vld [vmem:[%s2 + $0x158] sm:$0xff]
      %v3570 = vld [vmem:[%s2 + $0x160] sm:$0xff]
      %v3571 = vld [vmem:[%s2 + $0x168] sm:$0xff]
      %v3572 = vld [vmem:[%s2 + $0x170] sm:$0xff]
      %v3573 = vld [vmem:[%s2 + $0x178] sm:$0xff]
      %v3574 = vld [vmem:[%s2 + $0x180] sm:$0xff]
      %v3575 = vld [vmem:[%s2 + $0x188] sm:$0xff]
      %v3576 = vld [vmem:[%s2 + $0x190] sm:$0xff]
      %v3577 = vld [vmem:[%s2 + $0x198] sm:$0xff]
      %v3578 = vld [vmem:[%s2 + $0x1a0] sm:$0xff]
      %v3579 = vld [vmem:[%s2 + $0x1a8] sm:$0xff]
      %v3580 = vld [vmem:[%s2 + $0x1b0] sm:$0xff]
      %v3581 = vld [vmem:[%s2 + $0x1b8] sm:$0xff]
      %v3582 = vld [vmem:[%s2 + $0x1c0] sm:$0xff]
      %v3583 = vld [vmem:[%s2 + $0x1c8] sm:$0xff]
      %v3584 = vld [vmem:[%s2 + $0x1d0] sm:$0xff]
      %v3585 = vld [vmem:[%s2 + $0x1d8] sm:$0xff]
      %v3586 = vld [vmem:[%s2 + $0x1e0] sm:$0xff]
      %v3587 = vld [vmem:[%s2 + $0x1e8] sm:$0xff]
      %v3588 = vld [vmem:[%s2 + $0x1f0] sm:$0xff]
      %v3589 = vld [vmem:[%s2 + $0x1f8] sm:$0xff]
      %3590 = vmatprep.subr.mxu0 %v3587
      %3591 = vmatpush1.msra.mxu0 %v3586
      %3592 = vmatprep.subr.mxu0 %v3583
      %3593 = vmatpush1.msra.mxu0 %v3582
      %3594 = vmatprep.subr.mxu0 %v3579
      %3595 = vmatpush1.msra.mxu0 %v3578
      %3596 = vmatprep.subr.mxu0 %v3575
      %3597 = vmatpush1.msra.mxu0 %v3574
      %3598 = vmatprep.subr.mxu0 %v3571
      %3599 = vmatpush1.msra.mxu0 %v3570
      %3600 = vmatprep.subr.mxu0 %v3567
      %3601 = vmatpush1.msra.mxu0 %v3566
      %3602 = vmatprep.subr.mxu0 %v3563
      %3603 = vmatpush1.msra.mxu0 %v3562
      %3604 = vmatprep.subr.mxu0 %v3559
      %3605 = vmatpush1.msra.mxu0 %v3558
      %3606 = vmatprep.subr.mxu0 %v3555
      %3607 = vmatpush1.msra.mxu0 %v3554
      %3608 = vmatprep.subr.mxu0 %v3551
      %3609 = vmatpush1.msra.mxu0 %v3550
      %3610 = vmatprep.subr.mxu0 %v3547
      %3611 = vmatpush1.msra.mxu0 %v3546
      %3612 = vmatprep.subr.mxu0 %v3543
      %3613 = vmatpush1.msra.mxu0 %v3542
      %3614 = vmatprep.subr.mxu0 %v3539
      %3615 = vmatpush1.msra.mxu0 %v3538
      %3616 = vmatprep.subr.mxu0 %v3535
      %3617 = vmatpush1.msra.mxu0 %v3534
      %3618 = vmatprep.subr.mxu0 %v3531
      %3619 = vmatpush1.msra.mxu0 %v3530
      %3620 = vmatprep.subr.mxu0 %v3527
      %3621 = vmatpush1.msra.mxu0 %v3526
      %3622 = vmatprep.subr.mxu0 0.0
      %3623 = vmatpush2.msra.mxu0 0.0
      %3624 = vmatprep.subr.mxu0 0.0
      %3625 = vmatpush2.msra.mxu0 0.0
      %3626 = vmatprep.subr.mxu0 0.0
      %3627 = vmatpush2.msra.mxu0 0.0
      %3628 = vmatprep.subr.mxu0 0.0
      %3629 = vmatpush2.msra.mxu0 0.0
      %3630 = vmatprep.subr.mxu0 0.0
      %3631 = vmatpush2.msra.mxu0 0.0
      %3632 = vmatprep.subr.mxu0 0.0
      %3633 = vmatpush2.msra.mxu0 0.0
      %3634 = vmatprep.subr.mxu0 0.0
      %3635 = vmatpush2.msra.mxu0 0.0
      %3636 = vmatprep.subr.mxu0 0.0
      %3637 = vmatpush2.msra.mxu0 0.0
      %3638 = vmatprep.subr.mxu0 0.0
      %3639 = vmatpush2.msra.mxu0 0.0
      %3640 = vmatprep.subr.mxu0 0.0
      %3641 = vmatpush2.msra.mxu0 0.0
      %3642 = vmatprep.subr.mxu0 0.0
      %3643 = vmatpush2.msra.mxu0 0.0
      %3644 = vmatprep.subr.mxu0 0.0
      %3645 = vmatpush2.msra.mxu0 0.0
      %3646 = vmatprep.subr.mxu0 0.0
      %3647 = vmatpush2.msra.mxu0 0.0
      %3648 = vmatprep.subr.mxu0 0.0
      %3649 = vmatpush2.msra.mxu0 0.0
      %3650 = vmatprep.subr.mxu0 0.0
      %3651 = vmatpush2.msra.mxu0 0.0
      %3652 = vmatprep.subr.mxu0 0.0
      %3653 = vmatpush2.msra.mxu0 0.0
      %3654 = vmatprep.mubr.f32.mxu0 0.0
      %3655 = vmatmul.mubr.f32.gmra.mxu0 %v3524
      %v3656 = vpop.f32.mrf.mxu0
      %v3657 = vadd.f32 0.0, %v3656
      %v3658 = vpop.f32.mrf.mxu0
      %v3659 = vadd.f32 0.0, %v3658
      %3660 = vdwg.mxu0
      %3661 = vmatprep.subr.mxu0 %v3589
      %3662 = vmatpush1.msra.mxu0 %v3588
      %3663 = vmatprep.subr.mxu0 %v3585
      %3664 = vmatpush1.msra.mxu0 %v3584
      %3665 = vmatprep.subr.mxu0 %v3581
      %3666 = vmatpush1.msra.mxu0 %v3580
      %3667 = vmatprep.subr.mxu0 %v3577
      %3668 = vmatpush1.msra.mxu0 %v3576
      %3669 = vmatprep.subr.mxu0 %v3573
      %3670 = vmatpush1.msra.mxu0 %v3572
      %3671 = vmatprep.subr.mxu0 %v3569
      %3672 = vmatpush1.msra.mxu0 %v3568
      %3673 = vmatprep.subr.mxu0 %v3565
      %3674 = vmatpush1.msra.mxu0 %v3564
      %3675 = vmatprep.subr.mxu0 %v3561
      %3676 = vmatpush1.msra.mxu0 %v3560
      %3677 = vmatprep.subr.mxu0 %v3557
      %3678 = vmatpush1.msra.mxu0 %v3556
      %3679 = vmatprep.subr.mxu0 %v3553
      %3680 = vmatpush1.msra.mxu0 %v3552
      %3681 = vmatprep.subr.mxu0 %v3549
      %3682 = vmatpush1.msra.mxu0 %v3548
      %3683 = vmatprep.subr.mxu0 %v3545
      %3684 = vmatpush1.msra.mxu0 %v3544
      %3685 = vmatprep.subr.mxu0 %v3541
      %3686 = vmatpush1.msra.mxu0 %v3540
      %3687 = vmatprep.subr.mxu0 %v3537
      %3688 = vmatpush1.msra.mxu0 %v3536
      %3689 = vmatprep.subr.mxu0 %v3533
      %3690 = vmatpush1.msra.mxu0 %v3532
      %3691 = vmatprep.subr.mxu0 %v3529
      %3692 = vmatpush1.msra.mxu0 %v3528
      %3693 = vmatprep.subr.mxu0 0.0
      %3694 = vmatpush2.msra.mxu0 0.0
      %3695 = vmatprep.subr.mxu0 0.0
      %3696 = vmatpush2.msra.mxu0 0.0
      %3697 = vmatprep.subr.mxu0 0.0
      %3698 = vmatpush2.msra.mxu0 0.0
      %3699 = vmatprep.subr.mxu0 0.0
      %3700 = vmatpush2.msra.mxu0 0.0
      %3701 = vmatprep.subr.mxu0 0.0
      %3702 = vmatpush2.msra.mxu0 0.0
      %3703 = vmatprep.subr.mxu0 0.0
      %3704 = vmatpush2.msra.mxu0 0.0
      %3705 = vmatprep.subr.mxu0 0.0
      %3706 = vmatpush2.msra.mxu0 0.0
      %3707 = vmatprep.subr.mxu0 0.0
      %3708 = vmatpush2.msra.mxu0 0.0
      %3709 = vmatprep.subr.mxu0 0.0
      %3710 = vmatpush2.msra.mxu0 0.0
      %3711 = vmatprep.subr.mxu0 0.0
      %3712 = vmatpush2.msra.mxu0 0.0
      %3713 = vmatprep.subr.mxu0 0.0
      %3714 = vmatpush2.msra.mxu0 0.0
      %3715 = vmatprep.subr.mxu0 0.0
      %3716 = vmatpush2.msra.mxu0 0.0
      %3717 = vmatprep.subr.mxu0 0.0
      %3718 = vmatpush2.msra.mxu0 0.0
      %3719 = vmatprep.subr.mxu0 0.0
      %3720 = vmatpush2.msra.mxu0 0.0
      %3721 = vmatprep.subr.mxu0 0.0
      %3722 = vmatpush2.msra.mxu0 0.0
      %3723 = vmatprep.subr.mxu0 0.0
      %3724 = vmatpush2.msra.mxu0 0.0
      %3725 = vmatprep.mubr.f32.mxu0 0.0
      %3726 = vmatmul.mubr.f32.gmra.mxu0 %v3524
      %v3727 = vpop.f32.mrf.mxu0
      %v3728 = vadd.f32 0.0, %v3727
      %v3729 = vpop.f32.mrf.mxu0
      %v3730 = vadd.f32 0.0, %v3729
      %3731 = vdwg.mxu0
      %v3732 = vadd.f32 %v3520, %v3657
      %v3733 = vadd.f32 %v3521, %v3659
      %v3734 = vadd.f32 %v3522, %v3728
      %v3735 = vadd.f32 %v3523, %v3730
      %v3736 = vxor.u32 %v3732, 2147483648
      %v3737 = vmul.f32 %v3736, 1.442695
      %v3738 = vpow.pop %v3737
      %v3739 = vadd.f32 %v3738, 1.0
      %v3740 = vrcp.pop %v3739
      %v3741 = vmul.f32 1.0, %v3740
      %v3742 = vxor.u32 %v3733, 2147483648
      %v3743 = vmul.f32 %v3742, 1.442695
      %v3744 = vpow.pop %v3743
      %v3745 = vadd.f32 %v3744, 1.0
      %v3746 = vrcp.pop %v3745
      %v3747 = vmul.f32 1.0, %v3746
      %v3748 = vtanh.pop %v3734
      %v3749 = vxor.u32 %v3735, 2147483648
      %v3750 = vmul.f32 %v3749, 1.442695
      %v3751 = vpow.pop %v3750
      %v3752 = vadd.f32 %v3751, 1.0
      %v3753 = vrcp.pop %v3752
      %v3754 = vmul.f32 1.0, %v3753
      %v3755 = vmul.f32 %v3747, %v3525
      %v3756 = vmul.f32 %v3741, %v3748
      %v3757 = vadd.f32 %v3755, %v3756
      %v3758 = vtanh.pop %v3757
      %v3759 = vmul.f32 %v3754, %v3758
      %3760 = vst [vmem:[#allocation2] sm:$0xff] %v3759
      %3761 = vst [vmem:[#allocation3] sm:$0xff] %v3757
      %s3762 = scalar_lea.vmem %s353, 32
      %v3763 = vld [vmem:[%s3762] sm:$0xff]
      %v3764 = vld [vmem:[%s3762 + $0x8] sm:$0xff]
      %v3765 = vld [vmem:[%s3762 + $0x10] sm:$0xff]
      %v3766 = vld [vmem:[%s3762 + $0x18] sm:$0xff]
      %v3767 = vld [vmem:[#allocation4] sm:$0xff]
      %v3768 = vld [vmem:[#allocation5] sm:$0xff]
      %v3769 = vld [vmem:[%s3] sm:$0xff]
      %v3770 = vld [vmem:[%s3 + $0x8] sm:$0xff]
      %v3771 = vld [vmem:[%s3 + $0x10] sm:$0xff]
      %v3772 = vld [vmem:[%s3 + $0x18] sm:$0xff]
      %v3773 = vld [vmem:[%s3 + $0x20] sm:$0xff]
      %v3774 = vld [vmem:[%s3 + $0x28] sm:$0xff]
      %v3775 = vld [vmem:[%s3 + $0x30] sm:$0xff]
      %v3776 = vld [vmem:[%s3 + $0x38] sm:$0xff]
      %v3777 = vld [vmem:[%s3 + $0x40] sm:$0xff]
      %v3778 = vld [vmem:[%s3 + $0x48] sm:$0xff]
      %v3779 = vld [vmem:[%s3 + $0x50] sm:$0xff]
      %v3780 = vld [vmem:[%s3 + $0x58] sm:$0xff]
      %v3781 = vld [vmem:[%s3 + $0x60] sm:$0xff]
      %v3782 = vld [vmem:[%s3 + $0x68] sm:$0xff]
      %v3783 = vld [vmem:[%s3 + $0x70] sm:$0xff]
      %v3784 = vld [vmem:[%s3 + $0x78] sm:$0xff]
      %v3785 = vld [vmem:[%s3 + $0x80] sm:$0xff]
      %v3786 = vld [vmem:[%s3 + $0x88] sm:$0xff]
      %v3787 = vld [vmem:[%s3 + $0x90] sm:$0xff]
      %v3788 = vld [vmem:[%s3 + $0x98] sm:$0xff]
      %v3789 = vld [vmem:[%s3 + $0xa0] sm:$0xff]
      %v3790 = vld [vmem:[%s3 + $0xa8] sm:$0xff]
      %v3791 = vld [vmem:[%s3 + $0xb0] sm:$0xff]
      %v3792 = vld [vmem:[%s3 + $0xb8] sm:$0xff]
      %v3793 = vld [vmem:[%s3 + $0xc0] sm:$0xff]
      %v3794 = vld [vmem:[%s3 + $0xc8] sm:$0xff]
      %v3795 = vld [vmem:[%s3 + $0xd0] sm:$0xff]
      %v3796 = vld [vmem:[%s3 + $0xd8] sm:$0xff]
      %v3797 = vld [vmem:[%s3 + $0xe0] sm:$0xff]
      %v3798 = vld [vmem:[%s3 + $0xe8] sm:$0xff]
      %v3799 = vld [vmem:[%s3 + $0xf0] sm:$0xff]
      %v3800 = vld [vmem:[%s3 + $0xf8] sm:$0xff]
      %v3801 = vld [vmem:[%s3 + $0x100] sm:$0xff]
      %v3802 = vld [vmem:[%s3 + $0x108] sm:$0xff]
      %v3803 = vld [vmem:[%s3 + $0x110] sm:$0xff]
      %v3804 = vld [vmem:[%s3 + $0x118] sm:$0xff]
      %v3805 = vld [vmem:[%s3 + $0x120] sm:$0xff]
      %v3806 = vld [vmem:[%s3 + $0x128] sm:$0xff]
      %v3807 = vld [vmem:[%s3 + $0x130] sm:$0xff]
      %v3808 = vld [vmem:[%s3 + $0x138] sm:$0xff]
      %v3809 = vld [vmem:[%s3 + $0x140] sm:$0xff]
      %v3810 = vld [vmem:[%s3 + $0x148] sm:$0xff]
      %v3811 = vld [vmem:[%s3 + $0x150] sm:$0xff]
      %v3812 = vld [vmem:[%s3 + $0x158] sm:$0xff]
      %v3813 = vld [vmem:[%s3 + $0x160] sm:$0xff]
      %v3814 = vld [vmem:[%s3 + $0x168] sm:$0xff]
      %v3815 = vld [vmem:[%s3 + $0x170] sm:$0xff]
      %v3816 = vld [vmem:[%s3 + $0x178] sm:$0xff]
      %v3817 = vld [vmem:[%s3 + $0x180] sm:$0xff]
      %v3818 = vld [vmem:[%s3 + $0x188] sm:$0xff]
      %v3819 = vld [vmem:[%s3 + $0x190] sm:$0xff]
      %v3820 = vld [vmem:[%s3 + $0x198] sm:$0xff]
      %v3821 = vld [vmem:[%s3 + $0x1a0] sm:$0xff]
      %v3822 = vld [vmem:[%s3 + $0x1a8] sm:$0xff]
      %v3823 = vld [vmem:[%s3 + $0x1b0] sm:$0xff]
      %v3824 = vld [vmem:[%s3 + $0x1b8] sm:$0xff]
      %v3825 = vld [vmem:[%s3 + $0x1c0] sm:$0xff]
      %v3826 = vld [vmem:[%s3 + $0x1c8] sm:$0xff]
      %v3827 = vld [vmem:[%s3 + $0x1d0] sm:$0xff]
      %v3828 = vld [vmem:[%s3 + $0x1d8] sm:$0xff]
      %v3829 = vld [vmem:[%s3 + $0x1e0] sm:$0xff]
      %v3830 = vld [vmem:[%s3 + $0x1e8] sm:$0xff]
      %v3831 = vld [vmem:[%s3 + $0x1f0] sm:$0xff]
      %v3832 = vld [vmem:[%s3 + $0x1f8] sm:$0xff]
      %3833 = vmatprep.subr.mxu0 %v3830
      %3834 = vmatpush1.msra.mxu0 %v3829
      %3835 = vmatprep.subr.mxu0 %v3826
      %3836 = vmatpush1.msra.mxu0 %v3825
      %3837 = vmatprep.subr.mxu0 %v3822
      %3838 = vmatpush1.msra.mxu0 %v3821
      %3839 = vmatprep.subr.mxu0 %v3818
      %3840 = vmatpush1.msra.mxu0 %v3817
      %3841 = vmatprep.subr.mxu0 %v3814
      %3842 = vmatpush1.msra.mxu0 %v3813
      %3843 = vmatprep.subr.mxu0 %v3810
      %3844 = vmatpush1.msra.mxu0 %v3809
      %3845 = vmatprep.subr.mxu0 %v3806
      %3846 = vmatpush1.msra.mxu0 %v3805
      %3847 = vmatprep.subr.mxu0 %v3802
      %3848 = vmatpush1.msra.mxu0 %v3801
      %3849 = vmatprep.subr.mxu0 %v3798
      %3850 = vmatpush1.msra.mxu0 %v3797
      %3851 = vmatprep.subr.mxu0 %v3794
      %3852 = vmatpush1.msra.mxu0 %v3793
      %3853 = vmatprep.subr.mxu0 %v3790
      %3854 = vmatpush1.msra.mxu0 %v3789
      %3855 = vmatprep.subr.mxu0 %v3786
      %3856 = vmatpush1.msra.mxu0 %v3785
      %3857 = vmatprep.subr.mxu0 %v3782
      %3858 = vmatpush1.msra.mxu0 %v3781
      %3859 = vmatprep.subr.mxu0 %v3778
      %3860 = vmatpush1.msra.mxu0 %v3777
      %3861 = vmatprep.subr.mxu0 %v3774
      %3862 = vmatpush1.msra.mxu0 %v3773
      %3863 = vmatprep.subr.mxu0 %v3770
      %3864 = vmatpush1.msra.mxu0 %v3769
      %3865 = vmatprep.subr.mxu0 0.0
      %3866 = vmatpush2.msra.mxu0 0.0
      %3867 = vmatprep.subr.mxu0 0.0
      %3868 = vmatpush2.msra.mxu0 0.0
      %3869 = vmatprep.subr.mxu0 0.0
      %3870 = vmatpush2.msra.mxu0 0.0
      %3871 = vmatprep.subr.mxu0 0.0
      %3872 = vmatpush2.msra.mxu0 0.0
      %3873 = vmatprep.subr.mxu0 0.0
      %3874 = vmatpush2.msra.mxu0 0.0
      %3875 = vmatprep.subr.mxu0 0.0
      %3876 = vmatpush2.msra.mxu0 0.0
      %3877 = vmatprep.subr.mxu0 0.0
      %3878 = vmatpush2.msra.mxu0 0.0
      %3879 = vmatprep.subr.mxu0 0.0
      %3880 = vmatpush2.msra.mxu0 0.0
      %3881 = vmatprep.subr.mxu0 0.0
      %3882 = vmatpush2.msra.mxu0 0.0
      %3883 = vmatprep.subr.mxu0 0.0
      %3884 = vmatpush2.msra.mxu0 0.0
      %3885 = vmatprep.subr.mxu0 0.0
      %3886 = vmatpush2.msra.mxu0 0.0
      %3887 = vmatprep.subr.mxu0 0.0
      %3888 = vmatpush2.msra.mxu0 0.0
      %3889 = vmatprep.subr.mxu0 0.0
      %3890 = vmatpush2.msra.mxu0 0.0
      %3891 = vmatprep.subr.mxu0 0.0
      %3892 = vmatpush2.msra.mxu0 0.0
      %3893 = vmatprep.subr.mxu0 0.0
      %3894 = vmatpush2.msra.mxu0 0.0
      %3895 = vmatprep.subr.mxu0 0.0
      %3896 = vmatpush2.msra.mxu0 0.0
      %3897 = vmatprep.mubr.f32.mxu0 0.0
      %3898 = vmatmul.mubr.f32.gmra.mxu0 %v3767
      %v3899 = vpop.f32.mrf.mxu0
      %v3900 = vadd.f32 0.0, %v3899
      %v3901 = vpop.f32.mrf.mxu0
      %v3902 = vadd.f32 0.0, %v3901
      %3903 = vdwg.mxu0
      %3904 = vmatprep.subr.mxu0 %v3832
      %3905 = vmatpush1.msra.mxu0 %v3831
      %3906 = vmatprep.subr.mxu0 %v3828
      %3907 = vmatpush1.msra.mxu0 %v3827
      %3908 = vmatprep.subr.mxu0 %v3824
      %3909 = vmatpush1.msra.mxu0 %v3823
      %3910 = vmatprep.subr.mxu0 %v3820
      %3911 = vmatpush1.msra.mxu0 %v3819
      %3912 = vmatprep.subr.mxu0 %v3816
      %3913 = vmatpush1.msra.mxu0 %v3815
      %3914 = vmatprep.subr.mxu0 %v3812
      %3915 = vmatpush1.msra.mxu0 %v3811
      %3916 = vmatprep.subr.mxu0 %v3808
      %3917 = vmatpush1.msra.mxu0 %v3807
      %3918 = vmatprep.subr.mxu0 %v3804
      %3919 = vmatpush1.msra.mxu0 %v3803
      %3920 = vmatprep.subr.mxu0 %v3800
      %3921 = vmatpush1.msra.mxu0 %v3799
      %3922 = vmatprep.subr.mxu0 %v3796
      %3923 = vmatpush1.msra.mxu0 %v3795
      %3924 = vmatprep.subr.mxu0 %v3792
      %3925 = vmatpush1.msra.mxu0 %v3791
      %3926 = vmatprep.subr.mxu0 %v3788
      %3927 = vmatpush1.msra.mxu0 %v3787
      %3928 = vmatprep.subr.mxu0 %v3784
      %3929 = vmatpush1.msra.mxu0 %v3783
      %3930 = vmatprep.subr.mxu0 %v3780
      %3931 = vmatpush1.msra.mxu0 %v3779
      %3932 = vmatprep.subr.mxu0 %v3776
      %3933 = vmatpush1.msra.mxu0 %v3775
      %3934 = vmatprep.subr.mxu0 %v3772
      %3935 = vmatpush1.msra.mxu0 %v3771
      %3936 = vmatprep.subr.mxu0 0.0
      %3937 = vmatpush2.msra.mxu0 0.0
      %3938 = vmatprep.subr.mxu0 0.0
      %3939 = vmatpush2.msra.mxu0 0.0
      %3940 = vmatprep.subr.mxu0 0.0
      %3941 = vmatpush2.msra.mxu0 0.0
      %3942 = vmatprep.subr.mxu0 0.0
      %3943 = vmatpush2.msra.mxu0 0.0
      %3944 = vmatprep.subr.mxu0 0.0
      %3945 = vmatpush2.msra.mxu0 0.0
      %3946 = vmatprep.subr.mxu0 0.0
      %3947 = vmatpush2.msra.mxu0 0.0
      %3948 = vmatprep.subr.mxu0 0.0
      %3949 = vmatpush2.msra.mxu0 0.0
      %3950 = vmatprep.subr.mxu0 0.0
      %3951 = vmatpush2.msra.mxu0 0.0
      %3952 = vmatprep.subr.mxu0 0.0
      %3953 = vmatpush2.msra.mxu0 0.0
      %3954 = vmatprep.subr.mxu0 0.0
      %3955 = vmatpush2.msra.mxu0 0.0
      %3956 = vmatprep.subr.mxu0 0.0
      %3957 = vmatpush2.msra.mxu0 0.0
      %3958 = vmatprep.subr.mxu0 0.0
      %3959 = vmatpush2.msra.mxu0 0.0
      %3960 = vmatprep.subr.mxu0 0.0
      %3961 = vmatpush2.msra.mxu0 0.0
      %3962 = vmatprep.subr.mxu0 0.0
      %3963 = vmatpush2.msra.mxu0 0.0
      %3964 = vmatprep.subr.mxu0 0.0
      %3965 = vmatpush2.msra.mxu0 0.0
      %3966 = vmatprep.subr.mxu0 0.0
      %3967 = vmatpush2.msra.mxu0 0.0
      %3968 = vmatprep.mubr.f32.mxu0 0.0
      %3969 = vmatmul.mubr.f32.gmra.mxu0 %v3767
      %v3970 = vpop.f32.mrf.mxu0
      %v3971 = vadd.f32 0.0, %v3970
      %v3972 = vpop.f32.mrf.mxu0
      %v3973 = vadd.f32 0.0, %v3972
      %3974 = vdwg.mxu0
      %v3975 = vadd.f32 %v3763, %v3900
      %v3976 = vadd.f32 %v3764, %v3902
      %v3977 = vadd.f32 %v3765, %v3971
      %v3978 = vadd.f32 %v3766, %v3973
      %v3979 = vxor.u32 %v3975, 2147483648
      %v3980 = vmul.f32 %v3979, 1.442695
      %v3981 = vpow.pop %v3980
      %v3982 = vadd.f32 %v3981, 1.0
      %v3983 = vrcp.pop %v3982
      %v3984 = vmul.f32 1.0, %v3983
      %v3985 = vxor.u32 %v3976, 2147483648
      %v3986 = vmul.f32 %v3985, 1.442695
      %v3987 = vpow.pop %v3986
      %v3988 = vadd.f32 %v3987, 1.0
      %v3989 = vrcp.pop %v3988
      %v3990 = vmul.f32 1.0, %v3989
      %v3991 = vtanh.pop %v3977
      %v3992 = vxor.u32 %v3978, 2147483648
      %v3993 = vmul.f32 %v3992, 1.442695
      %v3994 = vpow.pop %v3993
      %v3995 = vadd.f32 %v3994, 1.0
      %v3996 = vrcp.pop %v3995
      %v3997 = vmul.f32 1.0, %v3996
      %v3998 = vmul.f32 %v3990, %v3768
      %v3999 = vmul.f32 %v3984, %v3991
      %v4000 = vadd.f32 %v3998, %v3999
      %v4001 = vtanh.pop %v4000
      %v4002 = vmul.f32 %v3997, %v4001
      %4003 = vst [vmem:[#allocation4] sm:$0xff] %v4002
      %4004 = vst [vmem:[#allocation5] sm:$0xff] %v4000
      %s4005 = scalar_lea.vmem %s345, 224
      %v4006 = vld [vmem:[%s4005] sm:$0xff]
      %v4007 = vld [vmem:[%s4005 + $0x8] sm:$0xff]
      %v4008 = vld [vmem:[%s4005 + $0x10] sm:$0xff]
      %v4009 = vld [vmem:[%s4005 + $0x18] sm:$0xff]
      %v4010 = vld [vmem:[#allocation2] sm:$0xff]
      %v4011 = vld [vmem:[#allocation3] sm:$0xff]
      %v4012 = vld [vmem:[%s2] sm:$0xff]
      %v4013 = vld [vmem:[%s2 + $0x8] sm:$0xff]
      %v4014 = vld [vmem:[%s2 + $0x10] sm:$0xff]
      %v4015 = vld [vmem:[%s2 + $0x18] sm:$0xff]
      %v4016 = vld [vmem:[%s2 + $0x20] sm:$0xff]
      %v4017 = vld [vmem:[%s2 + $0x28] sm:$0xff]
      %v4018 = vld [vmem:[%s2 + $0x30] sm:$0xff]
      %v4019 = vld [vmem:[%s2 + $0x38] sm:$0xff]
      %v4020 = vld [vmem:[%s2 + $0x40] sm:$0xff]
      %v4021 = vld [vmem:[%s2 + $0x48] sm:$0xff]
      %v4022 = vld [vmem:[%s2 + $0x50] sm:$0xff]
      %v4023 = vld [vmem:[%s2 + $0x58] sm:$0xff]
      %v4024 = vld [vmem:[%s2 + $0x60] sm:$0xff]
      %v4025 = vld [vmem:[%s2 + $0x68] sm:$0xff]
      %v4026 = vld [vmem:[%s2 + $0x70] sm:$0xff]
      %v4027 = vld [vmem:[%s2 + $0x78] sm:$0xff]
      %v4028 = vld [vmem:[%s2 + $0x80] sm:$0xff]
      %v4029 = vld [vmem:[%s2 + $0x88] sm:$0xff]
      %v4030 = vld [vmem:[%s2 + $0x90] sm:$0xff]
      %v4031 = vld [vmem:[%s2 + $0x98] sm:$0xff]
      %v4032 = vld [vmem:[%s2 + $0xa0] sm:$0xff]
      %v4033 = vld [vmem:[%s2 + $0xa8] sm:$0xff]
      %v4034 = vld [vmem:[%s2 + $0xb0] sm:$0xff]
      %v4035 = vld [vmem:[%s2 + $0xb8] sm:$0xff]
      %v4036 = vld [vmem:[%s2 + $0xc0] sm:$0xff]
      %v4037 = vld [vmem:[%s2 + $0xc8] sm:$0xff]
      %v4038 = vld [vmem:[%s2 + $0xd0] sm:$0xff]
      %v4039 = vld [vmem:[%s2 + $0xd8] sm:$0xff]
      %v4040 = vld [vmem:[%s2 + $0xe0] sm:$0xff]
      %v4041 = vld [vmem:[%s2 + $0xe8] sm:$0xff]
      %v4042 = vld [vmem:[%s2 + $0xf0] sm:$0xff]
      %v4043 = vld [vmem:[%s2 + $0xf8] sm:$0xff]
      %v4044 = vld [vmem:[%s2 + $0x100] sm:$0xff]
      %v4045 = vld [vmem:[%s2 + $0x108] sm:$0xff]
      %v4046 = vld [vmem:[%s2 + $0x110] sm:$0xff]
      %v4047 = vld [vmem:[%s2 + $0x118] sm:$0xff]
      %v4048 = vld [vmem:[%s2 + $0x120] sm:$0xff]
      %v4049 = vld [vmem:[%s2 + $0x128] sm:$0xff]
      %v4050 = vld [vmem:[%s2 + $0x130] sm:$0xff]
      %v4051 = vld [vmem:[%s2 + $0x138] sm:$0xff]
      %v4052 = vld [vmem:[%s2 + $0x140] sm:$0xff]
      %v4053 = vld [vmem:[%s2 + $0x148] sm:$0xff]
      %v4054 = vld [vmem:[%s2 + $0x150] sm:$0xff]
      %v4055 = vld [vmem:[%s2 + $0x158] sm:$0xff]
      %v4056 = vld [vmem:[%s2 + $0x160] sm:$0xff]
      %v4057 = vld [vmem:[%s2 + $0x168] sm:$0xff]
      %v4058 = vld [vmem:[%s2 + $0x170] sm:$0xff]
      %v4059 = vld [vmem:[%s2 + $0x178] sm:$0xff]
      %v4060 = vld [vmem:[%s2 + $0x180] sm:$0xff]
      %v4061 = vld [vmem:[%s2 + $0x188] sm:$0xff]
      %v4062 = vld [vmem:[%s2 + $0x190] sm:$0xff]
      %v4063 = vld [vmem:[%s2 + $0x198] sm:$0xff]
      %v4064 = vld [vmem:[%s2 + $0x1a0] sm:$0xff]
      %v4065 = vld [vmem:[%s2 + $0x1a8] sm:$0xff]
      %v4066 = vld [vmem:[%s2 + $0x1b0] sm:$0xff]
      %v4067 = vld [vmem:[%s2 + $0x1b8] sm:$0xff]
      %v4068 = vld [vmem:[%s2 + $0x1c0] sm:$0xff]
      %v4069 = vld [vmem:[%s2 + $0x1c8] sm:$0xff]
      %v4070 = vld [vmem:[%s2 + $0x1d0] sm:$0xff]
      %v4071 = vld [vmem:[%s2 + $0x1d8] sm:$0xff]
      %v4072 = vld [vmem:[%s2 + $0x1e0] sm:$0xff]
      %v4073 = vld [vmem:[%s2 + $0x1e8] sm:$0xff]
      %v4074 = vld [vmem:[%s2 + $0x1f0] sm:$0xff]
      %v4075 = vld [vmem:[%s2 + $0x1f8] sm:$0xff]
      %4076 = vmatprep.subr.mxu0 %v4073
      %4077 = vmatpush1.msra.mxu0 %v4072
      %4078 = vmatprep.subr.mxu0 %v4069
      %4079 = vmatpush1.msra.mxu0 %v4068
      %4080 = vmatprep.subr.mxu0 %v4065
      %4081 = vmatpush1.msra.mxu0 %v4064
      %4082 = vmatprep.subr.mxu0 %v4061
      %4083 = vmatpush1.msra.mxu0 %v4060
      %4084 = vmatprep.subr.mxu0 %v4057
      %4085 = vmatpush1.msra.mxu0 %v4056
      %4086 = vmatprep.subr.mxu0 %v4053
      %4087 = vmatpush1.msra.mxu0 %v4052
      %4088 = vmatprep.subr.mxu0 %v4049
      %4089 = vmatpush1.msra.mxu0 %v4048
      %4090 = vmatprep.subr.mxu0 %v4045
      %4091 = vmatpush1.msra.mxu0 %v4044
      %4092 = vmatprep.subr.mxu0 %v4041
      %4093 = vmatpush1.msra.mxu0 %v4040
      %4094 = vmatprep.subr.mxu0 %v4037
      %4095 = vmatpush1.msra.mxu0 %v4036
      %4096 = vmatprep.subr.mxu0 %v4033
      %4097 = vmatpush1.msra.mxu0 %v4032
      %4098 = vmatprep.subr.mxu0 %v4029
      %4099 = vmatpush1.msra.mxu0 %v4028
      %4100 = vmatprep.subr.mxu0 %v4025
      %4101 = vmatpush1.msra.mxu0 %v4024
      %4102 = vmatprep.subr.mxu0 %v4021
      %4103 = vmatpush1.msra.mxu0 %v4020
      %4104 = vmatprep.subr.mxu0 %v4017
      %4105 = vmatpush1.msra.mxu0 %v4016
      %4106 = vmatprep.subr.mxu0 %v4013
      %4107 = vmatpush1.msra.mxu0 %v4012
      %4108 = vmatprep.subr.mxu0 0.0
      %4109 = vmatpush2.msra.mxu0 0.0
      %4110 = vmatprep.subr.mxu0 0.0
      %4111 = vmatpush2.msra.mxu0 0.0
      %4112 = vmatprep.subr.mxu0 0.0
      %4113 = vmatpush2.msra.mxu0 0.0
      %4114 = vmatprep.subr.mxu0 0.0
      %4115 = vmatpush2.msra.mxu0 0.0
      %4116 = vmatprep.subr.mxu0 0.0
      %4117 = vmatpush2.msra.mxu0 0.0
      %4118 = vmatprep.subr.mxu0 0.0
      %4119 = vmatpush2.msra.mxu0 0.0
      %4120 = vmatprep.subr.mxu0 0.0
      %4121 = vmatpush2.msra.mxu0 0.0
      %4122 = vmatprep.subr.mxu0 0.0
      %4123 = vmatpush2.msra.mxu0 0.0
      %4124 = vmatprep.subr.mxu0 0.0
      %4125 = vmatpush2.msra.mxu0 0.0
      %4126 = vmatprep.subr.mxu0 0.0
      %4127 = vmatpush2.msra.mxu0 0.0
      %4128 = vmatprep.subr.mxu0 0.0
      %4129 = vmatpush2.msra.mxu0 0.0
      %4130 = vmatprep.subr.mxu0 0.0
      %4131 = vmatpush2.msra.mxu0 0.0
      %4132 = vmatprep.subr.mxu0 0.0
      %4133 = vmatpush2.msra.mxu0 0.0
      %4134 = vmatprep.subr.mxu0 0.0
      %4135 = vmatpush2.msra.mxu0 0.0
      %4136 = vmatprep.subr.mxu0 0.0
      %4137 = vmatpush2.msra.mxu0 0.0
      %4138 = vmatprep.subr.mxu0 0.0
      %4139 = vmatpush2.msra.mxu0 0.0
      %4140 = vmatprep.mubr.f32.mxu0 0.0
      %4141 = vmatmul.mubr.f32.gmra.mxu0 %v4010
      %v4142 = vpop.f32.mrf.mxu0
      %v4143 = vadd.f32 0.0, %v4142
      %v4144 = vpop.f32.mrf.mxu0
      %v4145 = vadd.f32 0.0, %v4144
      %4146 = vdwg.mxu0
      %4147 = vmatprep.subr.mxu0 %v4075
      %4148 = vmatpush1.msra.mxu0 %v4074
      %4149 = vmatprep.subr.mxu0 %v4071
      %4150 = vmatpush1.msra.mxu0 %v4070
      %4151 = vmatprep.subr.mxu0 %v4067
      %4152 = vmatpush1.msra.mxu0 %v4066
      %4153 = vmatprep.subr.mxu0 %v4063
      %4154 = vmatpush1.msra.mxu0 %v4062
      %4155 = vmatprep.subr.mxu0 %v4059
      %4156 = vmatpush1.msra.mxu0 %v4058
      %4157 = vmatprep.subr.mxu0 %v4055
      %4158 = vmatpush1.msra.mxu0 %v4054
      %4159 = vmatprep.subr.mxu0 %v4051
      %4160 = vmatpush1.msra.mxu0 %v4050
      %4161 = vmatprep.subr.mxu0 %v4047
      %4162 = vmatpush1.msra.mxu0 %v4046
      %4163 = vmatprep.subr.mxu0 %v4043
      %4164 = vmatpush1.msra.mxu0 %v4042
      %4165 = vmatprep.subr.mxu0 %v4039
      %4166 = vmatpush1.msra.mxu0 %v4038
      %4167 = vmatprep.subr.mxu0 %v4035
      %4168 = vmatpush1.msra.mxu0 %v4034
      %4169 = vmatprep.subr.mxu0 %v4031
      %4170 = vmatpush1.msra.mxu0 %v4030
      %4171 = vmatprep.subr.mxu0 %v4027
      %4172 = vmatpush1.msra.mxu0 %v4026
      %4173 = vmatprep.subr.mxu0 %v4023
      %4174 = vmatpush1.msra.mxu0 %v4022
      %4175 = vmatprep.subr.mxu0 %v4019
      %4176 = vmatpush1.msra.mxu0 %v4018
      %4177 = vmatprep.subr.mxu0 %v4015
      %4178 = vmatpush1.msra.mxu0 %v4014
      %4179 = vmatprep.subr.mxu0 0.0
      %4180 = vmatpush2.msra.mxu0 0.0
      %4181 = vmatprep.subr.mxu0 0.0
      %4182 = vmatpush2.msra.mxu0 0.0
      %4183 = vmatprep.subr.mxu0 0.0
      %4184 = vmatpush2.msra.mxu0 0.0
      %4185 = vmatprep.subr.mxu0 0.0
      %4186 = vmatpush2.msra.mxu0 0.0
      %4187 = vmatprep.subr.mxu0 0.0
      %4188 = vmatpush2.msra.mxu0 0.0
      %4189 = vmatprep.subr.mxu0 0.0
      %4190 = vmatpush2.msra.mxu0 0.0
      %4191 = vmatprep.subr.mxu0 0.0
      %4192 = vmatpush2.msra.mxu0 0.0
      %4193 = vmatprep.subr.mxu0 0.0
      %4194 = vmatpush2.msra.mxu0 0.0
      %4195 = vmatprep.subr.mxu0 0.0
      %4196 = vmatpush2.msra.mxu0 0.0
      %4197 = vmatprep.subr.mxu0 0.0
      %4198 = vmatpush2.msra.mxu0 0.0
      %4199 = vmatprep.subr.mxu0 0.0
      %4200 = vmatpush2.msra.mxu0 0.0
      %4201 = vmatprep.subr.mxu0 0.0
      %4202 = vmatpush2.msra.mxu0 0.0
      %4203 = vmatprep.subr.mxu0 0.0
      %4204 = vmatpush2.msra.mxu0 0.0
      %4205 = vmatprep.subr.mxu0 0.0
      %4206 = vmatpush2.msra.mxu0 0.0
      %4207 = vmatprep.subr.mxu0 0.0
      %4208 = vmatpush2.msra.mxu0 0.0
      %4209 = vmatprep.subr.mxu0 0.0
      %4210 = vmatpush2.msra.mxu0 0.0
      %4211 = vmatprep.mubr.f32.mxu0 0.0
      %4212 = vmatmul.mubr.f32.gmra.mxu0 %v4010
      %v4213 = vpop.f32.mrf.mxu0
      %v4214 = vadd.f32 0.0, %v4213
      %v4215 = vpop.f32.mrf.mxu0
      %v4216 = vadd.f32 0.0, %v4215
      %4217 = vdwg.mxu0
      %v4218 = vadd.f32 %v4006, %v4143
      %v4219 = vadd.f32 %v4007, %v4145
      %v4220 = vadd.f32 %v4008, %v4214
      %v4221 = vadd.f32 %v4009, %v4216
      %v4222 = vxor.u32 %v4218, 2147483648
      %v4223 = vmul.f32 %v4222, 1.442695
      %v4224 = vpow.pop %v4223
      %v4225 = vadd.f32 %v4224, 1.0
      %v4226 = vrcp.pop %v4225
      %v4227 = vmul.f32 1.0, %v4226
      %v4228 = vxor.u32 %v4219, 2147483648
      %v4229 = vmul.f32 %v4228, 1.442695
      %v4230 = vpow.pop %v4229
      %v4231 = vadd.f32 %v4230, 1.0
      %v4232 = vrcp.pop %v4231
      %v4233 = vmul.f32 1.0, %v4232
      %v4234 = vtanh.pop %v4220
      %v4235 = vxor.u32 %v4221, 2147483648
      %v4236 = vmul.f32 %v4235, 1.442695
      %v4237 = vpow.pop %v4236
      %v4238 = vadd.f32 %v4237, 1.0
      %v4239 = vrcp.pop %v4238
      %v4240 = vmul.f32 1.0, %v4239
      %v4241 = vmul.f32 %v4233, %v4011
      %v4242 = vmul.f32 %v4227, %v4234
      %v4243 = vadd.f32 %v4241, %v4242
      %v4244 = vtanh.pop %v4243
      %v4245 = vmul.f32 %v4240, %v4244
      %4246 = vst [vmem:[#allocation2] sm:$0xff] %v4245
      %4247 = vst [vmem:[#allocation3] sm:$0xff] %v4243
      %v4248 = vld [vmem:[%s353] sm:$0xff]
      %v4249 = vld [vmem:[%s353 + $0x8] sm:$0xff]
      %v4250 = vld [vmem:[%s353 + $0x10] sm:$0xff]
      %v4251 = vld [vmem:[%s353 + $0x18] sm:$0xff]
      %v4252 = vld [vmem:[#allocation4] sm:$0xff]
      %v4253 = vld [vmem:[#allocation5] sm:$0xff]
      %v4254 = vld [vmem:[%s3] sm:$0xff]
      %v4255 = vld [vmem:[%s3 + $0x8] sm:$0xff]
      %v4256 = vld [vmem:[%s3 + $0x10] sm:$0xff]
      %v4257 = vld [vmem:[%s3 + $0x18] sm:$0xff]
      %v4258 = vld [vmem:[%s3 + $0x20] sm:$0xff]
      %v4259 = vld [vmem:[%s3 + $0x28] sm:$0xff]
      %v4260 = vld [vmem:[%s3 + $0x30] sm:$0xff]
      %v4261 = vld [vmem:[%s3 + $0x38] sm:$0xff]
      %v4262 = vld [vmem:[%s3 + $0x40] sm:$0xff]
      %v4263 = vld [vmem:[%s3 + $0x48] sm:$0xff]
      %v4264 = vld [vmem:[%s3 + $0x50] sm:$0xff]
      %v4265 = vld [vmem:[%s3 + $0x58] sm:$0xff]
      %v4266 = vld [vmem:[%s3 + $0x60] sm:$0xff]
      %v4267 = vld [vmem:[%s3 + $0x68] sm:$0xff]
      %v4268 = vld [vmem:[%s3 + $0x70] sm:$0xff]
      %v4269 = vld [vmem:[%s3 + $0x78] sm:$0xff]
      %v4270 = vld [vmem:[%s3 + $0x80] sm:$0xff]
      %v4271 = vld [vmem:[%s3 + $0x88] sm:$0xff]
      %v4272 = vld [vmem:[%s3 + $0x90] sm:$0xff]
      %v4273 = vld [vmem:[%s3 + $0x98] sm:$0xff]
      %v4274 = vld [vmem:[%s3 + $0xa0] sm:$0xff]
      %v4275 = vld [vmem:[%s3 + $0xa8] sm:$0xff]
      %v4276 = vld [vmem:[%s3 + $0xb0] sm:$0xff]
      %v4277 = vld [vmem:[%s3 + $0xb8] sm:$0xff]
      %v4278 = vld [vmem:[%s3 + $0xc0] sm:$0xff]
      %v4279 = vld [vmem:[%s3 + $0xc8] sm:$0xff]
      %v4280 = vld [vmem:[%s3 + $0xd0] sm:$0xff]
      %v4281 = vld [vmem:[%s3 + $0xd8] sm:$0xff]
      %v4282 = vld [vmem:[%s3 + $0xe0] sm:$0xff]
      %v4283 = vld [vmem:[%s3 + $0xe8] sm:$0xff]
      %v4284 = vld [vmem:[%s3 + $0xf0] sm:$0xff]
      %v4285 = vld [vmem:[%s3 + $0xf8] sm:$0xff]
      %v4286 = vld [vmem:[%s3 + $0x100] sm:$0xff]
      %v4287 = vld [vmem:[%s3 + $0x108] sm:$0xff]
      %v4288 = vld [vmem:[%s3 + $0x110] sm:$0xff]
      %v4289 = vld [vmem:[%s3 + $0x118] sm:$0xff]
      %v4290 = vld [vmem:[%s3 + $0x120] sm:$0xff]
      %v4291 = vld [vmem:[%s3 + $0x128] sm:$0xff]
      %v4292 = vld [vmem:[%s3 + $0x130] sm:$0xff]
      %v4293 = vld [vmem:[%s3 + $0x138] sm:$0xff]
      %v4294 = vld [vmem:[%s3 + $0x140] sm:$0xff]
      %v4295 = vld [vmem:[%s3 + $0x148] sm:$0xff]
      %v4296 = vld [vmem:[%s3 + $0x150] sm:$0xff]
      %v4297 = vld [vmem:[%s3 + $0x158] sm:$0xff]
      %v4298 = vld [vmem:[%s3 + $0x160] sm:$0xff]
      %v4299 = vld [vmem:[%s3 + $0x168] sm:$0xff]
      %v4300 = vld [vmem:[%s3 + $0x170] sm:$0xff]
      %v4301 = vld [vmem:[%s3 + $0x178] sm:$0xff]
      %v4302 = vld [vmem:[%s3 + $0x180] sm:$0xff]
      %v4303 = vld [vmem:[%s3 + $0x188] sm:$0xff]
      %v4304 = vld [vmem:[%s3 + $0x190] sm:$0xff]
      %v4305 = vld [vmem:[%s3 + $0x198] sm:$0xff]
      %v4306 = vld [vmem:[%s3 + $0x1a0] sm:$0xff]
      %v4307 = vld [vmem:[%s3 + $0x1a8] sm:$0xff]
      %v4308 = vld [vmem:[%s3 + $0x1b0] sm:$0xff]
      %v4309 = vld [vmem:[%s3 + $0x1b8] sm:$0xff]
      %v4310 = vld [vmem:[%s3 + $0x1c0] sm:$0xff]
      %v4311 = vld [vmem:[%s3 + $0x1c8] sm:$0xff]
      %v4312 = vld [vmem:[%s3 + $0x1d0] sm:$0xff]
      %v4313 = vld [vmem:[%s3 + $0x1d8] sm:$0xff]
      %v4314 = vld [vmem:[%s3 + $0x1e0] sm:$0xff]
      %v4315 = vld [vmem:[%s3 + $0x1e8] sm:$0xff]
      %v4316 = vld [vmem:[%s3 + $0x1f0] sm:$0xff]
      %v4317 = vld [vmem:[%s3 + $0x1f8] sm:$0xff]
      %4318 = vmatprep.subr.mxu0 %v4315
      %4319 = vmatpush1.msra.mxu0 %v4314
      %4320 = vmatprep.subr.mxu0 %v4311
      %4321 = vmatpush1.msra.mxu0 %v4310
      %4322 = vmatprep.subr.mxu0 %v4307
      %4323 = vmatpush1.msra.mxu0 %v4306
      %4324 = vmatprep.subr.mxu0 %v4303
      %4325 = vmatpush1.msra.mxu0 %v4302
      %4326 = vmatprep.subr.mxu0 %v4299
      %4327 = vmatpush1.msra.mxu0 %v4298
      %4328 = vmatprep.subr.mxu0 %v4295
      %4329 = vmatpush1.msra.mxu0 %v4294
      %4330 = vmatprep.subr.mxu0 %v4291
      %4331 = vmatpush1.msra.mxu0 %v4290
      %4332 = vmatprep.subr.mxu0 %v4287
      %4333 = vmatpush1.msra.mxu0 %v4286
      %4334 = vmatprep.subr.mxu0 %v4283
      %4335 = vmatpush1.msra.mxu0 %v4282
      %4336 = vmatprep.subr.mxu0 %v4279
      %4337 = vmatpush1.msra.mxu0 %v4278
      %4338 = vmatprep.subr.mxu0 %v4275
      %4339 = vmatpush1.msra.mxu0 %v4274
      %4340 = vmatprep.subr.mxu0 %v4271
      %4341 = vmatpush1.msra.mxu0 %v4270
      %4342 = vmatprep.subr.mxu0 %v4267
      %4343 = vmatpush1.msra.mxu0 %v4266
      %4344 = vmatprep.subr.mxu0 %v4263
      %4345 = vmatpush1.msra.mxu0 %v4262
      %4346 = vmatprep.subr.mxu0 %v4259
      %4347 = vmatpush1.msra.mxu0 %v4258
      %4348 = vmatprep.subr.mxu0 %v4255
      %4349 = vmatpush1.msra.mxu0 %v4254
      %4350 = vmatprep.subr.mxu0 0.0
      %4351 = vmatpush2.msra.mxu0 0.0
      %4352 = vmatprep.subr.mxu0 0.0
      %4353 = vmatpush2.msra.mxu0 0.0
      %4354 = vmatprep.subr.mxu0 0.0
      %4355 = vmatpush2.msra.mxu0 0.0
      %4356 = vmatprep.subr.mxu0 0.0
      %4357 = vmatpush2.msra.mxu0 0.0
      %4358 = vmatprep.subr.mxu0 0.0
      %4359 = vmatpush2.msra.mxu0 0.0
      %4360 = vmatprep.subr.mxu0 0.0
      %4361 = vmatpush2.msra.mxu0 0.0
      %4362 = vmatprep.subr.mxu0 0.0
      %4363 = vmatpush2.msra.mxu0 0.0
      %4364 = vmatprep.subr.mxu0 0.0
      %4365 = vmatpush2.msra.mxu0 0.0
      %4366 = vmatprep.subr.mxu0 0.0
      %4367 = vmatpush2.msra.mxu0 0.0
      %4368 = vmatprep.subr.mxu0 0.0
      %4369 = vmatpush2.msra.mxu0 0.0
      %4370 = vmatprep.subr.mxu0 0.0
      %4371 = vmatpush2.msra.mxu0 0.0
      %4372 = vmatprep.subr.mxu0 0.0
      %4373 = vmatpush2.msra.mxu0 0.0
      %4374 = vmatprep.subr.mxu0 0.0
      %4375 = vmatpush2.msra.mxu0 0.0
      %4376 = vmatprep.subr.mxu0 0.0
      %4377 = vmatpush2.msra.mxu0 0.0
      %4378 = vmatprep.subr.mxu0 0.0
      %4379 = vmatpush2.msra.mxu0 0.0
      %4380 = vmatprep.subr.mxu0 0.0
      %4381 = vmatpush2.msra.mxu0 0.0
      %4382 = vmatprep.mubr.f32.mxu0 0.0
      %4383 = vmatmul.mubr.f32.gmra.mxu0 %v4252
      %v4384 = vpop.f32.mrf.mxu0
      %v4385 = vadd.f32 0.0, %v4384
      %v4386 = vpop.f32.mrf.mxu0
      %v4387 = vadd.f32 0.0, %v4386
      %4388 = vdwg.mxu0
      %4389 = vmatprep.subr.mxu0 %v4317
      %4390 = vmatpush1.msra.mxu0 %v4316
      %4391 = vmatprep.subr.mxu0 %v4313
      %4392 = vmatpush1.msra.mxu0 %v4312
      %4393 = vmatprep.subr.mxu0 %v4309
      %4394 = vmatpush1.msra.mxu0 %v4308
      %4395 = vmatprep.subr.mxu0 %v4305
      %4396 = vmatpush1.msra.mxu0 %v4304
      %4397 = vmatprep.subr.mxu0 %v4301
      %4398 = vmatpush1.msra.mxu0 %v4300
      %4399 = vmatprep.subr.mxu0 %v4297
      %4400 = vmatpush1.msra.mxu0 %v4296
      %4401 = vmatprep.subr.mxu0 %v4293
      %4402 = vmatpush1.msra.mxu0 %v4292
      %4403 = vmatprep.subr.mxu0 %v4289
      %4404 = vmatpush1.msra.mxu0 %v4288
      %4405 = vmatprep.subr.mxu0 %v4285
      %4406 = vmatpush1.msra.mxu0 %v4284
      %4407 = vmatprep.subr.mxu0 %v4281
      %4408 = vmatpush1.msra.mxu0 %v4280
      %4409 = vmatprep.subr.mxu0 %v4277
      %4410 = vmatpush1.msra.mxu0 %v4276
      %4411 = vmatprep.subr.mxu0 %v4273
      %4412 = vmatpush1.msra.mxu0 %v4272
      %4413 = vmatprep.subr.mxu0 %v4269
      %4414 = vmatpush1.msra.mxu0 %v4268
      %4415 = vmatprep.subr.mxu0 %v4265
      %4416 = vmatpush1.msra.mxu0 %v4264
      %4417 = vmatprep.subr.mxu0 %v4261
      %4418 = vmatpush1.msra.mxu0 %v4260
      %4419 = vmatprep.subr.mxu0 %v4257
      %4420 = vmatpush1.msra.mxu0 %v4256
      %4421 = vmatprep.subr.mxu0 0.0
      %4422 = vmatpush2.msra.mxu0 0.0
      %4423 = vmatprep.subr.mxu0 0.0
      %4424 = vmatpush2.msra.mxu0 0.0
      %4425 = vmatprep.subr.mxu0 0.0
      %4426 = vmatpush2.msra.mxu0 0.0
      %4427 = vmatprep.subr.mxu0 0.0
      %4428 = vmatpush2.msra.mxu0 0.0
      %4429 = vmatprep.subr.mxu0 0.0
      %4430 = vmatpush2.msra.mxu0 0.0
      %4431 = vmatprep.subr.mxu0 0.0
      %4432 = vmatpush2.msra.mxu0 0.0
      %4433 = vmatprep.subr.mxu0 0.0
      %4434 = vmatpush2.msra.mxu0 0.0
      %4435 = vmatprep.subr.mxu0 0.0
      %4436 = vmatpush2.msra.mxu0 0.0
      %4437 = vmatprep.subr.mxu0 0.0
      %4438 = vmatpush2.msra.mxu0 0.0
      %4439 = vmatprep.subr.mxu0 0.0
      %4440 = vmatpush2.msra.mxu0 0.0
      %4441 = vmatprep.subr.mxu0 0.0
      %4442 = vmatpush2.msra.mxu0 0.0
      %4443 = vmatprep.subr.mxu0 0.0
      %4444 = vmatpush2.msra.mxu0 0.0
      %4445 = vmatprep.subr.mxu0 0.0
      %4446 = vmatpush2.msra.mxu0 0.0
      %4447 = vmatprep.subr.mxu0 0.0
      %4448 = vmatpush2.msra.mxu0 0.0
      %4449 = vmatprep.subr.mxu0 0.0
      %4450 = vmatpush2.msra.mxu0 0.0
      %4451 = vmatprep.subr.mxu0 0.0
      %4452 = vmatpush2.msra.mxu0 0.0
      %4453 = vmatprep.mubr.f32.mxu0 0.0
      %4454 = vmatmul.mubr.f32.gmra.mxu0 %v4252
      %v4455 = vpop.f32.mrf.mxu0
      %v4456 = vadd.f32 0.0, %v4455
      %v4457 = vpop.f32.mrf.mxu0
      %v4458 = vadd.f32 0.0, %v4457
      %4459 = vdwg.mxu0
      %v4460 = vadd.f32 %v4248, %v4385
      %v4461 = vadd.f32 %v4249, %v4387
      %v4462 = vadd.f32 %v4250, %v4456
      %v4463 = vadd.f32 %v4251, %v4458
      %v4464 = vxor.u32 %v4460, 2147483648
      %v4465 = vmul.f32 %v4464, 1.442695
      %v4466 = vpow.pop %v4465
      %v4467 = vadd.f32 %v4466, 1.0
      %v4468 = vrcp.pop %v4467
      %v4469 = vmul.f32 1.0, %v4468
      %v4470 = vxor.u32 %v4461, 2147483648
      %v4471 = vmul.f32 %v4470, 1.442695
      %v4472 = vpow.pop %v4471
      %v4473 = vadd.f32 %v4472, 1.0
      %v4474 = vrcp.pop %v4473
      %v4475 = vmul.f32 1.0, %v4474
      %v4476 = vtanh.pop %v4462
      %v4477 = vxor.u32 %v4463, 2147483648
      %v4478 = vmul.f32 %v4477, 1.442695
      %v4479 = vpow.pop %v4478
      %v4480 = vadd.f32 %v4479, 1.0
      %v4481 = vrcp.pop %v4480
      %v4482 = vmul.f32 1.0, %v4481
      %v4483 = vmul.f32 %v4475, %v4253
      %v4484 = vmul.f32 %v4469, %v4476
      %v4485 = vadd.f32 %v4483, %v4484
      %v4486 = vtanh.pop %v4485
      %v4487 = vmul.f32 %v4482, %v4486
      %4488 = vst [vmem:[#allocation4] sm:$0xff] %v4487
      %4489 = vst [vmem:[#allocation5] sm:$0xff] %v4485
      %p4490 = scmp.eq.s32.totalorder %s21, 1
      // Predicated region
      $region61: #{rnn_forward.3} parent=55 // pred_check
        %p4491 = pneg %p4490
      $region62: #{rnn_forward.3} parent=55 // pred_check_branch
        %4493 = sbr.rel (%p4491) target = $region64
      $region63: #{rnn_forward.3} parent=55 // pred_region
        %v4494 = vld [vmem:[#allocation2] sm:$0xff]
        %v4495 = vld [vmem:[#allocation6] sm:$0xff]
        %v4496 = vld [vmem:[%s4] sm:$0xff]
        %v4497 = vld [vmem:[%s4 + $0x8] sm:$0xff]
        %v4498 = vld [vmem:[%s4 + $0x10] sm:$0xff]
        %v4499 = vld [vmem:[%s4 + $0x18] sm:$0xff]
        %v4500 = vld [vmem:[%s4 + $0x20] sm:$0xff]
        %v4501 = vld [vmem:[%s4 + $0x28] sm:$0xff]
        %v4502 = vld [vmem:[%s4 + $0x30] sm:$0xff]
        %v4503 = vld [vmem:[%s4 + $0x38] sm:$0xff]
        %v4504 = vld [vmem:[%s4 + $0x40] sm:$0xff]
        %v4505 = vld [vmem:[%s4 + $0x48] sm:$0xff]
        %v4506 = vld [vmem:[%s4 + $0x50] sm:$0xff]
        %v4507 = vld [vmem:[%s4 + $0x58] sm:$0xff]
        %v4508 = vld [vmem:[%s4 + $0x60] sm:$0xff]
        %v4509 = vld [vmem:[%s4 + $0x68] sm:$0xff]
        %v4510 = vld [vmem:[%s4 + $0x70] sm:$0xff]
        %v4511 = vld [vmem:[%s4 + $0x78] sm:$0xff]
        %v4512 = vld [vmem:[%s4 + $0x80] sm:$0xff]
        %v4513 = vld [vmem:[%s4 + $0x88] sm:$0xff]
        %v4514 = vld [vmem:[%s4 + $0x90] sm:$0xff]
        %v4515 = vld [vmem:[%s4 + $0x98] sm:$0xff]
        %v4516 = vld [vmem:[%s4 + $0xa0] sm:$0xff]
        %v4517 = vld [vmem:[%s4 + $0xa8] sm:$0xff]
        %v4518 = vld [vmem:[%s4 + $0xb0] sm:$0xff]
        %v4519 = vld [vmem:[%s4 + $0xb8] sm:$0xff]
        %v4520 = vld [vmem:[%s4 + $0xc0] sm:$0xff]
        %v4521 = vld [vmem:[%s4 + $0xc8] sm:$0xff]
        %v4522 = vld [vmem:[%s4 + $0xd0] sm:$0xff]
        %v4523 = vld [vmem:[%s4 + $0xd8] sm:$0xff]
        %v4524 = vld [vmem:[%s4 + $0xe0] sm:$0xff]
        %v4525 = vld [vmem:[%s4 + $0xe8] sm:$0xff]
        %v4526 = vld [vmem:[%s4 + $0xf0] sm:$0xff]
        %v4527 = vld [vmem:[%s4 + $0xf8] sm:$0xff]
        %v4528 = vld [vmem:[%s5] sm:$0x1]
        %v4530 = vlaneseq
        %v4531 = vshrl.u32 %v4530, 7
        %v4532 = vsub.s32 0, %v4531
        %v4533 = vrot.slane %v4528, %v4532
        %4535 = vmatprep.subr.mxu0 0.0
        %4536 = vmatpush1.msra.mxu0 %v4511
        %4537 = vmatprep.subr.mxu0 0.0
        %4538 = vmatpush1.msra.mxu0 %v4510
        %4539 = vmatprep.subr.mxu0 0.0
        %4540 = vmatpush1.msra.mxu0 %v4509
        %4541 = vmatprep.subr.mxu0 0.0
        %4542 = vmatpush1.msra.mxu0 %v4508
        %4543 = vmatprep.subr.mxu0 0.0
        %4544 = vmatpush1.msra.mxu0 %v4507
        %4545 = vmatprep.subr.mxu0 0.0
        %4546 = vmatpush1.msra.mxu0 %v4506
        %4547 = vmatprep.subr.mxu0 0.0
        %4548 = vmatpush1.msra.mxu0 %v4505
        %4549 = vmatprep.subr.mxu0 0.0
        %4550 = vmatpush1.msra.mxu0 %v4504
        %4551 = vmatprep.subr.mxu0 0.0
        %4552 = vmatpush1.msra.mxu0 %v4503
        %4553 = vmatprep.subr.mxu0 0.0
        %4554 = vmatpush1.msra.mxu0 %v4502
        %4555 = vmatprep.subr.mxu0 0.0
        %4556 = vmatpush1.msra.mxu0 %v4501
        %4557 = vmatprep.subr.mxu0 0.0
        %4558 = vmatpush1.msra.mxu0 %v4500
        %4559 = vmatprep.subr.mxu0 0.0
        %4560 = vmatpush1.msra.mxu0 %v4499
        %4561 = vmatprep.subr.mxu0 0.0
        %4562 = vmatpush1.msra.mxu0 %v4498
        %4563 = vmatprep.subr.mxu0 0.0
        %4564 = vmatpush1.msra.mxu0 %v4497
        %4565 = vmatprep.subr.mxu0 0.0
        %4566 = vmatpush1.msra.mxu0 %v4496
        %4567 = vmatprep.subr.mxu0 0.0
        %4568 = vmatpush2.msra.mxu0 %v4527
        %4569 = vmatprep.subr.mxu0 0.0
        %4570 = vmatpush2.msra.mxu0 %v4526
        %4571 = vmatprep.subr.mxu0 0.0
        %4572 = vmatpush2.msra.mxu0 %v4525
        %4573 = vmatprep.subr.mxu0 0.0
        %4574 = vmatpush2.msra.mxu0 %v4524
        %4575 = vmatprep.subr.mxu0 0.0
        %4576 = vmatpush2.msra.mxu0 %v4523
        %4577 = vmatprep.subr.mxu0 0.0
        %4578 = vmatpush2.msra.mxu0 %v4522
        %4579 = vmatprep.subr.mxu0 0.0
        %4580 = vmatpush2.msra.mxu0 %v4521
        %4581 = vmatprep.subr.mxu0 0.0
        %4582 = vmatpush2.msra.mxu0 %v4520
        %4583 = vmatprep.subr.mxu0 0.0
        %4584 = vmatpush2.msra.mxu0 %v4519
        %4585 = vmatprep.subr.mxu0 0.0
        %4586 = vmatpush2.msra.mxu0 %v4518
        %4587 = vmatprep.subr.mxu0 0.0
        %4588 = vmatpush2.msra.mxu0 %v4517
        %4589 = vmatprep.subr.mxu0 0.0
        %4590 = vmatpush2.msra.mxu0 %v4516
        %4591 = vmatprep.subr.mxu0 0.0
        %4592 = vmatpush2.msra.mxu0 %v4515
        %4593 = vmatprep.subr.mxu0 0.0
        %4594 = vmatpush2.msra.mxu0 %v4514
        %4595 = vmatprep.subr.mxu0 0.0
        %4596 = vmatpush2.msra.mxu0 %v4513
        %4597 = vmatprep.subr.mxu0 0.0
        %4598 = vmatpush2.msra.mxu0 %v4512
        %4599 = vmatprep.mubr.f32.mxu0 %v4495
        %4600 = vmatmul.mubr.f32.gmra.mxu0 %v4494
        %v4601 = vpop.f32.mrf.mxu0
        %v4602 = vadd.f32 %v4533, %v4601
        %v4603 = vpop.f32.mrf.mxu0
        %4604 = vdwg.mxu0
        %s4605 = sld [smem:[#allocation7]]
        %vm4606 = vcmp.ge.f32.partialorder %v4602, 0.0
        %v4607 = vstv %s4605
        %v4608 = vmul.f32 %v4607, %v4602
        %v4609 = vsel %vm4606, %v4602, %v4608
        %v4610 = vlaneseq
        %v4611 = vshrl.u32 %v4610, 7
        %vm4612 = vcmp.lt.s32.totalorder %v4611, 4
        %v4613 = vsel %vm4612, 1, 0
        %v4614 = vcvt.s32.f32 %v4613
        %v4615 = vmul.f32 %v4609, %v4614
        %vm4616 = vcmask 408576
        %v4617 = vsel %vm4616, %v4615, 0.0
        %v4618 = vrot.slane %v4617, 4
        %v4619 = vadd.f32 %v4617, %v4618
        %v4620 = vrot.slane %v4619, 2
        %v4621 = vadd.f32 %v4619, %v4620
        %v4622 = vrot.slane %v4621, 1
        %v4623 = vadd.f32 %v4621, %v4622
        %v4624 = vrcp.pop 4.0
        %v4625 = vmul.f32 %v4623, %v4624
        %v4626 = vsub.f32 %v4609, %v4625
        %v4627 = vmul.f32 %v4626, %v4614
        %v4628 = vmul.f32 %v4627, %v4627
        %v4629 = vsel %vm4616, %v4628, 0.0
        %v4630 = vrot.slane %v4629, 4
        %v4631 = vadd.f32 %v4629, %v4630
        %v4632 = vrot.slane %v4631, 2
        %v4633 = vadd.f32 %v4631, %v4632
        %v4634 = vrot.slane %v4633, 1
        %v4635 = vadd.f32 %v4633, %v4634
        %v4636 = vmul.f32 %v4635, %v4624
        %v4637 = vadd.f32 %v4636, 1e-05
        %v4638 = vrsqrt.pop %v4637
        %v4639 = vmul.f32 %v4626, %v4638
        %v4640 = vld [vmem:[%s7] sm:$0xff]
        %v4641 = vld [vmem:[%s7 + $0x8] sm:$0xff]
        %v4642 = vld [vmem:[%s7 + $0x10] sm:$0xff]
        %v4643 = vld [vmem:[%s7 + $0x18] sm:$0xff]
        %v4644 = vld [vmem:[%s7 + $0x20] sm:$0xff]
        %v4645 = vld [vmem:[%s7 + $0x28] sm:$0xff]
        %v4646 = vld [vmem:[%s7 + $0x30] sm:$0x3]
        %v4647 = vld [vmem:[%s8] sm:$0x1]
        %v4649 = vlaneseq
        %v4650 = vshrl.u32 %v4649, 7
        %v4651 = vsub.s32 0, %v4650
        %v4652 = vrot.slane %v4647, %v4651
        %v4655 = vsel %vm4616, %v4639, 0
        %vm4657 = vcmask 1041408
        %v4659 = vsel %vm4657, %v4646, 0
        %4661 = vmatprep.subr.mxu0 0.0
        %4662 = vmatpush1.msra.mxu0 0.0
        %4663 = vmatprep.subr.mxu0 0.0
        %4664 = vmatpush1.msra.mxu0 0.0
        %4665 = vmatprep.subr.mxu0 0.0
        %4666 = vmatpush1.msra.mxu0 0.0
        %4667 = vmatprep.subr.mxu0 0.0
        %4668 = vmatpush1.msra.mxu0 0.0
        %4669 = vmatprep.subr.mxu0 0.0
        %4670 = vmatpush1.msra.mxu0 0.0
        %4671 = vmatprep.subr.mxu0 0.0
        %4672 = vmatpush1.msra.mxu0 0.0
        %4673 = vmatprep.subr.mxu0 0.0
        %4674 = vmatpush1.msra.mxu0 0.0
        %4675 = vmatprep.subr.mxu0 0.0
        %4676 = vmatpush1.msra.mxu0 0.0
        %4677 = vmatprep.subr.mxu0 0.0
        %4678 = vmatpush1.msra.mxu0 0.0
        %4679 = vmatprep.subr.mxu0 0.0
        %4680 = vmatpush1.msra.mxu0 %v4659
        %4681 = vmatprep.subr.mxu0 0.0
        %4682 = vmatpush1.msra.mxu0 %v4645
        %4683 = vmatprep.subr.mxu0 0.0
        %4684 = vmatpush1.msra.mxu0 %v4644
        %4685 = vmatprep.subr.mxu0 0.0
        %4686 = vmatpush1.msra.mxu0 %v4643
        %4687 = vmatprep.subr.mxu0 0.0
        %4688 = vmatpush1.msra.mxu0 %v4642
        %4689 = vmatprep.subr.mxu0 0.0
        %4690 = vmatpush1.msra.mxu0 %v4641
        %4691 = vmatprep.subr.mxu0 0.0
        %4692 = vmatpush1.msra.mxu0 %v4640
        %4693 = vmatprep.subr.mxu0 0.0
        %4694 = vmatpush2.msra.mxu0 0.0
        %4695 = vmatprep.subr.mxu0 0.0
        %4696 = vmatpush2.msra.mxu0 0.0
        %4697 = vmatprep.subr.mxu0 0.0
        %4698 = vmatpush2.msra.mxu0 0.0
        %4699 = vmatprep.subr.mxu0 0.0
        %4700 = vmatpush2.msra.mxu0 0.0
        %4701 = vmatprep.subr.mxu0 0.0
        %4702 = vmatpush2.msra.mxu0 0.0
        %4703 = vmatprep.subr.mxu0 0.0
        %4704 = vmatpush2.msra.mxu0 0.0
        %4705 = vmatprep.subr.mxu0 0.0
        %4706 = vmatpush2.msra.mxu0 0.0
        %4707 = vmatprep.subr.mxu0 0.0
        %4708 = vmatpush2.msra.mxu0 0.0
        %4709 = vmatprep.subr.mxu0 0.0
        %4710 = vmatpush2.msra.mxu0 0.0
        %4711 = vmatprep.subr.mxu0 0.0
        %4712 = vmatpush2.msra.mxu0 0.0
        %4713 = vmatprep.subr.mxu0 0.0
        %4714 = vmatpush2.msra.mxu0 0.0
        %4715 = vmatprep.subr.mxu0 0.0
        %4716 = vmatpush2.msra.mxu0 0.0
        %4717 = vmatprep.subr.mxu0 0.0
        %4718 = vmatpush2.msra.mxu0 0.0
        %4719 = vmatprep.subr.mxu0 0.0
        %4720 = vmatpush2.msra.mxu0 0.0
        %4721 = vmatprep.subr.mxu0 0.0
        %4722 = vmatpush2.msra.mxu0 0.0
        %4723 = vmatprep.subr.mxu0 0.0
        %4724 = vmatpush2.msra.mxu0 0.0
        %4725 = vmatprep.mubr.f32.mxu0 0.0
        %4726 = vmatmul.mubr.f32.gmra.mxu0 %v4655
        %v4727 = vpop.f32.mrf.mxu0
        %v4728 = vadd.f32 %v4652, %v4727
        %v4729 = vpop.f32.mrf.mxu0
        %4730 = vdwg.mxu0
        %vm4731 = vcmask 31744
        %4732 = vst.msk [vmem:[%s9] sm:$0xff] %vm4731, %v4728
      $region64: #{rnn_forward.3} parent=55 // pred_fallthru
        _
      // Predicated region
      $region65: #{rnn_forward.3} parent=55 // pred_check
        %p4733 = pneg %p235
      $region66: #{rnn_forward.3} parent=55 // pred_check_branch
        %4735 = sbr.rel (%p4733) target = $region68
      $region67: #{rnn_forward.3} parent=55 // pred_region
        _
      $region68: #{rnn_forward.3} parent=55 // pred_fallthru
        _
      // Predicated region
      $region69: #{rnn_forward.3} parent=55 // pred_check
        %p4736 = pneg %p235
      $region70: #{rnn_forward.3} parent=55 // pred_check_branch
        %4738 = sbr.rel (%p4736) target = $region72
      $region71: #{rnn_forward.3} parent=55 // pred_region
        _
      $region72: #{rnn_forward.3} parent=55 // pred_fallthru
        _
    $region56: #{rnn_forward.3} parent=5 // pred_fallthru
      _
    %p4739 = scmp.le.s32.totalorder 2, %s16
    // Predicated region
    $region73: #{rnn_forward.3} parent=5 // pred_check
      %p4740 = pneg %p4739
    $region74: #{rnn_forward.3} parent=5 // pred_check_branch
      %4742 = sbr.rel (%p4740) target = $region76
    $region75: #{rnn_forward.3} parent=5 // pred_region
      %s4743 = ssub.s32 %s16, 2
    $region76: #{rnn_forward.3} parent=5 // pred_fallthru
      _
  $region6: #{rnn_forward.3} parent=0 // loop_footer
    %s20 = sadd.s32 1, %s16
  $region7: #{rnn_forward.3} parent=0 // loop_footer_branch
    %15 = sbr.rel target = $region3
  $region8: #{rnn_forward.3} parent=0 // loop_exit
    _

</llo_original>
